<compile_context>
chip_gen: v5e
topology: v5e:2x2
jax: 0.10.0
libtpu: 0.0.40
codegen_flags: <defaults>
</compile_context>

<pallas_src>
import functools

import jax
import jax.numpy as jnp
import numpy as np
from jax import lax
from jax.experimental import pallas as pl
from jax.experimental.pallas import tpu as pltpu


def _fusion_kernel(u_ref, v_ref,
                   wc1_ref, bc1_ref,
                   wca_ref, wcv_ref, bcat_ref,
                   ws1_ref, bs1_ref,
                   ws2_ref, bs2_ref,
                   o_ref,
                   padc_ref, padr_ref,
                   *, H, W):
    """One batch element of Fusion.forward, fully fused.

    u_ref, v_ref : (1, H, W, C)   NHWC inputs
    wc1_ref      : (9, C, C)      C1 3x3 weights, row k = ky*3 + kx, (Cin, Cout)
    bc1_ref      : (1, C)
    wca_ref      : (C, C)         cat 1x1 weights acting on the C1(u) half
    wcv_ref      : (C, C)         cat 1x1 weights acting on the v half
    bcat_ref     : (1, C)
    ws1_ref      : (9, C, CR)     SCA squeeze 3x3 weights
    bs1_ref      : (1, CR)
    ws2_ref      : (9, CR, C)     SCA expand 3x3 weights
    bs2_ref      : (1, C)
    o_ref        : (1, H*W, C)    output tokens (flattened NHWC)
    padc_ref     : (H+2, W+2, C)  VMEM scratch: zero-padded C-channel image
    padr_ref     : (H+2, W+2, CR) VMEM scratch: zero-padded CR-channel image
    """
    f32 = jnp.float32
    C = u_ref.shape[-1]
    CR = ws1_ref.shape[-1]
    HW = H * W

    # Zero both padded scratches. Only the 1-pixel border has to stay zero
    # (the interior is overwritten below), but the full memset is tiny and
    # stays correct even if the "parallel" grid is sharded across cores.
    padc_ref[...] = jnp.zeros_like(padc_ref)
    padr_ref[...] = jnp.zeros_like(padr_ref)

    # Hoist every weight / bias load once (JAX does not CSE re-broadcasts).
    wc1 = wc1_ref[...].astype(f32)
    wca = wca_ref[...].astype(f32)
    wcv = wcv_ref[...].astype(f32)
    ws1 = ws1_ref[...].astype(f32)
    ws2 = ws2_ref[...].astype(f32)
    bc1 = bc1_ref[...].astype(f32)
    bcat = bcat_ref[...].astype(f32)
    bs1 = bs1_ref[...].astype(f32)
    bs2 = bs2_ref[...].astype(f32)

    def conv3x3(pad_ref, w9, bias_row, n_in, n_out):
        # 3x3 / stride 1 / pad 1 conv as 9 shifted-tap matmuls on the MXU.
        # TODO(synk): kx = 1, 2 taps are sublane-misaligned slices; a
        # pltpu.roll-based shift would move that work onto the XLU.
        acc = jnp.zeros((HW, n_out), f32)
        for ky in range(3):
            for kx in range(3):
                patch = pad_ref[ky:ky + H, kx:kx + W, :].astype(f32)
                acc = acc + jnp.dot(patch.reshape(HW, n_in), w9[ky * 3 + kx],
                                    preferred_element_type=f32)
        return acc + bias_row

    # ---- a = C1(u): 3x3 conv, C -> C ---------------------------------------
    padc_ref[1:H + 1, 1:W + 1, :] = u_ref[0].astype(f32)
    a = conv3x3(padc_ref, wc1, bc1, C, C)                       # (HW, C)

    # ---- x = cat(concat([C1(u), v], channel)): 1x1 conv 2C -> C ------------
    # The 1x1 conv over the channel-concat is split into two matmuls against
    # the two C-wide halves of the weight (avoids an in-kernel lane concat).
    vflat = v_ref[0].astype(f32).reshape(HW, C)
    x = (jnp.dot(a, wca, preferred_element_type=f32)
         + jnp.dot(vflat, wcv, preferred_element_type=f32)
         + bcat)                                                # (HW, C)

    # ---- SCA squeeze: 3x3 conv C -> CR, then ReLU ---------------------------
    # Re-spatialize x into the padded scratch row by row (keeps every value
    # reshape in the proven "merge into sublane" direction).
    for h in range(H):
        padc_ref[h + 1, 1:W + 1, :] = x[h * W:(h + 1) * W, :]
    t = conv3x3(padc_ref, ws1, bs1, C, CR)                      # (HW, CR)
    t = jnp.maximum(t, 0.0)

    # ---- SCA expand: 3x3 conv CR -> C, then sigmoid -------------------------
    for h in range(H):
        padr_ref[h + 1, 1:W + 1, :] = t[h * W:(h + 1) * W, :]
    z = conv3x3(padr_ref, ws2, bs2, CR, C)                      # (HW, C)
    y = 1.0 / (1.0 + jnp.exp(-z))                               # sigmoid (EUP)

    # ---- result = SCA(x) * x ------------------------------------------------
    o_ref[0] = (y * x).astype(o_ref.dtype)


def fusion_forward(u_nchw, v_nchw, params):
    """Fusion.forward: u, v are (B, C, H, W); returns (B, C, H, W)."""
    B, C, H, W = u_nchw.shape
    assert v_nchw.shape == (B, C, H, W)
    CR = params["s1_w"].shape[0]
    HW = H * W

    # NCHW -> NHWC (channels on the TPU lane axis).
    u_nhwc = jnp.transpose(u_nchw, (0, 2, 3, 1))
    v_nhwc = jnp.transpose(v_nchw, (0, 2, 3, 1))

    def conv3x3_w(w):
        # PyTorch (Cout, Cin, 3, 3) -> (9, Cin, Cout), row k = ky*3 + kx.
        return jnp.transpose(w, (2, 3, 1, 0)).reshape(9, w.shape[1], w.shape[0])

    wc1 = conv3x3_w(params["c1_w"])
    bc1 = params["c1_b"].reshape(1, C)
    wcat = params["cat_w"][:, :, 0, 0]            # (C, 2C)
    wca = wcat[:, :C].T                           # (Cin, Cout) for the C1(u) half
    wcv = wcat[:, C:].T                           # (Cin, Cout) for the v half
    bcat = params["cat_b"].reshape(1, C)
    ws1 = conv3x3_w(params["s1_w"])               # (9, C, CR)
    bs1 = params["s1_b"].reshape(1, CR)
    ws2 = conv3x3_w(params["s2_w"])               # (9, CR, C)
    bs2 = params["s2_b"].reshape(1, C)

    kernel = functools.partial(_fusion_kernel, H=H, W=W)

    matmul_flops = 2 * B * HW * (9 * C * C + 2 * C * C + 9 * C * CR + 9 * CR * C)
    bytes_io = 4 * (3 * B * HW * C                                      # u, v, out
                    + 9 * C * C + 2 * C * C + 9 * C * CR + 9 * CR * C   # weights
                    + 3 * C + CR)                                       # biases
    cost = pl.CostEstimate(flops=matmul_flops,
                           transcendentals=B * HW * C,                  # sigmoid exp
                           bytes_accessed=bytes_io)

    out = pl.pallas_call(
        kernel,
        out_shape=jax.ShapeDtypeStruct((B, HW, C), u_nchw.dtype),
        grid=(B,),
        in_specs=[
            pl.BlockSpec((1, H, W, C), lambda i: (i, 0, 0, 0)),   # u
            pl.BlockSpec((1, H, W, C), lambda i: (i, 0, 0, 0)),   # v
            pl.BlockSpec((9, C, C), lambda i: (0, 0, 0)),         # wc1
            pl.BlockSpec((1, C), lambda i: (0, 0)),               # bc1
            pl.BlockSpec((C, C), lambda i: (0, 0)),               # wca
            pl.BlockSpec((C, C), lambda i: (0, 0)),               # wcv
            pl.BlockSpec((1, C), lambda i: (0, 0)),               # bcat
            pl.BlockSpec((9, C, CR), lambda i: (0, 0, 0)),        # ws1
            pl.BlockSpec((1, CR), lambda i: (0, 0)),              # bs1
            pl.BlockSpec((9, CR, C), lambda i: (0, 0, 0)),        # ws2
            pl.BlockSpec((1, C), lambda i: (0, 0)),               # bs2
        ],
        out_specs=pl.BlockSpec((1, HW, C), lambda i: (i, 0, 0)),
        scratch_shapes=[
            pltpu.VMEM((H + 2, W + 2, C), jnp.float32),
            pltpu.VMEM((H + 2, W + 2, CR), jnp.float32),
        ],
        compiler_params=pltpu.CompilerParams(
            dimension_semantics=("parallel",)),
        cost_estimate=cost,
    )(u_nhwc, v_nhwc, wc1, bc1, wca, wcv, bcat, ws1, bs1, ws2, bs2)

    # (B, H*W, C) -> (B, C, H, W)
    return out.reshape(B, H, W, C).transpose(0, 3, 1, 2)


# ---------------- pure-JAX reference (NCHW, mirrors PyTorch) -----------------
def _conv2d_nchw(x, w, b, pad):
    y = lax.conv_general_dilated(
        x, w, window_strides=(1, 1), padding=((pad, pad), (pad, pad)),
        dimension_numbers=("NCHW", "OIHW", "NCHW"))
    return y + b[None, :, None, None]


def fusion_ref(u, v, params):
    a = _conv2d_nchw(u, params["c1_w"], params["c1_b"], 1)              # C1
    x = _conv2d_nchw(jnp.concatenate([a, v], axis=1),
                     params["cat_w"], params["cat_b"], 0)               # cat 1x1
    t = jnp.maximum(_conv2d_nchw(x, params["s1_w"], params["s1_b"], 1), 0.0)
    y = jax.nn.sigmoid(_conv2d_nchw(t, params["s2_w"], params["s2_b"], 1))
    return y * x                                                        # SCA gate


# ------------------------------------------------------------------------------
if __name__ == "__main__":
    # Small Fusion(channel=32) on a 16x16 feature map (SCA reduction = 16).
    B, C, H, W = 2, 32, 16, 16
    reduction = 16
    CR = C // reduction

    key = jax.random.PRNGKey(0)
    ks = jax.random.split(key, 10)
    u = jax.random.normal(ks[0], (B, C, H, W), jnp.float32)
    v = jax.random.normal(ks[1], (B, C, H, W), jnp.float32)
    params = {
        "c1_w": 0.1 * jax.random.normal(ks[2], (C, C, 3, 3), jnp.float32),
        "c1_b": 0.1 * jax.random.normal(ks[3], (C,), jnp.float32),
        "cat_w": 0.1 * jax.random.normal(ks[4], (C, 2 * C, 1, 1), jnp.float32),
        "cat_b": 0.1 * jax.random.normal(ks[5], (C,), jnp.float32),
        "s1_w": 0.1 * jax.random.normal(ks[6], (CR, C, 3, 3), jnp.float32),
        "s1_b": 0.1 * jax.random.normal(ks[7], (CR,), jnp.float32),
        "s2_w": 0.1 * jax.random.normal(ks[8], (C, CR, 3, 3), jnp.float32),
        "s2_b": 0.1 * jax.random.normal(ks[9], (C,), jnp.float32),
    }

    out = fusion_forward(u, v, params)
    jax.block_until_ready(out)

    ref = fusion_ref(u, v, params)
    np.testing.assert_allclose(np.asarray(out), np.asarray(ref),
                               rtol=2e-3, atol=2e-4)
    assert out.shape == (B, C, H, W)
    print("KERNEL_OK")
</pallas_src>

<mosaic_0001>
module attributes {stable_mosaic.version = 11 : i64} {
  func.func @_fusion_kernel(%arg0: i32, %arg1: memref<1x16x16x32xf32, #tpu.memory_space<vmem>>, %arg2: memref<1x16x16x32xf32, #tpu.memory_space<vmem>>, %arg3: memref<9x32x32xf32, #tpu.memory_space<vmem>>, %arg4: memref<1x32xf32, #tpu.memory_space<vmem>>, %arg5: memref<32x32xf32, #tpu.memory_space<vmem>>, %arg6: memref<32x32xf32, #tpu.memory_space<vmem>>, %arg7: memref<1x32xf32, #tpu.memory_space<vmem>>, %arg8: memref<9x32x2xf32, #tpu.memory_space<vmem>>, %arg9: memref<1x2xf32, #tpu.memory_space<vmem>>, %arg10: memref<9x2x32xf32, #tpu.memory_space<vmem>>, %arg11: memref<1x32xf32, #tpu.memory_space<vmem>>, %arg12: memref<1x256x32xf32, #tpu.memory_space<vmem>>, %arg13: memref<18x18x32xf32, #tpu.memory_space<vmem>>, %arg14: memref<18x18x2xf32, #tpu.memory_space<vmem>>) attributes {dimension_semantics = [#tpu.dimension_semantics<parallel>], iteration_bounds = array<i64: 2>, scalar_prefetch = 0 : i64, scratch_operands = 2 : i64, tpu.core_type = #tpu.core_type<tc>, window_params = [{transform_indices = @transform_0, window_bounds = array<i64: 1, 16, 16, 32>}, {transform_indices = @transform_1, window_bounds = array<i64: 1, 16, 16, 32>}, {pipeline_mode = #tpu.pipeline_mode<synchronous>, transform_indices = @transform_2, window_bounds = array<i64: 9, 32, 32>}, {pipeline_mode = #tpu.pipeline_mode<synchronous>, transform_indices = @transform_3, window_bounds = array<i64: 1, 32>}, {pipeline_mode = #tpu.pipeline_mode<synchronous>, transform_indices = @transform_4, window_bounds = array<i64: 32, 32>}, {pipeline_mode = #tpu.pipeline_mode<synchronous>, transform_indices = @transform_5, window_bounds = array<i64: 32, 32>}, {pipeline_mode = #tpu.pipeline_mode<synchronous>, transform_indices = @transform_6, window_bounds = array<i64: 1, 32>}, {pipeline_mode = #tpu.pipeline_mode<synchronous>, transform_indices = @transform_7, window_bounds = array<i64: 9, 32, 2>}, {pipeline_mode = #tpu.pipeline_mode<synchronous>, transform_indices = @transform_8, window_bounds = array<i64: 1, 2>}, {pipeline_mode = #tpu.pipeline_mode<synchronous>, transform_indices = @transform_9, window_bounds = array<i64: 9, 2, 32>}, {pipeline_mode = #tpu.pipeline_mode<synchronous>, transform_indices = @transform_10, window_bounds = array<i64: 1, 32>}, {transform_indices = @transform_11, window_bounds = array<i64: 1, 256, 32>}]} {
    %cst = arith.constant 0.000000e+00 : f32
    %0 = vector.broadcast %cst : f32 to vector<18x18x32xf32>
    %c0 = arith.constant 0 : index
    %c0_0 = arith.constant 0 : index
    %c0_1 = arith.constant 0 : index
    %1 = vector.load %arg13[%c0, %c0_0, %c0_1] : memref<18x18x32xf32, #tpu.memory_space<vmem>>, vector<18x18x32xf32>
    tpu.vector_store %arg13[%c0, %c0_0, %c0_1], %0 {strides = array<i32>} : memref<18x18x32xf32, #tpu.memory_space<vmem>>, vector<18x18x32xf32>,
    %cst_2 = arith.constant 0.000000e+00 : f32
    %2 = vector.broadcast %cst_2 : f32 to vector<18x18x2xf32>
    %c0_3 = arith.constant 0 : index
    %c0_4 = arith.constant 0 : index
    %c0_5 = arith.constant 0 : index
    %3 = vector.load %arg14[%c0_3, %c0_4, %c0_5] : memref<18x18x2xf32, #tpu.memory_space<vmem>>, vector<18x18x2xf32>
    tpu.vector_store %arg14[%c0_3, %c0_4, %c0_5], %2 {strides = array<i32>} : memref<18x18x2xf32, #tpu.memory_space<vmem>>, vector<18x18x2xf32>,
    %c0_6 = arith.constant 0 : index
    %c0_7 = arith.constant 0 : index
    %c0_8 = arith.constant 0 : index
    %4 = vector.load %arg3[%c0_6, %c0_7, %c0_8] : memref<9x32x32xf32, #tpu.memory_space<vmem>>, vector<9x32x32xf32>
    %c0_9 = arith.constant 0 : index
    %c0_10 = arith.constant 0 : index
    %5 = vector.load %arg5[%c0_9, %c0_10] : memref<32x32xf32, #tpu.memory_space<vmem>>, vector<32x32xf32>
    %c0_11 = arith.constant 0 : index
    %c0_12 = arith.constant 0 : index
    %6 = vector.load %arg6[%c0_11, %c0_12] : memref<32x32xf32, #tpu.memory_space<vmem>>, vector<32x32xf32>
    %c0_13 = arith.constant 0 : index
    %c0_14 = arith.constant 0 : index
    %c0_15 = arith.constant 0 : index
    %7 = vector.load %arg8[%c0_13, %c0_14, %c0_15] : memref<9x32x2xf32, #tpu.memory_space<vmem>>, vector<9x32x2xf32>
    %c0_16 = arith.constant 0 : index
    %c0_17 = arith.constant 0 : index
    %c0_18 = arith.constant 0 : index
    %8 = vector.load %arg10[%c0_16, %c0_17, %c0_18] : memref<9x2x32xf32, #tpu.memory_space<vmem>>, vector<9x2x32xf32>
    %c0_19 = arith.constant 0 : index
    %c0_20 = arith.constant 0 : index
    %9 = vector.load %arg4[%c0_19, %c0_20] : memref<1x32xf32, #tpu.memory_space<vmem>>, vector<1x32xf32>
    %c0_21 = arith.constant 0 : index
    %c0_22 = arith.constant 0 : index
    %10 = vector.load %arg7[%c0_21, %c0_22] : memref<1x32xf32, #tpu.memory_space<vmem>>, vector<1x32xf32>
    %c0_23 = arith.constant 0 : index
    %c0_24 = arith.constant 0 : index
    %11 = vector.load %arg9[%c0_23, %c0_24] : memref<1x2xf32, #tpu.memory_space<vmem>>, vector<1x2xf32>
    %c0_25 = arith.constant 0 : index
    %c0_26 = arith.constant 0 : index
    %12 = vector.load %arg11[%c0_25, %c0_26] : memref<1x32xf32, #tpu.memory_space<vmem>>, vector<1x32xf32>
    %c0_27 = arith.constant 0 : index
    %c0_28 = arith.constant 0 : index
    %c0_29 = arith.constant 0 : index
    %c0_30 = arith.constant 0 : index
    %13 = vector.load %arg1[%c0_27, %c0_28, %c0_29, %c0_30] : memref<1x16x16x32xf32, #tpu.memory_space<vmem>>, vector<1x16x16x32xf32>
    %14 = vector.shape_cast %13 : vector<1x16x16x32xf32> to vector<16x16x32xf32>
    %c1 = arith.constant 1 : index
    %c1_31 = arith.constant 1 : index
    %c0_32 = arith.constant 0 : index
    %15 = vector.load %arg13[%c1, %c1_31, %c0_32] : memref<18x18x32xf32, #tpu.memory_space<vmem>>, vector<16x16x32xf32>
    tpu.vector_store %arg13[%c1, %c1_31, %c0_32], %14 {strides = array<i32>} : memref<18x18x32xf32, #tpu.memory_space<vmem>>, vector<16x16x32xf32>,
    %cst_33 = arith.constant 0.000000e+00 : f32
    %16 = vector.broadcast %cst_33 : f32 to vector<256x32xf32>
    %c0_34 = arith.constant 0 : index
    %c0_35 = arith.constant 0 : index
    %c0_36 = arith.constant 0 : index
    %17 = vector.load %arg13[%c0_34, %c0_35, %c0_36] : memref<18x18x32xf32, #tpu.memory_space<vmem>>, vector<16x16x32xf32>
    %18 = vector.shape_cast %17 : vector<16x16x32xf32> to vector<256x32xf32>
    %19 = vector.extract_strided_slice %4 {offsets = [0, 0, 0], sizes = [1, 32, 32], strides = [1, 1, 1]} : vector<9x32x32xf32> to vector<1x32x32xf32>
    %20 = vector.shape_cast %19 : vector<1x32x32xf32> to vector<32x32xf32>
    %cst_37 = arith.constant dense<0.000000e+00> : vector<256x32xf32>
    %21 = tpu.matmul %18, %20, %cst_37 {dimension_numbers = #tpu.dot_dimension_numbers<[1], [0], [0], [1], [0, 0, 1, 1], [], []>} : vector<256x32xf32>, vector<32x32xf32>, vector<256x32xf32> -> vector<256x32xf32>
    %22 = arith.addf %16, %21 : vector<256x32xf32>
    %c0_38 = arith.constant 0 : index
    %c1_39 = arith.constant 1 : index
    %c0_40 = arith.constant 0 : index
    %23 = vector.load %arg13[%c0_38, %c1_39, %c0_40] : memref<18x18x32xf32, #tpu.memory_space<vmem>>, vector<16x16x32xf32>
    %24 = vector.shape_cast %23 : vector<16x16x32xf32> to vector<256x32xf32>
    %25 = vector.extract_strided_slice %4 {offsets = [1, 0, 0], sizes = [1, 32, 32], strides = [1, 1, 1]} : vector<9x32x32xf32> to vector<1x32x32xf32>
    %26 = vector.shape_cast %25 : vector<1x32x32xf32> to vector<32x32xf32>
    %cst_41 = arith.constant dense<0.000000e+00> : vector<256x32xf32>
    %27 = tpu.matmul %24, %26, %cst_41 {dimension_numbers = #tpu.dot_dimension_numbers<[1], [0], [0], [1], [0, 0, 1, 1], [], []>} : vector<256x32xf32>, vector<32x32xf32>, vector<256x32xf32> -> vector<256x32xf32>
    %28 = arith.addf %22, %27 : vector<256x32xf32>
    %c0_42 = arith.constant 0 : index
    %c2 = arith.constant 2 : index
    %c0_43 = arith.constant 0 : index
    %29 = vector.load %arg13[%c0_42, %c2, %c0_43] : memref<18x18x32xf32, #tpu.memory_space<vmem>>, vector<16x16x32xf32>
    %30 = vector.shape_cast %29 : vector<16x16x32xf32> to vector<256x32xf32>
    %31 = vector.extract_strided_slice %4 {offsets = [2, 0, 0], sizes = [1, 32, 32], strides = [1, 1, 1]} : vector<9x32x32xf32> to vector<1x32x32xf32>
    %32 = vector.shape_cast %31 : vector<1x32x32xf32> to vector<32x32xf32>
    %cst_44 = arith.constant dense<0.000000e+00> : vector<256x32xf32>
    %33 = tpu.matmul %30, %32, %cst_44 {dimension_numbers = #tpu.dot_dimension_numbers<[1], [0], [0], [1], [0, 0, 1, 1], [], []>} : vector<256x32xf32>, vector<32x32xf32>, vector<256x32xf32> -> vector<256x32xf32>
    %34 = arith.addf %28, %33 : vector<256x32xf32>
    %c1_45 = arith.constant 1 : index
    %c0_46 = arith.constant 0 : index
    %c0_47 = arith.constant 0 : index
    %35 = vector.load %arg13[%c1_45, %c0_46, %c0_47] : memref<18x18x32xf32, #tpu.memory_space<vmem>>, vector<16x16x32xf32>
    %36 = vector.shape_cast %35 : vector<16x16x32xf32> to vector<256x32xf32>
    %37 = vector.extract_strided_slice %4 {offsets = [3, 0, 0], sizes = [1, 32, 32], strides = [1, 1, 1]} : vector<9x32x32xf32> to vector<1x32x32xf32>
    %38 = vector.shape_cast %37 : vector<1x32x32xf32> to vector<32x32xf32>
    %cst_48 = arith.constant dense<0.000000e+00> : vector<256x32xf32>
    %39 = tpu.matmul %36, %38, %cst_48 {dimension_numbers = #tpu.dot_dimension_numbers<[1], [0], [0], [1], [0, 0, 1, 1], [], []>} : vector<256x32xf32>, vector<32x32xf32>, vector<256x32xf32> -> vector<256x32xf32>
    %40 = arith.addf %34, %39 : vector<256x32xf32>
    %c1_49 = arith.constant 1 : index
    %c1_50 = arith.constant 1 : index
    %c0_51 = arith.constant 0 : index
    %41 = vector.load %arg13[%c1_49, %c1_50, %c0_51] : memref<18x18x32xf32, #tpu.memory_space<vmem>>, vector<16x16x32xf32>
    %42 = vector.shape_cast %41 : vector<16x16x32xf32> to vector<256x32xf32>
    %43 = vector.extract_strided_slice %4 {offsets = [4, 0, 0], sizes = [1, 32, 32], strides = [1, 1, 1]} : vector<9x32x32xf32> to vector<1x32x32xf32>
    %44 = vector.shape_cast %43 : vector<1x32x32xf32> to vector<32x32xf32>
    %cst_52 = arith.constant dense<0.000000e+00> : vector<256x32xf32>
    %45 = tpu.matmul %42, %44, %cst_52 {dimension_numbers = #tpu.dot_dimension_numbers<[1], [0], [0], [1], [0, 0, 1, 1], [], []>} : vector<256x32xf32>, vector<32x32xf32>, vector<256x32xf32> -> vector<256x32xf32>
    %46 = arith.addf %40, %45 : vector<256x32xf32>
    %c1_53 = arith.constant 1 : index
    %c2_54 = arith.constant 2 : index
    %c0_55 = arith.constant 0 : index
    %47 = vector.load %arg13[%c1_53, %c2_54, %c0_55] : memref<18x18x32xf32, #tpu.memory_space<vmem>>, vector<16x16x32xf32>
    %48 = vector.shape_cast %47 : vector<16x16x32xf32> to vector<256x32xf32>
    %49 = vector.extract_strided_slice %4 {offsets = [5, 0, 0], sizes = [1, 32, 32], strides = [1, 1, 1]} : vector<9x32x32xf32> to vector<1x32x32xf32>
    %50 = vector.shape_cast %49 : vector<1x32x32xf32> to vector<32x32xf32>
    %cst_56 = arith.constant dense<0.000000e+00> : vector<256x32xf32>
    %51 = tpu.matmul %48, %50, %cst_56 {dimension_numbers = #tpu.dot_dimension_numbers<[1], [0], [0], [1], [0, 0, 1, 1], [], []>} : vector<256x32xf32>, vector<32x32xf32>, vector<256x32xf32> -> vector<256x32xf32>
    %52 = arith.addf %46, %51 : vector<256x32xf32>
    %c2_57 = arith.constant 2 : index
    %c0_58 = arith.constant 0 : index
    %c0_59 = arith.constant 0 : index
    %53 = vector.load %arg13[%c2_57, %c0_58, %c0_59] : memref<18x18x32xf32, #tpu.memory_space<vmem>>, vector<16x16x32xf32>
    %54 = vector.shape_cast %53 : vector<16x16x32xf32> to vector<256x32xf32>
    %55 = vector.extract_strided_slice %4 {offsets = [6, 0, 0], sizes = [1, 32, 32], strides = [1, 1, 1]} : vector<9x32x32xf32> to vector<1x32x32xf32>
    %56 = vector.shape_cast %55 : vector<1x32x32xf32> to vector<32x32xf32>
    %cst_60 = arith.constant dense<0.000000e+00> : vector<256x32xf32>
    %57 = tpu.matmul %54, %56, %cst_60 {dimension_numbers = #tpu.dot_dimension_numbers<[1], [0], [0], [1], [0, 0, 1, 1], [], []>} : vector<256x32xf32>, vector<32x32xf32>, vector<256x32xf32> -> vector<256x32xf32>
    %58 = arith.addf %52, %57 : vector<256x32xf32>
    %c2_61 = arith.constant 2 : index
    %c1_62 = arith.constant 1 : index
    %c0_63 = arith.constant 0 : index
    %59 = vector.load %arg13[%c2_61, %c1_62, %c0_63] : memref<18x18x32xf32, #tpu.memory_space<vmem>>, vector<16x16x32xf32>
    %60 = vector.shape_cast %59 : vector<16x16x32xf32> to vector<256x32xf32>
    %61 = vector.extract_strided_slice %4 {offsets = [7, 0, 0], sizes = [1, 32, 32], strides = [1, 1, 1]} : vector<9x32x32xf32> to vector<1x32x32xf32>
    %62 = vector.shape_cast %61 : vector<1x32x32xf32> to vector<32x32xf32>
    %cst_64 = arith.constant dense<0.000000e+00> : vector<256x32xf32>
    %63 = tpu.matmul %60, %62, %cst_64 {dimension_numbers = #tpu.dot_dimension_numbers<[1], [0], [0], [1], [0, 0, 1, 1], [], []>} : vector<256x32xf32>, vector<32x32xf32>, vector<256x32xf32> -> vector<256x32xf32>
    %64 = arith.addf %58, %63 : vector<256x32xf32>
    %c2_65 = arith.constant 2 : index
    %c2_66 = arith.constant 2 : index
    %c0_67 = arith.constant 0 : index
    %65 = vector.load %arg13[%c2_65, %c2_66, %c0_67] : memref<18x18x32xf32, #tpu.memory_space<vmem>>, vector<16x16x32xf32>
    %66 = vector.shape_cast %65 : vector<16x16x32xf32> to vector<256x32xf32>
    %67 = vector.extract_strided_slice %4 {offsets = [8, 0, 0], sizes = [1, 32, 32], strides = [1, 1, 1]} : vector<9x32x32xf32> to vector<1x32x32xf32>
    %68 = vector.shape_cast %67 : vector<1x32x32xf32> to vector<32x32xf32>
    %cst_68 = arith.constant dense<0.000000e+00> : vector<256x32xf32>
    %69 = tpu.matmul %66, %68, %cst_68 {dimension_numbers = #tpu.dot_dimension_numbers<[1], [0], [0], [1], [0, 0, 1, 1], [], []>} : vector<256x32xf32>, vector<32x32xf32>, vector<256x32xf32> -> vector<256x32xf32>
    %70 = arith.addf %64, %69 : vector<256x32xf32>
    %71 = vector.broadcast %9 : vector<1x32xf32> to vector<256x32xf32>
    %72 = arith.addf %70, %71 : vector<256x32xf32>
    %c0_69 = arith.constant 0 : index
    %c0_70 = arith.constant 0 : index
    %c0_71 = arith.constant 0 : index
    %c0_72 = arith.constant 0 : index
    %73 = vector.load %arg2[%c0_69, %c0_70, %c0_71, %c0_72] : memref<1x16x16x32xf32, #tpu.memory_space<vmem>>, vector<1x16x16x32xf32>
    %74 = vector.shape_cast %73 : vector<1x16x16x32xf32> to vector<16x16x32xf32>
    %75 = vector.shape_cast %74 : vector<16x16x32xf32> to vector<256x32xf32>
    %cst_73 = arith.constant dense<0.000000e+00> : vector<256x32xf32>
    %76 = tpu.matmul %72, %5, %cst_73 {dimension_numbers = #tpu.dot_dimension_numbers<[1], [0], [0], [1], [0, 0, 1, 1], [], []>} : vector<256x32xf32>, vector<32x32xf32>, vector<256x32xf32> -> vector<256x32xf32>
    %cst_74 = arith.constant dense<0.000000e+00> : vector<256x32xf32>
    %77 = tpu.matmul %75, %6, %cst_74 {dimension_numbers = #tpu.dot_dimension_numbers<[1], [0], [0], [1], [0, 0, 1, 1], [], []>} : vector<256x32xf32>, vector<32x32xf32>, vector<256x32xf32> -> vector<256x32xf32>
    %78 = arith.addf %76, %77 : vector<256x32xf32>
    %79 = vector.broadcast %10 : vector<1x32xf32> to vector<256x32xf32>
    %80 = arith.addf %78, %79 : vector<256x32xf32>
    %81 = vector.extract_strided_slice %80 {offsets = [0, 0], sizes = [16, 32], strides = [1, 1]} : vector<256x32xf32> to vector<16x32xf32>
    %c1_75 = arith.constant 1 : index
    %c1_76 = arith.constant 1 : index
    %c0_77 = arith.constant 0 : index
    %82 = vector.load %arg13[%c1_75, %c1_76, %c0_77] : memref<18x18x32xf32, #tpu.memory_space<vmem>>, vector<1x16x32xf32>
    %83 = vector.shape_cast %82 : vector<1x16x32xf32> to vector<16x32xf32>
    %84 = vector.shape_cast %81 : vector<16x32xf32> to vector<1x16x32xf32>
    tpu.vector_store %arg13[%c1_75, %c1_76, %c0_77], %84 {strides = array<i32>} : memref<18x18x32xf32, #tpu.memory_space<vmem>>, vector<1x16x32xf32>,
    %85 = vector.extract_strided_slice %80 {offsets = [16, 0], sizes = [16, 32], strides = [1, 1]} : vector<256x32xf32> to vector<16x32xf32>
    %c2_78 = arith.constant 2 : index
    %c1_79 = arith.constant 1 : index
    %c0_80 = arith.constant 0 : index
    %86 = vector.load %arg13[%c2_78, %c1_79, %c0_80] : memref<18x18x32xf32, #tpu.memory_space<vmem>>, vector<1x16x32xf32>
    %87 = vector.shape_cast %86 : vector<1x16x32xf32> to vector<16x32xf32>
    %88 = vector.shape_cast %85 : vector<16x32xf32> to vector<1x16x32xf32>
    tpu.vector_store %arg13[%c2_78, %c1_79, %c0_80], %88 {strides = array<i32>} : memref<18x18x32xf32, #tpu.memory_space<vmem>>, vector<1x16x32xf32>,
    %89 = vector.extract_strided_slice %80 {offsets = [32, 0], sizes = [16, 32], strides = [1, 1]} : vector<256x32xf32> to vector<16x32xf32>
    %c3 = arith.constant 3 : index
    %c1_81 = arith.constant 1 : index
    %c0_82 = arith.constant 0 : index
    %90 = vector.load %arg13[%c3, %c1_81, %c0_82] : memref<18x18x32xf32, #tpu.memory_space<vmem>>, vector<1x16x32xf32>
    %91 = vector.shape_cast %90 : vector<1x16x32xf32> to vector<16x32xf32>
    %92 = vector.shape_cast %89 : vector<16x32xf32> to vector<1x16x32xf32>
    tpu.vector_store %arg13[%c3, %c1_81, %c0_82], %92 {strides = array<i32>} : memref<18x18x32xf32, #tpu.memory_space<vmem>>, vector<1x16x32xf32>,
    %93 = vector.extract_strided_slice %80 {offsets = [48, 0], sizes = [16, 32], strides = [1, 1]} : vector<256x32xf32> to vector<16x32xf32>
    %c4 = arith.constant 4 : index
    %c1_83 = arith.constant 1 : index
    %c0_84 = arith.constant 0 : index
    %94 = vector.load %arg13[%c4, %c1_83, %c0_84] : memref<18x18x32xf32, #tpu.memory_space<vmem>>, vector<1x16x32xf32>
    %95 = vector.shape_cast %94 : vector<1x16x32xf32> to vector<16x32xf32>
    %96 = vector.shape_cast %93 : vector<16x32xf32> to vector<1x16x32xf32>
    tpu.vector_store %arg13[%c4, %c1_83, %c0_84], %96 {strides = array<i32>} : memref<18x18x32xf32, #tpu.memory_space<vmem>>, vector<1x16x32xf32>,
    %97 = vector.extract_strided_slice %80 {offsets = [64, 0], sizes = [16, 32], strides = [1, 1]} : vector<256x32xf32> to vector<16x32xf32>
    %c5 = arith.constant 5 : index
    %c1_85 = arith.constant 1 : index
    %c0_86 = arith.constant 0 : index
    %98 = vector.load %arg13[%c5, %c1_85, %c0_86] : memref<18x18x32xf32, #tpu.memory_space<vmem>>, vector<1x16x32xf32>
    %99 = vector.shape_cast %98 : vector<1x16x32xf32> to vector<16x32xf32>
    %100 = vector.shape_cast %97 : vector<16x32xf32> to vector<1x16x32xf32>
    tpu.vector_store %arg13[%c5, %c1_85, %c0_86], %100 {strides = array<i32>} : memref<18x18x32xf32, #tpu.memory_space<vmem>>, vector<1x16x32xf32>,
    %101 = vector.extract_strided_slice %80 {offsets = [80, 0], sizes = [16, 32], strides = [1, 1]} : vector<256x32xf32> to vector<16x32xf32>
    %c6 = arith.constant 6 : index
    %c1_87 = arith.constant 1 : index
    %c0_88 = arith.constant 0 : index
    %102 = vector.load %arg13[%c6, %c1_87, %c0_88] : memref<18x18x32xf32, #tpu.memory_space<vmem>>, vector<1x16x32xf32>
    %103 = vector.shape_cast %102 : vector<1x16x32xf32> to vector<16x32xf32>
    %104 = vector.shape_cast %101 : vector<16x32xf32> to vector<1x16x32xf32>
    tpu.vector_store %arg13[%c6, %c1_87, %c0_88], %104 {strides = array<i32>} : memref<18x18x32xf32, #tpu.memory_space<vmem>>, vector<1x16x32xf32>,
    %105 = vector.extract_strided_slice %80 {offsets = [96, 0], sizes = [16, 32], strides = [1, 1]} : vector<256x32xf32> to vector<16x32xf32>
    %c7 = arith.constant 7 : index
    %c1_89 = arith.constant 1 : index
    %c0_90 = arith.constant 0 : index
    %106 = vector.load %arg13[%c7, %c1_89, %c0_90] : memref<18x18x32xf32, #tpu.memory_space<vmem>>, vector<1x16x32xf32>
    %107 = vector.shape_cast %106 : vector<1x16x32xf32> to vector<16x32xf32>
    %108 = vector.shape_cast %105 : vector<16x32xf32> to vector<1x16x32xf32>
    tpu.vector_store %arg13[%c7, %c1_89, %c0_90], %108 {strides = array<i32>} : memref<18x18x32xf32, #tpu.memory_space<vmem>>, vector<1x16x32xf32>,
    %109 = vector.extract_strided_slice %80 {offsets = [112, 0], sizes = [16, 32], strides = [1, 1]} : vector<256x32xf32> to vector<16x32xf32>
    %c8 = arith.constant 8 : index
    %c1_91 = arith.constant 1 : index
    %c0_92 = arith.constant 0 : index
    %110 = vector.load %arg13[%c8, %c1_91, %c0_92] : memref<18x18x32xf32, #tpu.memory_space<vmem>>, vector<1x16x32xf32>
    %111 = vector.shape_cast %110 : vector<1x16x32xf32> to vector<16x32xf32>
    %112 = vector.shape_cast %109 : vector<16x32xf32> to vector<1x16x32xf32>
    tpu.vector_store %arg13[%c8, %c1_91, %c0_92], %112 {strides = array<i32>} : memref<18x18x32xf32, #tpu.memory_space<vmem>>, vector<1x16x32xf32>,
    %113 = vector.extract_strided_slice %80 {offsets = [128, 0], sizes = [16, 32], strides = [1, 1]} : vector<256x32xf32> to vector<16x32xf32>
    %c9 = arith.constant 9 : index
    %c1_93 = arith.constant 1 : index
    %c0_94 = arith.constant 0 : index
    %114 = vector.load %arg13[%c9, %c1_93, %c0_94] : memref<18x18x32xf32, #tpu.memory_space<vmem>>, vector<1x16x32xf32>
    %115 = vector.shape_cast %114 : vector<1x16x32xf32> to vector<16x32xf32>
    %116 = vector.shape_cast %113 : vector<16x32xf32> to vector<1x16x32xf32>
    tpu.vector_store %arg13[%c9, %c1_93, %c0_94], %116 {strides = array<i32>} : memref<18x18x32xf32, #tpu.memory_space<vmem>>, vector<1x16x32xf32>,
    %117 = vector.extract_strided_slice %80 {offsets = [144, 0], sizes = [16, 32], strides = [1, 1]} : vector<256x32xf32> to vector<16x32xf32>
    %c10 = arith.constant 10 : index
    %c1_95 = arith.constant 1 : index
    %c0_96 = arith.constant 0 : index
    %118 = vector.load %arg13[%c10, %c1_95, %c0_96] : memref<18x18x32xf32, #tpu.memory_space<vmem>>, vector<1x16x32xf32>
    %119 = vector.shape_cast %118 : vector<1x16x32xf32> to vector<16x32xf32>
    %120 = vector.shape_cast %117 : vector<16x32xf32> to vector<1x16x32xf32>
    tpu.vector_store %arg13[%c10, %c1_95, %c0_96], %120 {strides = array<i32>} : memref<18x18x32xf32, #tpu.memory_space<vmem>>, vector<1x16x32xf32>,
    %121 = vector.extract_strided_slice %80 {offsets = [160, 0], sizes = [16, 32], strides = [1, 1]} : vector<256x32xf32> to vector<16x32xf32>
    %c11 = arith.constant 11 : index
    %c1_97 = arith.constant 1 : index
    %c0_98 = arith.constant 0 : index
    %122 = vector.load %arg13[%c11, %c1_97, %c0_98] : memref<18x18x32xf32, #tpu.memory_space<vmem>>, vector<1x16x32xf32>
    %123 = vector.shape_cast %122 : vector<1x16x32xf32> to vector<16x32xf32>
    %124 = vector.shape_cast %121 : vector<16x32xf32> to vector<1x16x32xf32>
    tpu.vector_store %arg13[%c11, %c1_97, %c0_98], %124 {strides = array<i32>} : memref<18x18x32xf32, #tpu.memory_space<vmem>>, vector<1x16x32xf32>,
    %125 = vector.extract_strided_slice %80 {offsets = [176, 0], sizes = [16, 32], strides = [1, 1]} : vector<256x32xf32> to vector<16x32xf32>
    %c12 = arith.constant 12 : index
    %c1_99 = arith.constant 1 : index
    %c0_100 = arith.constant 0 : index
    %126 = vector.load %arg13[%c12, %c1_99, %c0_100] : memref<18x18x32xf32, #tpu.memory_space<vmem>>, vector<1x16x32xf32>
    %127 = vector.shape_cast %126 : vector<1x16x32xf32> to vector<16x32xf32>
    %128 = vector.shape_cast %125 : vector<16x32xf32> to vector<1x16x32xf32>
    tpu.vector_store %arg13[%c12, %c1_99, %c0_100], %128 {strides = array<i32>} : memref<18x18x32xf32, #tpu.memory_space<vmem>>, vector<1x16x32xf32>,
    %129 = vector.extract_strided_slice %80 {offsets = [192, 0], sizes = [16, 32], strides = [1, 1]} : vector<256x32xf32> to vector<16x32xf32>
    %c13 = arith.constant 13 : index
    %c1_101 = arith.constant 1 : index
    %c0_102 = arith.constant 0 : index
    %130 = vector.load %arg13[%c13, %c1_101, %c0_102] : memref<18x18x32xf32, #tpu.memory_space<vmem>>, vector<1x16x32xf32>
    %131 = vector.shape_cast %130 : vector<1x16x32xf32> to vector<16x32xf32>
    %132 = vector.shape_cast %129 : vector<16x32xf32> to vector<1x16x32xf32>
    tpu.vector_store %arg13[%c13, %c1_101, %c0_102], %132 {strides = array<i32>} : memref<18x18x32xf32, #tpu.memory_space<vmem>>, vector<1x16x32xf32>,
    %133 = vector.extract_strided_slice %80 {offsets = [208, 0], sizes = [16, 32], strides = [1, 1]} : vector<256x32xf32> to vector<16x32xf32>
    %c14 = arith.constant 14 : index
    %c1_103 = arith.constant 1 : index
    %c0_104 = arith.constant 0 : index
    %134 = vector.load %arg13[%c14, %c1_103, %c0_104] : memref<18x18x32xf32, #tpu.memory_space<vmem>>, vector<1x16x32xf32>
    %135 = vector.shape_cast %134 : vector<1x16x32xf32> to vector<16x32xf32>
    %136 = vector.shape_cast %133 : vector<16x32xf32> to vector<1x16x32xf32>
    tpu.vector_store %arg13[%c14, %c1_103, %c0_104], %136 {strides = array<i32>} : memref<18x18x32xf32, #tpu.memory_space<vmem>>, vector<1x16x32xf32>,
    %137 = vector.extract_strided_slice %80 {offsets = [224, 0], sizes = [16, 32], strides = [1, 1]} : vector<256x32xf32> to vector<16x32xf32>
    %c15 = arith.constant 15 : index
    %c1_105 = arith.constant 1 : index
    %c0_106 = arith.constant 0 : index
    %138 = vector.load %arg13[%c15, %c1_105, %c0_106] : memref<18x18x32xf32, #tpu.memory_space<vmem>>, vector<1x16x32xf32>
    %139 = vector.shape_cast %138 : vector<1x16x32xf32> to vector<16x32xf32>
    %140 = vector.shape_cast %137 : vector<16x32xf32> to vector<1x16x32xf32>
    tpu.vector_store %arg13[%c15, %c1_105, %c0_106], %140 {strides = array<i32>} : memref<18x18x32xf32, #tpu.memory_space<vmem>>, vector<1x16x32xf32>,
    %141 = vector.extract_strided_slice %80 {offsets = [240, 0], sizes = [16, 32], strides = [1, 1]} : vector<256x32xf32> to vector<16x32xf32>
    %c16 = arith.constant 16 : index
    %c1_107 = arith.constant 1 : index
    %c0_108 = arith.constant 0 : index
    %142 = vector.load %arg13[%c16, %c1_107, %c0_108] : memref<18x18x32xf32, #tpu.memory_space<vmem>>, vector<1x16x32xf32>
    %143 = vector.shape_cast %142 : vector<1x16x32xf32> to vector<16x32xf32>
    %144 = vector.shape_cast %141 : vector<16x32xf32> to vector<1x16x32xf32>
    tpu.vector_store %arg13[%c16, %c1_107, %c0_108], %144 {strides = array<i32>} : memref<18x18x32xf32, #tpu.memory_space<vmem>>, vector<1x16x32xf32>,
    %cst_109 = arith.constant 0.000000e+00 : f32
    %145 = vector.broadcast %cst_109 : f32 to vector<256x2xf32>
    %c0_110 = arith.constant 0 : index
    %c0_111 = arith.constant 0 : index
    %c0_112 = arith.constant 0 : index
    %146 = vector.load %arg13[%c0_110, %c0_111, %c0_112] : memref<18x18x32xf32, #tpu.memory_space<vmem>>, vector<16x16x32xf32>
    %147 = vector.shape_cast %146 : vector<16x16x32xf32> to vector<256x32xf32>
    %148 = vector.extract_strided_slice %7 {offsets = [0, 0, 0], sizes = [1, 32, 2], strides = [1, 1, 1]} : vector<9x32x2xf32> to vector<1x32x2xf32>
    %149 = vector.shape_cast %148 : vector<1x32x2xf32> to vector<32x2xf32>
    %cst_113 = arith.constant dense<0.000000e+00> : vector<256x2xf32>
    %150 = tpu.matmul %147, %149, %cst_113 {dimension_numbers = #tpu.dot_dimension_numbers<[1], [0], [0], [1], [0, 0, 1, 1], [], []>} : vector<256x32xf32>, vector<32x2xf32>, vector<256x2xf32> -> vector<256x2xf32>
    %151 = arith.addf %145, %150 : vector<256x2xf32>
    %c0_114 = arith.constant 0 : index
    %c1_115 = arith.constant 1 : index
    %c0_116 = arith.constant 0 : index
    %152 = vector.load %arg13[%c0_114, %c1_115, %c0_116] : memref<18x18x32xf32, #tpu.memory_space<vmem>>, vector<16x16x32xf32>
    %153 = vector.shape_cast %152 : vector<16x16x32xf32> to vector<256x32xf32>
    %154 = vector.extract_strided_slice %7 {offsets = [1, 0, 0], sizes = [1, 32, 2], strides = [1, 1, 1]} : vector<9x32x2xf32> to vector<1x32x2xf32>
    %155 = vector.shape_cast %154 : vector<1x32x2xf32> to vector<32x2xf32>
    %cst_117 = arith.constant dense<0.000000e+00> : vector<256x2xf32>
    %156 = tpu.matmul %153, %155, %cst_117 {dimension_numbers = #tpu.dot_dimension_numbers<[1], [0], [0], [1], [0, 0, 1, 1], [], []>} : vector<256x32xf32>, vector<32x2xf32>, vector<256x2xf32> -> vector<256x2xf32>
    %157 = arith.addf %151, %156 : vector<256x2xf32>
    %c0_118 = arith.constant 0 : index
    %c2_119 = arith.constant 2 : index
    %c0_120 = arith.constant 0 : index
    %158 = vector.load %arg13[%c0_118, %c2_119, %c0_120] : memref<18x18x32xf32, #tpu.memory_space<vmem>>, vector<16x16x32xf32>
    %159 = vector.shape_cast %158 : vector<16x16x32xf32> to vector<256x32xf32>
    %160 = vector.extract_strided_slice %7 {offsets = [2, 0, 0], sizes = [1, 32, 2], strides = [1, 1, 1]} : vector<9x32x2xf32> to vector<1x32x2xf32>
    %161 = vector.shape_cast %160 : vector<1x32x2xf32> to vector<32x2xf32>
    %cst_121 = arith.constant dense<0.000000e+00> : vector<256x2xf32>
    %162 = tpu.matmul %159, %161, %cst_121 {dimension_numbers = #tpu.dot_dimension_numbers<[1], [0], [0], [1], [0, 0, 1, 1], [], []>} : vector<256x32xf32>, vector<32x2xf32>, vector<256x2xf32> -> vector<256x2xf32>
    %163 = arith.addf %157, %162 : vector<256x2xf32>
    %c1_122 = arith.constant 1 : index
    %c0_123 = arith.constant 0 : index
    %c0_124 = arith.constant 0 : index
    %164 = vector.load %arg13[%c1_122, %c0_123, %c0_124] : memref<18x18x32xf32, #tpu.memory_space<vmem>>, vector<16x16x32xf32>
    %165 = vector.shape_cast %164 : vector<16x16x32xf32> to vector<256x32xf32>
    %166 = vector.extract_strided_slice %7 {offsets = [3, 0, 0], sizes = [1, 32, 2], strides = [1, 1, 1]} : vector<9x32x2xf32> to vector<1x32x2xf32>
    %167 = vector.shape_cast %166 : vector<1x32x2xf32> to vector<32x2xf32>
    %cst_125 = arith.constant dense<0.000000e+00> : vector<256x2xf32>
    %168 = tpu.matmul %165, %167, %cst_125 {dimension_numbers = #tpu.dot_dimension_numbers<[1], [0], [0], [1], [0, 0, 1, 1], [], []>} : vector<256x32xf32>, vector<32x2xf32>, vector<256x2xf32> -> vector<256x2xf32>
    %169 = arith.addf %163, %168 : vector<256x2xf32>
    %c1_126 = arith.constant 1 : index
    %c1_127 = arith.constant 1 : index
    %c0_128 = arith.constant 0 : index
    %170 = vector.load %arg13[%c1_126, %c1_127, %c0_128] : memref<18x18x32xf32, #tpu.memory_space<vmem>>, vector<16x16x32xf32>
    %171 = vector.shape_cast %170 : vector<16x16x32xf32> to vector<256x32xf32>
    %172 = vector.extract_strided_slice %7 {offsets = [4, 0, 0], sizes = [1, 32, 2], strides = [1, 1, 1]} : vector<9x32x2xf32> to vector<1x32x2xf32>
    %173 = vector.shape_cast %172 : vector<1x32x2xf32> to vector<32x2xf32>
    %cst_129 = arith.constant dense<0.000000e+00> : vector<256x2xf32>
    %174 = tpu.matmul %171, %173, %cst_129 {dimension_numbers = #tpu.dot_dimension_numbers<[1], [0], [0], [1], [0, 0, 1, 1], [], []>} : vector<256x32xf32>, vector<32x2xf32>, vector<256x2xf32> -> vector<256x2xf32>
    %175 = arith.addf %169, %174 : vector<256x2xf32>
    %c1_130 = arith.constant 1 : index
    %c2_131 = arith.constant 2 : index
    %c0_132 = arith.constant 0 : index
    %176 = vector.load %arg13[%c1_130, %c2_131, %c0_132] : memref<18x18x32xf32, #tpu.memory_space<vmem>>, vector<16x16x32xf32>
    %177 = vector.shape_cast %176 : vector<16x16x32xf32> to vector<256x32xf32>
    %178 = vector.extract_strided_slice %7 {offsets = [5, 0, 0], sizes = [1, 32, 2], strides = [1, 1, 1]} : vector<9x32x2xf32> to vector<1x32x2xf32>
    %179 = vector.shape_cast %178 : vector<1x32x2xf32> to vector<32x2xf32>
    %cst_133 = arith.constant dense<0.000000e+00> : vector<256x2xf32>
    %180 = tpu.matmul %177, %179, %cst_133 {dimension_numbers = #tpu.dot_dimension_numbers<[1], [0], [0], [1], [0, 0, 1, 1], [], []>} : vector<256x32xf32>, vector<32x2xf32>, vector<256x2xf32> -> vector<256x2xf32>
    %181 = arith.addf %175, %180 : vector<256x2xf32>
    %c2_134 = arith.constant 2 : index
    %c0_135 = arith.constant 0 : index
    %c0_136 = arith.constant 0 : index
    %182 = vector.load %arg13[%c2_134, %c0_135, %c0_136] : memref<18x18x32xf32, #tpu.memory_space<vmem>>, vector<16x16x32xf32>
    %183 = vector.shape_cast %182 : vector<16x16x32xf32> to vector<256x32xf32>
    %184 = vector.extract_strided_slice %7 {offsets = [6, 0, 0], sizes = [1, 32, 2], strides = [1, 1, 1]} : vector<9x32x2xf32> to vector<1x32x2xf32>
    %185 = vector.shape_cast %184 : vector<1x32x2xf32> to vector<32x2xf32>
    %cst_137 = arith.constant dense<0.000000e+00> : vector<256x2xf32>
    %186 = tpu.matmul %183, %185, %cst_137 {dimension_numbers = #tpu.dot_dimension_numbers<[1], [0], [0], [1], [0, 0, 1, 1], [], []>} : vector<256x32xf32>, vector<32x2xf32>, vector<256x2xf32> -> vector<256x2xf32>
    %187 = arith.addf %181, %186 : vector<256x2xf32>
    %c2_138 = arith.constant 2 : index
    %c1_139 = arith.constant 1 : index
    %c0_140 = arith.constant 0 : index
    %188 = vector.load %arg13[%c2_138, %c1_139, %c0_140] : memref<18x18x32xf32, #tpu.memory_space<vmem>>, vector<16x16x32xf32>
    %189 = vector.shape_cast %188 : vector<16x16x32xf32> to vector<256x32xf32>
    %190 = vector.extract_strided_slice %7 {offsets = [7, 0, 0], sizes = [1, 32, 2], strides = [1, 1, 1]} : vector<9x32x2xf32> to vector<1x32x2xf32>
    %191 = vector.shape_cast %190 : vector<1x32x2xf32> to vector<32x2xf32>
    %cst_141 = arith.constant dense<0.000000e+00> : vector<256x2xf32>
    %192 = tpu.matmul %189, %191, %cst_141 {dimension_numbers = #tpu.dot_dimension_numbers<[1], [0], [0], [1], [0, 0, 1, 1], [], []>} : vector<256x32xf32>, vector<32x2xf32>, vector<256x2xf32> -> vector<256x2xf32>
    %193 = arith.addf %187, %192 : vector<256x2xf32>
    %c2_142 = arith.constant 2 : index
    %c2_143 = arith.constant 2 : index
    %c0_144 = arith.constant 0 : index
    %194 = vector.load %arg13[%c2_142, %c2_143, %c0_144] : memref<18x18x32xf32, #tpu.memory_space<vmem>>, vector<16x16x32xf32>
    %195 = vector.shape_cast %194 : vector<16x16x32xf32> to vector<256x32xf32>
    %196 = vector.extract_strided_slice %7 {offsets = [8, 0, 0], sizes = [1, 32, 2], strides = [1, 1, 1]} : vector<9x32x2xf32> to vector<1x32x2xf32>
    %197 = vector.shape_cast %196 : vector<1x32x2xf32> to vector<32x2xf32>
    %cst_145 = arith.constant dense<0.000000e+00> : vector<256x2xf32>
    %198 = tpu.matmul %195, %197, %cst_145 {dimension_numbers = #tpu.dot_dimension_numbers<[1], [0], [0], [1], [0, 0, 1, 1], [], []>} : vector<256x32xf32>, vector<32x2xf32>, vector<256x2xf32> -> vector<256x2xf32>
    %199 = arith.addf %193, %198 : vector<256x2xf32>
    %200 = vector.broadcast %11 : vector<1x2xf32> to vector<256x2xf32>
    %201 = arith.addf %199, %200 : vector<256x2xf32>
    %cst_146 = arith.constant 0.000000e+00 : f32
    %202 = vector.broadcast %cst_146 : f32 to vector<256x2xf32>
    %203 = arith.maximumf %201, %202 : vector<256x2xf32>
    %204 = vector.extract_strided_slice %203 {offsets = [0, 0], sizes = [16, 2], strides = [1, 1]} : vector<256x2xf32> to vector<16x2xf32>
    %c1_147 = arith.constant 1 : index
    %c1_148 = arith.constant 1 : index
    %c0_149 = arith.constant 0 : index
    %205 = vector.load %arg14[%c1_147, %c1_148, %c0_149] : memref<18x18x2xf32, #tpu.memory_space<vmem>>, vector<1x16x2xf32>
    %206 = vector.shape_cast %205 : vector<1x16x2xf32> to vector<16x2xf32>
    %207 = vector.shape_cast %204 : vector<16x2xf32> to vector<1x16x2xf32>
    tpu.vector_store %arg14[%c1_147, %c1_148, %c0_149], %207 {strides = array<i32>} : memref<18x18x2xf32, #tpu.memory_space<vmem>>, vector<1x16x2xf32>,
    %208 = vector.extract_strided_slice %203 {offsets = [16, 0], sizes = [16, 2], strides = [1, 1]} : vector<256x2xf32> to vector<16x2xf32>
    %c2_150 = arith.constant 2 : index
    %c1_151 = arith.constant 1 : index
    %c0_152 = arith.constant 0 : index
    %209 = vector.load %arg14[%c2_150, %c1_151, %c0_152] : memref<18x18x2xf32, #tpu.memory_space<vmem>>, vector<1x16x2xf32>
    %210 = vector.shape_cast %209 : vector<1x16x2xf32> to vector<16x2xf32>
    %211 = vector.shape_cast %208 : vector<16x2xf32> to vector<1x16x2xf32>
    tpu.vector_store %arg14[%c2_150, %c1_151, %c0_152], %211 {strides = array<i32>} : memref<18x18x2xf32, #tpu.memory_space<vmem>>, vector<1x16x2xf32>,
    %212 = vector.extract_strided_slice %203 {offsets = [32, 0], sizes = [16, 2], strides = [1, 1]} : vector<256x2xf32> to vector<16x2xf32>
    %c3_153 = arith.constant 3 : index
    %c1_154 = arith.constant 1 : index
    %c0_155 = arith.constant 0 : index
    %213 = vector.load %arg14[%c3_153, %c1_154, %c0_155] : memref<18x18x2xf32, #tpu.memory_space<vmem>>, vector<1x16x2xf32>
    %214 = vector.shape_cast %213 : vector<1x16x2xf32> to vector<16x2xf32>
    %215 = vector.shape_cast %212 : vector<16x2xf32> to vector<1x16x2xf32>
    tpu.vector_store %arg14[%c3_153, %c1_154, %c0_155], %215 {strides = array<i32>} : memref<18x18x2xf32, #tpu.memory_space<vmem>>, vector<1x16x2xf32>,
    %216 = vector.extract_strided_slice %203 {offsets = [48, 0], sizes = [16, 2], strides = [1, 1]} : vector<256x2xf32> to vector<16x2xf32>
    %c4_156 = arith.constant 4 : index
    %c1_157 = arith.constant 1 : index
    %c0_158 = arith.constant 0 : index
    %217 = vector.load %arg14[%c4_156, %c1_157, %c0_158] : memref<18x18x2xf32, #tpu.memory_space<vmem>>, vector<1x16x2xf32>
    %218 = vector.shape_cast %217 : vector<1x16x2xf32> to vector<16x2xf32>
    %219 = vector.shape_cast %216 : vector<16x2xf32> to vector<1x16x2xf32>
    tpu.vector_store %arg14[%c4_156, %c1_157, %c0_158], %219 {strides = array<i32>} : memref<18x18x2xf32, #tpu.memory_space<vmem>>, vector<1x16x2xf32>,
    %220 = vector.extract_strided_slice %203 {offsets = [64, 0], sizes = [16, 2], strides = [1, 1]} : vector<256x2xf32> to vector<16x2xf32>
    %c5_159 = arith.constant 5 : index
    %c1_160 = arith.constant 1 : index
    %c0_161 = arith.constant 0 : index
    %221 = vector.load %arg14[%c5_159, %c1_160, %c0_161] : memref<18x18x2xf32, #tpu.memory_space<vmem>>, vector<1x16x2xf32>
    %222 = vector.shape_cast %221 : vector<1x16x2xf32> to vector<16x2xf32>
    %223 = vector.shape_cast %220 : vector<16x2xf32> to vector<1x16x2xf32>
    tpu.vector_store %arg14[%c5_159, %c1_160, %c0_161], %223 {strides = array<i32>} : memref<18x18x2xf32, #tpu.memory_space<vmem>>, vector<1x16x2xf32>,
    %224 = vector.extract_strided_slice %203 {offsets = [80, 0], sizes = [16, 2], strides = [1, 1]} : vector<256x2xf32> to vector<16x2xf32>
    %c6_162 = arith.constant 6 : index
    %c1_163 = arith.constant 1 : index
    %c0_164 = arith.constant 0 : index
    %225 = vector.load %arg14[%c6_162, %c1_163, %c0_164] : memref<18x18x2xf32, #tpu.memory_space<vmem>>, vector<1x16x2xf32>
    %226 = vector.shape_cast %225 : vector<1x16x2xf32> to vector<16x2xf32>
    %227 = vector.shape_cast %224 : vector<16x2xf32> to vector<1x16x2xf32>
    tpu.vector_store %arg14[%c6_162, %c1_163, %c0_164], %227 {strides = array<i32>} : memref<18x18x2xf32, #tpu.memory_space<vmem>>, vector<1x16x2xf32>,
    %228 = vector.extract_strided_slice %203 {offsets = [96, 0], sizes = [16, 2], strides = [1, 1]} : vector<256x2xf32> to vector<16x2xf32>
    %c7_165 = arith.constant 7 : index
    %c1_166 = arith.constant 1 : index
    %c0_167 = arith.constant 0 : index
    %229 = vector.load %arg14[%c7_165, %c1_166, %c0_167] : memref<18x18x2xf32, #tpu.memory_space<vmem>>, vector<1x16x2xf32>
    %230 = vector.shape_cast %229 : vector<1x16x2xf32> to vector<16x2xf32>
    %231 = vector.shape_cast %228 : vector<16x2xf32> to vector<1x16x2xf32>
    tpu.vector_store %arg14[%c7_165, %c1_166, %c0_167], %231 {strides = array<i32>} : memref<18x18x2xf32, #tpu.memory_space<vmem>>, vector<1x16x2xf32>,
    %232 = vector.extract_strided_slice %203 {offsets = [112, 0], sizes = [16, 2], strides = [1, 1]} : vector<256x2xf32> to vector<16x2xf32>
    %c8_168 = arith.constant 8 : index
    %c1_169 = arith.constant 1 : index
    %c0_170 = arith.constant 0 : index
    %233 = vector.load %arg14[%c8_168, %c1_169, %c0_170] : memref<18x18x2xf32, #tpu.memory_space<vmem>>, vector<1x16x2xf32>
    %234 = vector.shape_cast %233 : vector<1x16x2xf32> to vector<16x2xf32>
    %235 = vector.shape_cast %232 : vector<16x2xf32> to vector<1x16x2xf32>
    tpu.vector_store %arg14[%c8_168, %c1_169, %c0_170], %235 {strides = array<i32>} : memref<18x18x2xf32, #tpu.memory_space<vmem>>, vector<1x16x2xf32>,
    %236 = vector.extract_strided_slice %203 {offsets = [128, 0], sizes = [16, 2], strides = [1, 1]} : vector<256x2xf32> to vector<16x2xf32>
    %c9_171 = arith.constant 9 : index
    %c1_172 = arith.constant 1 : index
    %c0_173 = arith.constant 0 : index
    %237 = vector.load %arg14[%c9_171, %c1_172, %c0_173] : memref<18x18x2xf32, #tpu.memory_space<vmem>>, vector<1x16x2xf32>
    %238 = vector.shape_cast %237 : vector<1x16x2xf32> to vector<16x2xf32>
    %239 = vector.shape_cast %236 : vector<16x2xf32> to vector<1x16x2xf32>
    tpu.vector_store %arg14[%c9_171, %c1_172, %c0_173], %239 {strides = array<i32>} : memref<18x18x2xf32, #tpu.memory_space<vmem>>, vector<1x16x2xf32>,
    %240 = vector.extract_strided_slice %203 {offsets = [144, 0], sizes = [16, 2], strides = [1, 1]} : vector<256x2xf32> to vector<16x2xf32>
    %c10_174 = arith.constant 10 : index
    %c1_175 = arith.constant 1 : index
    %c0_176 = arith.constant 0 : index
    %241 = vector.load %arg14[%c10_174, %c1_175, %c0_176] : memref<18x18x2xf32, #tpu.memory_space<vmem>>, vector<1x16x2xf32>
    %242 = vector.shape_cast %241 : vector<1x16x2xf32> to vector<16x2xf32>
    %243 = vector.shape_cast %240 : vector<16x2xf32> to vector<1x16x2xf32>
    tpu.vector_store %arg14[%c10_174, %c1_175, %c0_176], %243 {strides = array<i32>} : memref<18x18x2xf32, #tpu.memory_space<vmem>>, vector<1x16x2xf32>,
    %244 = vector.extract_strided_slice %203 {offsets = [160, 0], sizes = [16, 2], strides = [1, 1]} : vector<256x2xf32> to vector<16x2xf32>
    %c11_177 = arith.constant 11 : index
    %c1_178 = arith.constant 1 : index
    %c0_179 = arith.constant 0 : index
    %245 = vector.load %arg14[%c11_177, %c1_178, %c0_179] : memref<18x18x2xf32, #tpu.memory_space<vmem>>, vector<1x16x2xf32>
    %246 = vector.shape_cast %245 : vector<1x16x2xf32> to vector<16x2xf32>
    %247 = vector.shape_cast %244 : vector<16x2xf32> to vector<1x16x2xf32>
    tpu.vector_store %arg14[%c11_177, %c1_178, %c0_179], %247 {strides = array<i32>} : memref<18x18x2xf32, #tpu.memory_space<vmem>>, vector<1x16x2xf32>,
    %248 = vector.extract_strided_slice %203 {offsets = [176, 0], sizes = [16, 2], strides = [1, 1]} : vector<256x2xf32> to vector<16x2xf32>
    %c12_180 = arith.constant 12 : index
    %c1_181 = arith.constant 1 : index
    %c0_182 = arith.constant 0 : index
    %249 = vector.load %arg14[%c12_180, %c1_181, %c0_182] : memref<18x18x2xf32, #tpu.memory_space<vmem>>, vector<1x16x2xf32>
    %250 = vector.shape_cast %249 : vector<1x16x2xf32> to vector<16x2xf32>
    %251 = vector.shape_cast %248 : vector<16x2xf32> to vector<1x16x2xf32>
    tpu.vector_store %arg14[%c12_180, %c1_181, %c0_182], %251 {strides = array<i32>} : memref<18x18x2xf32, #tpu.memory_space<vmem>>, vector<1x16x2xf32>,
    %252 = vector.extract_strided_slice %203 {offsets = [192, 0], sizes = [16, 2], strides = [1, 1]} : vector<256x2xf32> to vector<16x2xf32>
    %c13_183 = arith.constant 13 : index
    %c1_184 = arith.constant 1 : index
    %c0_185 = arith.constant 0 : index
    %253 = vector.load %arg14[%c13_183, %c1_184, %c0_185] : memref<18x18x2xf32, #tpu.memory_space<vmem>>, vector<1x16x2xf32>
    %254 = vector.shape_cast %253 : vector<1x16x2xf32> to vector<16x2xf32>
    %255 = vector.shape_cast %252 : vector<16x2xf32> to vector<1x16x2xf32>
    tpu.vector_store %arg14[%c13_183, %c1_184, %c0_185], %255 {strides = array<i32>} : memref<18x18x2xf32, #tpu.memory_space<vmem>>, vector<1x16x2xf32>,
    %256 = vector.extract_strided_slice %203 {offsets = [208, 0], sizes = [16, 2], strides = [1, 1]} : vector<256x2xf32> to vector<16x2xf32>
    %c14_186 = arith.constant 14 : index
    %c1_187 = arith.constant 1 : index
    %c0_188 = arith.constant 0 : index
    %257 = vector.load %arg14[%c14_186, %c1_187, %c0_188] : memref<18x18x2xf32, #tpu.memory_space<vmem>>, vector<1x16x2xf32>
    %258 = vector.shape_cast %257 : vector<1x16x2xf32> to vector<16x2xf32>
    %259 = vector.shape_cast %256 : vector<16x2xf32> to vector<1x16x2xf32>
    tpu.vector_store %arg14[%c14_186, %c1_187, %c0_188], %259 {strides = array<i32>} : memref<18x18x2xf32, #tpu.memory_space<vmem>>, vector<1x16x2xf32>,
    %260 = vector.extract_strided_slice %203 {offsets = [224, 0], sizes = [16, 2], strides = [1, 1]} : vector<256x2xf32> to vector<16x2xf32>
    %c15_189 = arith.constant 15 : index
    %c1_190 = arith.constant 1 : index
    %c0_191 = arith.constant 0 : index
    %261 = vector.load %arg14[%c15_189, %c1_190, %c0_191] : memref<18x18x2xf32, #tpu.memory_space<vmem>>, vector<1x16x2xf32>
    %262 = vector.shape_cast %261 : vector<1x16x2xf32> to vector<16x2xf32>
    %263 = vector.shape_cast %260 : vector<16x2xf32> to vector<1x16x2xf32>
    tpu.vector_store %arg14[%c15_189, %c1_190, %c0_191], %263 {strides = array<i32>} : memref<18x18x2xf32, #tpu.memory_space<vmem>>, vector<1x16x2xf32>,
    %264 = vector.extract_strided_slice %203 {offsets = [240, 0], sizes = [16, 2], strides = [1, 1]} : vector<256x2xf32> to vector<16x2xf32>
    %c16_192 = arith.constant 16 : index
    %c1_193 = arith.constant 1 : index
    %c0_194 = arith.constant 0 : index
    %265 = vector.load %arg14[%c16_192, %c1_193, %c0_194] : memref<18x18x2xf32, #tpu.memory_space<vmem>>, vector<1x16x2xf32>
    %266 = vector.shape_cast %265 : vector<1x16x2xf32> to vector<16x2xf32>
    %267 = vector.shape_cast %264 : vector<16x2xf32> to vector<1x16x2xf32>
    tpu.vector_store %arg14[%c16_192, %c1_193, %c0_194], %267 {strides = array<i32>} : memref<18x18x2xf32, #tpu.memory_space<vmem>>, vector<1x16x2xf32>,
    %cst_195 = arith.constant 0.000000e+00 : f32
    %268 = vector.broadcast %cst_195 : f32 to vector<256x32xf32>
    %c0_196 = arith.constant 0 : index
    %c0_197 = arith.constant 0 : index
    %c0_198 = arith.constant 0 : index
    %269 = vector.load %arg14[%c0_196, %c0_197, %c0_198] : memref<18x18x2xf32, #tpu.memory_space<vmem>>, vector<16x16x2xf32>
    %270 = vector.shape_cast %269 : vector<16x16x2xf32> to vector<256x2xf32>
    %271 = vector.extract_strided_slice %8 {offsets = [0, 0, 0], sizes = [1, 2, 32], strides = [1, 1, 1]} : vector<9x2x32xf32> to vector<1x2x32xf32>
    %272 = vector.shape_cast %271 : vector<1x2x32xf32> to vector<2x32xf32>
    %cst_199 = arith.constant dense<0.000000e+00> : vector<256x32xf32>
    %273 = tpu.matmul %270, %272, %cst_199 {dimension_numbers = #tpu.dot_dimension_numbers<[1], [0], [0], [1], [0, 0, 1, 1], [], []>} : vector<256x2xf32>, vector<2x32xf32>, vector<256x32xf32> -> vector<256x32xf32>
    %274 = arith.addf %268, %273 : vector<256x32xf32>
    %c0_200 = arith.constant 0 : index
    %c1_201 = arith.constant 1 : index
    %c0_202 = arith.constant 0 : index
    %275 = vector.load %arg14[%c0_200, %c1_201, %c0_202] : memref<18x18x2xf32, #tpu.memory_space<vmem>>, vector<16x16x2xf32>
    %276 = vector.shape_cast %275 : vector<16x16x2xf32> to vector<256x2xf32>
    %277 = vector.extract_strided_slice %8 {offsets = [1, 0, 0], sizes = [1, 2, 32], strides = [1, 1, 1]} : vector<9x2x32xf32> to vector<1x2x32xf32>
    %278 = vector.shape_cast %277 : vector<1x2x32xf32> to vector<2x32xf32>
    %cst_203 = arith.constant dense<0.000000e+00> : vector<256x32xf32>
    %279 = tpu.matmul %276, %278, %cst_203 {dimension_numbers = #tpu.dot_dimension_numbers<[1], [0], [0], [1], [0, 0, 1, 1], [], []>} : vector<256x2xf32>, vector<2x32xf32>, vector<256x32xf32> -> vector<256x32xf32>
    %280 = arith.addf %274, %279 : vector<256x32xf32>
    %c0_204 = arith.constant 0 : index
    %c2_205 = arith.constant 2 : index
    %c0_206 = arith.constant 0 : index
    %281 = vector.load %arg14[%c0_204, %c2_205, %c0_206] : memref<18x18x2xf32, #tpu.memory_space<vmem>>, vector<16x16x2xf32>
    %282 = vector.shape_cast %281 : vector<16x16x2xf32> to vector<256x2xf32>
    %283 = vector.extract_strided_slice %8 {offsets = [2, 0, 0], sizes = [1, 2, 32], strides = [1, 1, 1]} : vector<9x2x32xf32> to vector<1x2x32xf32>
    %284 = vector.shape_cast %283 : vector<1x2x32xf32> to vector<2x32xf32>
    %cst_207 = arith.constant dense<0.000000e+00> : vector<256x32xf32>
    %285 = tpu.matmul %282, %284, %cst_207 {dimension_numbers = #tpu.dot_dimension_numbers<[1], [0], [0], [1], [0, 0, 1, 1], [], []>} : vector<256x2xf32>, vector<2x32xf32>, vector<256x32xf32> -> vector<256x32xf32>
    %286 = arith.addf %280, %285 : vector<256x32xf32>
    %c1_208 = arith.constant 1 : index
    %c0_209 = arith.constant 0 : index
    %c0_210 = arith.constant 0 : index
    %287 = vector.load %arg14[%c1_208, %c0_209, %c0_210] : memref<18x18x2xf32, #tpu.memory_space<vmem>>, vector<16x16x2xf32>
    %288 = vector.shape_cast %287 : vector<16x16x2xf32> to vector<256x2xf32>
    %289 = vector.extract_strided_slice %8 {offsets = [3, 0, 0], sizes = [1, 2, 32], strides = [1, 1, 1]} : vector<9x2x32xf32> to vector<1x2x32xf32>
    %290 = vector.shape_cast %289 : vector<1x2x32xf32> to vector<2x32xf32>
    %cst_211 = arith.constant dense<0.000000e+00> : vector<256x32xf32>
    %291 = tpu.matmul %288, %290, %cst_211 {dimension_numbers = #tpu.dot_dimension_numbers<[1], [0], [0], [1], [0, 0, 1, 1], [], []>} : vector<256x2xf32>, vector<2x32xf32>, vector<256x32xf32> -> vector<256x32xf32>
    %292 = arith.addf %286, %291 : vector<256x32xf32>
    %c1_212 = arith.constant 1 : index
    %c1_213 = arith.constant 1 : index
    %c0_214 = arith.constant 0 : index
    %293 = vector.load %arg14[%c1_212, %c1_213, %c0_214] : memref<18x18x2xf32, #tpu.memory_space<vmem>>, vector<16x16x2xf32>
    %294 = vector.shape_cast %293 : vector<16x16x2xf32> to vector<256x2xf32>
    %295 = vector.extract_strided_slice %8 {offsets = [4, 0, 0], sizes = [1, 2, 32], strides = [1, 1, 1]} : vector<9x2x32xf32> to vector<1x2x32xf32>
    %296 = vector.shape_cast %295 : vector<1x2x32xf32> to vector<2x32xf32>
    %cst_215 = arith.constant dense<0.000000e+00> : vector<256x32xf32>
    %297 = tpu.matmul %294, %296, %cst_215 {dimension_numbers = #tpu.dot_dimension_numbers<[1], [0], [0], [1], [0, 0, 1, 1], [], []>} : vector<256x2xf32>, vector<2x32xf32>, vector<256x32xf32> -> vector<256x32xf32>
    %298 = arith.addf %292, %297 : vector<256x32xf32>
    %c1_216 = arith.constant 1 : index
    %c2_217 = arith.constant 2 : index
    %c0_218 = arith.constant 0 : index
    %299 = vector.load %arg14[%c1_216, %c2_217, %c0_218] : memref<18x18x2xf32, #tpu.memory_space<vmem>>, vector<16x16x2xf32>
    %300 = vector.shape_cast %299 : vector<16x16x2xf32> to vector<256x2xf32>
    %301 = vector.extract_strided_slice %8 {offsets = [5, 0, 0], sizes = [1, 2, 32], strides = [1, 1, 1]} : vector<9x2x32xf32> to vector<1x2x32xf32>
    %302 = vector.shape_cast %301 : vector<1x2x32xf32> to vector<2x32xf32>
    %cst_219 = arith.constant dense<0.000000e+00> : vector<256x32xf32>
    %303 = tpu.matmul %300, %302, %cst_219 {dimension_numbers = #tpu.dot_dimension_numbers<[1], [0], [0], [1], [0, 0, 1, 1], [], []>} : vector<256x2xf32>, vector<2x32xf32>, vector<256x32xf32> -> vector<256x32xf32>
    %304 = arith.addf %298, %303 : vector<256x32xf32>
    %c2_220 = arith.constant 2 : index
    %c0_221 = arith.constant 0 : index
    %c0_222 = arith.constant 0 : index
    %305 = vector.load %arg14[%c2_220, %c0_221, %c0_222] : memref<18x18x2xf32, #tpu.memory_space<vmem>>, vector<16x16x2xf32>
    %306 = vector.shape_cast %305 : vector<16x16x2xf32> to vector<256x2xf32>
    %307 = vector.extract_strided_slice %8 {offsets = [6, 0, 0], sizes = [1, 2, 32], strides = [1, 1, 1]} : vector<9x2x32xf32> to vector<1x2x32xf32>
    %308 = vector.shape_cast %307 : vector<1x2x32xf32> to vector<2x32xf32>
    %cst_223 = arith.constant dense<0.000000e+00> : vector<256x32xf32>
    %309 = tpu.matmul %306, %308, %cst_223 {dimension_numbers = #tpu.dot_dimension_numbers<[1], [0], [0], [1], [0, 0, 1, 1], [], []>} : vector<256x2xf32>, vector<2x32xf32>, vector<256x32xf32> -> vector<256x32xf32>
    %310 = arith.addf %304, %309 : vector<256x32xf32>
    %c2_224 = arith.constant 2 : index
    %c1_225 = arith.constant 1 : index
    %c0_226 = arith.constant 0 : index
    %311 = vector.load %arg14[%c2_224, %c1_225, %c0_226] : memref<18x18x2xf32, #tpu.memory_space<vmem>>, vector<16x16x2xf32>
    %312 = vector.shape_cast %311 : vector<16x16x2xf32> to vector<256x2xf32>
    %313 = vector.extract_strided_slice %8 {offsets = [7, 0, 0], sizes = [1, 2, 32], strides = [1, 1, 1]} : vector<9x2x32xf32> to vector<1x2x32xf32>
    %314 = vector.shape_cast %313 : vector<1x2x32xf32> to vector<2x32xf32>
    %cst_227 = arith.constant dense<0.000000e+00> : vector<256x32xf32>
    %315 = tpu.matmul %312, %314, %cst_227 {dimension_numbers = #tpu.dot_dimension_numbers<[1], [0], [0], [1], [0, 0, 1, 1], [], []>} : vector<256x2xf32>, vector<2x32xf32>, vector<256x32xf32> -> vector<256x32xf32>
    %316 = arith.addf %310, %315 : vector<256x32xf32>
    %c2_228 = arith.constant 2 : index
    %c2_229 = arith.constant 2 : index
    %c0_230 = arith.constant 0 : index
    %317 = vector.load %arg14[%c2_228, %c2_229, %c0_230] : memref<18x18x2xf32, #tpu.memory_space<vmem>>, vector<16x16x2xf32>
    %318 = vector.shape_cast %317 : vector<16x16x2xf32> to vector<256x2xf32>
    %319 = vector.extract_strided_slice %8 {offsets = [8, 0, 0], sizes = [1, 2, 32], strides = [1, 1, 1]} : vector<9x2x32xf32> to vector<1x2x32xf32>
    %320 = vector.shape_cast %319 : vector<1x2x32xf32> to vector<2x32xf32>
    %cst_231 = arith.constant dense<0.000000e+00> : vector<256x32xf32>
    %321 = tpu.matmul %318, %320, %cst_231 {dimension_numbers = #tpu.dot_dimension_numbers<[1], [0], [0], [1], [0, 0, 1, 1], [], []>} : vector<256x2xf32>, vector<2x32xf32>, vector<256x32xf32> -> vector<256x32xf32>
    %322 = arith.addf %316, %321 : vector<256x32xf32>
    %323 = vector.broadcast %12 : vector<1x32xf32> to vector<256x32xf32>
    %324 = arith.addf %322, %323 : vector<256x32xf32>
    %cst_232 = arith.constant 0.000000e+00 : f32
    %325 = vector.broadcast %cst_232 : f32 to vector<256x32xf32>
    %326 = arith.subf %325, %324 : vector<256x32xf32>
    %327 = math.exp %326 : vector<256x32xf32>
    %cst_233 = arith.constant 1.000000e+00 : f32
    %328 = vector.broadcast %cst_233 : f32 to vector<256x32xf32>
    %329 = arith.addf %328, %327 : vector<256x32xf32>
    %cst_234 = arith.constant 1.000000e+00 : f32
    %330 = vector.broadcast %cst_234 : f32 to vector<256x32xf32>
    %331 = arith.divf %330, %329 : vector<256x32xf32>
    %332 = arith.mulf %331, %80 : vector<256x32xf32>
    %c0_235 = arith.constant 0 : index
    %c0_236 = arith.constant 0 : index
    %c0_237 = arith.constant 0 : index
    %333 = vector.load %arg12[%c0_235, %c0_236, %c0_237] : memref<1x256x32xf32, #tpu.memory_space<vmem>>, vector<1x256x32xf32>
    %334 = vector.shape_cast %333 : vector<1x256x32xf32> to vector<256x32xf32>
    %335 = vector.shape_cast %332 : vector<256x32xf32> to vector<1x256x32xf32>
    tpu.vector_store %arg12[%c0_235, %c0_236, %c0_237], %335 {strides = array<i32>} : memref<1x256x32xf32, #tpu.memory_space<vmem>>, vector<1x256x32xf32>,
    return
  }
  func.func @transform_0(%arg0: i32) -> (i32, i32, i32, i32) {
    %c0_i32 = arith.constant 0 : i32
    %c0_i32_0 = arith.constant 0 : i32
    %c0_i32_1 = arith.constant 0 : i32
    %c0_i32_2 = arith.constant 0 : i32
    return %arg0, %c0_i32, %c0_i32_0, %c0_i32_1 : i32, i32, i32, i32
  }
  func.func @transform_1(%arg0: i32) -> (i32, i32, i32, i32) {
    %c0_i32 = arith.constant 0 : i32
    %c0_i32_0 = arith.constant 0 : i32
    %c0_i32_1 = arith.constant 0 : i32
    %c0_i32_2 = arith.constant 0 : i32
    return %arg0, %c0_i32, %c0_i32_0, %c0_i32_1 : i32, i32, i32, i32
  }
  func.func @transform_2(%arg0: i32) -> (i32, i32, i32) {
    %c0_i32 = arith.constant 0 : i32
    %c0_i32_0 = arith.constant 0 : i32
    %c0_i32_1 = arith.constant 0 : i32
    %c0_i32_2 = arith.constant 0 : i32
    return %c0_i32, %c0_i32_0, %c0_i32_1 : i32, i32, i32
  }
  func.func @transform_3(%arg0: i32) -> (i32, i32) {
    %c0_i32 = arith.constant 0 : i32
    %c0_i32_0 = arith.constant 0 : i32
    %c0_i32_1 = arith.constant 0 : i32
    return %c0_i32, %c0_i32_0 : i32, i32
  }
  func.func @transform_4(%arg0: i32) -> (i32, i32) {
    %c0_i32 = arith.constant 0 : i32
    %c0_i32_0 = arith.constant 0 : i32
    %c0_i32_1 = arith.constant 0 : i32
    return %c0_i32, %c0_i32_0 : i32, i32
  }
  func.func @transform_5(%arg0: i32) -> (i32, i32) {
    %c0_i32 = arith.constant 0 : i32
    %c0_i32_0 = arith.constant 0 : i32
    %c0_i32_1 = arith.constant 0 : i32
    return %c0_i32, %c0_i32_0 : i32, i32
  }
  func.func @transform_6(%arg0: i32) -> (i32, i32) {
    %c0_i32 = arith.constant 0 : i32
    %c0_i32_0 = arith.constant 0 : i32
    %c0_i32_1 = arith.constant 0 : i32
    return %c0_i32, %c0_i32_0 : i32, i32
  }
  func.func @transform_7(%arg0: i32) -> (i32, i32, i32) {
    %c0_i32 = arith.constant 0 : i32
    %c0_i32_0 = arith.constant 0 : i32
    %c0_i32_1 = arith.constant 0 : i32
    %c0_i32_2 = arith.constant 0 : i32
    return %c0_i32, %c0_i32_0, %c0_i32_1 : i32, i32, i32
  }
  func.func @transform_8(%arg0: i32) -> (i32, i32) {
    %c0_i32 = arith.constant 0 : i32
    %c0_i32_0 = arith.constant 0 : i32
    %c0_i32_1 = arith.constant 0 : i32
    return %c0_i32, %c0_i32_0 : i32, i32
  }
  func.func @transform_9(%arg0: i32) -> (i32, i32, i32) {
    %c0_i32 = arith.constant 0 : i32
    %c0_i32_0 = arith.constant 0 : i32
    %c0_i32_1 = arith.constant 0 : i32
    %c0_i32_2 = arith.constant 0 : i32
    return %c0_i32, %c0_i32_0, %c0_i32_1 : i32, i32, i32
  }
  func.func @transform_10(%arg0: i32) -> (i32, i32) {
    %c0_i32 = arith.constant 0 : i32
    %c0_i32_0 = arith.constant 0 : i32
    %c0_i32_1 = arith.constant 0 : i32
    return %c0_i32, %c0_i32_0 : i32, i32
  }
  func.func @transform_11(%arg0: i32) -> (i32, i32, i32) {
    %c0_i32 = arith.constant 0 : i32
    %c0_i32_0 = arith.constant 0 : i32
    %c0_i32_1 = arith.constant 0 : i32
    return %arg0, %c0_i32, %c0_i32_0 : i32, i32, i32
  }
}

</mosaic_0001>

<llo_original>
// kernel: tpu_custom_call.1
$region0: #{tpu_custom_call.1}
  #allocation0 [shape = 'u32[]', space=smem, size = 0x4, offset = 0x4, fixed_abs, tag = 'smem constant byte address 0x4 - core index']
  #allocation1 [shape = 'u32[72,128]{1,0:T(1,128)}', space=vmem, size = 0x9000, scoped, tag = 'internal scratch']
  #allocation2 [shape = 'f32[18,18,32]{2,1,0:T(8,128)}', space=vmem, size = 0x36000, scoped, tag = 'scratch operand']
  #allocation3 [shape = 'f32[18,18,2]{2,1,0:T(8,128)}', space=vmem, size = 0x36000, scoped, tag = 'scratch operand']
  %s0 = inlined_call_operand.hbm [shape: f32[2,16,16,32], index: 0, kind: input, shape index: {}]
  %s1 = inlined_call_operand.hbm [shape: f32[2,16,16,32], index: 1, kind: input, shape index: {}]
  %s2 = inlined_call_operand.vmem [shape: f32[9,32,32], index: 2, kind: input, shape index: {}]
  %s3 = inlined_call_operand.vmem [shape: f32[1,32], index: 3, kind: input, shape index: {}]
  %s4 = inlined_call_operand.hbm [shape: f32[32,32], index: 4, kind: input, shape index: {}]
  %s5 = inlined_call_operand.hbm [shape: f32[32,32], index: 5, kind: input, shape index: {}]
  %s6 = inlined_call_operand.vmem [shape: f32[1,32], index: 6, kind: input, shape index: {}]
  %s7 = inlined_call_operand.vmem [shape: f32[9,32,2], index: 7, kind: input, shape index: {}]
  %s8 = inlined_call_operand.vmem [shape: f32[1,2], index: 8, kind: input, shape index: {}]
  %s9 = inlined_call_operand.vmem [shape: f32[9,2,32], index: 9, kind: input, shape index: {}]
  %s10 = inlined_call_operand.vmem [shape: f32[1,32], index: 10, kind: input, shape index: {}]
  %s11 = inlined_call_operand.vmem [shape: f32[2,256,32], index: 11, kind: output, shape index: {}]
  %s12 = sld [smem:[#allocation0]]
  $region93: #{tpu_custom_call.1} parent=0
    _
  %s14 = ssub.s32 1, %s12
  %s15 = scalar_select 0, %s14, %s12
  $region1: #{tpu_custom_call.1} parent=0
    #allocation4 [shape = 'u8[262144]{0}', space=vmem, size = 0x40000, scoped, tag = 'input window, operand 0']
    #allocation5 [shape = 's32[2]{0}', space=sflag, size = 0x8, scoped, tag = 'scoped memory for tpu_custom_call.1']
    #allocation6 [shape = 'u8[262144]{0}', space=vmem, size = 0x40000, scoped, tag = 'input window, operand 1']
    #allocation7 [shape = 's32[2]{0}', space=sflag, size = 0x8, scoped, tag = 'scoped memory for tpu_custom_call.1']
    #allocation8 [shape = 'u8[16384]{0}', space=vmem, size = 0x4000, scoped, tag = 'input window, operand 4, single buffered']
    #allocation9 [shape = 'u8[16384]{0}', space=vmem, size = 0x4000, scoped, tag = 'input window, operand 5, single buffered']
    #allocation10 [shape = 's32[1]{0}', space=sflag, size = 0x4, scoped, tag = 'scoped memory for tpu_custom_call.1']
    %16 = vsyncpa [#allocation5], 0
    %s17 = scalar_lea.sflag [#allocation5], 1
    %18 = vsyncpa %s17, 0
    %19 = vsyncpa [#allocation7], 0
    %s20 = scalar_lea.sflag [#allocation7], 1
    %21 = vsyncpa %s20, 0
    %22 = vsyncpa [#allocation10], 0
    loop: start=0, step=1, limit=4
    $region2: #{tpu_custom_call.1} parent=1 // loop_pre_header
      _
    $region3: #{tpu_custom_call.1} parent=1 // loop_header
      %s24 = sphi 0, %s28
      %p25 = scmp.ge.s32.totalorder %s24, 4
      %s34 = sphi 0, %s36
      %s37 = sphi 0, %s34
      %s38 = sphi 0, %s37
      %s54 = sphi 0, %s38
      %s60 = sphi 0, %s62
      %s63 = sphi 0, %s60
      %s64 = sphi 0, %s63
      %s80 = sphi 0, %s64
      %s84 = sphi 0, %s84
      %s86 = sphi 0, %s84
      %s87 = sphi 0, %s86
      %s101 = sphi 0, %s87
      %s105 = sphi 0, %s105
      %s107 = sphi 0, %s105
      %s108 = sphi 0, %s107
      %s122 = sphi 0, %s108
      %s126 = sphi 0, %s126
      %s128 = sphi 0, %s126
      %s129 = sphi 0, %s128
      %s143 = sphi 0, %s129
      %s147 = sphi 0, %s147
      %s149 = sphi 0, %s147
      %s150 = sphi 0, %s149
      %s164 = sphi 0, %s150
      %s168 = sphi 0, %s168
      %s170 = sphi 0, %s168
      %s171 = sphi 0, %s170
      %s185 = sphi 0, %s171
      %s189 = sphi 0, %s189
      %s191 = sphi 0, %s189
      %s192 = sphi 0, %s191
      %s206 = sphi 0, %s192
      %s210 = sphi 0, %s210
      %s212 = sphi 0, %s210
      %s213 = sphi 0, %s212
      %s227 = sphi 0, %s213
      %s231 = sphi 0, %s231
      %s233 = sphi 0, %s231
      %s234 = sphi 0, %s233
      %s248 = sphi 0, %s234
      %s252 = sphi 0, %s252
      %s254 = sphi 0, %s252
      %s255 = sphi 0, %s254
      %s269 = sphi 0, %s255
      %s275 = sphi 0, %s277
      %s278 = sphi 0, %s275
      %s279 = sphi 0, %s278
      %s295 = sphi 0, %s279
    $region4: #{tpu_custom_call.1} parent=1 // loop_header_branch
      %27 = sbr.rel (%p25) target = $region8
    $region5: #{tpu_custom_call.1} parent=1 // loop_body
      %s29 = ssub.s32 %s24, 1
      %s30 = ssub.s32 %s24, 2
      %s31 = sadd.s32 %s24, 1
      %s32 = ssub.s32 %s24, %s31
      %p33 = scmp.eq.s32.totalorder %s32, 0
      %s35 = sadd.s32 %s34, 1
      %s36 = scalar_select %p33, %s34, %s35
      %p39 = pneg %p33
      %p40 = scmp.eq.s32.totalorder %s24, 1
      %p41 = por %p39, %p40
      %p42 = scmp.ne.s32.totalorder %s34, %s37
      %p43 = scmp.eq.s32.totalorder %s24, 0
      %p44 = por %p42, %p43
      %p45 = scmp.ne.s32.totalorder %s34, %s37
      %p46 = scmp.eq.s32.totalorder %s29, 1
      %p47 = por %p45, %p46
      %p48 = scmp.ne.s32.totalorder %s37, %s38
      %p49 = scmp.eq.s32.totalorder %s29, 0
      %p50 = por %p48, %p49
      %p51 = scmp.ne.s32.totalorder %s37, %s38
      %p52 = scmp.eq.s32.totalorder %s30, 1
      %p53 = por %p51, %p52
      %p55 = scmp.ne.s32.totalorder %s38, %s54
      %p56 = scmp.eq.s32.totalorder %s30, 0
      %p57 = por %p55, %p56
      %s58 = ssub.s32 %s24, %s31
      %p59 = scmp.eq.s32.totalorder %s58, 0
      %s61 = sadd.s32 %s60, 1
      %s62 = scalar_select %p59, %s60, %s61
      %p65 = pneg %p59
      %p66 = scmp.eq.s32.totalorder %s24, 1
      %p67 = por %p65, %p66
      %p68 = scmp.ne.s32.totalorder %s60, %s63
      %p69 = scmp.eq.s32.totalorder %s24, 0
      %p70 = por %p68, %p69
      %p71 = scmp.ne.s32.totalorder %s60, %s63
      %p72 = scmp.eq.s32.totalorder %s29, 1
      %p73 = por %p71, %p72
      %p74 = scmp.ne.s32.totalorder %s63, %s64
      %p75 = scmp.eq.s32.totalorder %s29, 0
      %p76 = por %p74, %p75
      %p77 = scmp.ne.s32.totalorder %s63, %s64
      %p78 = scmp.eq.s32.totalorder %s30, 1
      %p79 = por %p77, %p78
      %p81 = scmp.ne.s32.totalorder %s64, %s80
      %p82 = scmp.eq.s32.totalorder %s30, 0
      %p83 = por %p81, %p82
      %s85 = sadd.s32 %s84, 1
      %p88 = scmp.eq.s32.totalorder %s24, 1
      %p89 = scmp.ne.s32.totalorder %s84, %s86
      %p90 = scmp.eq.s32.totalorder %s24, 0
      %p91 = por %p89, %p90
      %p92 = scmp.ne.s32.totalorder %s84, %s86
      %p93 = scmp.eq.s32.totalorder %s29, 1
      %p94 = por %p92, %p93
      %p95 = scmp.ne.s32.totalorder %s86, %s87
      %p96 = scmp.eq.s32.totalorder %s29, 0
      %p97 = por %p95, %p96
      %p98 = scmp.ne.s32.totalorder %s86, %s87
      %p99 = scmp.eq.s32.totalorder %s30, 1
      %p100 = por %p98, %p99
      %p102 = scmp.ne.s32.totalorder %s87, %s101
      %p103 = scmp.eq.s32.totalorder %s30, 0
      %p104 = por %p102, %p103
      %s106 = sadd.s32 %s105, 1
      %p109 = scmp.eq.s32.totalorder %s24, 1
      %p110 = scmp.ne.s32.totalorder %s105, %s107
      %p111 = scmp.eq.s32.totalorder %s24, 0
      %p112 = por %p110, %p111
      %p113 = scmp.ne.s32.totalorder %s105, %s107
      %p114 = scmp.eq.s32.totalorder %s29, 1
      %p115 = por %p113, %p114
      %p116 = scmp.ne.s32.totalorder %s107, %s108
      %p117 = scmp.eq.s32.totalorder %s29, 0
      %p118 = por %p116, %p117
      %p119 = scmp.ne.s32.totalorder %s107, %s108
      %p120 = scmp.eq.s32.totalorder %s30, 1
      %p121 = por %p119, %p120
      %p123 = scmp.ne.s32.totalorder %s108, %s122
      %p124 = scmp.eq.s32.totalorder %s30, 0
      %p125 = por %p123, %p124
      %s127 = sadd.s32 %s126, 1
      %p130 = scmp.eq.s32.totalorder %s24, 1
      %p131 = scmp.ne.s32.totalorder %s126, %s128
      %p132 = scmp.eq.s32.totalorder %s24, 0
      %p133 = por %p131, %p132
      %p134 = scmp.ne.s32.totalorder %s126, %s128
      %p135 = scmp.eq.s32.totalorder %s29, 1
      %p136 = por %p134, %p135
      %p137 = scmp.ne.s32.totalorder %s128, %s129
      %p138 = scmp.eq.s32.totalorder %s29, 0
      %p139 = por %p137, %p138
      %p140 = scmp.ne.s32.totalorder %s128, %s129
      %p141 = scmp.eq.s32.totalorder %s30, 1
      %p142 = por %p140, %p141
      %p144 = scmp.ne.s32.totalorder %s129, %s143
      %p145 = scmp.eq.s32.totalorder %s30, 0
      %p146 = por %p144, %p145
      %s148 = sadd.s32 %s147, 1
      %p151 = scmp.eq.s32.totalorder %s24, 1
      %p152 = scmp.ne.s32.totalorder %s147, %s149
      %p153 = scmp.eq.s32.totalorder %s24, 0
      %p154 = por %p152, %p153
      %p155 = scmp.ne.s32.totalorder %s147, %s149
      %p156 = scmp.eq.s32.totalorder %s29, 1
      %p157 = por %p155, %p156
      %p158 = scmp.ne.s32.totalorder %s149, %s150
      %p159 = scmp.eq.s32.totalorder %s29, 0
      %p160 = por %p158, %p159
      %p161 = scmp.ne.s32.totalorder %s149, %s150
      %p162 = scmp.eq.s32.totalorder %s30, 1
      %p163 = por %p161, %p162
      %p165 = scmp.ne.s32.totalorder %s150, %s164
      %p166 = scmp.eq.s32.totalorder %s30, 0
      %p167 = por %p165, %p166
      %s169 = sadd.s32 %s168, 1
      %p172 = scmp.eq.s32.totalorder %s24, 1
      %p173 = scmp.ne.s32.totalorder %s168, %s170
      %p174 = scmp.eq.s32.totalorder %s24, 0
      %p175 = por %p173, %p174
      %p176 = scmp.ne.s32.totalorder %s168, %s170
      %p177 = scmp.eq.s32.totalorder %s29, 1
      %p178 = por %p176, %p177
      %p179 = scmp.ne.s32.totalorder %s170, %s171
      %p180 = scmp.eq.s32.totalorder %s29, 0
      %p181 = por %p179, %p180
      %p182 = scmp.ne.s32.totalorder %s170, %s171
      %p183 = scmp.eq.s32.totalorder %s30, 1
      %p184 = por %p182, %p183
      %p186 = scmp.ne.s32.totalorder %s171, %s185
      %p187 = scmp.eq.s32.totalorder %s30, 0
      %p188 = por %p186, %p187
      %s190 = sadd.s32 %s189, 1
      %p193 = scmp.eq.s32.totalorder %s24, 1
      %p194 = scmp.ne.s32.totalorder %s189, %s191
      %p195 = scmp.eq.s32.totalorder %s24, 0
      %p196 = por %p194, %p195
      %p197 = scmp.ne.s32.totalorder %s189, %s191
      %p198 = scmp.eq.s32.totalorder %s29, 1
      %p199 = por %p197, %p198
      %p200 = scmp.ne.s32.totalorder %s191, %s192
      %p201 = scmp.eq.s32.totalorder %s29, 0
      %p202 = por %p200, %p201
      %p203 = scmp.ne.s32.totalorder %s191, %s192
      %p204 = scmp.eq.s32.totalorder %s30, 1
      %p205 = por %p203, %p204
      %p207 = scmp.ne.s32.totalorder %s192, %s206
      %p208 = scmp.eq.s32.totalorder %s30, 0
      %p209 = por %p207, %p208
      %s211 = sadd.s32 %s210, 1
      %p214 = scmp.eq.s32.totalorder %s24, 1
      %p215 = scmp.ne.s32.totalorder %s210, %s212
      %p216 = scmp.eq.s32.totalorder %s24, 0
      %p217 = por %p215, %p216
      %p218 = scmp.ne.s32.totalorder %s210, %s212
      %p219 = scmp.eq.s32.totalorder %s29, 1
      %p220 = por %p218, %p219
      %p221 = scmp.ne.s32.totalorder %s212, %s213
      %p222 = scmp.eq.s32.totalorder %s29, 0
      %p223 = por %p221, %p222
      %p224 = scmp.ne.s32.totalorder %s212, %s213
      %p225 = scmp.eq.s32.totalorder %s30, 1
      %p226 = por %p224, %p225
      %p228 = scmp.ne.s32.totalorder %s213, %s227
      %p229 = scmp.eq.s32.totalorder %s30, 0
      %p230 = por %p228, %p229
      %s232 = sadd.s32 %s231, 1
      %p235 = scmp.eq.s32.totalorder %s24, 1
      %p236 = scmp.ne.s32.totalorder %s231, %s233
      %p237 = scmp.eq.s32.totalorder %s24, 0
      %p238 = por %p236, %p237
      %p239 = scmp.ne.s32.totalorder %s231, %s233
      %p240 = scmp.eq.s32.totalorder %s29, 1
      %p241 = por %p239, %p240
      %p242 = scmp.ne.s32.totalorder %s233, %s234
      %p243 = scmp.eq.s32.totalorder %s29, 0
      %p244 = por %p242, %p243
      %p245 = scmp.ne.s32.totalorder %s233, %s234
      %p246 = scmp.eq.s32.totalorder %s30, 1
      %p247 = por %p245, %p246
      %p249 = scmp.ne.s32.totalorder %s234, %s248
      %p250 = scmp.eq.s32.totalorder %s30, 0
      %p251 = por %p249, %p250
      %s253 = sadd.s32 %s252, 1
      %p256 = scmp.eq.s32.totalorder %s24, 1
      %p257 = scmp.ne.s32.totalorder %s252, %s254
      %p258 = scmp.eq.s32.totalorder %s24, 0
      %p259 = por %p257, %p258
      %p260 = scmp.ne.s32.totalorder %s252, %s254
      %p261 = scmp.eq.s32.totalorder %s29, 1
      %p262 = por %p260, %p261
      %p263 = scmp.ne.s32.totalorder %s254, %s255
      %p264 = scmp.eq.s32.totalorder %s29, 0
      %p265 = por %p263, %p264
      %p266 = scmp.ne.s32.totalorder %s254, %s255
      %p267 = scmp.eq.s32.totalorder %s30, 1
      %p268 = por %p266, %p267
      %p270 = scmp.ne.s32.totalorder %s255, %s269
      %p271 = scmp.eq.s32.totalorder %s30, 0
      %p272 = por %p270, %p271
      %s273 = ssub.s32 %s24, %s31
      %p274 = scmp.eq.s32.totalorder %s273, 0
      %s276 = sadd.s32 %s275, 1
      %s277 = scalar_select %p274, %s275, %s276
      %p280 = pneg %p274
      %p281 = scmp.eq.s32.totalorder %s24, 1
      %p282 = por %p280, %p281
      %p283 = scmp.ne.s32.totalorder %s275, %s278
      %p284 = scmp.eq.s32.totalorder %s24, 0
      %p285 = por %p283, %p284
      %p286 = scmp.ne.s32.totalorder %s275, %s278
      %p287 = scmp.eq.s32.totalorder %s29, 1
      %p288 = por %p286, %p287
      %p289 = scmp.ne.s32.totalorder %s278, %s279
      %p290 = scmp.eq.s32.totalorder %s29, 0
      %p291 = por %p289, %p290
      %p292 = scmp.ne.s32.totalorder %s278, %s279
      %p293 = scmp.eq.s32.totalorder %s30, 1
      %p294 = por %p292, %p293
      %p296 = scmp.ne.s32.totalorder %s279, %s295
      %p297 = scmp.eq.s32.totalorder %s30, 0
      %p298 = por %p296, %p297
      %p299 = scmp.le.s32.totalorder 1, %s24
      %p300 = scmp.lt.s32.totalorder %s24, 3
      %p301 = pnand %p299, %p300
      %p302 = pneg %p301
      // Predicated region
      $region9: #{tpu_custom_call.1} parent=5 // pred_check
        _
      $region10: #{tpu_custom_call.1} parent=5 // pred_check_branch
        %304 = sbr.rel (%p301) target = $region12
      $region11: #{tpu_custom_call.1} parent=5 // pred_region
        %s305 = ssub.s32 %s24, 1
        // Predicated region
        $region13: #{tpu_custom_call.1} parent=11 // pred_check
          %p306 = pneg %p97
        $region14: #{tpu_custom_call.1} parent=11 // pred_check_branch
          %308 = sbr.rel (%p306) target = $region16
        $region15: #{tpu_custom_call.1} parent=11 // pred_region
          _
        $region16: #{tpu_custom_call.1} parent=11 // pred_fallthru
          _
        // Predicated region
        $region17: #{tpu_custom_call.1} parent=11 // pred_check
          %p309 = pneg %p118
        $region18: #{tpu_custom_call.1} parent=11 // pred_check_branch
          %311 = sbr.rel (%p309) target = $region20
        $region19: #{tpu_custom_call.1} parent=11 // pred_region
          _
        $region20: #{tpu_custom_call.1} parent=11 // pred_fallthru
          _
        // Predicated region
        $region21: #{tpu_custom_call.1} parent=11 // pred_check
          %p312 = pneg %p139
        $region22: #{tpu_custom_call.1} parent=11 // pred_check_branch
          %314 = sbr.rel (%p312) target = $region24
        $region23: #{tpu_custom_call.1} parent=11 // pred_region
          %316 = vsyncadd [#allocation7], 0
          %s317 = sshll.u32 %s4, 4
          %s318 = int_to_ptr.hbm [resolvable:$true] %s317
          %s319 = sshll.u32 [#allocation8], 4
          %s320 = int_to_ptr.vmem [resolvable:$true] %s319
          %325 = dma.hbm_to_vmem [thread:$0]  %s318, 512, %s320, [#allocation7], 128, 128, 8
        $region24: #{tpu_custom_call.1} parent=11 // pred_fallthru
          _
        // Predicated region
        $region25: #{tpu_custom_call.1} parent=11 // pred_check
          %p326 = pneg %p160
        $region26: #{tpu_custom_call.1} parent=11 // pred_check_branch
          %328 = sbr.rel (%p326) target = $region28
        $region27: #{tpu_custom_call.1} parent=11 // pred_region
          %330 = vsyncadd [#allocation10], 0
          %s331 = sshll.u32 %s5, 4
          %s332 = int_to_ptr.hbm [resolvable:$true] %s331
          %s333 = sshll.u32 [#allocation9], 4
          %s334 = int_to_ptr.vmem [resolvable:$true] %s333
          %339 = dma.hbm_to_vmem [thread:$0]  %s332, 512, %s334, [#allocation10], 128, 128, 8
        $region28: #{tpu_custom_call.1} parent=11 // pred_fallthru
          _
        // Predicated region
        $region29: #{tpu_custom_call.1} parent=11 // pred_check
          %p340 = pneg %p181
        $region30: #{tpu_custom_call.1} parent=11 // pred_check_branch
          %342 = sbr.rel (%p340) target = $region32
        $region31: #{tpu_custom_call.1} parent=11 // pred_region
          _
        $region32: #{tpu_custom_call.1} parent=11 // pred_fallthru
          _
        // Predicated region
        $region33: #{tpu_custom_call.1} parent=11 // pred_check
          %p343 = pneg %p202
        $region34: #{tpu_custom_call.1} parent=11 // pred_check_branch
          %345 = sbr.rel (%p343) target = $region36
        $region35: #{tpu_custom_call.1} parent=11 // pred_region
          _
        $region36: #{tpu_custom_call.1} parent=11 // pred_fallthru
          _
        // Predicated region
        $region37: #{tpu_custom_call.1} parent=11 // pred_check
          %p346 = pneg %p223
        $region38: #{tpu_custom_call.1} parent=11 // pred_check_branch
          %348 = sbr.rel (%p346) target = $region40
        $region39: #{tpu_custom_call.1} parent=11 // pred_region
          _
        $region40: #{tpu_custom_call.1} parent=11 // pred_fallthru
          _
        // Predicated region
        $region41: #{tpu_custom_call.1} parent=11 // pred_check
          %p349 = pneg %p244
        $region42: #{tpu_custom_call.1} parent=11 // pred_check_branch
          %351 = sbr.rel (%p349) target = $region44
        $region43: #{tpu_custom_call.1} parent=11 // pred_region
          _
        $region44: #{tpu_custom_call.1} parent=11 // pred_fallthru
          _
        // Predicated region
        $region45: #{tpu_custom_call.1} parent=11 // pred_check
          %p352 = pneg %p265
        $region46: #{tpu_custom_call.1} parent=11 // pred_check_branch
          %354 = sbr.rel (%p352) target = $region48
        $region47: #{tpu_custom_call.1} parent=11 // pred_region
          _
        $region48: #{tpu_custom_call.1} parent=11 // pred_fallthru
          _
      $region12: #{tpu_custom_call.1} parent=5 // pred_fallthru
        _
      %p355 = scmp.lt.s32.totalorder %s24, 2
      // Predicated region
      $region49: #{tpu_custom_call.1} parent=5 // pred_check
        %p356 = pneg %p355
      $region50: #{tpu_custom_call.1} parent=5 // pred_check_branch
        %358 = sbr.rel (%p356) target = $region52
      $region51: #{tpu_custom_call.1} parent=5 // pred_region
        // Predicated region
        $region53: #{tpu_custom_call.1} parent=51 // pred_check
          %p359 = pneg %p44
        $region54: #{tpu_custom_call.1} parent=51 // pred_check_branch
          %361 = sbr.rel (%p359) target = $region56
        $region55: #{tpu_custom_call.1} parent=51 // pred_region
          %s362 = sand.u32 %s34, 1
          %s363 = scalar_lea.sflag [#allocation5], %s362
          %s364 = sand.u32 %s34, 1
          %s365 = smul.addr %s364, 256
          %s366 = scalar_lea.vmem [#allocation4], %s365
          %368 = vsyncadd %s363, 0
          %s369 = smul.addr %s24, 32
          %s370 = smul.addr %s369, 8
          %s371 = scalar_lea.hbm %s0, %s370
          %s372 = sshll.u32 %s371, 4
          %s373 = int_to_ptr.hbm [resolvable:$true] %s372
          %s374 = sshll.u32 %s366, 4
          %s375 = int_to_ptr.vmem [resolvable:$true] %s374
          %380 = dma.hbm_to_vmem [thread:$0]  %s373, 4096, %s375, %s363, 128, 128, 8
        $region56: #{tpu_custom_call.1} parent=51 // pred_fallthru
          _
        // Predicated region
        $region57: #{tpu_custom_call.1} parent=51 // pred_check
          %p381 = pneg %p70
        $region58: #{tpu_custom_call.1} parent=51 // pred_check_branch
          %383 = sbr.rel (%p381) target = $region60
        $region59: #{tpu_custom_call.1} parent=51 // pred_region
          %s384 = sand.u32 %s24, 1
          %s385 = scalar_lea.sflag [#allocation7], %s384
          %s386 = sand.u32 %s60, 1
          %s387 = smul.addr %s386, 256
          %s388 = scalar_lea.vmem [#allocation6], %s387
          %390 = vsyncadd %s385, 0
          %s391 = smul.addr %s24, 32
          %s392 = smul.addr %s391, 8
          %s393 = scalar_lea.hbm %s1, %s392
          %s394 = sshll.u32 %s393, 4
          %s395 = int_to_ptr.hbm [resolvable:$true] %s394
          %s396 = sshll.u32 %s388, 4
          %s397 = int_to_ptr.vmem [resolvable:$true] %s396
          %402 = dma.hbm_to_vmem [thread:$0]  %s395, 4096, %s397, %s385, 128, 128, 8
        $region60: #{tpu_custom_call.1} parent=51 // pred_fallthru
          _
      $region52: #{tpu_custom_call.1} parent=5 // pred_fallthru
        _
      %p403 = scmp.le.s32.totalorder 1, %s24
      %p404 = scmp.lt.s32.totalorder %s24, 3
      %p405 = pnand %p403, %p404
      %p406 = pneg %p405
      // Predicated region
      $region61: #{tpu_custom_call.1} parent=5 // pred_check
        _
      $region62: #{tpu_custom_call.1} parent=5 // pred_check_branch
        %408 = sbr.rel (%p405) target = $region64
      $region63: #{tpu_custom_call.1} parent=5 // pred_region
        %s409 = ssub.s32 %s24, 1
        %s410 = sand.u32 %s37, 1
        %s411 = scalar_lea.sflag [#allocation5], %s410
        %s412 = sand.u32 %s37, 1
        %s413 = smul.addr %s412, 256
        %s414 = scalar_lea.vmem [#allocation4], %s413
        // Predicated region
        $region65: #{tpu_custom_call.1} parent=63 // pred_check
          %p415 = pneg %p50
        $region66: #{tpu_custom_call.1} parent=63 // pred_check_branch
          %417 = sbr.rel (%p415) target = $region68
        $region67: #{tpu_custom_call.1} parent=63 // pred_region
          %419 = dma.done %s411, 4096
        $region68: #{tpu_custom_call.1} parent=63 // pred_fallthru
          _
        %s420 = sand.u32 %s29, 1
        %s421 = scalar_lea.sflag [#allocation7], %s420
        %s422 = sand.u32 %s63, 1
        %s423 = smul.addr %s422, 256
        %s424 = scalar_lea.vmem [#allocation6], %s423
        // Predicated region
        $region69: #{tpu_custom_call.1} parent=63 // pred_check
          %p425 = pneg %p76
        $region70: #{tpu_custom_call.1} parent=63 // pred_check_branch
          %427 = sbr.rel (%p425) target = $region72
        $region71: #{tpu_custom_call.1} parent=63 // pred_region
          %429 = dma.done %s421, 4096
        $region72: #{tpu_custom_call.1} parent=63 // pred_fallthru
          _
        // Predicated region
        $region73: #{tpu_custom_call.1} parent=63 // pred_check
          %p430 = pneg %p139
        $region74: #{tpu_custom_call.1} parent=63 // pred_check_branch
          %432 = sbr.rel (%p430) target = $region76
        $region75: #{tpu_custom_call.1} parent=63 // pred_region
          %434 = dma.done [#allocation7], 512
        $region76: #{tpu_custom_call.1} parent=63 // pred_fallthru
          _
        // Predicated region
        $region77: #{tpu_custom_call.1} parent=63 // pred_check
          %p435 = pneg %p160
        $region78: #{tpu_custom_call.1} parent=63 // pred_check_branch
          %437 = sbr.rel (%p435) target = $region80
        $region79: #{tpu_custom_call.1} parent=63 // pred_region
          %439 = dma.done [#allocation10], 512
        $region80: #{tpu_custom_call.1} parent=63 // pred_fallthru
          _
        %s440 = sand.u32 %s37, 1
        %s441 = scalar_lea.sflag [#allocation5], %s440
        %s442 = sand.u32 %s37, 1
        %s443 = smul.addr %s442, 256
        %s444 = scalar_lea.vmem [#allocation4], %s443
        %p445 = pneg %p50
        %p446 = pneg %p47
        %s447 = sand.u32 %s29, 1
        %s448 = scalar_lea.sflag [#allocation7], %s447
        %s449 = sand.u32 %s63, 1
        %s450 = smul.addr %s449, 256
        %s451 = scalar_lea.vmem [#allocation6], %s450
        %p452 = pneg %p76
        %p453 = pneg %p73
        %p454 = pneg %p97
        %p455 = pneg %p94
        %p456 = pneg %p118
        %p457 = pneg %p115
        %p458 = pneg %p139
        %p459 = pneg %p136
        %p460 = pneg %p160
        %p461 = pneg %p157
        %p462 = pneg %p181
        %p463 = pneg %p178
        %p464 = pneg %p202
        %p465 = pneg %p199
        %p466 = pneg %p223
        %p467 = pneg %p220
        %p468 = pneg %p244
        %p469 = pneg %p241
        %p470 = pneg %p265
        %p471 = pneg %p262
        %p472 = pneg %p291
        %p473 = pneg %p288
        %p474 = scmp.lt.s32.totalorder %s29, 1
        %s475 = scalar_select %p474, %s29, 1
        %s476 = smul.addr %s475, 32
        %s477 = smul.addr %s476, 8
        %s478 = scalar_lea.vmem %s11, %s477
        %p479 = scmp.lt.s32.totalorder %s29, 1
        %s480 = scalar_select %p479, %s29, 1
        %s481 = smul.addr %s480, 32
        %s482 = smul.addr %s481, 8
        %s483 = scalar_lea.vmem %s11, %s482
        %vm484 = vcmask 261120
        %485 = vst.msk [vmem:[#allocation2] sm:$0xff] %vm484, 0.0
        %486 = vst.msk [vmem:[#allocation2 + $0x8] sm:$0xff] %vm484, 0.0
        %vm487 = vcmask 254976
        %488 = vst.msk [vmem:[#allocation2 + $0x10] sm:$0x3] %vm487, 0.0
        %489 = vst.msk [vmem:[#allocation2 + $0x18] sm:$0xff] %vm484, 0.0
        %490 = vst.msk [vmem:[#allocation2 + $0x20] sm:$0xff] %vm484, 0.0
        %491 = vst.msk [vmem:[#allocation2 + $0x28] sm:$0x3] %vm487, 0.0
        %492 = vst.msk [vmem:[#allocation2 + $0x30] sm:$0xff] %vm484, 0.0
        %493 = vst.msk [vmem:[#allocation2 + $0x38] sm:$0xff] %vm484, 0.0
        %494 = vst.msk [vmem:[#allocation2 + $0x40] sm:$0x3] %vm487, 0.0
        %495 = vst.msk [vmem:[#allocation2 + $0x48] sm:$0xff] %vm484, 0.0
        %496 = vst.msk [vmem:[#allocation2 + $0x50] sm:$0xff] %vm484, 0.0
        %497 = vst.msk [vmem:[#allocation2 + $0x58] sm:$0x3] %vm487, 0.0
        %498 = vst.msk [vmem:[#allocation2 + $0x60] sm:$0xff] %vm484, 0.0
        %499 = vst.msk [vmem:[#allocation2 + $0x68] sm:$0xff] %vm484, 0.0
        %500 = vst.msk [vmem:[#allocation2 + $0x70] sm:$0x3] %vm487, 0.0
        %501 = vst.msk [vmem:[#allocation2 + $0x78] sm:$0xff] %vm484, 0.0
        %502 = vst.msk [vmem:[#allocation2 + $0x80] sm:$0xff] %vm484, 0.0
        %503 = vst.msk [vmem:[#allocation2 + $0x88] sm:$0x3] %vm487, 0.0
        %504 = vst.msk [vmem:[#allocation2 + $0x90] sm:$0xff] %vm484, 0.0
        %505 = vst.msk [vmem:[#allocation2 + $0x98] sm:$0xff] %vm484, 0.0
        %506 = vst.msk [vmem:[#allocation2 + $0xa0] sm:$0x3] %vm487, 0.0
        %507 = vst.msk [vmem:[#allocation2 + $0xa8] sm:$0xff] %vm484, 0.0
        %508 = vst.msk [vmem:[#allocation2 + $0xb0] sm:$0xff] %vm484, 0.0
        %509 = vst.msk [vmem:[#allocation2 + $0xb8] sm:$0x3] %vm487, 0.0
        %510 = vst.msk [vmem:[#allocation2 + $0xc0] sm:$0xff] %vm484, 0.0
        %511 = vst.msk [vmem:[#allocation2 + $0xc8] sm:$0xff] %vm484, 0.0
        %512 = vst.msk [vmem:[#allocation2 + $0xd0] sm:$0x3] %vm487, 0.0
        %513 = vst.msk [vmem:[#allocation2 + $0xd8] sm:$0xff] %vm484, 0.0
        %514 = vst.msk [vmem:[#allocation2 + $0xe0] sm:$0xff] %vm484, 0.0
        %515 = vst.msk [vmem:[#allocation2 + $0xe8] sm:$0x3] %vm487, 0.0
        %516 = vst.msk [vmem:[#allocation2 + $0xf0] sm:$0xff] %vm484, 0.0
        %517 = vst.msk [vmem:[#allocation2 + $0xf8] sm:$0xff] %vm484, 0.0
        %518 = vst.msk [vmem:[#allocation2 + $0x100] sm:$0x3] %vm487, 0.0
        %519 = vst.msk [vmem:[#allocation2 + $0x108] sm:$0xff] %vm484, 0.0
        %520 = vst.msk [vmem:[#allocation2 + $0x110] sm:$0xff] %vm484, 0.0
        %521 = vst.msk [vmem:[#allocation2 + $0x118] sm:$0x3] %vm487, 0.0
        %522 = vst.msk [vmem:[#allocation2 + $0x120] sm:$0xff] %vm484, 0.0
        %523 = vst.msk [vmem:[#allocation2 + $0x128] sm:$0xff] %vm484, 0.0
        %524 = vst.msk [vmem:[#allocation2 + $0x130] sm:$0x3] %vm487, 0.0
        %525 = vst.msk [vmem:[#allocation2 + $0x138] sm:$0xff] %vm484, 0.0
        %526 = vst.msk [vmem:[#allocation2 + $0x140] sm:$0xff] %vm484, 0.0
        %527 = vst.msk [vmem:[#allocation2 + $0x148] sm:$0x3] %vm487, 0.0
        %528 = vst.msk [vmem:[#allocation2 + $0x150] sm:$0xff] %vm484, 0.0
        %529 = vst.msk [vmem:[#allocation2 + $0x158] sm:$0xff] %vm484, 0.0
        %530 = vst.msk [vmem:[#allocation2 + $0x160] sm:$0x3] %vm487, 0.0
        %531 = vst.msk [vmem:[#allocation2 + $0x168] sm:$0xff] %vm484, 0.0
        %532 = vst.msk [vmem:[#allocation2 + $0x170] sm:$0xff] %vm484, 0.0
        %533 = vst.msk [vmem:[#allocation2 + $0x178] sm:$0x3] %vm487, 0.0
        %534 = vst.msk [vmem:[#allocation2 + $0x180] sm:$0xff] %vm484, 0.0
        %535 = vst.msk [vmem:[#allocation2 + $0x188] sm:$0xff] %vm484, 0.0
        %536 = vst.msk [vmem:[#allocation2 + $0x190] sm:$0x3] %vm487, 0.0
        %537 = vst.msk [vmem:[#allocation2 + $0x198] sm:$0xff] %vm484, 0.0
        %538 = vst.msk [vmem:[#allocation2 + $0x1a0] sm:$0xff] %vm484, 0.0
        %539 = vst.msk [vmem:[#allocation2 + $0x1a8] sm:$0x3] %vm487, 0.0
        %vm540 = vcmask 15360
        %541 = vst.msk [vmem:[#allocation3] sm:$0xff] %vm540, 0.0
        %542 = vst.msk [vmem:[#allocation3 + $0x8] sm:$0xff] %vm540, 0.0
        %vm543 = vcmask 9216
        %544 = vst.msk [vmem:[#allocation3 + $0x10] sm:$0x3] %vm543, 0.0
        %545 = vst.msk [vmem:[#allocation3 + $0x18] sm:$0xff] %vm540, 0.0
        %546 = vst.msk [vmem:[#allocation3 + $0x20] sm:$0xff] %vm540, 0.0
        %547 = vst.msk [vmem:[#allocation3 + $0x28] sm:$0x3] %vm543, 0.0
        %548 = vst.msk [vmem:[#allocation3 + $0x30] sm:$0xff] %vm540, 0.0
        %549 = vst.msk [vmem:[#allocation3 + $0x38] sm:$0xff] %vm540, 0.0
        %550 = vst.msk [vmem:[#allocation3 + $0x40] sm:$0x3] %vm543, 0.0
        %551 = vst.msk [vmem:[#allocation3 + $0x48] sm:$0xff] %vm540, 0.0
        %552 = vst.msk [vmem:[#allocation3 + $0x50] sm:$0xff] %vm540, 0.0
        %553 = vst.msk [vmem:[#allocation3 + $0x58] sm:$0x3] %vm543, 0.0
        %554 = vst.msk [vmem:[#allocation3 + $0x60] sm:$0xff] %vm540, 0.0
        %555 = vst.msk [vmem:[#allocation3 + $0x68] sm:$0xff] %vm540, 0.0
        %556 = vst.msk [vmem:[#allocation3 + $0x70] sm:$0x3] %vm543, 0.0
        %557 = vst.msk [vmem:[#allocation3 + $0x78] sm:$0xff] %vm540, 0.0
        %558 = vst.msk [vmem:[#allocation3 + $0x80] sm:$0xff] %vm540, 0.0
        %559 = vst.msk [vmem:[#allocation3 + $0x88] sm:$0x3] %vm543, 0.0
        %560 = vst.msk [vmem:[#allocation3 + $0x90] sm:$0xff] %vm540, 0.0
        %561 = vst.msk [vmem:[#allocation3 + $0x98] sm:$0xff] %vm540, 0.0
        %562 = vst.msk [vmem:[#allocation3 + $0xa0] sm:$0x3] %vm543, 0.0
        %563 = vst.msk [vmem:[#allocation3 + $0xa8] sm:$0xff] %vm540, 0.0
        %564 = vst.msk [vmem:[#allocation3 + $0xb0] sm:$0xff] %vm540, 0.0
        %565 = vst.msk [vmem:[#allocation3 + $0xb8] sm:$0x3] %vm543, 0.0
        %566 = vst.msk [vmem:[#allocation3 + $0xc0] sm:$0xff] %vm540, 0.0
        %567 = vst.msk [vmem:[#allocation3 + $0xc8] sm:$0xff] %vm540, 0.0
        %568 = vst.msk [vmem:[#allocation3 + $0xd0] sm:$0x3] %vm543, 0.0
        %569 = vst.msk [vmem:[#allocation3 + $0xd8] sm:$0xff] %vm540, 0.0
        %570 = vst.msk [vmem:[#allocation3 + $0xe0] sm:$0xff] %vm540, 0.0
        %571 = vst.msk [vmem:[#allocation3 + $0xe8] sm:$0x3] %vm543, 0.0
        %572 = vst.msk [vmem:[#allocation3 + $0xf0] sm:$0xff] %vm540, 0.0
        %573 = vst.msk [vmem:[#allocation3 + $0xf8] sm:$0xff] %vm540, 0.0
        %574 = vst.msk [vmem:[#allocation3 + $0x100] sm:$0x3] %vm543, 0.0
        %575 = vst.msk [vmem:[#allocation3 + $0x108] sm:$0xff] %vm540, 0.0
        %576 = vst.msk [vmem:[#allocation3 + $0x110] sm:$0xff] %vm540, 0.0
        %577 = vst.msk [vmem:[#allocation3 + $0x118] sm:$0x3] %vm543, 0.0
        %578 = vst.msk [vmem:[#allocation3 + $0x120] sm:$0xff] %vm540, 0.0
        %579 = vst.msk [vmem:[#allocation3 + $0x128] sm:$0xff] %vm540, 0.0
        %580 = vst.msk [vmem:[#allocation3 + $0x130] sm:$0x3] %vm543, 0.0
        %581 = vst.msk [vmem:[#allocation3 + $0x138] sm:$0xff] %vm540, 0.0
        %582 = vst.msk [vmem:[#allocation3 + $0x140] sm:$0xff] %vm540, 0.0
        %583 = vst.msk [vmem:[#allocation3 + $0x148] sm:$0x3] %vm543, 0.0
        %584 = vst.msk [vmem:[#allocation3 + $0x150] sm:$0xff] %vm540, 0.0
        %585 = vst.msk [vmem:[#allocation3 + $0x158] sm:$0xff] %vm540, 0.0
        %586 = vst.msk [vmem:[#allocation3 + $0x160] sm:$0x3] %vm543, 0.0
        %587 = vst.msk [vmem:[#allocation3 + $0x168] sm:$0xff] %vm540, 0.0
        %588 = vst.msk [vmem:[#allocation3 + $0x170] sm:$0xff] %vm540, 0.0
        %589 = vst.msk [vmem:[#allocation3 + $0x178] sm:$0x3] %vm543, 0.0
        %590 = vst.msk [vmem:[#allocation3 + $0x180] sm:$0xff] %vm540, 0.0
        %591 = vst.msk [vmem:[#allocation3 + $0x188] sm:$0xff] %vm540, 0.0
        %592 = vst.msk [vmem:[#allocation3 + $0x190] sm:$0x3] %vm543, 0.0
        %593 = vst.msk [vmem:[#allocation3 + $0x198] sm:$0xff] %vm540, 0.0
        %594 = vst.msk [vmem:[#allocation3 + $0x1a0] sm:$0xff] %vm540, 0.0
        %595 = vst.msk [vmem:[#allocation3 + $0x1a8] sm:$0x3] %vm543, 0.0
        %v596 = vld [vmem:[%s2] sm:$0xff]
        %v597 = vld [vmem:[%s2 + $0x8] sm:$0xff]
        %v598 = vld [vmem:[%s2 + $0x10] sm:$0xff]
        %v599 = vld [vmem:[%s2 + $0x18] sm:$0xff]
        %v600 = vld [vmem:[%s2 + $0x20] sm:$0xff]
        %v601 = vld [vmem:[%s2 + $0x28] sm:$0xff]
        %v602 = vld [vmem:[%s2 + $0x30] sm:$0xff]
        %v603 = vld [vmem:[%s2 + $0x38] sm:$0xff]
        %v604 = vld [vmem:[%s2 + $0x40] sm:$0xff]
        %v605 = vld [vmem:[%s2 + $0x48] sm:$0xff]
        %v606 = vld [vmem:[%s2 + $0x50] sm:$0xff]
        %v607 = vld [vmem:[%s2 + $0x58] sm:$0xff]
        %v608 = vld [vmem:[%s2 + $0x60] sm:$0xff]
        %v609 = vld [vmem:[%s2 + $0x68] sm:$0xff]
        %v610 = vld [vmem:[%s2 + $0x70] sm:$0xff]
        %v611 = vld [vmem:[%s2 + $0x78] sm:$0xff]
        %v612 = vld [vmem:[%s2 + $0x80] sm:$0xff]
        %v613 = vld [vmem:[%s2 + $0x88] sm:$0xff]
        %v614 = vld [vmem:[%s2 + $0x90] sm:$0xff]
        %v615 = vld [vmem:[%s2 + $0x98] sm:$0xff]
        %v616 = vld [vmem:[%s2 + $0xa0] sm:$0xff]
        %v617 = vld [vmem:[%s2 + $0xa8] sm:$0xff]
        %v618 = vld [vmem:[%s2 + $0xb0] sm:$0xff]
        %v619 = vld [vmem:[%s2 + $0xb8] sm:$0xff]
        %v620 = vld [vmem:[%s2 + $0xc0] sm:$0xff]
        %v621 = vld [vmem:[%s2 + $0xc8] sm:$0xff]
        %v622 = vld [vmem:[%s2 + $0xd0] sm:$0xff]
        %v623 = vld [vmem:[%s2 + $0xd8] sm:$0xff]
        %v624 = vld [vmem:[%s2 + $0xe0] sm:$0xff]
        %v625 = vld [vmem:[%s2 + $0xe8] sm:$0xff]
        %v626 = vld [vmem:[%s2 + $0xf0] sm:$0xff]
        %v627 = vld [vmem:[%s2 + $0xf8] sm:$0xff]
        %v628 = vld [vmem:[%s2 + $0x100] sm:$0xff]
        %v629 = vld [vmem:[%s2 + $0x108] sm:$0xff]
        %v630 = vld [vmem:[%s2 + $0x110] sm:$0xff]
        %v631 = vld [vmem:[%s2 + $0x118] sm:$0xff]
        %v632 = vld [vmem:[#allocation8] sm:$0xff]
        %v633 = vld [vmem:[#allocation8 + $0x8] sm:$0xff]
        %v634 = vld [vmem:[#allocation8 + $0x10] sm:$0xff]
        %v635 = vld [vmem:[#allocation8 + $0x18] sm:$0xff]
        %v636 = vld [vmem:[#allocation9] sm:$0xff]
        %v637 = vld [vmem:[#allocation9 + $0x8] sm:$0xff]
        %v638 = vld [vmem:[#allocation9 + $0x10] sm:$0xff]
        %v639 = vld [vmem:[#allocation9 + $0x18] sm:$0xff]
        %v640 = vld [vmem:[%s7] sm:$0xff]
        %v641 = vld [vmem:[%s7 + $0x8] sm:$0xff]
        %v642 = vld [vmem:[%s7 + $0x10] sm:$0xff]
        %v643 = vld [vmem:[%s7 + $0x18] sm:$0xff]
        %v644 = vld [vmem:[%s7 + $0x20] sm:$0xff]
        %v645 = vld [vmem:[%s7 + $0x28] sm:$0xff]
        %v646 = vld [vmem:[%s7 + $0x30] sm:$0xff]
        %v647 = vld [vmem:[%s7 + $0x38] sm:$0xff]
        %v648 = vld [vmem:[%s7 + $0x40] sm:$0xff]
        %v649 = vld [vmem:[%s7 + $0x48] sm:$0xff]
        %v650 = vld [vmem:[%s7 + $0x50] sm:$0xff]
        %v651 = vld [vmem:[%s7 + $0x58] sm:$0xff]
        %v652 = vld [vmem:[%s7 + $0x60] sm:$0xff]
        %v653 = vld [vmem:[%s7 + $0x68] sm:$0xff]
        %v654 = vld [vmem:[%s7 + $0x70] sm:$0xff]
        %v655 = vld [vmem:[%s7 + $0x78] sm:$0xff]
        %v656 = vld [vmem:[%s7 + $0x80] sm:$0xff]
        %v657 = vld [vmem:[%s7 + $0x88] sm:$0xff]
        %v658 = vld [vmem:[%s7 + $0x90] sm:$0xff]
        %v659 = vld [vmem:[%s7 + $0x98] sm:$0xff]
        %v660 = vld [vmem:[%s7 + $0xa0] sm:$0xff]
        %v661 = vld [vmem:[%s7 + $0xa8] sm:$0xff]
        %v662 = vld [vmem:[%s7 + $0xb0] sm:$0xff]
        %v663 = vld [vmem:[%s7 + $0xb8] sm:$0xff]
        %v664 = vld [vmem:[%s7 + $0xc0] sm:$0xff]
        %v665 = vld [vmem:[%s7 + $0xc8] sm:$0xff]
        %v666 = vld [vmem:[%s7 + $0xd0] sm:$0xff]
        %v667 = vld [vmem:[%s7 + $0xd8] sm:$0xff]
        %v668 = vld [vmem:[%s7 + $0xe0] sm:$0xff]
        %v669 = vld [vmem:[%s7 + $0xe8] sm:$0xff]
        %v670 = vld [vmem:[%s7 + $0xf0] sm:$0xff]
        %v671 = vld [vmem:[%s7 + $0xf8] sm:$0xff]
        %v672 = vld [vmem:[%s7 + $0x100] sm:$0xff]
        %v673 = vld [vmem:[%s7 + $0x108] sm:$0xff]
        %v674 = vld [vmem:[%s7 + $0x110] sm:$0xff]
        %v675 = vld [vmem:[%s7 + $0x118] sm:$0xff]
        %v676 = vld [vmem:[%s9] sm:$0x3]
        %v677 = vld [vmem:[%s9 + $0x2] sm:$0x3]
        %v678 = vld [vmem:[%s9 + $0x4] sm:$0x3]
        %v679 = vld [vmem:[%s9 + $0x6] sm:$0x3]
        %v680 = vld [vmem:[%s9 + $0x8] sm:$0x3]
        %v681 = vld [vmem:[%s9 + $0xa] sm:$0x3]
        %v682 = vld [vmem:[%s9 + $0xc] sm:$0x3]
        %v683 = vld [vmem:[%s9 + $0xe] sm:$0x3]
        %v684 = vld [vmem:[%s9 + $0x10] sm:$0x3]
        %v685 = vld [vmem:[%s3] sm:$0x1]
        %v686 = vld [vmem:[%s6] sm:$0x1]
        %v687 = vld [vmem:[%s8] sm:$0x1]
        %v688 = vld [vmem:[%s10] sm:$0x1]
        %v689 = vld [vmem:[%s414] sm:$0xff]
        %v690 = vld [vmem:[%s414 + $0x8] sm:$0xff]
        %v691 = vld [vmem:[%s414 + $0x10] sm:$0xff]
        %v692 = vld [vmem:[%s414 + $0x18] sm:$0xff]
        %v693 = vld [vmem:[%s414 + $0x20] sm:$0xff]
        %v694 = vld [vmem:[%s414 + $0x28] sm:$0xff]
        %v695 = vld [vmem:[%s414 + $0x30] sm:$0xff]
        %v696 = vld [vmem:[%s414 + $0x38] sm:$0xff]
        %v697 = vld [vmem:[%s414 + $0x40] sm:$0xff]
        %v698 = vld [vmem:[%s414 + $0x48] sm:$0xff]
        %v699 = vld [vmem:[%s414 + $0x50] sm:$0xff]
        %v700 = vld [vmem:[%s414 + $0x58] sm:$0xff]
        %v701 = vld [vmem:[%s414 + $0x60] sm:$0xff]
        %v702 = vld [vmem:[%s414 + $0x68] sm:$0xff]
        %v703 = vld [vmem:[%s414 + $0x70] sm:$0xff]
        %v704 = vld [vmem:[%s414 + $0x78] sm:$0xff]
        %v705 = vld [vmem:[%s414 + $0x80] sm:$0xff]
        %v706 = vld [vmem:[%s414 + $0x88] sm:$0xff]
        %v707 = vld [vmem:[%s414 + $0x90] sm:$0xff]
        %v708 = vld [vmem:[%s414 + $0x98] sm:$0xff]
        %v709 = vld [vmem:[%s414 + $0xa0] sm:$0xff]
        %v710 = vld [vmem:[%s414 + $0xa8] sm:$0xff]
        %v711 = vld [vmem:[%s414 + $0xb0] sm:$0xff]
        %v712 = vld [vmem:[%s414 + $0xb8] sm:$0xff]
        %v713 = vld [vmem:[%s414 + $0xc0] sm:$0xff]
        %v714 = vld [vmem:[%s414 + $0xc8] sm:$0xff]
        %v715 = vld [vmem:[%s414 + $0xd0] sm:$0xff]
        %v716 = vld [vmem:[%s414 + $0xd8] sm:$0xff]
        %v717 = vld [vmem:[%s414 + $0xe0] sm:$0xff]
        %v718 = vld [vmem:[%s414 + $0xe8] sm:$0xff]
        %v719 = vld [vmem:[%s414 + $0xf0] sm:$0xff]
        %v720 = vld [vmem:[%s414 + $0xf8] sm:$0xff]
        %s721 = scalar_lea.vmem [#allocation2], 24
        %722 = vst.msk [vmem:[%s721 + $0x1] sm:$0xff] %vm484, %v689
        %723 = vst.msk [vmem:[%s721 + $0x9] sm:$0xff] %vm484, %v690
        %724 = vst.msk [vmem:[%s721 + $0x19] sm:$0xff] %vm484, %v691
        %725 = vst.msk [vmem:[%s721 + $0x21] sm:$0xff] %vm484, %v692
        %726 = vst.msk [vmem:[%s721 + $0x31] sm:$0xff] %vm484, %v693
        %727 = vst.msk [vmem:[%s721 + $0x39] sm:$0xff] %vm484, %v694
        %728 = vst.msk [vmem:[%s721 + $0x49] sm:$0xff] %vm484, %v695
        %729 = vst.msk [vmem:[%s721 + $0x51] sm:$0xff] %vm484, %v696
        %730 = vst.msk [vmem:[%s721 + $0x61] sm:$0xff] %vm484, %v697
        %731 = vst.msk [vmem:[%s721 + $0x69] sm:$0xff] %vm484, %v698
        %732 = vst.msk [vmem:[%s721 + $0x79] sm:$0xff] %vm484, %v699
        %733 = vst.msk [vmem:[%s721 + $0x81] sm:$0xff] %vm484, %v700
        %734 = vst.msk [vmem:[%s721 + $0x91] sm:$0xff] %vm484, %v701
        %735 = vst.msk [vmem:[%s721 + $0x99] sm:$0xff] %vm484, %v702
        %736 = vst.msk [vmem:[%s721 + $0xa9] sm:$0xff] %vm484, %v703
        %737 = vst.msk [vmem:[%s721 + $0xb1] sm:$0xff] %vm484, %v704
        %738 = vst.msk [vmem:[%s721 + $0xc1] sm:$0xff] %vm484, %v705
        %739 = vst.msk [vmem:[%s721 + $0xc9] sm:$0xff] %vm484, %v706
        %740 = vst.msk [vmem:[%s721 + $0xd9] sm:$0xff] %vm484, %v707
        %741 = vst.msk [vmem:[%s721 + $0xe1] sm:$0xff] %vm484, %v708
        %742 = vst.msk [vmem:[%s721 + $0xf1] sm:$0xff] %vm484, %v709
        %743 = vst.msk [vmem:[%s721 + $0xf9] sm:$0xff] %vm484, %v710
        %744 = vst.msk [vmem:[%s721 + $0x109] sm:$0xff] %vm484, %v711
        %745 = vst.msk [vmem:[%s721 + $0x111] sm:$0xff] %vm484, %v712
        %746 = vst.msk [vmem:[%s721 + $0x121] sm:$0xff] %vm484, %v713
        %747 = vst.msk [vmem:[%s721 + $0x129] sm:$0xff] %vm484, %v714
        %748 = vst.msk [vmem:[%s721 + $0x139] sm:$0xff] %vm484, %v715
        %749 = vst.msk [vmem:[%s721 + $0x141] sm:$0xff] %vm484, %v716
        %750 = vst.msk [vmem:[%s721 + $0x151] sm:$0xff] %vm484, %v717
        %751 = vst.msk [vmem:[%s721 + $0x159] sm:$0xff] %vm484, %v718
        %752 = vst.msk [vmem:[%s721 + $0x169] sm:$0xff] %vm484, %v719
        %753 = vst.msk [vmem:[%s721 + $0x171] sm:$0xff] %vm484, %v720
        %v754 = vld [vmem:[#allocation2] sm:$0xff]
        %v755 = vld [vmem:[#allocation2 + $0x8] sm:$0xff]
        %v756 = vld [vmem:[#allocation2 + $0x18] sm:$0xff]
        %v757 = vld [vmem:[#allocation2 + $0x20] sm:$0xff]
        %v758 = vld [vmem:[#allocation2 + $0x30] sm:$0xff]
        %v759 = vld [vmem:[#allocation2 + $0x38] sm:$0xff]
        %v760 = vld [vmem:[#allocation2 + $0x48] sm:$0xff]
        %v761 = vld [vmem:[#allocation2 + $0x50] sm:$0xff]
        %v762 = vld [vmem:[#allocation2 + $0x60] sm:$0xff]
        %v763 = vld [vmem:[#allocation2 + $0x68] sm:$0xff]
        %v764 = vld [vmem:[#allocation2 + $0x78] sm:$0xff]
        %v765 = vld [vmem:[#allocation2 + $0x80] sm:$0xff]
        %v766 = vld [vmem:[#allocation2 + $0x90] sm:$0xff]
        %v767 = vld [vmem:[#allocation2 + $0x98] sm:$0xff]
        %v768 = vld [vmem:[#allocation2 + $0xa8] sm:$0xff]
        %v769 = vld [vmem:[#allocation2 + $0xb0] sm:$0xff]
        %v770 = vld [vmem:[#allocation2 + $0xc0] sm:$0xff]
        %v771 = vld [vmem:[#allocation2 + $0xc8] sm:$0xff]
        %v772 = vld [vmem:[#allocation2 + $0xd8] sm:$0xff]
        %v773 = vld [vmem:[#allocation2 + $0xe0] sm:$0xff]
        %v774 = vld [vmem:[#allocation2 + $0xf0] sm:$0xff]
        %v775 = vld [vmem:[#allocation2 + $0xf8] sm:$0xff]
        %v776 = vld [vmem:[#allocation2 + $0x108] sm:$0xff]
        %v777 = vld [vmem:[#allocation2 + $0x110] sm:$0xff]
        %v778 = vld [vmem:[#allocation2 + $0x120] sm:$0xff]
        %v779 = vld [vmem:[#allocation2 + $0x128] sm:$0xff]
        %v780 = vld [vmem:[#allocation2 + $0x138] sm:$0xff]
        %v781 = vld [vmem:[#allocation2 + $0x140] sm:$0xff]
        %v782 = vld [vmem:[#allocation2 + $0x150] sm:$0xff]
        %v783 = vld [vmem:[#allocation2 + $0x158] sm:$0xff]
        %v784 = vld [vmem:[#allocation2 + $0x168] sm:$0xff]
        %v785 = vld [vmem:[#allocation2 + $0x170] sm:$0xff]
        %v786 = vld [vmem:[#allocation2 + $0x1] sm:$0xff]
        %v787 = vld [vmem:[#allocation2 + $0x9] sm:$0xff]
        %v788 = vld [vmem:[#allocation2 + $0x19] sm:$0xff]
        %v789 = vld [vmem:[#allocation2 + $0x21] sm:$0xff]
        %v790 = vld [vmem:[#allocation2 + $0x31] sm:$0xff]
        %v791 = vld [vmem:[#allocation2 + $0x39] sm:$0xff]
        %v792 = vld [vmem:[#allocation2 + $0x49] sm:$0xff]
        %v793 = vld [vmem:[#allocation2 + $0x51] sm:$0xff]
        %v794 = vld [vmem:[#allocation2 + $0x61] sm:$0xff]
        %v795 = vld [vmem:[#allocation2 + $0x69] sm:$0xff]
        %v796 = vld [vmem:[#allocation2 + $0x79] sm:$0xff]
        %v797 = vld [vmem:[#allocation2 + $0x81] sm:$0xff]
        %v798 = vld [vmem:[#allocation2 + $0x91] sm:$0xff]
        %v799 = vld [vmem:[#allocation2 + $0x99] sm:$0xff]
        %v800 = vld [vmem:[#allocation2 + $0xa9] sm:$0xff]
        %v801 = vld [vmem:[#allocation2 + $0xb1] sm:$0xff]
        %v802 = vld [vmem:[#allocation2 + $0xc1] sm:$0xff]
        %v803 = vld [vmem:[#allocation2 + $0xc9] sm:$0xff]
        %v804 = vld [vmem:[#allocation2 + $0xd9] sm:$0xff]
        %v805 = vld [vmem:[#allocation2 + $0xe1] sm:$0xff]
        %v806 = vld [vmem:[#allocation2 + $0xf1] sm:$0xff]
        %v807 = vld [vmem:[#allocation2 + $0xf9] sm:$0xff]
        %v808 = vld [vmem:[#allocation2 + $0x109] sm:$0xff]
        %v809 = vld [vmem:[#allocation2 + $0x111] sm:$0xff]
        %v810 = vld [vmem:[#allocation2 + $0x121] sm:$0xff]
        %v811 = vld [vmem:[#allocation2 + $0x129] sm:$0xff]
        %v812 = vld [vmem:[#allocation2 + $0x139] sm:$0xff]
        %v813 = vld [vmem:[#allocation2 + $0x141] sm:$0xff]
        %v814 = vld [vmem:[#allocation2 + $0x151] sm:$0xff]
        %v815 = vld [vmem:[#allocation2 + $0x159] sm:$0xff]
        %v816 = vld [vmem:[#allocation2 + $0x169] sm:$0xff]
        %v817 = vld [vmem:[#allocation2 + $0x171] sm:$0xff]
        %v819 = vsel %vm484, %v786, 0
        %v822 = vsel %vm484, %v787, 0
        %v825 = vsel %vm484, %v788, 0
        %v828 = vsel %vm484, %v789, 0
        %v831 = vsel %vm484, %v790, 0
        %v834 = vsel %vm484, %v791, 0
        %v837 = vsel %vm484, %v792, 0
        %v840 = vsel %vm484, %v793, 0
        %v843 = vsel %vm484, %v794, 0
        %v846 = vsel %vm484, %v795, 0
        %v849 = vsel %vm484, %v796, 0
        %v852 = vsel %vm484, %v797, 0
        %v855 = vsel %vm484, %v798, 0
        %v858 = vsel %vm484, %v799, 0
        %v861 = vsel %vm484, %v800, 0
        %v864 = vsel %vm484, %v801, 0
        %v867 = vsel %vm484, %v802, 0
        %v870 = vsel %vm484, %v803, 0
        %v873 = vsel %vm484, %v804, 0
        %v876 = vsel %vm484, %v805, 0
        %v879 = vsel %vm484, %v806, 0
        %v882 = vsel %vm484, %v807, 0
        %v885 = vsel %vm484, %v808, 0
        %v888 = vsel %vm484, %v809, 0
        %v891 = vsel %vm484, %v810, 0
        %v894 = vsel %vm484, %v811, 0
        %v897 = vsel %vm484, %v812, 0
        %v900 = vsel %vm484, %v813, 0
        %v903 = vsel %vm484, %v814, 0
        %v906 = vsel %vm484, %v815, 0
        %v909 = vsel %vm484, %v816, 0
        %v912 = vsel %vm484, %v817, 0
        %914 = vmatpush.msra.mxu0 0.0
        %915 = vmatpush.msra.mxu0 0.0
        %916 = vmatpush.msra.mxu0 0.0
        %917 = vmatpush.msra.mxu0 0.0
        %918 = vmatpush.msra.mxu0 0.0
        %919 = vmatpush.msra.mxu0 0.0
        %920 = vmatpush.msra.mxu0 0.0
        %921 = vmatpush.msra.mxu0 0.0
        %922 = vmatpush.msra.mxu0 0.0
        %923 = vmatpush.msra.mxu0 0.0
        %924 = vmatpush.msra.mxu0 0.0
        %925 = vmatpush.msra.mxu0 0.0
        %926 = vmatpush.msra.mxu0 %v603
        %927 = vmatpush.msra.mxu0 %v602
        %928 = vmatpush.msra.mxu0 %v601
        %929 = vmatpush.msra.mxu0 %v600
        %930 = vmatmul.f32.gmra.mxu0 %v819
        %v931 = vpop.f32.mrf.mxu0
        %v932 = vadd.f32 0.0, %v931
        %933 = vmatmul.f32.gmra.mxu0 %v822
        %v934 = vpop.f32.mrf.mxu0
        %v935 = vadd.f32 0.0, %v934
        %936 = vmatmul.f32.gmra.mxu0 %v825
        %v937 = vpop.f32.mrf.mxu0
        %v938 = vadd.f32 0.0, %v937
        %939 = vmatmul.f32.gmra.mxu0 %v828
        %v940 = vpop.f32.mrf.mxu0
        %v941 = vadd.f32 0.0, %v940
        %942 = vmatmul.f32.gmra.mxu0 %v831
        %v943 = vpop.f32.mrf.mxu0
        %v944 = vadd.f32 0.0, %v943
        %945 = vmatmul.f32.gmra.mxu0 %v834
        %v946 = vpop.f32.mrf.mxu0
        %v947 = vadd.f32 0.0, %v946
        %948 = vmatmul.f32.gmra.mxu0 %v837
        %v949 = vpop.f32.mrf.mxu0
        %v950 = vadd.f32 0.0, %v949
        %951 = vmatmul.f32.gmra.mxu0 %v840
        %v952 = vpop.f32.mrf.mxu0
        %v953 = vadd.f32 0.0, %v952
        %954 = vmatmul.f32.gmra.mxu0 %v843
        %v955 = vpop.f32.mrf.mxu0
        %v956 = vadd.f32 0.0, %v955
        %957 = vmatmul.f32.gmra.mxu0 %v846
        %v958 = vpop.f32.mrf.mxu0
        %v959 = vadd.f32 0.0, %v958
        %960 = vmatmul.f32.gmra.mxu0 %v849
        %v961 = vpop.f32.mrf.mxu0
        %v962 = vadd.f32 0.0, %v961
        %963 = vmatmul.f32.gmra.mxu0 %v852
        %v964 = vpop.f32.mrf.mxu0
        %v965 = vadd.f32 0.0, %v964
        %966 = vmatmul.f32.gmra.mxu0 %v855
        %v967 = vpop.f32.mrf.mxu0
        %v968 = vadd.f32 0.0, %v967
        %969 = vmatmul.f32.gmra.mxu0 %v858
        %v970 = vpop.f32.mrf.mxu0
        %v971 = vadd.f32 0.0, %v970
        %972 = vmatmul.f32.gmra.mxu0 %v861
        %v973 = vpop.f32.mrf.mxu0
        %v974 = vadd.f32 0.0, %v973
        %975 = vmatmul.f32.gmra.mxu0 %v864
        %v976 = vpop.f32.mrf.mxu0
        %v977 = vadd.f32 0.0, %v976
        %978 = vmatmul.f32.gmra.mxu0 %v867
        %v979 = vpop.f32.mrf.mxu0
        %v980 = vadd.f32 0.0, %v979
        %981 = vmatmul.f32.gmra.mxu0 %v870
        %v982 = vpop.f32.mrf.mxu0
        %v983 = vadd.f32 0.0, %v982
        %984 = vmatmul.f32.gmra.mxu0 %v873
        %v985 = vpop.f32.mrf.mxu0
        %v986 = vadd.f32 0.0, %v985
        %987 = vmatmul.f32.gmra.mxu0 %v876
        %v988 = vpop.f32.mrf.mxu0
        %v989 = vadd.f32 0.0, %v988
        %990 = vmatmul.f32.gmra.mxu0 %v879
        %v991 = vpop.f32.mrf.mxu0
        %v992 = vadd.f32 0.0, %v991
        %993 = vmatmul.f32.gmra.mxu0 %v882
        %v994 = vpop.f32.mrf.mxu0
        %v995 = vadd.f32 0.0, %v994
        %996 = vmatmul.f32.gmra.mxu0 %v885
        %v997 = vpop.f32.mrf.mxu0
        %v998 = vadd.f32 0.0, %v997
        %999 = vmatmul.f32.gmra.mxu0 %v888
        %v1000 = vpop.f32.mrf.mxu0
        %v1001 = vadd.f32 0.0, %v1000
        %1002 = vmatmul.f32.gmra.mxu0 %v891
        %v1003 = vpop.f32.mrf.mxu0
        %v1004 = vadd.f32 0.0, %v1003
        %1005 = vmatmul.f32.gmra.mxu0 %v894
        %v1006 = vpop.f32.mrf.mxu0
        %v1007 = vadd.f32 0.0, %v1006
        %1008 = vmatmul.f32.gmra.mxu0 %v897
        %v1009 = vpop.f32.mrf.mxu0
        %v1010 = vadd.f32 0.0, %v1009
        %1011 = vmatmul.f32.gmra.mxu0 %v900
        %v1012 = vpop.f32.mrf.mxu0
        %v1013 = vadd.f32 0.0, %v1012
        %1014 = vmatmul.f32.gmra.mxu0 %v903
        %v1015 = vpop.f32.mrf.mxu0
        %v1016 = vadd.f32 0.0, %v1015
        %1017 = vmatmul.f32.gmra.mxu0 %v906
        %v1018 = vpop.f32.mrf.mxu0
        %v1019 = vadd.f32 0.0, %v1018
        %1020 = vmatmul.f32.gmra.mxu0 %v909
        %v1021 = vpop.f32.mrf.mxu0
        %v1022 = vadd.f32 0.0, %v1021
        %1023 = vmatmul.f32.gmra.mxu0 %v912
        %v1024 = vpop.f32.mrf.mxu0
        %v1025 = vadd.f32 0.0, %v1024
        %1026 = vdwg.mxu0
        %v1028 = vsel %vm484, %v754, 0
        %v1031 = vsel %vm484, %v755, 0
        %v1034 = vsel %vm484, %v756, 0
        %v1037 = vsel %vm484, %v757, 0
        %v1040 = vsel %vm484, %v758, 0
        %v1043 = vsel %vm484, %v759, 0
        %v1046 = vsel %vm484, %v760, 0
        %v1049 = vsel %vm484, %v761, 0
        %v1052 = vsel %vm484, %v762, 0
        %v1055 = vsel %vm484, %v763, 0
        %v1058 = vsel %vm484, %v764, 0
        %v1061 = vsel %vm484, %v765, 0
        %v1064 = vsel %vm484, %v766, 0
        %v1067 = vsel %vm484, %v767, 0
        %v1070 = vsel %vm484, %v768, 0
        %v1073 = vsel %vm484, %v769, 0
        %v1076 = vsel %vm484, %v770, 0
        %v1079 = vsel %vm484, %v771, 0
        %v1082 = vsel %vm484, %v772, 0
        %v1085 = vsel %vm484, %v773, 0
        %v1088 = vsel %vm484, %v774, 0
        %v1091 = vsel %vm484, %v775, 0
        %v1094 = vsel %vm484, %v776, 0
        %v1097 = vsel %vm484, %v777, 0
        %v1100 = vsel %vm484, %v778, 0
        %v1103 = vsel %vm484, %v779, 0
        %v1106 = vsel %vm484, %v780, 0
        %v1109 = vsel %vm484, %v781, 0
        %v1112 = vsel %vm484, %v782, 0
        %v1115 = vsel %vm484, %v783, 0
        %v1118 = vsel %vm484, %v784, 0
        %v1121 = vsel %vm484, %v785, 0
        %1123 = vmatpush.msra.mxu0 0.0
        %1124 = vmatpush.msra.mxu0 0.0
        %1125 = vmatpush.msra.mxu0 0.0
        %1126 = vmatpush.msra.mxu0 0.0
        %1127 = vmatpush.msra.mxu0 0.0
        %1128 = vmatpush.msra.mxu0 0.0
        %1129 = vmatpush.msra.mxu0 0.0
        %1130 = vmatpush.msra.mxu0 0.0
        %1131 = vmatpush.msra.mxu0 0.0
        %1132 = vmatpush.msra.mxu0 0.0
        %1133 = vmatpush.msra.mxu0 0.0
        %1134 = vmatpush.msra.mxu0 0.0
        %1135 = vmatpush.msra.mxu0 %v599
        %1136 = vmatpush.msra.mxu0 %v598
        %1137 = vmatpush.msra.mxu0 %v597
        %1138 = vmatpush.msra.mxu0 %v596
        %1139 = vmatmul.f32.gmra.mxu0 %v1028
        %v1140 = vpop.f32.mrf.mxu0
        %v1141 = vadd.f32 %v932, %v1140
        %1142 = vmatmul.f32.gmra.mxu0 %v1031
        %v1143 = vpop.f32.mrf.mxu0
        %v1144 = vadd.f32 %v935, %v1143
        %1145 = vmatmul.f32.gmra.mxu0 %v1034
        %v1146 = vpop.f32.mrf.mxu0
        %v1147 = vadd.f32 %v938, %v1146
        %1148 = vmatmul.f32.gmra.mxu0 %v1037
        %v1149 = vpop.f32.mrf.mxu0
        %v1150 = vadd.f32 %v941, %v1149
        %1151 = vmatmul.f32.gmra.mxu0 %v1040
        %v1152 = vpop.f32.mrf.mxu0
        %v1153 = vadd.f32 %v944, %v1152
        %1154 = vmatmul.f32.gmra.mxu0 %v1043
        %v1155 = vpop.f32.mrf.mxu0
        %v1156 = vadd.f32 %v947, %v1155
        %1157 = vmatmul.f32.gmra.mxu0 %v1046
        %v1158 = vpop.f32.mrf.mxu0
        %v1159 = vadd.f32 %v950, %v1158
        %1160 = vmatmul.f32.gmra.mxu0 %v1049
        %v1161 = vpop.f32.mrf.mxu0
        %v1162 = vadd.f32 %v953, %v1161
        %1163 = vmatmul.f32.gmra.mxu0 %v1052
        %v1164 = vpop.f32.mrf.mxu0
        %v1165 = vadd.f32 %v956, %v1164
        %1166 = vmatmul.f32.gmra.mxu0 %v1055
        %v1167 = vpop.f32.mrf.mxu0
        %v1168 = vadd.f32 %v959, %v1167
        %1169 = vmatmul.f32.gmra.mxu0 %v1058
        %v1170 = vpop.f32.mrf.mxu0
        %v1171 = vadd.f32 %v962, %v1170
        %1172 = vmatmul.f32.gmra.mxu0 %v1061
        %v1173 = vpop.f32.mrf.mxu0
        %v1174 = vadd.f32 %v965, %v1173
        %1175 = vmatmul.f32.gmra.mxu0 %v1064
        %v1176 = vpop.f32.mrf.mxu0
        %v1177 = vadd.f32 %v968, %v1176
        %1178 = vmatmul.f32.gmra.mxu0 %v1067
        %v1179 = vpop.f32.mrf.mxu0
        %v1180 = vadd.f32 %v971, %v1179
        %1181 = vmatmul.f32.gmra.mxu0 %v1070
        %v1182 = vpop.f32.mrf.mxu0
        %v1183 = vadd.f32 %v974, %v1182
        %1184 = vmatmul.f32.gmra.mxu0 %v1073
        %v1185 = vpop.f32.mrf.mxu0
        %v1186 = vadd.f32 %v977, %v1185
        %1187 = vmatmul.f32.gmra.mxu0 %v1076
        %v1188 = vpop.f32.mrf.mxu0
        %v1189 = vadd.f32 %v980, %v1188
        %1190 = vmatmul.f32.gmra.mxu0 %v1079
        %v1191 = vpop.f32.mrf.mxu0
        %v1192 = vadd.f32 %v983, %v1191
        %1193 = vmatmul.f32.gmra.mxu0 %v1082
        %v1194 = vpop.f32.mrf.mxu0
        %v1195 = vadd.f32 %v986, %v1194
        %1196 = vmatmul.f32.gmra.mxu0 %v1085
        %v1197 = vpop.f32.mrf.mxu0
        %v1198 = vadd.f32 %v989, %v1197
        %1199 = vmatmul.f32.gmra.mxu0 %v1088
        %v1200 = vpop.f32.mrf.mxu0
        %v1201 = vadd.f32 %v992, %v1200
        %1202 = vmatmul.f32.gmra.mxu0 %v1091
        %v1203 = vpop.f32.mrf.mxu0
        %v1204 = vadd.f32 %v995, %v1203
        %1205 = vmatmul.f32.gmra.mxu0 %v1094
        %v1206 = vpop.f32.mrf.mxu0
        %v1207 = vadd.f32 %v998, %v1206
        %1208 = vmatmul.f32.gmra.mxu0 %v1097
        %v1209 = vpop.f32.mrf.mxu0
        %v1210 = vadd.f32 %v1001, %v1209
        %1211 = vmatmul.f32.gmra.mxu0 %v1100
        %v1212 = vpop.f32.mrf.mxu0
        %v1213 = vadd.f32 %v1004, %v1212
        %1214 = vmatmul.f32.gmra.mxu0 %v1103
        %v1215 = vpop.f32.mrf.mxu0
        %v1216 = vadd.f32 %v1007, %v1215
        %1217 = vmatmul.f32.gmra.mxu0 %v1106
        %v1218 = vpop.f32.mrf.mxu0
        %v1219 = vadd.f32 %v1010, %v1218
        %1220 = vmatmul.f32.gmra.mxu0 %v1109
        %v1221 = vpop.f32.mrf.mxu0
        %v1222 = vadd.f32 %v1013, %v1221
        %1223 = vmatmul.f32.gmra.mxu0 %v1112
        %v1224 = vpop.f32.mrf.mxu0
        %v1225 = vadd.f32 %v1016, %v1224
        %1226 = vmatmul.f32.gmra.mxu0 %v1115
        %v1227 = vpop.f32.mrf.mxu0
        %v1228 = vadd.f32 %v1019, %v1227
        %1229 = vmatmul.f32.gmra.mxu0 %v1118
        %v1230 = vpop.f32.mrf.mxu0
        %v1231 = vadd.f32 %v1022, %v1230
        %1232 = vmatmul.f32.gmra.mxu0 %v1121
        %v1233 = vpop.f32.mrf.mxu0
        %v1234 = vadd.f32 %v1025, %v1233
        %1235 = vdwg.mxu0
        %v1236 = vld [vmem:[#allocation2 + $0x2] sm:$0xff]
        %v1237 = vld [vmem:[#allocation2 + $0xa] sm:$0xff]
        %v1238 = vld [vmem:[#allocation2 + $0x1a] sm:$0xff]
        %v1239 = vld [vmem:[#allocation2 + $0x22] sm:$0xff]
        %v1240 = vld [vmem:[#allocation2 + $0x32] sm:$0xff]
        %v1241 = vld [vmem:[#allocation2 + $0x3a] sm:$0xff]
        %v1242 = vld [vmem:[#allocation2 + $0x4a] sm:$0xff]
        %v1243 = vld [vmem:[#allocation2 + $0x52] sm:$0xff]
        %v1244 = vld [vmem:[#allocation2 + $0x62] sm:$0xff]
        %v1245 = vld [vmem:[#allocation2 + $0x6a] sm:$0xff]
        %v1246 = vld [vmem:[#allocation2 + $0x7a] sm:$0xff]
        %v1247 = vld [vmem:[#allocation2 + $0x82] sm:$0xff]
        %v1248 = vld [vmem:[#allocation2 + $0x92] sm:$0xff]
        %v1249 = vld [vmem:[#allocation2 + $0x9a] sm:$0xff]
        %v1250 = vld [vmem:[#allocation2 + $0xaa] sm:$0xff]
        %v1251 = vld [vmem:[#allocation2 + $0xb2] sm:$0xff]
        %v1252 = vld [vmem:[#allocation2 + $0xc2] sm:$0xff]
        %v1253 = vld [vmem:[#allocation2 + $0xca] sm:$0xff]
        %v1254 = vld [vmem:[#allocation2 + $0xda] sm:$0xff]
        %v1255 = vld [vmem:[#allocation2 + $0xe2] sm:$0xff]
        %v1256 = vld [vmem:[#allocation2 + $0xf2] sm:$0xff]
        %v1257 = vld [vmem:[#allocation2 + $0xfa] sm:$0xff]
        %v1258 = vld [vmem:[#allocation2 + $0x10a] sm:$0xff]
        %v1259 = vld [vmem:[#allocation2 + $0x112] sm:$0xff]
        %v1260 = vld [vmem:[#allocation2 + $0x122] sm:$0xff]
        %v1261 = vld [vmem:[#allocation2 + $0x12a] sm:$0xff]
        %v1262 = vld [vmem:[#allocation2 + $0x13a] sm:$0xff]
        %v1263 = vld [vmem:[#allocation2 + $0x142] sm:$0xff]
        %v1264 = vld [vmem:[#allocation2 + $0x152] sm:$0xff]
        %v1265 = vld [vmem:[#allocation2 + $0x15a] sm:$0xff]
        %v1266 = vld [vmem:[#allocation2 + $0x16a] sm:$0xff]
        %v1267 = vld [vmem:[#allocation2 + $0x172] sm:$0xff]
        %v1269 = vsel %vm484, %v1236, 0
        %v1272 = vsel %vm484, %v1237, 0
        %v1275 = vsel %vm484, %v1238, 0
        %v1278 = vsel %vm484, %v1239, 0
        %v1281 = vsel %vm484, %v1240, 0
        %v1284 = vsel %vm484, %v1241, 0
        %v1287 = vsel %vm484, %v1242, 0
        %v1290 = vsel %vm484, %v1243, 0
        %v1293 = vsel %vm484, %v1244, 0
        %v1296 = vsel %vm484, %v1245, 0
        %v1299 = vsel %vm484, %v1246, 0
        %v1302 = vsel %vm484, %v1247, 0
        %v1305 = vsel %vm484, %v1248, 0
        %v1308 = vsel %vm484, %v1249, 0
        %v1311 = vsel %vm484, %v1250, 0
        %v1314 = vsel %vm484, %v1251, 0
        %v1317 = vsel %vm484, %v1252, 0
        %v1320 = vsel %vm484, %v1253, 0
        %v1323 = vsel %vm484, %v1254, 0
        %v1326 = vsel %vm484, %v1255, 0
        %v1329 = vsel %vm484, %v1256, 0
        %v1332 = vsel %vm484, %v1257, 0
        %v1335 = vsel %vm484, %v1258, 0
        %v1338 = vsel %vm484, %v1259, 0
        %v1341 = vsel %vm484, %v1260, 0
        %v1344 = vsel %vm484, %v1261, 0
        %v1347 = vsel %vm484, %v1262, 0
        %v1350 = vsel %vm484, %v1263, 0
        %v1353 = vsel %vm484, %v1264, 0
        %v1356 = vsel %vm484, %v1265, 0
        %v1359 = vsel %vm484, %v1266, 0
        %v1362 = vsel %vm484, %v1267, 0
        %1364 = vmatpush.msra.mxu0 0.0
        %1365 = vmatpush.msra.mxu0 0.0
        %1366 = vmatpush.msra.mxu0 0.0
        %1367 = vmatpush.msra.mxu0 0.0
        %1368 = vmatpush.msra.mxu0 0.0
        %1369 = vmatpush.msra.mxu0 0.0
        %1370 = vmatpush.msra.mxu0 0.0
        %1371 = vmatpush.msra.mxu0 0.0
        %1372 = vmatpush.msra.mxu0 0.0
        %1373 = vmatpush.msra.mxu0 0.0
        %1374 = vmatpush.msra.mxu0 0.0
        %1375 = vmatpush.msra.mxu0 0.0
        %1376 = vmatpush.msra.mxu0 %v607
        %1377 = vmatpush.msra.mxu0 %v606
        %1378 = vmatpush.msra.mxu0 %v605
        %1379 = vmatpush.msra.mxu0 %v604
        %1380 = vmatmul.f32.gmra.mxu0 %v1269
        %v1381 = vpop.f32.mrf.mxu0
        %v1382 = vadd.f32 0.0, %v1381
        %1383 = vmatmul.f32.gmra.mxu0 %v1272
        %v1384 = vpop.f32.mrf.mxu0
        %v1385 = vadd.f32 0.0, %v1384
        %1386 = vmatmul.f32.gmra.mxu0 %v1275
        %v1387 = vpop.f32.mrf.mxu0
        %v1388 = vadd.f32 0.0, %v1387
        %1389 = vmatmul.f32.gmra.mxu0 %v1278
        %v1390 = vpop.f32.mrf.mxu0
        %v1391 = vadd.f32 0.0, %v1390
        %1392 = vmatmul.f32.gmra.mxu0 %v1281
        %v1393 = vpop.f32.mrf.mxu0
        %v1394 = vadd.f32 0.0, %v1393
        %1395 = vmatmul.f32.gmra.mxu0 %v1284
        %v1396 = vpop.f32.mrf.mxu0
        %v1397 = vadd.f32 0.0, %v1396
        %1398 = vmatmul.f32.gmra.mxu0 %v1287
        %v1399 = vpop.f32.mrf.mxu0
        %v1400 = vadd.f32 0.0, %v1399
        %1401 = vmatmul.f32.gmra.mxu0 %v1290
        %v1402 = vpop.f32.mrf.mxu0
        %v1403 = vadd.f32 0.0, %v1402
        %1404 = vmatmul.f32.gmra.mxu0 %v1293
        %v1405 = vpop.f32.mrf.mxu0
        %v1406 = vadd.f32 0.0, %v1405
        %1407 = vmatmul.f32.gmra.mxu0 %v1296
        %v1408 = vpop.f32.mrf.mxu0
        %v1409 = vadd.f32 0.0, %v1408
        %1410 = vmatmul.f32.gmra.mxu0 %v1299
        %v1411 = vpop.f32.mrf.mxu0
        %v1412 = vadd.f32 0.0, %v1411
        %1413 = vmatmul.f32.gmra.mxu0 %v1302
        %v1414 = vpop.f32.mrf.mxu0
        %v1415 = vadd.f32 0.0, %v1414
        %1416 = vmatmul.f32.gmra.mxu0 %v1305
        %v1417 = vpop.f32.mrf.mxu0
        %v1418 = vadd.f32 0.0, %v1417
        %1419 = vmatmul.f32.gmra.mxu0 %v1308
        %v1420 = vpop.f32.mrf.mxu0
        %v1421 = vadd.f32 0.0, %v1420
        %1422 = vmatmul.f32.gmra.mxu0 %v1311
        %v1423 = vpop.f32.mrf.mxu0
        %v1424 = vadd.f32 0.0, %v1423
        %1425 = vmatmul.f32.gmra.mxu0 %v1314
        %v1426 = vpop.f32.mrf.mxu0
        %v1427 = vadd.f32 0.0, %v1426
        %1428 = vmatmul.f32.gmra.mxu0 %v1317
        %v1429 = vpop.f32.mrf.mxu0
        %v1430 = vadd.f32 0.0, %v1429
        %1431 = vmatmul.f32.gmra.mxu0 %v1320
        %v1432 = vpop.f32.mrf.mxu0
        %v1433 = vadd.f32 0.0, %v1432
        %1434 = vmatmul.f32.gmra.mxu0 %v1323
        %v1435 = vpop.f32.mrf.mxu0
        %v1436 = vadd.f32 0.0, %v1435
        %1437 = vmatmul.f32.gmra.mxu0 %v1326
        %v1438 = vpop.f32.mrf.mxu0
        %v1439 = vadd.f32 0.0, %v1438
        %1440 = vmatmul.f32.gmra.mxu0 %v1329
        %v1441 = vpop.f32.mrf.mxu0
        %v1442 = vadd.f32 0.0, %v1441
        %1443 = vmatmul.f32.gmra.mxu0 %v1332
        %v1444 = vpop.f32.mrf.mxu0
        %v1445 = vadd.f32 0.0, %v1444
        %1446 = vmatmul.f32.gmra.mxu0 %v1335
        %v1447 = vpop.f32.mrf.mxu0
        %v1448 = vadd.f32 0.0, %v1447
        %1449 = vmatmul.f32.gmra.mxu0 %v1338
        %v1450 = vpop.f32.mrf.mxu0
        %v1451 = vadd.f32 0.0, %v1450
        %1452 = vmatmul.f32.gmra.mxu0 %v1341
        %v1453 = vpop.f32.mrf.mxu0
        %v1454 = vadd.f32 0.0, %v1453
        %1455 = vmatmul.f32.gmra.mxu0 %v1344
        %v1456 = vpop.f32.mrf.mxu0
        %v1457 = vadd.f32 0.0, %v1456
        %1458 = vmatmul.f32.gmra.mxu0 %v1347
        %v1459 = vpop.f32.mrf.mxu0
        %v1460 = vadd.f32 0.0, %v1459
        %1461 = vmatmul.f32.gmra.mxu0 %v1350
        %v1462 = vpop.f32.mrf.mxu0
        %v1463 = vadd.f32 0.0, %v1462
        %1464 = vmatmul.f32.gmra.mxu0 %v1353
        %v1465 = vpop.f32.mrf.mxu0
        %v1466 = vadd.f32 0.0, %v1465
        %1467 = vmatmul.f32.gmra.mxu0 %v1356
        %v1468 = vpop.f32.mrf.mxu0
        %v1469 = vadd.f32 0.0, %v1468
        %1470 = vmatmul.f32.gmra.mxu0 %v1359
        %v1471 = vpop.f32.mrf.mxu0
        %v1472 = vadd.f32 0.0, %v1471
        %1473 = vmatmul.f32.gmra.mxu0 %v1362
        %v1474 = vpop.f32.mrf.mxu0
        %v1475 = vadd.f32 0.0, %v1474
        %1476 = vdwg.mxu0
        %v1477 = vadd.f32 %v1141, %v1382
        %v1478 = vadd.f32 %v1144, %v1385
        %v1479 = vadd.f32 %v1147, %v1388
        %v1480 = vadd.f32 %v1150, %v1391
        %v1481 = vadd.f32 %v1153, %v1394
        %v1482 = vadd.f32 %v1156, %v1397
        %v1483 = vadd.f32 %v1159, %v1400
        %v1484 = vadd.f32 %v1162, %v1403
        %v1485 = vadd.f32 %v1165, %v1406
        %v1486 = vadd.f32 %v1168, %v1409
        %v1487 = vadd.f32 %v1171, %v1412
        %v1488 = vadd.f32 %v1174, %v1415
        %v1489 = vadd.f32 %v1177, %v1418
        %v1490 = vadd.f32 %v1180, %v1421
        %v1491 = vadd.f32 %v1183, %v1424
        %v1492 = vadd.f32 %v1186, %v1427
        %v1493 = vadd.f32 %v1189, %v1430
        %v1494 = vadd.f32 %v1192, %v1433
        %v1495 = vadd.f32 %v1195, %v1436
        %v1496 = vadd.f32 %v1198, %v1439
        %v1497 = vadd.f32 %v1201, %v1442
        %v1498 = vadd.f32 %v1204, %v1445
        %v1499 = vadd.f32 %v1207, %v1448
        %v1500 = vadd.f32 %v1210, %v1451
        %v1501 = vadd.f32 %v1213, %v1454
        %v1502 = vadd.f32 %v1216, %v1457
        %v1503 = vadd.f32 %v1219, %v1460
        %v1504 = vadd.f32 %v1222, %v1463
        %v1505 = vadd.f32 %v1225, %v1466
        %v1506 = vadd.f32 %v1228, %v1469
        %v1507 = vadd.f32 %v1231, %v1472
        %v1508 = vadd.f32 %v1234, %v1475
        %v1509 = vld [vmem:[%s721] sm:$0xff]
        %v1510 = vld [vmem:[%s721 + $0x8] sm:$0xff]
        %v1511 = vld [vmem:[%s721 + $0x18] sm:$0xff]
        %v1512 = vld [vmem:[%s721 + $0x20] sm:$0xff]
        %v1513 = vld [vmem:[%s721 + $0x30] sm:$0xff]
        %v1514 = vld [vmem:[%s721 + $0x38] sm:$0xff]
        %v1515 = vld [vmem:[%s721 + $0x48] sm:$0xff]
        %v1516 = vld [vmem:[%s721 + $0x50] sm:$0xff]
        %v1517 = vld [vmem:[%s721 + $0x60] sm:$0xff]
        %v1518 = vld [vmem:[%s721 + $0x68] sm:$0xff]
        %v1519 = vld [vmem:[%s721 + $0x78] sm:$0xff]
        %v1520 = vld [vmem:[%s721 + $0x80] sm:$0xff]
        %v1521 = vld [vmem:[%s721 + $0x90] sm:$0xff]
        %v1522 = vld [vmem:[%s721 + $0x98] sm:$0xff]
        %v1523 = vld [vmem:[%s721 + $0xa8] sm:$0xff]
        %v1524 = vld [vmem:[%s721 + $0xb0] sm:$0xff]
        %v1525 = vld [vmem:[%s721 + $0xc0] sm:$0xff]
        %v1526 = vld [vmem:[%s721 + $0xc8] sm:$0xff]
        %v1527 = vld [vmem:[%s721 + $0xd8] sm:$0xff]
        %v1528 = vld [vmem:[%s721 + $0xe0] sm:$0xff]
        %v1529 = vld [vmem:[%s721 + $0xf0] sm:$0xff]
        %v1530 = vld [vmem:[%s721 + $0xf8] sm:$0xff]
        %v1531 = vld [vmem:[%s721 + $0x108] sm:$0xff]
        %v1532 = vld [vmem:[%s721 + $0x110] sm:$0xff]
        %v1533 = vld [vmem:[%s721 + $0x120] sm:$0xff]
        %v1534 = vld [vmem:[%s721 + $0x128] sm:$0xff]
        %v1535 = vld [vmem:[%s721 + $0x138] sm:$0xff]
        %v1536 = vld [vmem:[%s721 + $0x140] sm:$0xff]
        %v1537 = vld [vmem:[%s721 + $0x150] sm:$0xff]
        %v1538 = vld [vmem:[%s721 + $0x158] sm:$0xff]
        %v1539 = vld [vmem:[%s721 + $0x168] sm:$0xff]
        %v1540 = vld [vmem:[%s721 + $0x170] sm:$0xff]
        %v1542 = vsel %vm484, %v1509, 0
        %v1545 = vsel %vm484, %v1510, 0
        %v1548 = vsel %vm484, %v1511, 0
        %v1551 = vsel %vm484, %v1512, 0
        %v1554 = vsel %vm484, %v1513, 0
        %v1557 = vsel %vm484, %v1514, 0
        %v1560 = vsel %vm484, %v1515, 0
        %v1563 = vsel %vm484, %v1516, 0
        %v1566 = vsel %vm484, %v1517, 0
        %v1569 = vsel %vm484, %v1518, 0
        %v1572 = vsel %vm484, %v1519, 0
        %v1575 = vsel %vm484, %v1520, 0
        %v1578 = vsel %vm484, %v1521, 0
        %v1581 = vsel %vm484, %v1522, 0
        %v1584 = vsel %vm484, %v1523, 0
        %v1587 = vsel %vm484, %v1524, 0
        %v1590 = vsel %vm484, %v1525, 0
        %v1593 = vsel %vm484, %v1526, 0
        %v1596 = vsel %vm484, %v1527, 0
        %v1599 = vsel %vm484, %v1528, 0
        %v1602 = vsel %vm484, %v1529, 0
        %v1605 = vsel %vm484, %v1530, 0
        %v1608 = vsel %vm484, %v1531, 0
        %v1611 = vsel %vm484, %v1532, 0
        %v1614 = vsel %vm484, %v1533, 0
        %v1617 = vsel %vm484, %v1534, 0
        %v1620 = vsel %vm484, %v1535, 0
        %v1623 = vsel %vm484, %v1536, 0
        %v1626 = vsel %vm484, %v1537, 0
        %v1629 = vsel %vm484, %v1538, 0
        %v1632 = vsel %vm484, %v1539, 0
        %v1635 = vsel %vm484, %v1540, 0
        %1637 = vmatpush.msra.mxu0 0.0
        %1638 = vmatpush.msra.mxu0 0.0
        %1639 = vmatpush.msra.mxu0 0.0
        %1640 = vmatpush.msra.mxu0 0.0
        %1641 = vmatpush.msra.mxu0 0.0
        %1642 = vmatpush.msra.mxu0 0.0
        %1643 = vmatpush.msra.mxu0 0.0
        %1644 = vmatpush.msra.mxu0 0.0
        %1645 = vmatpush.msra.mxu0 0.0
        %1646 = vmatpush.msra.mxu0 0.0
        %1647 = vmatpush.msra.mxu0 0.0
        %1648 = vmatpush.msra.mxu0 0.0
        %1649 = vmatpush.msra.mxu0 %v611
        %1650 = vmatpush.msra.mxu0 %v610
        %1651 = vmatpush.msra.mxu0 %v609
        %1652 = vmatpush.msra.mxu0 %v608
        %1653 = vmatmul.f32.gmra.mxu0 %v1542
        %v1654 = vpop.f32.mrf.mxu0
        %v1655 = vadd.f32 0.0, %v1654
        %1656 = vmatmul.f32.gmra.mxu0 %v1545
        %v1657 = vpop.f32.mrf.mxu0
        %v1658 = vadd.f32 0.0, %v1657
        %1659 = vmatmul.f32.gmra.mxu0 %v1548
        %v1660 = vpop.f32.mrf.mxu0
        %v1661 = vadd.f32 0.0, %v1660
        %1662 = vmatmul.f32.gmra.mxu0 %v1551
        %v1663 = vpop.f32.mrf.mxu0
        %v1664 = vadd.f32 0.0, %v1663
        %1665 = vmatmul.f32.gmra.mxu0 %v1554
        %v1666 = vpop.f32.mrf.mxu0
        %v1667 = vadd.f32 0.0, %v1666
        %1668 = vmatmul.f32.gmra.mxu0 %v1557
        %v1669 = vpop.f32.mrf.mxu0
        %v1670 = vadd.f32 0.0, %v1669
        %1671 = vmatmul.f32.gmra.mxu0 %v1560
        %v1672 = vpop.f32.mrf.mxu0
        %v1673 = vadd.f32 0.0, %v1672
        %1674 = vmatmul.f32.gmra.mxu0 %v1563
        %v1675 = vpop.f32.mrf.mxu0
        %v1676 = vadd.f32 0.0, %v1675
        %1677 = vmatmul.f32.gmra.mxu0 %v1566
        %v1678 = vpop.f32.mrf.mxu0
        %v1679 = vadd.f32 0.0, %v1678
        %1680 = vmatmul.f32.gmra.mxu0 %v1569
        %v1681 = vpop.f32.mrf.mxu0
        %v1682 = vadd.f32 0.0, %v1681
        %1683 = vmatmul.f32.gmra.mxu0 %v1572
        %v1684 = vpop.f32.mrf.mxu0
        %v1685 = vadd.f32 0.0, %v1684
        %1686 = vmatmul.f32.gmra.mxu0 %v1575
        %v1687 = vpop.f32.mrf.mxu0
        %v1688 = vadd.f32 0.0, %v1687
        %1689 = vmatmul.f32.gmra.mxu0 %v1578
        %v1690 = vpop.f32.mrf.mxu0
        %v1691 = vadd.f32 0.0, %v1690
        %1692 = vmatmul.f32.gmra.mxu0 %v1581
        %v1693 = vpop.f32.mrf.mxu0
        %v1694 = vadd.f32 0.0, %v1693
        %1695 = vmatmul.f32.gmra.mxu0 %v1584
        %v1696 = vpop.f32.mrf.mxu0
        %v1697 = vadd.f32 0.0, %v1696
        %1698 = vmatmul.f32.gmra.mxu0 %v1587
        %v1699 = vpop.f32.mrf.mxu0
        %v1700 = vadd.f32 0.0, %v1699
        %1701 = vmatmul.f32.gmra.mxu0 %v1590
        %v1702 = vpop.f32.mrf.mxu0
        %v1703 = vadd.f32 0.0, %v1702
        %1704 = vmatmul.f32.gmra.mxu0 %v1593
        %v1705 = vpop.f32.mrf.mxu0
        %v1706 = vadd.f32 0.0, %v1705
        %1707 = vmatmul.f32.gmra.mxu0 %v1596
        %v1708 = vpop.f32.mrf.mxu0
        %v1709 = vadd.f32 0.0, %v1708
        %1710 = vmatmul.f32.gmra.mxu0 %v1599
        %v1711 = vpop.f32.mrf.mxu0
        %v1712 = vadd.f32 0.0, %v1711
        %1713 = vmatmul.f32.gmra.mxu0 %v1602
        %v1714 = vpop.f32.mrf.mxu0
        %v1715 = vadd.f32 0.0, %v1714
        %1716 = vmatmul.f32.gmra.mxu0 %v1605
        %v1717 = vpop.f32.mrf.mxu0
        %v1718 = vadd.f32 0.0, %v1717
        %1719 = vmatmul.f32.gmra.mxu0 %v1608
        %v1720 = vpop.f32.mrf.mxu0
        %v1721 = vadd.f32 0.0, %v1720
        %1722 = vmatmul.f32.gmra.mxu0 %v1611
        %v1723 = vpop.f32.mrf.mxu0
        %v1724 = vadd.f32 0.0, %v1723
        %1725 = vmatmul.f32.gmra.mxu0 %v1614
        %v1726 = vpop.f32.mrf.mxu0
        %v1727 = vadd.f32 0.0, %v1726
        %1728 = vmatmul.f32.gmra.mxu0 %v1617
        %v1729 = vpop.f32.mrf.mxu0
        %v1730 = vadd.f32 0.0, %v1729
        %1731 = vmatmul.f32.gmra.mxu0 %v1620
        %v1732 = vpop.f32.mrf.mxu0
        %v1733 = vadd.f32 0.0, %v1732
        %1734 = vmatmul.f32.gmra.mxu0 %v1623
        %v1735 = vpop.f32.mrf.mxu0
        %v1736 = vadd.f32 0.0, %v1735
        %1737 = vmatmul.f32.gmra.mxu0 %v1626
        %v1738 = vpop.f32.mrf.mxu0
        %v1739 = vadd.f32 0.0, %v1738
        %1740 = vmatmul.f32.gmra.mxu0 %v1629
        %v1741 = vpop.f32.mrf.mxu0
        %v1742 = vadd.f32 0.0, %v1741
        %1743 = vmatmul.f32.gmra.mxu0 %v1632
        %v1744 = vpop.f32.mrf.mxu0
        %v1745 = vadd.f32 0.0, %v1744
        %1746 = vmatmul.f32.gmra.mxu0 %v1635
        %v1747 = vpop.f32.mrf.mxu0
        %v1748 = vadd.f32 0.0, %v1747
        %1749 = vdwg.mxu0
        %v1750 = vadd.f32 %v1477, %v1655
        %v1751 = vadd.f32 %v1478, %v1658
        %v1752 = vadd.f32 %v1479, %v1661
        %v1753 = vadd.f32 %v1480, %v1664
        %v1754 = vadd.f32 %v1481, %v1667
        %v1755 = vadd.f32 %v1482, %v1670
        %v1756 = vadd.f32 %v1483, %v1673
        %v1757 = vadd.f32 %v1484, %v1676
        %v1758 = vadd.f32 %v1485, %v1679
        %v1759 = vadd.f32 %v1486, %v1682
        %v1760 = vadd.f32 %v1487, %v1685
        %v1761 = vadd.f32 %v1488, %v1688
        %v1762 = vadd.f32 %v1489, %v1691
        %v1763 = vadd.f32 %v1490, %v1694
        %v1764 = vadd.f32 %v1491, %v1697
        %v1765 = vadd.f32 %v1492, %v1700
        %v1766 = vadd.f32 %v1493, %v1703
        %v1767 = vadd.f32 %v1494, %v1706
        %v1768 = vadd.f32 %v1495, %v1709
        %v1769 = vadd.f32 %v1496, %v1712
        %v1770 = vadd.f32 %v1497, %v1715
        %v1771 = vadd.f32 %v1498, %v1718
        %v1772 = vadd.f32 %v1499, %v1721
        %v1773 = vadd.f32 %v1500, %v1724
        %v1774 = vadd.f32 %v1501, %v1727
        %v1775 = vadd.f32 %v1502, %v1730
        %v1776 = vadd.f32 %v1503, %v1733
        %v1777 = vadd.f32 %v1504, %v1736
        %v1778 = vadd.f32 %v1505, %v1739
        %v1779 = vadd.f32 %v1506, %v1742
        %v1780 = vadd.f32 %v1507, %v1745
        %v1781 = vadd.f32 %v1508, %v1748
        %v1782 = vld [vmem:[%s721 + $0x1] sm:$0xff]
        %v1783 = vld [vmem:[%s721 + $0x9] sm:$0xff]
        %v1784 = vld [vmem:[%s721 + $0x19] sm:$0xff]
        %v1785 = vld [vmem:[%s721 + $0x21] sm:$0xff]
        %v1786 = vld [vmem:[%s721 + $0x31] sm:$0xff]
        %v1787 = vld [vmem:[%s721 + $0x39] sm:$0xff]
        %v1788 = vld [vmem:[%s721 + $0x49] sm:$0xff]
        %v1789 = vld [vmem:[%s721 + $0x51] sm:$0xff]
        %v1790 = vld [vmem:[%s721 + $0x61] sm:$0xff]
        %v1791 = vld [vmem:[%s721 + $0x69] sm:$0xff]
        %v1792 = vld [vmem:[%s721 + $0x79] sm:$0xff]
        %v1793 = vld [vmem:[%s721 + $0x81] sm:$0xff]
        %v1794 = vld [vmem:[%s721 + $0x91] sm:$0xff]
        %v1795 = vld [vmem:[%s721 + $0x99] sm:$0xff]
        %v1796 = vld [vmem:[%s721 + $0xa9] sm:$0xff]
        %v1797 = vld [vmem:[%s721 + $0xb1] sm:$0xff]
        %v1798 = vld [vmem:[%s721 + $0xc1] sm:$0xff]
        %v1799 = vld [vmem:[%s721 + $0xc9] sm:$0xff]
        %v1800 = vld [vmem:[%s721 + $0xd9] sm:$0xff]
        %v1801 = vld [vmem:[%s721 + $0xe1] sm:$0xff]
        %v1802 = vld [vmem:[%s721 + $0xf1] sm:$0xff]
        %v1803 = vld [vmem:[%s721 + $0xf9] sm:$0xff]
        %v1804 = vld [vmem:[%s721 + $0x109] sm:$0xff]
        %v1805 = vld [vmem:[%s721 + $0x111] sm:$0xff]
        %v1806 = vld [vmem:[%s721 + $0x121] sm:$0xff]
        %v1807 = vld [vmem:[%s721 + $0x129] sm:$0xff]
        %v1808 = vld [vmem:[%s721 + $0x139] sm:$0xff]
        %v1809 = vld [vmem:[%s721 + $0x141] sm:$0xff]
        %v1810 = vld [vmem:[%s721 + $0x151] sm:$0xff]
        %v1811 = vld [vmem:[%s721 + $0x159] sm:$0xff]
        %v1812 = vld [vmem:[%s721 + $0x169] sm:$0xff]
        %v1813 = vld [vmem:[%s721 + $0x171] sm:$0xff]
        %v1815 = vsel %vm484, %v1782, 0
        %v1818 = vsel %vm484, %v1783, 0
        %v1821 = vsel %vm484, %v1784, 0
        %v1824 = vsel %vm484, %v1785, 0
        %v1827 = vsel %vm484, %v1786, 0
        %v1830 = vsel %vm484, %v1787, 0
        %v1833 = vsel %vm484, %v1788, 0
        %v1836 = vsel %vm484, %v1789, 0
        %v1839 = vsel %vm484, %v1790, 0
        %v1842 = vsel %vm484, %v1791, 0
        %v1845 = vsel %vm484, %v1792, 0
        %v1848 = vsel %vm484, %v1793, 0
        %v1851 = vsel %vm484, %v1794, 0
        %v1854 = vsel %vm484, %v1795, 0
        %v1857 = vsel %vm484, %v1796, 0
        %v1860 = vsel %vm484, %v1797, 0
        %v1863 = vsel %vm484, %v1798, 0
        %v1866 = vsel %vm484, %v1799, 0
        %v1869 = vsel %vm484, %v1800, 0
        %v1872 = vsel %vm484, %v1801, 0
        %v1875 = vsel %vm484, %v1802, 0
        %v1878 = vsel %vm484, %v1803, 0
        %v1881 = vsel %vm484, %v1804, 0
        %v1884 = vsel %vm484, %v1805, 0
        %v1887 = vsel %vm484, %v1806, 0
        %v1890 = vsel %vm484, %v1807, 0
        %v1893 = vsel %vm484, %v1808, 0
        %v1896 = vsel %vm484, %v1809, 0
        %v1899 = vsel %vm484, %v1810, 0
        %v1902 = vsel %vm484, %v1811, 0
        %v1905 = vsel %vm484, %v1812, 0
        %v1908 = vsel %vm484, %v1813, 0
        %1910 = vmatpush.msra.mxu0 0.0
        %1911 = vmatpush.msra.mxu0 0.0
        %1912 = vmatpush.msra.mxu0 0.0
        %1913 = vmatpush.msra.mxu0 0.0
        %1914 = vmatpush.msra.mxu0 0.0
        %1915 = vmatpush.msra.mxu0 0.0
        %1916 = vmatpush.msra.mxu0 0.0
        %1917 = vmatpush.msra.mxu0 0.0
        %1918 = vmatpush.msra.mxu0 0.0
        %1919 = vmatpush.msra.mxu0 0.0
        %1920 = vmatpush.msra.mxu0 0.0
        %1921 = vmatpush.msra.mxu0 0.0
        %1922 = vmatpush.msra.mxu0 %v615
        %1923 = vmatpush.msra.mxu0 %v614
        %1924 = vmatpush.msra.mxu0 %v613
        %1925 = vmatpush.msra.mxu0 %v612
        %1926 = vmatmul.f32.gmra.mxu0 %v1815
        %v1927 = vpop.f32.mrf.mxu0
        %v1928 = vadd.f32 0.0, %v1927
        %1929 = vmatmul.f32.gmra.mxu0 %v1818
        %v1930 = vpop.f32.mrf.mxu0
        %v1931 = vadd.f32 0.0, %v1930
        %1932 = vmatmul.f32.gmra.mxu0 %v1821
        %v1933 = vpop.f32.mrf.mxu0
        %v1934 = vadd.f32 0.0, %v1933
        %1935 = vmatmul.f32.gmra.mxu0 %v1824
        %v1936 = vpop.f32.mrf.mxu0
        %v1937 = vadd.f32 0.0, %v1936
        %1938 = vmatmul.f32.gmra.mxu0 %v1827
        %v1939 = vpop.f32.mrf.mxu0
        %v1940 = vadd.f32 0.0, %v1939
        %1941 = vmatmul.f32.gmra.mxu0 %v1830
        %v1942 = vpop.f32.mrf.mxu0
        %v1943 = vadd.f32 0.0, %v1942
        %1944 = vmatmul.f32.gmra.mxu0 %v1833
        %v1945 = vpop.f32.mrf.mxu0
        %v1946 = vadd.f32 0.0, %v1945
        %1947 = vmatmul.f32.gmra.mxu0 %v1836
        %v1948 = vpop.f32.mrf.mxu0
        %v1949 = vadd.f32 0.0, %v1948
        %1950 = vmatmul.f32.gmra.mxu0 %v1839
        %v1951 = vpop.f32.mrf.mxu0
        %v1952 = vadd.f32 0.0, %v1951
        %1953 = vmatmul.f32.gmra.mxu0 %v1842
        %v1954 = vpop.f32.mrf.mxu0
        %v1955 = vadd.f32 0.0, %v1954
        %1956 = vmatmul.f32.gmra.mxu0 %v1845
        %v1957 = vpop.f32.mrf.mxu0
        %v1958 = vadd.f32 0.0, %v1957
        %1959 = vmatmul.f32.gmra.mxu0 %v1848
        %v1960 = vpop.f32.mrf.mxu0
        %v1961 = vadd.f32 0.0, %v1960
        %1962 = vmatmul.f32.gmra.mxu0 %v1851
        %v1963 = vpop.f32.mrf.mxu0
        %v1964 = vadd.f32 0.0, %v1963
        %1965 = vmatmul.f32.gmra.mxu0 %v1854
        %v1966 = vpop.f32.mrf.mxu0
        %v1967 = vadd.f32 0.0, %v1966
        %1968 = vmatmul.f32.gmra.mxu0 %v1857
        %v1969 = vpop.f32.mrf.mxu0
        %v1970 = vadd.f32 0.0, %v1969
        %1971 = vmatmul.f32.gmra.mxu0 %v1860
        %v1972 = vpop.f32.mrf.mxu0
        %v1973 = vadd.f32 0.0, %v1972
        %1974 = vmatmul.f32.gmra.mxu0 %v1863
        %v1975 = vpop.f32.mrf.mxu0
        %v1976 = vadd.f32 0.0, %v1975
        %1977 = vmatmul.f32.gmra.mxu0 %v1866
        %v1978 = vpop.f32.mrf.mxu0
        %v1979 = vadd.f32 0.0, %v1978
        %1980 = vmatmul.f32.gmra.mxu0 %v1869
        %v1981 = vpop.f32.mrf.mxu0
        %v1982 = vadd.f32 0.0, %v1981
        %1983 = vmatmul.f32.gmra.mxu0 %v1872
        %v1984 = vpop.f32.mrf.mxu0
        %v1985 = vadd.f32 0.0, %v1984
        %1986 = vmatmul.f32.gmra.mxu0 %v1875
        %v1987 = vpop.f32.mrf.mxu0
        %v1988 = vadd.f32 0.0, %v1987
        %1989 = vmatmul.f32.gmra.mxu0 %v1878
        %v1990 = vpop.f32.mrf.mxu0
        %v1991 = vadd.f32 0.0, %v1990
        %1992 = vmatmul.f32.gmra.mxu0 %v1881
        %v1993 = vpop.f32.mrf.mxu0
        %v1994 = vadd.f32 0.0, %v1993
        %1995 = vmatmul.f32.gmra.mxu0 %v1884
        %v1996 = vpop.f32.mrf.mxu0
        %v1997 = vadd.f32 0.0, %v1996
        %1998 = vmatmul.f32.gmra.mxu0 %v1887
        %v1999 = vpop.f32.mrf.mxu0
        %v2000 = vadd.f32 0.0, %v1999
        %2001 = vmatmul.f32.gmra.mxu0 %v1890
        %v2002 = vpop.f32.mrf.mxu0
        %v2003 = vadd.f32 0.0, %v2002
        %2004 = vmatmul.f32.gmra.mxu0 %v1893
        %v2005 = vpop.f32.mrf.mxu0
        %v2006 = vadd.f32 0.0, %v2005
        %2007 = vmatmul.f32.gmra.mxu0 %v1896
        %v2008 = vpop.f32.mrf.mxu0
        %v2009 = vadd.f32 0.0, %v2008
        %2010 = vmatmul.f32.gmra.mxu0 %v1899
        %v2011 = vpop.f32.mrf.mxu0
        %v2012 = vadd.f32 0.0, %v2011
        %2013 = vmatmul.f32.gmra.mxu0 %v1902
        %v2014 = vpop.f32.mrf.mxu0
        %v2015 = vadd.f32 0.0, %v2014
        %2016 = vmatmul.f32.gmra.mxu0 %v1905
        %v2017 = vpop.f32.mrf.mxu0
        %v2018 = vadd.f32 0.0, %v2017
        %2019 = vmatmul.f32.gmra.mxu0 %v1908
        %v2020 = vpop.f32.mrf.mxu0
        %v2021 = vadd.f32 0.0, %v2020
        %2022 = vdwg.mxu0
        %v2023 = vadd.f32 %v1750, %v1928
        %v2024 = vadd.f32 %v1751, %v1931
        %v2025 = vadd.f32 %v1752, %v1934
        %v2026 = vadd.f32 %v1753, %v1937
        %v2027 = vadd.f32 %v1754, %v1940
        %v2028 = vadd.f32 %v1755, %v1943
        %v2029 = vadd.f32 %v1756, %v1946
        %v2030 = vadd.f32 %v1757, %v1949
        %v2031 = vadd.f32 %v1758, %v1952
        %v2032 = vadd.f32 %v1759, %v1955
        %v2033 = vadd.f32 %v1760, %v1958
        %v2034 = vadd.f32 %v1761, %v1961
        %v2035 = vadd.f32 %v1762, %v1964
        %v2036 = vadd.f32 %v1763, %v1967
        %v2037 = vadd.f32 %v1764, %v1970
        %v2038 = vadd.f32 %v1765, %v1973
        %v2039 = vadd.f32 %v1766, %v1976
        %v2040 = vadd.f32 %v1767, %v1979
        %v2041 = vadd.f32 %v1768, %v1982
        %v2042 = vadd.f32 %v1769, %v1985
        %v2043 = vadd.f32 %v1770, %v1988
        %v2044 = vadd.f32 %v1771, %v1991
        %v2045 = vadd.f32 %v1772, %v1994
        %v2046 = vadd.f32 %v1773, %v1997
        %v2047 = vadd.f32 %v1774, %v2000
        %v2048 = vadd.f32 %v1775, %v2003
        %v2049 = vadd.f32 %v1776, %v2006
        %v2050 = vadd.f32 %v1777, %v2009
        %v2051 = vadd.f32 %v1778, %v2012
        %v2052 = vadd.f32 %v1779, %v2015
        %v2053 = vadd.f32 %v1780, %v2018
        %v2054 = vadd.f32 %v1781, %v2021
        %v2055 = vld [vmem:[%s721 + $0x2] sm:$0xff]
        %v2056 = vld [vmem:[%s721 + $0xa] sm:$0xff]
        %v2057 = vld [vmem:[%s721 + $0x1a] sm:$0xff]
        %v2058 = vld [vmem:[%s721 + $0x22] sm:$0xff]
        %v2059 = vld [vmem:[%s721 + $0x32] sm:$0xff]
        %v2060 = vld [vmem:[%s721 + $0x3a] sm:$0xff]
        %v2061 = vld [vmem:[%s721 + $0x4a] sm:$0xff]
        %v2062 = vld [vmem:[%s721 + $0x52] sm:$0xff]
        %v2063 = vld [vmem:[%s721 + $0x62] sm:$0xff]
        %v2064 = vld [vmem:[%s721 + $0x6a] sm:$0xff]
        %v2065 = vld [vmem:[%s721 + $0x7a] sm:$0xff]
        %v2066 = vld [vmem:[%s721 + $0x82] sm:$0xff]
        %v2067 = vld [vmem:[%s721 + $0x92] sm:$0xff]
        %v2068 = vld [vmem:[%s721 + $0x9a] sm:$0xff]
        %v2069 = vld [vmem:[%s721 + $0xaa] sm:$0xff]
        %v2070 = vld [vmem:[%s721 + $0xb2] sm:$0xff]
        %v2071 = vld [vmem:[%s721 + $0xc2] sm:$0xff]
        %v2072 = vld [vmem:[%s721 + $0xca] sm:$0xff]
        %v2073 = vld [vmem:[%s721 + $0xda] sm:$0xff]
        %v2074 = vld [vmem:[%s721 + $0xe2] sm:$0xff]
        %v2075 = vld [vmem:[%s721 + $0xf2] sm:$0xff]
        %v2076 = vld [vmem:[%s721 + $0xfa] sm:$0xff]
        %v2077 = vld [vmem:[%s721 + $0x10a] sm:$0xff]
        %v2078 = vld [vmem:[%s721 + $0x112] sm:$0xff]
        %v2079 = vld [vmem:[%s721 + $0x122] sm:$0xff]
        %v2080 = vld [vmem:[%s721 + $0x12a] sm:$0xff]
        %v2081 = vld [vmem:[%s721 + $0x13a] sm:$0xff]
        %v2082 = vld [vmem:[%s721 + $0x142] sm:$0xff]
        %v2083 = vld [vmem:[%s721 + $0x152] sm:$0xff]
        %v2084 = vld [vmem:[%s721 + $0x15a] sm:$0xff]
        %v2085 = vld [vmem:[%s721 + $0x16a] sm:$0xff]
        %v2086 = vld [vmem:[%s721 + $0x172] sm:$0xff]
        %v2088 = vsel %vm484, %v2055, 0
        %v2091 = vsel %vm484, %v2056, 0
        %v2094 = vsel %vm484, %v2057, 0
        %v2097 = vsel %vm484, %v2058, 0
        %v2100 = vsel %vm484, %v2059, 0
        %v2103 = vsel %vm484, %v2060, 0
        %v2106 = vsel %vm484, %v2061, 0
        %v2109 = vsel %vm484, %v2062, 0
        %v2112 = vsel %vm484, %v2063, 0
        %v2115 = vsel %vm484, %v2064, 0
        %v2118 = vsel %vm484, %v2065, 0
        %v2121 = vsel %vm484, %v2066, 0
        %v2124 = vsel %vm484, %v2067, 0
        %v2127 = vsel %vm484, %v2068, 0
        %v2130 = vsel %vm484, %v2069, 0
        %v2133 = vsel %vm484, %v2070, 0
        %v2136 = vsel %vm484, %v2071, 0
        %v2139 = vsel %vm484, %v2072, 0
        %v2142 = vsel %vm484, %v2073, 0
        %v2145 = vsel %vm484, %v2074, 0
        %v2148 = vsel %vm484, %v2075, 0
        %v2151 = vsel %vm484, %v2076, 0
        %v2154 = vsel %vm484, %v2077, 0
        %v2157 = vsel %vm484, %v2078, 0
        %v2160 = vsel %vm484, %v2079, 0
        %v2163 = vsel %vm484, %v2080, 0
        %v2166 = vsel %vm484, %v2081, 0
        %v2169 = vsel %vm484, %v2082, 0
        %v2172 = vsel %vm484, %v2083, 0
        %v2175 = vsel %vm484, %v2084, 0
        %v2178 = vsel %vm484, %v2085, 0
        %v2181 = vsel %vm484, %v2086, 0
        %2183 = vmatpush.msra.mxu0 0.0
        %2184 = vmatpush.msra.mxu0 0.0
        %2185 = vmatpush.msra.mxu0 0.0
        %2186 = vmatpush.msra.mxu0 0.0
        %2187 = vmatpush.msra.mxu0 0.0
        %2188 = vmatpush.msra.mxu0 0.0
        %2189 = vmatpush.msra.mxu0 0.0
        %2190 = vmatpush.msra.mxu0 0.0
        %2191 = vmatpush.msra.mxu0 0.0
        %2192 = vmatpush.msra.mxu0 0.0
        %2193 = vmatpush.msra.mxu0 0.0
        %2194 = vmatpush.msra.mxu0 0.0
        %2195 = vmatpush.msra.mxu0 %v619
        %2196 = vmatpush.msra.mxu0 %v618
        %2197 = vmatpush.msra.mxu0 %v617
        %2198 = vmatpush.msra.mxu0 %v616
        %2199 = vmatmul.f32.gmra.mxu0 %v2088
        %v2200 = vpop.f32.mrf.mxu0
        %v2201 = vadd.f32 0.0, %v2200
        %2202 = vmatmul.f32.gmra.mxu0 %v2091
        %v2203 = vpop.f32.mrf.mxu0
        %v2204 = vadd.f32 0.0, %v2203
        %2205 = vmatmul.f32.gmra.mxu0 %v2094
        %v2206 = vpop.f32.mrf.mxu0
        %v2207 = vadd.f32 0.0, %v2206
        %2208 = vmatmul.f32.gmra.mxu0 %v2097
        %v2209 = vpop.f32.mrf.mxu0
        %v2210 = vadd.f32 0.0, %v2209
        %2211 = vmatmul.f32.gmra.mxu0 %v2100
        %v2212 = vpop.f32.mrf.mxu0
        %v2213 = vadd.f32 0.0, %v2212
        %2214 = vmatmul.f32.gmra.mxu0 %v2103
        %v2215 = vpop.f32.mrf.mxu0
        %v2216 = vadd.f32 0.0, %v2215
        %2217 = vmatmul.f32.gmra.mxu0 %v2106
        %v2218 = vpop.f32.mrf.mxu0
        %v2219 = vadd.f32 0.0, %v2218
        %2220 = vmatmul.f32.gmra.mxu0 %v2109
        %v2221 = vpop.f32.mrf.mxu0
        %v2222 = vadd.f32 0.0, %v2221
        %2223 = vmatmul.f32.gmra.mxu0 %v2112
        %v2224 = vpop.f32.mrf.mxu0
        %v2225 = vadd.f32 0.0, %v2224
        %2226 = vmatmul.f32.gmra.mxu0 %v2115
        %v2227 = vpop.f32.mrf.mxu0
        %v2228 = vadd.f32 0.0, %v2227
        %2229 = vmatmul.f32.gmra.mxu0 %v2118
        %v2230 = vpop.f32.mrf.mxu0
        %v2231 = vadd.f32 0.0, %v2230
        %2232 = vmatmul.f32.gmra.mxu0 %v2121
        %v2233 = vpop.f32.mrf.mxu0
        %v2234 = vadd.f32 0.0, %v2233
        %2235 = vmatmul.f32.gmra.mxu0 %v2124
        %v2236 = vpop.f32.mrf.mxu0
        %v2237 = vadd.f32 0.0, %v2236
        %2238 = vmatmul.f32.gmra.mxu0 %v2127
        %v2239 = vpop.f32.mrf.mxu0
        %v2240 = vadd.f32 0.0, %v2239
        %2241 = vmatmul.f32.gmra.mxu0 %v2130
        %v2242 = vpop.f32.mrf.mxu0
        %v2243 = vadd.f32 0.0, %v2242
        %2244 = vmatmul.f32.gmra.mxu0 %v2133
        %v2245 = vpop.f32.mrf.mxu0
        %v2246 = vadd.f32 0.0, %v2245
        %2247 = vmatmul.f32.gmra.mxu0 %v2136
        %v2248 = vpop.f32.mrf.mxu0
        %v2249 = vadd.f32 0.0, %v2248
        %2250 = vmatmul.f32.gmra.mxu0 %v2139
        %v2251 = vpop.f32.mrf.mxu0
        %v2252 = vadd.f32 0.0, %v2251
        %2253 = vmatmul.f32.gmra.mxu0 %v2142
        %v2254 = vpop.f32.mrf.mxu0
        %v2255 = vadd.f32 0.0, %v2254
        %2256 = vmatmul.f32.gmra.mxu0 %v2145
        %v2257 = vpop.f32.mrf.mxu0
        %v2258 = vadd.f32 0.0, %v2257
        %2259 = vmatmul.f32.gmra.mxu0 %v2148
        %v2260 = vpop.f32.mrf.mxu0
        %v2261 = vadd.f32 0.0, %v2260
        %2262 = vmatmul.f32.gmra.mxu0 %v2151
        %v2263 = vpop.f32.mrf.mxu0
        %v2264 = vadd.f32 0.0, %v2263
        %2265 = vmatmul.f32.gmra.mxu0 %v2154
        %v2266 = vpop.f32.mrf.mxu0
        %v2267 = vadd.f32 0.0, %v2266
        %2268 = vmatmul.f32.gmra.mxu0 %v2157
        %v2269 = vpop.f32.mrf.mxu0
        %v2270 = vadd.f32 0.0, %v2269
        %2271 = vmatmul.f32.gmra.mxu0 %v2160
        %v2272 = vpop.f32.mrf.mxu0
        %v2273 = vadd.f32 0.0, %v2272
        %2274 = vmatmul.f32.gmra.mxu0 %v2163
        %v2275 = vpop.f32.mrf.mxu0
        %v2276 = vadd.f32 0.0, %v2275
        %2277 = vmatmul.f32.gmra.mxu0 %v2166
        %v2278 = vpop.f32.mrf.mxu0
        %v2279 = vadd.f32 0.0, %v2278
        %2280 = vmatmul.f32.gmra.mxu0 %v2169
        %v2281 = vpop.f32.mrf.mxu0
        %v2282 = vadd.f32 0.0, %v2281
        %2283 = vmatmul.f32.gmra.mxu0 %v2172
        %v2284 = vpop.f32.mrf.mxu0
        %v2285 = vadd.f32 0.0, %v2284
        %2286 = vmatmul.f32.gmra.mxu0 %v2175
        %v2287 = vpop.f32.mrf.mxu0
        %v2288 = vadd.f32 0.0, %v2287
        %2289 = vmatmul.f32.gmra.mxu0 %v2178
        %v2290 = vpop.f32.mrf.mxu0
        %v2291 = vadd.f32 0.0, %v2290
        %2292 = vmatmul.f32.gmra.mxu0 %v2181
        %v2293 = vpop.f32.mrf.mxu0
        %v2294 = vadd.f32 0.0, %v2293
        %2295 = vdwg.mxu0
        %v2296 = vadd.f32 %v2023, %v2201
        %v2297 = vadd.f32 %v2024, %v2204
        %v2298 = vadd.f32 %v2025, %v2207
        %v2299 = vadd.f32 %v2026, %v2210
        %v2300 = vadd.f32 %v2027, %v2213
        %v2301 = vadd.f32 %v2028, %v2216
        %v2302 = vadd.f32 %v2029, %v2219
        %v2303 = vadd.f32 %v2030, %v2222
        %v2304 = vadd.f32 %v2031, %v2225
        %v2305 = vadd.f32 %v2032, %v2228
        %v2306 = vadd.f32 %v2033, %v2231
        %v2307 = vadd.f32 %v2034, %v2234
        %v2308 = vadd.f32 %v2035, %v2237
        %v2309 = vadd.f32 %v2036, %v2240
        %v2310 = vadd.f32 %v2037, %v2243
        %v2311 = vadd.f32 %v2038, %v2246
        %v2312 = vadd.f32 %v2039, %v2249
        %v2313 = vadd.f32 %v2040, %v2252
        %v2314 = vadd.f32 %v2041, %v2255
        %v2315 = vadd.f32 %v2042, %v2258
        %v2316 = vadd.f32 %v2043, %v2261
        %v2317 = vadd.f32 %v2044, %v2264
        %v2318 = vadd.f32 %v2045, %v2267
        %v2319 = vadd.f32 %v2046, %v2270
        %v2320 = vadd.f32 %v2047, %v2273
        %v2321 = vadd.f32 %v2048, %v2276
        %v2322 = vadd.f32 %v2049, %v2279
        %v2323 = vadd.f32 %v2050, %v2282
        %v2324 = vadd.f32 %v2051, %v2285
        %v2325 = vadd.f32 %v2052, %v2288
        %v2326 = vadd.f32 %v2053, %v2291
        %v2327 = vadd.f32 %v2054, %v2294
        %s2328 = scalar_lea.vmem [#allocation2], 48
        %v2329 = vld [vmem:[%s2328] sm:$0xff]
        %v2330 = vld [vmem:[%s2328 + $0x8] sm:$0xff]
        %v2331 = vld [vmem:[%s2328 + $0x18] sm:$0xff]
        %v2332 = vld [vmem:[%s2328 + $0x20] sm:$0xff]
        %v2333 = vld [vmem:[%s2328 + $0x30] sm:$0xff]
        %v2334 = vld [vmem:[%s2328 + $0x38] sm:$0xff]
        %v2335 = vld [vmem:[%s2328 + $0x48] sm:$0xff]
        %v2336 = vld [vmem:[%s2328 + $0x50] sm:$0xff]
        %v2337 = vld [vmem:[%s2328 + $0x60] sm:$0xff]
        %v2338 = vld [vmem:[%s2328 + $0x68] sm:$0xff]
        %v2339 = vld [vmem:[%s2328 + $0x78] sm:$0xff]
        %v2340 = vld [vmem:[%s2328 + $0x80] sm:$0xff]
        %v2341 = vld [vmem:[%s2328 + $0x90] sm:$0xff]
        %v2342 = vld [vmem:[%s2328 + $0x98] sm:$0xff]
        %v2343 = vld [vmem:[%s2328 + $0xa8] sm:$0xff]
        %v2344 = vld [vmem:[%s2328 + $0xb0] sm:$0xff]
        %v2345 = vld [vmem:[%s2328 + $0xc0] sm:$0xff]
        %v2346 = vld [vmem:[%s2328 + $0xc8] sm:$0xff]
        %v2347 = vld [vmem:[%s2328 + $0xd8] sm:$0xff]
        %v2348 = vld [vmem:[%s2328 + $0xe0] sm:$0xff]
        %v2349 = vld [vmem:[%s2328 + $0xf0] sm:$0xff]
        %v2350 = vld [vmem:[%s2328 + $0xf8] sm:$0xff]
        %v2351 = vld [vmem:[%s2328 + $0x108] sm:$0xff]
        %v2352 = vld [vmem:[%s2328 + $0x110] sm:$0xff]
        %v2353 = vld [vmem:[%s2328 + $0x120] sm:$0xff]
        %v2354 = vld [vmem:[%s2328 + $0x128] sm:$0xff]
        %v2355 = vld [vmem:[%s2328 + $0x138] sm:$0xff]
        %v2356 = vld [vmem:[%s2328 + $0x140] sm:$0xff]
        %v2357 = vld [vmem:[%s2328 + $0x150] sm:$0xff]
        %v2358 = vld [vmem:[%s2328 + $0x158] sm:$0xff]
        %v2359 = vld [vmem:[%s2328 + $0x168] sm:$0xff]
        %v2360 = vld [vmem:[%s2328 + $0x170] sm:$0xff]
        %v2362 = vsel %vm484, %v2329, 0
        %v2365 = vsel %vm484, %v2330, 0
        %v2368 = vsel %vm484, %v2331, 0
        %v2371 = vsel %vm484, %v2332, 0
        %v2374 = vsel %vm484, %v2333, 0
        %v2377 = vsel %vm484, %v2334, 0
        %v2380 = vsel %vm484, %v2335, 0
        %v2383 = vsel %vm484, %v2336, 0
        %v2386 = vsel %vm484, %v2337, 0
        %v2389 = vsel %vm484, %v2338, 0
        %v2392 = vsel %vm484, %v2339, 0
        %v2395 = vsel %vm484, %v2340, 0
        %v2398 = vsel %vm484, %v2341, 0
        %v2401 = vsel %vm484, %v2342, 0
        %v2404 = vsel %vm484, %v2343, 0
        %v2407 = vsel %vm484, %v2344, 0
        %v2410 = vsel %vm484, %v2345, 0
        %v2413 = vsel %vm484, %v2346, 0
        %v2416 = vsel %vm484, %v2347, 0
        %v2419 = vsel %vm484, %v2348, 0
        %v2422 = vsel %vm484, %v2349, 0
        %v2425 = vsel %vm484, %v2350, 0
        %v2428 = vsel %vm484, %v2351, 0
        %v2431 = vsel %vm484, %v2352, 0
        %v2434 = vsel %vm484, %v2353, 0
        %v2437 = vsel %vm484, %v2354, 0
        %v2440 = vsel %vm484, %v2355, 0
        %v2443 = vsel %vm484, %v2356, 0
        %v2446 = vsel %vm484, %v2357, 0
        %v2449 = vsel %vm484, %v2358, 0
        %v2452 = vsel %vm484, %v2359, 0
        %v2455 = vsel %vm484, %v2360, 0
        %2457 = vmatpush.msra.mxu0 0.0
        %2458 = vmatpush.msra.mxu0 0.0
        %2459 = vmatpush.msra.mxu0 0.0
        %2460 = vmatpush.msra.mxu0 0.0
        %2461 = vmatpush.msra.mxu0 0.0
        %2462 = vmatpush.msra.mxu0 0.0
        %2463 = vmatpush.msra.mxu0 0.0
        %2464 = vmatpush.msra.mxu0 0.0
        %2465 = vmatpush.msra.mxu0 0.0
        %2466 = vmatpush.msra.mxu0 0.0
        %2467 = vmatpush.msra.mxu0 0.0
        %2468 = vmatpush.msra.mxu0 0.0
        %2469 = vmatpush.msra.mxu0 %v623
        %2470 = vmatpush.msra.mxu0 %v622
        %2471 = vmatpush.msra.mxu0 %v621
        %2472 = vmatpush.msra.mxu0 %v620
        %2473 = vmatmul.f32.gmra.mxu0 %v2362
        %v2474 = vpop.f32.mrf.mxu0
        %v2475 = vadd.f32 0.0, %v2474
        %2476 = vmatmul.f32.gmra.mxu0 %v2365
        %v2477 = vpop.f32.mrf.mxu0
        %v2478 = vadd.f32 0.0, %v2477
        %2479 = vmatmul.f32.gmra.mxu0 %v2368
        %v2480 = vpop.f32.mrf.mxu0
        %v2481 = vadd.f32 0.0, %v2480
        %2482 = vmatmul.f32.gmra.mxu0 %v2371
        %v2483 = vpop.f32.mrf.mxu0
        %v2484 = vadd.f32 0.0, %v2483
        %2485 = vmatmul.f32.gmra.mxu0 %v2374
        %v2486 = vpop.f32.mrf.mxu0
        %v2487 = vadd.f32 0.0, %v2486
        %2488 = vmatmul.f32.gmra.mxu0 %v2377
        %v2489 = vpop.f32.mrf.mxu0
        %v2490 = vadd.f32 0.0, %v2489
        %2491 = vmatmul.f32.gmra.mxu0 %v2380
        %v2492 = vpop.f32.mrf.mxu0
        %v2493 = vadd.f32 0.0, %v2492
        %2494 = vmatmul.f32.gmra.mxu0 %v2383
        %v2495 = vpop.f32.mrf.mxu0
        %v2496 = vadd.f32 0.0, %v2495
        %2497 = vmatmul.f32.gmra.mxu0 %v2386
        %v2498 = vpop.f32.mrf.mxu0
        %v2499 = vadd.f32 0.0, %v2498
        %2500 = vmatmul.f32.gmra.mxu0 %v2389
        %v2501 = vpop.f32.mrf.mxu0
        %v2502 = vadd.f32 0.0, %v2501
        %2503 = vmatmul.f32.gmra.mxu0 %v2392
        %v2504 = vpop.f32.mrf.mxu0
        %v2505 = vadd.f32 0.0, %v2504
        %2506 = vmatmul.f32.gmra.mxu0 %v2395
        %v2507 = vpop.f32.mrf.mxu0
        %v2508 = vadd.f32 0.0, %v2507
        %2509 = vmatmul.f32.gmra.mxu0 %v2398
        %v2510 = vpop.f32.mrf.mxu0
        %v2511 = vadd.f32 0.0, %v2510
        %2512 = vmatmul.f32.gmra.mxu0 %v2401
        %v2513 = vpop.f32.mrf.mxu0
        %v2514 = vadd.f32 0.0, %v2513
        %2515 = vmatmul.f32.gmra.mxu0 %v2404
        %v2516 = vpop.f32.mrf.mxu0
        %v2517 = vadd.f32 0.0, %v2516
        %2518 = vmatmul.f32.gmra.mxu0 %v2407
        %v2519 = vpop.f32.mrf.mxu0
        %v2520 = vadd.f32 0.0, %v2519
        %2521 = vmatmul.f32.gmra.mxu0 %v2410
        %v2522 = vpop.f32.mrf.mxu0
        %v2523 = vadd.f32 0.0, %v2522
        %2524 = vmatmul.f32.gmra.mxu0 %v2413
        %v2525 = vpop.f32.mrf.mxu0
        %v2526 = vadd.f32 0.0, %v2525
        %2527 = vmatmul.f32.gmra.mxu0 %v2416
        %v2528 = vpop.f32.mrf.mxu0
        %v2529 = vadd.f32 0.0, %v2528
        %2530 = vmatmul.f32.gmra.mxu0 %v2419
        %v2531 = vpop.f32.mrf.mxu0
        %v2532 = vadd.f32 0.0, %v2531
        %2533 = vmatmul.f32.gmra.mxu0 %v2422
        %v2534 = vpop.f32.mrf.mxu0
        %v2535 = vadd.f32 0.0, %v2534
        %2536 = vmatmul.f32.gmra.mxu0 %v2425
        %v2537 = vpop.f32.mrf.mxu0
        %v2538 = vadd.f32 0.0, %v2537
        %2539 = vmatmul.f32.gmra.mxu0 %v2428
        %v2540 = vpop.f32.mrf.mxu0
        %v2541 = vadd.f32 0.0, %v2540
        %2542 = vmatmul.f32.gmra.mxu0 %v2431
        %v2543 = vpop.f32.mrf.mxu0
        %v2544 = vadd.f32 0.0, %v2543
        %2545 = vmatmul.f32.gmra.mxu0 %v2434
        %v2546 = vpop.f32.mrf.mxu0
        %v2547 = vadd.f32 0.0, %v2546
        %2548 = vmatmul.f32.gmra.mxu0 %v2437
        %v2549 = vpop.f32.mrf.mxu0
        %v2550 = vadd.f32 0.0, %v2549
        %2551 = vmatmul.f32.gmra.mxu0 %v2440
        %v2552 = vpop.f32.mrf.mxu0
        %v2553 = vadd.f32 0.0, %v2552
        %2554 = vmatmul.f32.gmra.mxu0 %v2443
        %v2555 = vpop.f32.mrf.mxu0
        %v2556 = vadd.f32 0.0, %v2555
        %2557 = vmatmul.f32.gmra.mxu0 %v2446
        %v2558 = vpop.f32.mrf.mxu0
        %v2559 = vadd.f32 0.0, %v2558
        %2560 = vmatmul.f32.gmra.mxu0 %v2449
        %v2561 = vpop.f32.mrf.mxu0
        %v2562 = vadd.f32 0.0, %v2561
        %2563 = vmatmul.f32.gmra.mxu0 %v2452
        %v2564 = vpop.f32.mrf.mxu0
        %v2565 = vadd.f32 0.0, %v2564
        %2566 = vmatmul.f32.gmra.mxu0 %v2455
        %v2567 = vpop.f32.mrf.mxu0
        %v2568 = vadd.f32 0.0, %v2567
        %2569 = vdwg.mxu0
        %v2570 = vadd.f32 %v2296, %v2475
        %v2571 = vadd.f32 %v2297, %v2478
        %v2572 = vadd.f32 %v2298, %v2481
        %v2573 = vadd.f32 %v2299, %v2484
        %v2574 = vadd.f32 %v2300, %v2487
        %v2575 = vadd.f32 %v2301, %v2490
        %v2576 = vadd.f32 %v2302, %v2493
        %v2577 = vadd.f32 %v2303, %v2496
        %v2578 = vadd.f32 %v2304, %v2499
        %v2579 = vadd.f32 %v2305, %v2502
        %v2580 = vadd.f32 %v2306, %v2505
        %v2581 = vadd.f32 %v2307, %v2508
        %v2582 = vadd.f32 %v2308, %v2511
        %v2583 = vadd.f32 %v2309, %v2514
        %v2584 = vadd.f32 %v2310, %v2517
        %v2585 = vadd.f32 %v2311, %v2520
        %v2586 = vadd.f32 %v2312, %v2523
        %v2587 = vadd.f32 %v2313, %v2526
        %v2588 = vadd.f32 %v2314, %v2529
        %v2589 = vadd.f32 %v2315, %v2532
        %v2590 = vadd.f32 %v2316, %v2535
        %v2591 = vadd.f32 %v2317, %v2538
        %v2592 = vadd.f32 %v2318, %v2541
        %v2593 = vadd.f32 %v2319, %v2544
        %v2594 = vadd.f32 %v2320, %v2547
        %v2595 = vadd.f32 %v2321, %v2550
        %v2596 = vadd.f32 %v2322, %v2553
        %v2597 = vadd.f32 %v2323, %v2556
        %v2598 = vadd.f32 %v2324, %v2559
        %v2599 = vadd.f32 %v2325, %v2562
        %v2600 = vadd.f32 %v2326, %v2565
        %v2601 = vadd.f32 %v2327, %v2568
        %v2602 = vld [vmem:[%s2328 + $0x1] sm:$0xff]
        %v2603 = vld [vmem:[%s2328 + $0x9] sm:$0xff]
        %v2604 = vld [vmem:[%s2328 + $0x19] sm:$0xff]
        %v2605 = vld [vmem:[%s2328 + $0x21] sm:$0xff]
        %v2606 = vld [vmem:[%s2328 + $0x31] sm:$0xff]
        %v2607 = vld [vmem:[%s2328 + $0x39] sm:$0xff]
        %v2608 = vld [vmem:[%s2328 + $0x49] sm:$0xff]
        %v2609 = vld [vmem:[%s2328 + $0x51] sm:$0xff]
        %v2610 = vld [vmem:[%s2328 + $0x61] sm:$0xff]
        %v2611 = vld [vmem:[%s2328 + $0x69] sm:$0xff]
        %v2612 = vld [vmem:[%s2328 + $0x79] sm:$0xff]
        %v2613 = vld [vmem:[%s2328 + $0x81] sm:$0xff]
        %v2614 = vld [vmem:[%s2328 + $0x91] sm:$0xff]
        %v2615 = vld [vmem:[%s2328 + $0x99] sm:$0xff]
        %v2616 = vld [vmem:[%s2328 + $0xa9] sm:$0xff]
        %v2617 = vld [vmem:[%s2328 + $0xb1] sm:$0xff]
        %v2618 = vld [vmem:[%s2328 + $0xc1] sm:$0xff]
        %v2619 = vld [vmem:[%s2328 + $0xc9] sm:$0xff]
        %v2620 = vld [vmem:[%s2328 + $0xd9] sm:$0xff]
        %v2621 = vld [vmem:[%s2328 + $0xe1] sm:$0xff]
        %v2622 = vld [vmem:[%s2328 + $0xf1] sm:$0xff]
        %v2623 = vld [vmem:[%s2328 + $0xf9] sm:$0xff]
        %v2624 = vld [vmem:[%s2328 + $0x109] sm:$0xff]
        %v2625 = vld [vmem:[%s2328 + $0x111] sm:$0xff]
        %v2626 = vld [vmem:[%s2328 + $0x121] sm:$0xff]
        %v2627 = vld [vmem:[%s2328 + $0x129] sm:$0xff]
        %v2628 = vld [vmem:[%s2328 + $0x139] sm:$0xff]
        %v2629 = vld [vmem:[%s2328 + $0x141] sm:$0xff]
        %v2630 = vld [vmem:[%s2328 + $0x151] sm:$0xff]
        %v2631 = vld [vmem:[%s2328 + $0x159] sm:$0xff]
        %v2632 = vld [vmem:[%s2328 + $0x169] sm:$0xff]
        %v2633 = vld [vmem:[%s2328 + $0x171] sm:$0xff]
        %v2635 = vsel %vm484, %v2602, 0
        %v2638 = vsel %vm484, %v2603, 0
        %v2641 = vsel %vm484, %v2604, 0
        %v2644 = vsel %vm484, %v2605, 0
        %v2647 = vsel %vm484, %v2606, 0
        %v2650 = vsel %vm484, %v2607, 0
        %v2653 = vsel %vm484, %v2608, 0
        %v2656 = vsel %vm484, %v2609, 0
        %v2659 = vsel %vm484, %v2610, 0
        %v2662 = vsel %vm484, %v2611, 0
        %v2665 = vsel %vm484, %v2612, 0
        %v2668 = vsel %vm484, %v2613, 0
        %v2671 = vsel %vm484, %v2614, 0
        %v2674 = vsel %vm484, %v2615, 0
        %v2677 = vsel %vm484, %v2616, 0
        %v2680 = vsel %vm484, %v2617, 0
        %v2683 = vsel %vm484, %v2618, 0
        %v2686 = vsel %vm484, %v2619, 0
        %v2689 = vsel %vm484, %v2620, 0
        %v2692 = vsel %vm484, %v2621, 0
        %v2695 = vsel %vm484, %v2622, 0
        %v2698 = vsel %vm484, %v2623, 0
        %v2701 = vsel %vm484, %v2624, 0
        %v2704 = vsel %vm484, %v2625, 0
        %v2707 = vsel %vm484, %v2626, 0
        %v2710 = vsel %vm484, %v2627, 0
        %v2713 = vsel %vm484, %v2628, 0
        %v2716 = vsel %vm484, %v2629, 0
        %v2719 = vsel %vm484, %v2630, 0
        %v2722 = vsel %vm484, %v2631, 0
        %v2725 = vsel %vm484, %v2632, 0
        %v2728 = vsel %vm484, %v2633, 0
        %2730 = vmatpush.msra.mxu0 0.0
        %2731 = vmatpush.msra.mxu0 0.0
        %2732 = vmatpush.msra.mxu0 0.0
        %2733 = vmatpush.msra.mxu0 0.0
        %2734 = vmatpush.msra.mxu0 0.0
        %2735 = vmatpush.msra.mxu0 0.0
        %2736 = vmatpush.msra.mxu0 0.0
        %2737 = vmatpush.msra.mxu0 0.0
        %2738 = vmatpush.msra.mxu0 0.0
        %2739 = vmatpush.msra.mxu0 0.0
        %2740 = vmatpush.msra.mxu0 0.0
        %2741 = vmatpush.msra.mxu0 0.0
        %2742 = vmatpush.msra.mxu0 %v627
        %2743 = vmatpush.msra.mxu0 %v626
        %2744 = vmatpush.msra.mxu0 %v625
        %2745 = vmatpush.msra.mxu0 %v624
        %2746 = vmatmul.f32.gmra.mxu0 %v2635
        %v2747 = vpop.f32.mrf.mxu0
        %v2748 = vadd.f32 0.0, %v2747
        %2749 = vmatmul.f32.gmra.mxu0 %v2638
        %v2750 = vpop.f32.mrf.mxu0
        %v2751 = vadd.f32 0.0, %v2750
        %2752 = vmatmul.f32.gmra.mxu0 %v2641
        %v2753 = vpop.f32.mrf.mxu0
        %v2754 = vadd.f32 0.0, %v2753
        %2755 = vmatmul.f32.gmra.mxu0 %v2644
        %v2756 = vpop.f32.mrf.mxu0
        %v2757 = vadd.f32 0.0, %v2756
        %2758 = vmatmul.f32.gmra.mxu0 %v2647
        %v2759 = vpop.f32.mrf.mxu0
        %v2760 = vadd.f32 0.0, %v2759
        %2761 = vmatmul.f32.gmra.mxu0 %v2650
        %v2762 = vpop.f32.mrf.mxu0
        %v2763 = vadd.f32 0.0, %v2762
        %2764 = vmatmul.f32.gmra.mxu0 %v2653
        %v2765 = vpop.f32.mrf.mxu0
        %v2766 = vadd.f32 0.0, %v2765
        %2767 = vmatmul.f32.gmra.mxu0 %v2656
        %v2768 = vpop.f32.mrf.mxu0
        %v2769 = vadd.f32 0.0, %v2768
        %2770 = vmatmul.f32.gmra.mxu0 %v2659
        %v2771 = vpop.f32.mrf.mxu0
        %v2772 = vadd.f32 0.0, %v2771
        %2773 = vmatmul.f32.gmra.mxu0 %v2662
        %v2774 = vpop.f32.mrf.mxu0
        %v2775 = vadd.f32 0.0, %v2774
        %2776 = vmatmul.f32.gmra.mxu0 %v2665
        %v2777 = vpop.f32.mrf.mxu0
        %v2778 = vadd.f32 0.0, %v2777
        %2779 = vmatmul.f32.gmra.mxu0 %v2668
        %v2780 = vpop.f32.mrf.mxu0
        %v2781 = vadd.f32 0.0, %v2780
        %2782 = vmatmul.f32.gmra.mxu0 %v2671
        %v2783 = vpop.f32.mrf.mxu0
        %v2784 = vadd.f32 0.0, %v2783
        %2785 = vmatmul.f32.gmra.mxu0 %v2674
        %v2786 = vpop.f32.mrf.mxu0
        %v2787 = vadd.f32 0.0, %v2786
        %2788 = vmatmul.f32.gmra.mxu0 %v2677
        %v2789 = vpop.f32.mrf.mxu0
        %v2790 = vadd.f32 0.0, %v2789
        %2791 = vmatmul.f32.gmra.mxu0 %v2680
        %v2792 = vpop.f32.mrf.mxu0
        %v2793 = vadd.f32 0.0, %v2792
        %2794 = vmatmul.f32.gmra.mxu0 %v2683
        %v2795 = vpop.f32.mrf.mxu0
        %v2796 = vadd.f32 0.0, %v2795
        %2797 = vmatmul.f32.gmra.mxu0 %v2686
        %v2798 = vpop.f32.mrf.mxu0
        %v2799 = vadd.f32 0.0, %v2798
        %2800 = vmatmul.f32.gmra.mxu0 %v2689
        %v2801 = vpop.f32.mrf.mxu0
        %v2802 = vadd.f32 0.0, %v2801
        %2803 = vmatmul.f32.gmra.mxu0 %v2692
        %v2804 = vpop.f32.mrf.mxu0
        %v2805 = vadd.f32 0.0, %v2804
        %2806 = vmatmul.f32.gmra.mxu0 %v2695
        %v2807 = vpop.f32.mrf.mxu0
        %v2808 = vadd.f32 0.0, %v2807
        %2809 = vmatmul.f32.gmra.mxu0 %v2698
        %v2810 = vpop.f32.mrf.mxu0
        %v2811 = vadd.f32 0.0, %v2810
        %2812 = vmatmul.f32.gmra.mxu0 %v2701
        %v2813 = vpop.f32.mrf.mxu0
        %v2814 = vadd.f32 0.0, %v2813
        %2815 = vmatmul.f32.gmra.mxu0 %v2704
        %v2816 = vpop.f32.mrf.mxu0
        %v2817 = vadd.f32 0.0, %v2816
        %2818 = vmatmul.f32.gmra.mxu0 %v2707
        %v2819 = vpop.f32.mrf.mxu0
        %v2820 = vadd.f32 0.0, %v2819
        %2821 = vmatmul.f32.gmra.mxu0 %v2710
        %v2822 = vpop.f32.mrf.mxu0
        %v2823 = vadd.f32 0.0, %v2822
        %2824 = vmatmul.f32.gmra.mxu0 %v2713
        %v2825 = vpop.f32.mrf.mxu0
        %v2826 = vadd.f32 0.0, %v2825
        %2827 = vmatmul.f32.gmra.mxu0 %v2716
        %v2828 = vpop.f32.mrf.mxu0
        %v2829 = vadd.f32 0.0, %v2828
        %2830 = vmatmul.f32.gmra.mxu0 %v2719
        %v2831 = vpop.f32.mrf.mxu0
        %v2832 = vadd.f32 0.0, %v2831
        %2833 = vmatmul.f32.gmra.mxu0 %v2722
        %v2834 = vpop.f32.mrf.mxu0
        %v2835 = vadd.f32 0.0, %v2834
        %2836 = vmatmul.f32.gmra.mxu0 %v2725
        %v2837 = vpop.f32.mrf.mxu0
        %v2838 = vadd.f32 0.0, %v2837
        %2839 = vmatmul.f32.gmra.mxu0 %v2728
        %v2840 = vpop.f32.mrf.mxu0
        %v2841 = vadd.f32 0.0, %v2840
        %2842 = vdwg.mxu0
        %v2843 = vadd.f32 %v2570, %v2748
        %v2844 = vadd.f32 %v2571, %v2751
        %v2845 = vadd.f32 %v2572, %v2754
        %v2846 = vadd.f32 %v2573, %v2757
        %v2847 = vadd.f32 %v2574, %v2760
        %v2848 = vadd.f32 %v2575, %v2763
        %v2849 = vadd.f32 %v2576, %v2766
        %v2850 = vadd.f32 %v2577, %v2769
        %v2851 = vadd.f32 %v2578, %v2772
        %v2852 = vadd.f32 %v2579, %v2775
        %v2853 = vadd.f32 %v2580, %v2778
        %v2854 = vadd.f32 %v2581, %v2781
        %v2855 = vadd.f32 %v2582, %v2784
        %v2856 = vadd.f32 %v2583, %v2787
        %v2857 = vadd.f32 %v2584, %v2790
        %v2858 = vadd.f32 %v2585, %v2793
        %v2859 = vadd.f32 %v2586, %v2796
        %v2860 = vadd.f32 %v2587, %v2799
        %v2861 = vadd.f32 %v2588, %v2802
        %v2862 = vadd.f32 %v2589, %v2805
        %v2863 = vadd.f32 %v2590, %v2808
        %v2864 = vadd.f32 %v2591, %v2811
        %v2865 = vadd.f32 %v2592, %v2814
        %v2866 = vadd.f32 %v2593, %v2817
        %v2867 = vadd.f32 %v2594, %v2820
        %v2868 = vadd.f32 %v2595, %v2823
        %v2869 = vadd.f32 %v2596, %v2826
        %v2870 = vadd.f32 %v2597, %v2829
        %v2871 = vadd.f32 %v2598, %v2832
        %v2872 = vadd.f32 %v2599, %v2835
        %v2873 = vadd.f32 %v2600, %v2838
        %v2874 = vadd.f32 %v2601, %v2841
        %v2875 = vld [vmem:[%s2328 + $0x2] sm:$0xff]
        %v2876 = vld [vmem:[%s2328 + $0xa] sm:$0xff]
        %v2877 = vld [vmem:[%s2328 + $0x1a] sm:$0xff]
        %v2878 = vld [vmem:[%s2328 + $0x22] sm:$0xff]
        %v2879 = vld [vmem:[%s2328 + $0x32] sm:$0xff]
        %v2880 = vld [vmem:[%s2328 + $0x3a] sm:$0xff]
        %v2881 = vld [vmem:[%s2328 + $0x4a] sm:$0xff]
        %v2882 = vld [vmem:[%s2328 + $0x52] sm:$0xff]
        %v2883 = vld [vmem:[%s2328 + $0x62] sm:$0xff]
        %v2884 = vld [vmem:[%s2328 + $0x6a] sm:$0xff]
        %v2885 = vld [vmem:[%s2328 + $0x7a] sm:$0xff]
        %v2886 = vld [vmem:[%s2328 + $0x82] sm:$0xff]
        %v2887 = vld [vmem:[%s2328 + $0x92] sm:$0xff]
        %v2888 = vld [vmem:[%s2328 + $0x9a] sm:$0xff]
        %v2889 = vld [vmem:[%s2328 + $0xaa] sm:$0xff]
        %v2890 = vld [vmem:[%s2328 + $0xb2] sm:$0xff]
        %v2891 = vld [vmem:[%s2328 + $0xc2] sm:$0xff]
        %v2892 = vld [vmem:[%s2328 + $0xca] sm:$0xff]
        %v2893 = vld [vmem:[%s2328 + $0xda] sm:$0xff]
        %v2894 = vld [vmem:[%s2328 + $0xe2] sm:$0xff]
        %v2895 = vld [vmem:[%s2328 + $0xf2] sm:$0xff]
        %v2896 = vld [vmem:[%s2328 + $0xfa] sm:$0xff]
        %v2897 = vld [vmem:[%s2328 + $0x10a] sm:$0xff]
        %v2898 = vld [vmem:[%s2328 + $0x112] sm:$0xff]
        %v2899 = vld [vmem:[%s2328 + $0x122] sm:$0xff]
        %v2900 = vld [vmem:[%s2328 + $0x12a] sm:$0xff]
        %v2901 = vld [vmem:[%s2328 + $0x13a] sm:$0xff]
        %v2902 = vld [vmem:[%s2328 + $0x142] sm:$0xff]
        %v2903 = vld [vmem:[%s2328 + $0x152] sm:$0xff]
        %v2904 = vld [vmem:[%s2328 + $0x15a] sm:$0xff]
        %v2905 = vld [vmem:[%s2328 + $0x16a] sm:$0xff]
        %v2906 = vld [vmem:[%s2328 + $0x172] sm:$0xff]
        %v2908 = vsel %vm484, %v2875, 0
        %v2911 = vsel %vm484, %v2876, 0
        %v2914 = vsel %vm484, %v2877, 0
        %v2917 = vsel %vm484, %v2878, 0
        %v2920 = vsel %vm484, %v2879, 0
        %v2923 = vsel %vm484, %v2880, 0
        %v2926 = vsel %vm484, %v2881, 0
        %v2929 = vsel %vm484, %v2882, 0
        %v2932 = vsel %vm484, %v2883, 0
        %v2935 = vsel %vm484, %v2884, 0
        %v2938 = vsel %vm484, %v2885, 0
        %v2941 = vsel %vm484, %v2886, 0
        %v2944 = vsel %vm484, %v2887, 0
        %v2947 = vsel %vm484, %v2888, 0
        %v2950 = vsel %vm484, %v2889, 0
        %v2953 = vsel %vm484, %v2890, 0
        %v2956 = vsel %vm484, %v2891, 0
        %v2959 = vsel %vm484, %v2892, 0
        %v2962 = vsel %vm484, %v2893, 0
        %v2965 = vsel %vm484, %v2894, 0
        %v2968 = vsel %vm484, %v2895, 0
        %v2971 = vsel %vm484, %v2896, 0
        %v2974 = vsel %vm484, %v2897, 0
        %v2977 = vsel %vm484, %v2898, 0
        %v2980 = vsel %vm484, %v2899, 0
        %v2983 = vsel %vm484, %v2900, 0
        %v2986 = vsel %vm484, %v2901, 0
        %v2989 = vsel %vm484, %v2902, 0
        %v2992 = vsel %vm484, %v2903, 0
        %v2995 = vsel %vm484, %v2904, 0
        %v2998 = vsel %vm484, %v2905, 0
        %v3001 = vsel %vm484, %v2906, 0
        %3003 = vmatpush.msra.mxu0 0.0
        %3004 = vmatpush.msra.mxu0 0.0
        %3005 = vmatpush.msra.mxu0 0.0
        %3006 = vmatpush.msra.mxu0 0.0
        %3007 = vmatpush.msra.mxu0 0.0
        %3008 = vmatpush.msra.mxu0 0.0
        %3009 = vmatpush.msra.mxu0 0.0
        %3010 = vmatpush.msra.mxu0 0.0
        %3011 = vmatpush.msra.mxu0 0.0
        %3012 = vmatpush.msra.mxu0 0.0
        %3013 = vmatpush.msra.mxu0 0.0
        %3014 = vmatpush.msra.mxu0 0.0
        %3015 = vmatpush.msra.mxu0 %v631
        %3016 = vmatpush.msra.mxu0 %v630
        %3017 = vmatpush.msra.mxu0 %v629
        %3018 = vmatpush.msra.mxu0 %v628
        %3019 = vmatmul.f32.gmra.mxu0 %v2908
        %v3020 = vpop.f32.mrf.mxu0
        %v3021 = vadd.f32 0.0, %v3020
        %3022 = vmatmul.f32.gmra.mxu0 %v2911
        %v3023 = vpop.f32.mrf.mxu0
        %v3024 = vadd.f32 0.0, %v3023
        %3025 = vmatmul.f32.gmra.mxu0 %v2914
        %v3026 = vpop.f32.mrf.mxu0
        %v3027 = vadd.f32 0.0, %v3026
        %3028 = vmatmul.f32.gmra.mxu0 %v2917
        %v3029 = vpop.f32.mrf.mxu0
        %v3030 = vadd.f32 0.0, %v3029
        %3031 = vmatmul.f32.gmra.mxu0 %v2920
        %v3032 = vpop.f32.mrf.mxu0
        %v3033 = vadd.f32 0.0, %v3032
        %3034 = vmatmul.f32.gmra.mxu0 %v2923
        %v3035 = vpop.f32.mrf.mxu0
        %v3036 = vadd.f32 0.0, %v3035
        %3037 = vmatmul.f32.gmra.mxu0 %v2926
        %v3038 = vpop.f32.mrf.mxu0
        %v3039 = vadd.f32 0.0, %v3038
        %3040 = vmatmul.f32.gmra.mxu0 %v2929
        %v3041 = vpop.f32.mrf.mxu0
        %v3042 = vadd.f32 0.0, %v3041
        %3043 = vmatmul.f32.gmra.mxu0 %v2932
        %v3044 = vpop.f32.mrf.mxu0
        %v3045 = vadd.f32 0.0, %v3044
        %3046 = vmatmul.f32.gmra.mxu0 %v2935
        %v3047 = vpop.f32.mrf.mxu0
        %v3048 = vadd.f32 0.0, %v3047
        %3049 = vmatmul.f32.gmra.mxu0 %v2938
        %v3050 = vpop.f32.mrf.mxu0
        %v3051 = vadd.f32 0.0, %v3050
        %3052 = vmatmul.f32.gmra.mxu0 %v2941
        %v3053 = vpop.f32.mrf.mxu0
        %v3054 = vadd.f32 0.0, %v3053
        %3055 = vmatmul.f32.gmra.mxu0 %v2944
        %v3056 = vpop.f32.mrf.mxu0
        %v3057 = vadd.f32 0.0, %v3056
        %3058 = vmatmul.f32.gmra.mxu0 %v2947
        %v3059 = vpop.f32.mrf.mxu0
        %v3060 = vadd.f32 0.0, %v3059
        %3061 = vmatmul.f32.gmra.mxu0 %v2950
        %v3062 = vpop.f32.mrf.mxu0
        %v3063 = vadd.f32 0.0, %v3062
        %3064 = vmatmul.f32.gmra.mxu0 %v2953
        %v3065 = vpop.f32.mrf.mxu0
        %v3066 = vadd.f32 0.0, %v3065
        %3067 = vmatmul.f32.gmra.mxu0 %v2956
        %v3068 = vpop.f32.mrf.mxu0
        %v3069 = vadd.f32 0.0, %v3068
        %3070 = vmatmul.f32.gmra.mxu0 %v2959
        %v3071 = vpop.f32.mrf.mxu0
        %v3072 = vadd.f32 0.0, %v3071
        %3073 = vmatmul.f32.gmra.mxu0 %v2962
        %v3074 = vpop.f32.mrf.mxu0
        %v3075 = vadd.f32 0.0, %v3074
        %3076 = vmatmul.f32.gmra.mxu0 %v2965
        %v3077 = vpop.f32.mrf.mxu0
        %v3078 = vadd.f32 0.0, %v3077
        %3079 = vmatmul.f32.gmra.mxu0 %v2968
        %v3080 = vpop.f32.mrf.mxu0
        %v3081 = vadd.f32 0.0, %v3080
        %3082 = vmatmul.f32.gmra.mxu0 %v2971
        %v3083 = vpop.f32.mrf.mxu0
        %v3084 = vadd.f32 0.0, %v3083
        %3085 = vmatmul.f32.gmra.mxu0 %v2974
        %v3086 = vpop.f32.mrf.mxu0
        %v3087 = vadd.f32 0.0, %v3086
        %3088 = vmatmul.f32.gmra.mxu0 %v2977
        %v3089 = vpop.f32.mrf.mxu0
        %v3090 = vadd.f32 0.0, %v3089
        %3091 = vmatmul.f32.gmra.mxu0 %v2980
        %v3092 = vpop.f32.mrf.mxu0
        %v3093 = vadd.f32 0.0, %v3092
        %3094 = vmatmul.f32.gmra.mxu0 %v2983
        %v3095 = vpop.f32.mrf.mxu0
        %v3096 = vadd.f32 0.0, %v3095
        %3097 = vmatmul.f32.gmra.mxu0 %v2986
        %v3098 = vpop.f32.mrf.mxu0
        %v3099 = vadd.f32 0.0, %v3098
        %3100 = vmatmul.f32.gmra.mxu0 %v2989
        %v3101 = vpop.f32.mrf.mxu0
        %v3102 = vadd.f32 0.0, %v3101
        %3103 = vmatmul.f32.gmra.mxu0 %v2992
        %v3104 = vpop.f32.mrf.mxu0
        %v3105 = vadd.f32 0.0, %v3104
        %3106 = vmatmul.f32.gmra.mxu0 %v2995
        %v3107 = vpop.f32.mrf.mxu0
        %v3108 = vadd.f32 0.0, %v3107
        %3109 = vmatmul.f32.gmra.mxu0 %v2998
        %v3110 = vpop.f32.mrf.mxu0
        %v3111 = vadd.f32 0.0, %v3110
        %3112 = vmatmul.f32.gmra.mxu0 %v3001
        %v3113 = vpop.f32.mrf.mxu0
        %v3114 = vadd.f32 0.0, %v3113
        %3115 = vdwg.mxu0
        %v3116 = vadd.f32 %v2843, %v3021
        %v3117 = vadd.f32 %v2844, %v3024
        %v3118 = vadd.f32 %v2845, %v3027
        %v3119 = vadd.f32 %v2846, %v3030
        %v3120 = vadd.f32 %v2847, %v3033
        %v3121 = vadd.f32 %v2848, %v3036
        %v3122 = vadd.f32 %v2849, %v3039
        %v3123 = vadd.f32 %v2850, %v3042
        %v3124 = vadd.f32 %v2851, %v3045
        %v3125 = vadd.f32 %v2852, %v3048
        %v3126 = vadd.f32 %v2853, %v3051
        %v3127 = vadd.f32 %v2854, %v3054
        %v3128 = vadd.f32 %v2855, %v3057
        %v3129 = vadd.f32 %v2856, %v3060
        %v3130 = vadd.f32 %v2857, %v3063
        %v3131 = vadd.f32 %v2858, %v3066
        %v3132 = vadd.f32 %v2859, %v3069
        %v3133 = vadd.f32 %v2860, %v3072
        %v3134 = vadd.f32 %v2861, %v3075
        %v3135 = vadd.f32 %v2862, %v3078
        %v3136 = vadd.f32 %v2863, %v3081
        %v3137 = vadd.f32 %v2864, %v3084
        %v3138 = vadd.f32 %v2865, %v3087
        %v3139 = vadd.f32 %v2866, %v3090
        %v3140 = vadd.f32 %v2867, %v3093
        %v3141 = vadd.f32 %v2868, %v3096
        %v3142 = vadd.f32 %v2869, %v3099
        %v3143 = vadd.f32 %v2870, %v3102
        %v3144 = vadd.f32 %v2871, %v3105
        %v3145 = vadd.f32 %v2872, %v3108
        %v3146 = vadd.f32 %v2873, %v3111
        %v3147 = vadd.f32 %v2874, %v3114
        %v3149 = vperm.slane %v685, 0
        %v3151 = vadd.f32 %v3116, %v3149
        %v3152 = vadd.f32 %v3117, %v3149
        %v3153 = vadd.f32 %v3118, %v3149
        %v3154 = vadd.f32 %v3119, %v3149
        %v3155 = vadd.f32 %v3120, %v3149
        %v3156 = vadd.f32 %v3121, %v3149
        %v3157 = vadd.f32 %v3122, %v3149
        %v3158 = vadd.f32 %v3123, %v3149
        %v3159 = vadd.f32 %v3124, %v3149
        %v3160 = vadd.f32 %v3125, %v3149
        %v3161 = vadd.f32 %v3126, %v3149
        %v3162 = vadd.f32 %v3127, %v3149
        %v3163 = vadd.f32 %v3128, %v3149
        %v3164 = vadd.f32 %v3129, %v3149
        %v3165 = vadd.f32 %v3130, %v3149
        %v3166 = vadd.f32 %v3131, %v3149
        %v3167 = vadd.f32 %v3132, %v3149
        %v3168 = vadd.f32 %v3133, %v3149
        %v3169 = vadd.f32 %v3134, %v3149
        %v3170 = vadd.f32 %v3135, %v3149
        %v3171 = vadd.f32 %v3136, %v3149
        %v3172 = vadd.f32 %v3137, %v3149
        %v3173 = vadd.f32 %v3138, %v3149
        %v3174 = vadd.f32 %v3139, %v3149
        %v3175 = vadd.f32 %v3140, %v3149
        %v3176 = vadd.f32 %v3141, %v3149
        %v3177 = vadd.f32 %v3142, %v3149
        %v3178 = vadd.f32 %v3143, %v3149
        %v3179 = vadd.f32 %v3144, %v3149
        %v3180 = vadd.f32 %v3145, %v3149
        %v3181 = vadd.f32 %v3146, %v3149
        %v3182 = vadd.f32 %v3147, %v3149
        %v3183 = vld [vmem:[%s424] sm:$0xff]
        %v3184 = vld [vmem:[%s424 + $0x8] sm:$0xff]
        %v3185 = vld [vmem:[%s424 + $0x10] sm:$0xff]
        %v3186 = vld [vmem:[%s424 + $0x18] sm:$0xff]
        %v3187 = vld [vmem:[%s424 + $0x20] sm:$0xff]
        %v3188 = vld [vmem:[%s424 + $0x28] sm:$0xff]
        %v3189 = vld [vmem:[%s424 + $0x30] sm:$0xff]
        %v3190 = vld [vmem:[%s424 + $0x38] sm:$0xff]
        %v3191 = vld [vmem:[%s424 + $0x40] sm:$0xff]
        %v3192 = vld [vmem:[%s424 + $0x48] sm:$0xff]
        %v3193 = vld [vmem:[%s424 + $0x50] sm:$0xff]
        %v3194 = vld [vmem:[%s424 + $0x58] sm:$0xff]
        %v3195 = vld [vmem:[%s424 + $0x60] sm:$0xff]
        %v3196 = vld [vmem:[%s424 + $0x68] sm:$0xff]
        %v3197 = vld [vmem:[%s424 + $0x70] sm:$0xff]
        %v3198 = vld [vmem:[%s424 + $0x78] sm:$0xff]
        %v3199 = vld [vmem:[%s424 + $0x80] sm:$0xff]
        %v3200 = vld [vmem:[%s424 + $0x88] sm:$0xff]
        %v3201 = vld [vmem:[%s424 + $0x90] sm:$0xff]
        %v3202 = vld [vmem:[%s424 + $0x98] sm:$0xff]
        %v3203 = vld [vmem:[%s424 + $0xa0] sm:$0xff]
        %v3204 = vld [vmem:[%s424 + $0xa8] sm:$0xff]
        %v3205 = vld [vmem:[%s424 + $0xb0] sm:$0xff]
        %v3206 = vld [vmem:[%s424 + $0xb8] sm:$0xff]
        %v3207 = vld [vmem:[%s424 + $0xc0] sm:$0xff]
        %v3208 = vld [vmem:[%s424 + $0xc8] sm:$0xff]
        %v3209 = vld [vmem:[%s424 + $0xd0] sm:$0xff]
        %v3210 = vld [vmem:[%s424 + $0xd8] sm:$0xff]
        %v3211 = vld [vmem:[%s424 + $0xe0] sm:$0xff]
        %v3212 = vld [vmem:[%s424 + $0xe8] sm:$0xff]
        %v3213 = vld [vmem:[%s424 + $0xf0] sm:$0xff]
        %v3214 = vld [vmem:[%s424 + $0xf8] sm:$0xff]
        %v3216 = vsel %vm484, %v3183, 0
        %v3219 = vsel %vm484, %v3184, 0
        %v3222 = vsel %vm484, %v3185, 0
        %v3225 = vsel %vm484, %v3186, 0
        %v3228 = vsel %vm484, %v3187, 0
        %v3231 = vsel %vm484, %v3188, 0
        %v3234 = vsel %vm484, %v3189, 0
        %v3237 = vsel %vm484, %v3190, 0
        %v3240 = vsel %vm484, %v3191, 0
        %v3243 = vsel %vm484, %v3192, 0
        %v3246 = vsel %vm484, %v3193, 0
        %v3249 = vsel %vm484, %v3194, 0
        %v3252 = vsel %vm484, %v3195, 0
        %v3255 = vsel %vm484, %v3196, 0
        %v3258 = vsel %vm484, %v3197, 0
        %v3261 = vsel %vm484, %v3198, 0
        %v3264 = vsel %vm484, %v3199, 0
        %v3267 = vsel %vm484, %v3200, 0
        %v3270 = vsel %vm484, %v3201, 0
        %v3273 = vsel %vm484, %v3202, 0
        %v3276 = vsel %vm484, %v3203, 0
        %v3279 = vsel %vm484, %v3204, 0
        %v3282 = vsel %vm484, %v3205, 0
        %v3285 = vsel %vm484, %v3206, 0
        %v3288 = vsel %vm484, %v3207, 0
        %v3291 = vsel %vm484, %v3208, 0
        %v3294 = vsel %vm484, %v3209, 0
        %v3297 = vsel %vm484, %v3210, 0
        %v3300 = vsel %vm484, %v3211, 0
        %v3303 = vsel %vm484, %v3212, 0
        %v3306 = vsel %vm484, %v3213, 0
        %v3309 = vsel %vm484, %v3214, 0
        %3311 = vmatpush.msra.mxu0 0.0
        %3312 = vmatpush.msra.mxu0 0.0
        %3313 = vmatpush.msra.mxu0 0.0
        %3314 = vmatpush.msra.mxu0 0.0
        %3315 = vmatpush.msra.mxu0 0.0
        %3316 = vmatpush.msra.mxu0 0.0
        %3317 = vmatpush.msra.mxu0 0.0
        %3318 = vmatpush.msra.mxu0 0.0
        %3319 = vmatpush.msra.mxu0 0.0
        %3320 = vmatpush.msra.mxu0 0.0
        %3321 = vmatpush.msra.mxu0 0.0
        %3322 = vmatpush.msra.mxu0 0.0
        %3323 = vmatpush.msra.mxu0 %v639
        %3324 = vmatpush.msra.mxu0 %v638
        %3325 = vmatpush.msra.mxu0 %v637
        %3326 = vmatpush.msra.mxu0 %v636
        %3327 = vmatmul.f32.gmra.mxu0 %v3216
        %v3328 = vpop.f32.mrf.mxu0
        %v3329 = vadd.f32 0.0, %v3328
        %3330 = vmatmul.f32.gmra.mxu0 %v3219
        %v3331 = vpop.f32.mrf.mxu0
        %v3332 = vadd.f32 0.0, %v3331
        %3333 = vmatmul.f32.gmra.mxu0 %v3222
        %v3334 = vpop.f32.mrf.mxu0
        %v3335 = vadd.f32 0.0, %v3334
        %3336 = vmatmul.f32.gmra.mxu0 %v3225
        %v3337 = vpop.f32.mrf.mxu0
        %v3338 = vadd.f32 0.0, %v3337
        %3339 = vmatmul.f32.gmra.mxu0 %v3228
        %v3340 = vpop.f32.mrf.mxu0
        %v3341 = vadd.f32 0.0, %v3340
        %3342 = vmatmul.f32.gmra.mxu0 %v3231
        %v3343 = vpop.f32.mrf.mxu0
        %v3344 = vadd.f32 0.0, %v3343
        %3345 = vmatmul.f32.gmra.mxu0 %v3234
        %v3346 = vpop.f32.mrf.mxu0
        %v3347 = vadd.f32 0.0, %v3346
        %3348 = vmatmul.f32.gmra.mxu0 %v3237
        %v3349 = vpop.f32.mrf.mxu0
        %v3350 = vadd.f32 0.0, %v3349
        %3351 = vmatmul.f32.gmra.mxu0 %v3240
        %v3352 = vpop.f32.mrf.mxu0
        %v3353 = vadd.f32 0.0, %v3352
        %3354 = vmatmul.f32.gmra.mxu0 %v3243
        %v3355 = vpop.f32.mrf.mxu0
        %v3356 = vadd.f32 0.0, %v3355
        %3357 = vmatmul.f32.gmra.mxu0 %v3246
        %v3358 = vpop.f32.mrf.mxu0
        %v3359 = vadd.f32 0.0, %v3358
        %3360 = vmatmul.f32.gmra.mxu0 %v3249
        %v3361 = vpop.f32.mrf.mxu0
        %v3362 = vadd.f32 0.0, %v3361
        %3363 = vmatmul.f32.gmra.mxu0 %v3252
        %v3364 = vpop.f32.mrf.mxu0
        %v3365 = vadd.f32 0.0, %v3364
        %3366 = vmatmul.f32.gmra.mxu0 %v3255
        %v3367 = vpop.f32.mrf.mxu0
        %v3368 = vadd.f32 0.0, %v3367
        %3369 = vmatmul.f32.gmra.mxu0 %v3258
        %v3370 = vpop.f32.mrf.mxu0
        %v3371 = vadd.f32 0.0, %v3370
        %3372 = vmatmul.f32.gmra.mxu0 %v3261
        %v3373 = vpop.f32.mrf.mxu0
        %v3374 = vadd.f32 0.0, %v3373
        %3375 = vmatmul.f32.gmra.mxu0 %v3264
        %v3376 = vpop.f32.mrf.mxu0
        %v3377 = vadd.f32 0.0, %v3376
        %3378 = vmatmul.f32.gmra.mxu0 %v3267
        %v3379 = vpop.f32.mrf.mxu0
        %v3380 = vadd.f32 0.0, %v3379
        %3381 = vmatmul.f32.gmra.mxu0 %v3270
        %v3382 = vpop.f32.mrf.mxu0
        %v3383 = vadd.f32 0.0, %v3382
        %3384 = vmatmul.f32.gmra.mxu0 %v3273
        %v3385 = vpop.f32.mrf.mxu0
        %v3386 = vadd.f32 0.0, %v3385
        %3387 = vmatmul.f32.gmra.mxu0 %v3276
        %v3388 = vpop.f32.mrf.mxu0
        %v3389 = vadd.f32 0.0, %v3388
        %3390 = vmatmul.f32.gmra.mxu0 %v3279
        %v3391 = vpop.f32.mrf.mxu0
        %v3392 = vadd.f32 0.0, %v3391
        %3393 = vmatmul.f32.gmra.mxu0 %v3282
        %v3394 = vpop.f32.mrf.mxu0
        %v3395 = vadd.f32 0.0, %v3394
        %3396 = vmatmul.f32.gmra.mxu0 %v3285
        %v3397 = vpop.f32.mrf.mxu0
        %v3398 = vadd.f32 0.0, %v3397
        %3399 = vmatmul.f32.gmra.mxu0 %v3288
        %v3400 = vpop.f32.mrf.mxu0
        %v3401 = vadd.f32 0.0, %v3400
        %3402 = vmatmul.f32.gmra.mxu0 %v3291
        %v3403 = vpop.f32.mrf.mxu0
        %v3404 = vadd.f32 0.0, %v3403
        %3405 = vmatmul.f32.gmra.mxu0 %v3294
        %v3406 = vpop.f32.mrf.mxu0
        %v3407 = vadd.f32 0.0, %v3406
        %3408 = vmatmul.f32.gmra.mxu0 %v3297
        %v3409 = vpop.f32.mrf.mxu0
        %v3410 = vadd.f32 0.0, %v3409
        %3411 = vmatmul.f32.gmra.mxu0 %v3300
        %v3412 = vpop.f32.mrf.mxu0
        %v3413 = vadd.f32 0.0, %v3412
        %3414 = vmatmul.f32.gmra.mxu0 %v3303
        %v3415 = vpop.f32.mrf.mxu0
        %v3416 = vadd.f32 0.0, %v3415
        %3417 = vmatmul.f32.gmra.mxu0 %v3306
        %v3418 = vpop.f32.mrf.mxu0
        %v3419 = vadd.f32 0.0, %v3418
        %3420 = vmatmul.f32.gmra.mxu0 %v3309
        %v3421 = vpop.f32.mrf.mxu0
        %v3422 = vadd.f32 0.0, %v3421
        %3423 = vdwg.mxu0
        %v3425 = vsel %vm484, %v3151, 0
        %v3428 = vsel %vm484, %v3152, 0
        %v3431 = vsel %vm484, %v3153, 0
        %v3434 = vsel %vm484, %v3154, 0
        %v3437 = vsel %vm484, %v3155, 0
        %v3440 = vsel %vm484, %v3156, 0
        %v3443 = vsel %vm484, %v3157, 0
        %v3446 = vsel %vm484, %v3158, 0
        %v3449 = vsel %vm484, %v3159, 0
        %v3452 = vsel %vm484, %v3160, 0
        %v3455 = vsel %vm484, %v3161, 0
        %v3458 = vsel %vm484, %v3162, 0
        %v3461 = vsel %vm484, %v3163, 0
        %v3464 = vsel %vm484, %v3164, 0
        %v3467 = vsel %vm484, %v3165, 0
        %v3470 = vsel %vm484, %v3166, 0
        %v3473 = vsel %vm484, %v3167, 0
        %v3476 = vsel %vm484, %v3168, 0
        %v3479 = vsel %vm484, %v3169, 0
        %v3482 = vsel %vm484, %v3170, 0
        %v3485 = vsel %vm484, %v3171, 0
        %v3488 = vsel %vm484, %v3172, 0
        %v3491 = vsel %vm484, %v3173, 0
        %v3494 = vsel %vm484, %v3174, 0
        %v3497 = vsel %vm484, %v3175, 0
        %v3500 = vsel %vm484, %v3176, 0
        %v3503 = vsel %vm484, %v3177, 0
        %v3506 = vsel %vm484, %v3178, 0
        %v3509 = vsel %vm484, %v3179, 0
        %v3512 = vsel %vm484, %v3180, 0
        %v3515 = vsel %vm484, %v3181, 0
        %v3518 = vsel %vm484, %v3182, 0
        %3520 = vmatpush.msra.mxu0 0.0
        %3521 = vmatpush.msra.mxu0 0.0
        %3522 = vmatpush.msra.mxu0 0.0
        %3523 = vmatpush.msra.mxu0 0.0
        %3524 = vmatpush.msra.mxu0 0.0
        %3525 = vmatpush.msra.mxu0 0.0
        %3526 = vmatpush.msra.mxu0 0.0
        %3527 = vmatpush.msra.mxu0 0.0
        %3528 = vmatpush.msra.mxu0 0.0
        %3529 = vmatpush.msra.mxu0 0.0
        %3530 = vmatpush.msra.mxu0 0.0
        %3531 = vmatpush.msra.mxu0 0.0
        %3532 = vmatpush.msra.mxu0 %v635
        %3533 = vmatpush.msra.mxu0 %v634
        %3534 = vmatpush.msra.mxu0 %v633
        %3535 = vmatpush.msra.mxu0 %v632
        %3536 = vmatmul.f32.gmra.mxu0 %v3425
        %v3537 = vpop.f32.mrf.mxu0
        %v3538 = vadd.f32 %v3329, %v3537
        %3539 = vmatmul.f32.gmra.mxu0 %v3428
        %v3540 = vpop.f32.mrf.mxu0
        %v3541 = vadd.f32 %v3332, %v3540
        %3542 = vmatmul.f32.gmra.mxu0 %v3431
        %v3543 = vpop.f32.mrf.mxu0
        %v3544 = vadd.f32 %v3335, %v3543
        %3545 = vmatmul.f32.gmra.mxu0 %v3434
        %v3546 = vpop.f32.mrf.mxu0
        %v3547 = vadd.f32 %v3338, %v3546
        %3548 = vmatmul.f32.gmra.mxu0 %v3437
        %v3549 = vpop.f32.mrf.mxu0
        %v3550 = vadd.f32 %v3341, %v3549
        %3551 = vmatmul.f32.gmra.mxu0 %v3440
        %v3552 = vpop.f32.mrf.mxu0
        %v3553 = vadd.f32 %v3344, %v3552
        %3554 = vmatmul.f32.gmra.mxu0 %v3443
        %v3555 = vpop.f32.mrf.mxu0
        %v3556 = vadd.f32 %v3347, %v3555
        %3557 = vmatmul.f32.gmra.mxu0 %v3446
        %v3558 = vpop.f32.mrf.mxu0
        %v3559 = vadd.f32 %v3350, %v3558
        %3560 = vmatmul.f32.gmra.mxu0 %v3449
        %v3561 = vpop.f32.mrf.mxu0
        %v3562 = vadd.f32 %v3353, %v3561
        %3563 = vmatmul.f32.gmra.mxu0 %v3452
        %v3564 = vpop.f32.mrf.mxu0
        %v3565 = vadd.f32 %v3356, %v3564
        %3566 = vmatmul.f32.gmra.mxu0 %v3455
        %v3567 = vpop.f32.mrf.mxu0
        %v3568 = vadd.f32 %v3359, %v3567
        %3569 = vmatmul.f32.gmra.mxu0 %v3458
        %v3570 = vpop.f32.mrf.mxu0
        %v3571 = vadd.f32 %v3362, %v3570
        %3572 = vmatmul.f32.gmra.mxu0 %v3461
        %v3573 = vpop.f32.mrf.mxu0
        %v3574 = vadd.f32 %v3365, %v3573
        %3575 = vmatmul.f32.gmra.mxu0 %v3464
        %v3576 = vpop.f32.mrf.mxu0
        %v3577 = vadd.f32 %v3368, %v3576
        %3578 = vmatmul.f32.gmra.mxu0 %v3467
        %v3579 = vpop.f32.mrf.mxu0
        %v3580 = vadd.f32 %v3371, %v3579
        %3581 = vmatmul.f32.gmra.mxu0 %v3470
        %v3582 = vpop.f32.mrf.mxu0
        %v3583 = vadd.f32 %v3374, %v3582
        %3584 = vmatmul.f32.gmra.mxu0 %v3473
        %v3585 = vpop.f32.mrf.mxu0
        %v3586 = vadd.f32 %v3377, %v3585
        %3587 = vmatmul.f32.gmra.mxu0 %v3476
        %v3588 = vpop.f32.mrf.mxu0
        %v3589 = vadd.f32 %v3380, %v3588
        %3590 = vmatmul.f32.gmra.mxu0 %v3479
        %v3591 = vpop.f32.mrf.mxu0
        %v3592 = vadd.f32 %v3383, %v3591
        %3593 = vmatmul.f32.gmra.mxu0 %v3482
        %v3594 = vpop.f32.mrf.mxu0
        %v3595 = vadd.f32 %v3386, %v3594
        %3596 = vmatmul.f32.gmra.mxu0 %v3485
        %v3597 = vpop.f32.mrf.mxu0
        %v3598 = vadd.f32 %v3389, %v3597
        %3599 = vmatmul.f32.gmra.mxu0 %v3488
        %v3600 = vpop.f32.mrf.mxu0
        %v3601 = vadd.f32 %v3392, %v3600
        %3602 = vmatmul.f32.gmra.mxu0 %v3491
        %v3603 = vpop.f32.mrf.mxu0
        %v3604 = vadd.f32 %v3395, %v3603
        %3605 = vmatmul.f32.gmra.mxu0 %v3494
        %v3606 = vpop.f32.mrf.mxu0
        %v3607 = vadd.f32 %v3398, %v3606
        %3608 = vmatmul.f32.gmra.mxu0 %v3497
        %v3609 = vpop.f32.mrf.mxu0
        %v3610 = vadd.f32 %v3401, %v3609
        %3611 = vmatmul.f32.gmra.mxu0 %v3500
        %v3612 = vpop.f32.mrf.mxu0
        %v3613 = vadd.f32 %v3404, %v3612
        %3614 = vmatmul.f32.gmra.mxu0 %v3503
        %v3615 = vpop.f32.mrf.mxu0
        %v3616 = vadd.f32 %v3407, %v3615
        %3617 = vmatmul.f32.gmra.mxu0 %v3506
        %v3618 = vpop.f32.mrf.mxu0
        %v3619 = vadd.f32 %v3410, %v3618
        %3620 = vmatmul.f32.gmra.mxu0 %v3509
        %v3621 = vpop.f32.mrf.mxu0
        %v3622 = vadd.f32 %v3413, %v3621
        %3623 = vmatmul.f32.gmra.mxu0 %v3512
        %v3624 = vpop.f32.mrf.mxu0
        %v3625 = vadd.f32 %v3416, %v3624
        %3626 = vmatmul.f32.gmra.mxu0 %v3515
        %v3627 = vpop.f32.mrf.mxu0
        %v3628 = vadd.f32 %v3419, %v3627
        %3629 = vmatmul.f32.gmra.mxu0 %v3518
        %v3630 = vpop.f32.mrf.mxu0
        %v3631 = vadd.f32 %v3422, %v3630
        %3632 = vdwg.mxu0
        %v3634 = vperm.slane %v686, 0
        %v3636 = vadd.f32 %v3538, %v3634
        %v3637 = vadd.f32 %v3541, %v3634
        %v3638 = vadd.f32 %v3544, %v3634
        %v3639 = vadd.f32 %v3547, %v3634
        %v3640 = vadd.f32 %v3550, %v3634
        %v3641 = vadd.f32 %v3553, %v3634
        %v3642 = vadd.f32 %v3556, %v3634
        %v3643 = vadd.f32 %v3559, %v3634
        %v3644 = vadd.f32 %v3562, %v3634
        %v3645 = vadd.f32 %v3565, %v3634
        %v3646 = vadd.f32 %v3568, %v3634
        %v3647 = vadd.f32 %v3571, %v3634
        %v3648 = vadd.f32 %v3574, %v3634
        %v3649 = vadd.f32 %v3577, %v3634
        %v3650 = vadd.f32 %v3580, %v3634
        %v3651 = vadd.f32 %v3583, %v3634
        %v3652 = vadd.f32 %v3586, %v3634
        %v3653 = vadd.f32 %v3589, %v3634
        %v3654 = vadd.f32 %v3592, %v3634
        %v3655 = vadd.f32 %v3595, %v3634
        %v3656 = vadd.f32 %v3598, %v3634
        %v3657 = vadd.f32 %v3601, %v3634
        %v3658 = vadd.f32 %v3604, %v3634
        %v3659 = vadd.f32 %v3607, %v3634
        %v3660 = vadd.f32 %v3610, %v3634
        %v3661 = vadd.f32 %v3613, %v3634
        %v3662 = vadd.f32 %v3616, %v3634
        %v3663 = vadd.f32 %v3619, %v3634
        %v3664 = vadd.f32 %v3622, %v3634
        %v3665 = vadd.f32 %v3625, %v3634
        %v3666 = vadd.f32 %v3628, %v3634
        %v3667 = vadd.f32 %v3631, %v3634
        %3668 = vst.msk [vmem:[%s721 + $0x1] sm:$0xff] %vm484, %v3636
        %3669 = vst.msk [vmem:[%s721 + $0x9] sm:$0xff] %vm484, %v3637
        %3670 = vst.msk [vmem:[%s2328 + $0x1] sm:$0xff] %vm484, %v3638
        %3671 = vst.msk [vmem:[%s2328 + $0x9] sm:$0xff] %vm484, %v3639
        %s3672 = scalar_lea.vmem [#allocation2], 72
        %3673 = vst.msk [vmem:[%s3672 + $0x1] sm:$0xff] %vm484, %v3640
        %3674 = vst.msk [vmem:[%s3672 + $0x9] sm:$0xff] %vm484, %v3641
        %s3675 = scalar_lea.vmem [#allocation2], 96
        %3676 = vst.msk [vmem:[%s3675 + $0x1] sm:$0xff] %vm484, %v3642
        %3677 = vst.msk [vmem:[%s3675 + $0x9] sm:$0xff] %vm484, %v3643
        %s3678 = scalar_lea.vmem [#allocation2], 120
        %3679 = vst.msk [vmem:[%s3678 + $0x1] sm:$0xff] %vm484, %v3644
        %3680 = vst.msk [vmem:[%s3678 + $0x9] sm:$0xff] %vm484, %v3645
        %s3681 = scalar_lea.vmem [#allocation2], 144
        %3682 = vst.msk [vmem:[%s3681 + $0x1] sm:$0xff] %vm484, %v3646
        %3683 = vst.msk [vmem:[%s3681 + $0x9] sm:$0xff] %vm484, %v3647
        %s3684 = scalar_lea.vmem [#allocation2], 168
        %3685 = vst.msk [vmem:[%s3684 + $0x1] sm:$0xff] %vm484, %v3648
        %3686 = vst.msk [vmem:[%s3684 + $0x9] sm:$0xff] %vm484, %v3649
        %s3687 = scalar_lea.vmem [#allocation2], 192
        %3688 = vst.msk [vmem:[%s3687 + $0x1] sm:$0xff] %vm484, %v3650
        %3689 = vst.msk [vmem:[%s3687 + $0x9] sm:$0xff] %vm484, %v3651
        %s3690 = scalar_lea.vmem [#allocation2], 216
        %3691 = vst.msk [vmem:[%s3690 + $0x1] sm:$0xff] %vm484, %v3652
        %3692 = vst.msk [vmem:[%s3690 + $0x9] sm:$0xff] %vm484, %v3653
        %s3693 = scalar_lea.vmem [#allocation2], 240
        %3694 = vst.msk [vmem:[%s3693 + $0x1] sm:$0xff] %vm484, %v3654
        %3695 = vst.msk [vmem:[%s3693 + $0x9] sm:$0xff] %vm484, %v3655
        %s3696 = scalar_lea.vmem [#allocation2], 264
        %3697 = vst.msk [vmem:[%s3696 + $0x1] sm:$0xff] %vm484, %v3656
        %3698 = vst.msk [vmem:[%s3696 + $0x9] sm:$0xff] %vm484, %v3657
        %s3699 = scalar_lea.vmem [#allocation2], 288
        %3700 = vst.msk [vmem:[%s3699 + $0x1] sm:$0xff] %vm484, %v3658
        %3701 = vst.msk [vmem:[%s3699 + $0x9] sm:$0xff] %vm484, %v3659
        %s3702 = scalar_lea.vmem [#allocation2], 312
        %3703 = vst.msk [vmem:[%s3702 + $0x1] sm:$0xff] %vm484, %v3660
        %3704 = vst.msk [vmem:[%s3702 + $0x9] sm:$0xff] %vm484, %v3661
        %s3705 = scalar_lea.vmem [#allocation2], 336
        %3706 = vst.msk [vmem:[%s3705 + $0x1] sm:$0xff] %vm484, %v3662
        %3707 = vst.msk [vmem:[%s3705 + $0x9] sm:$0xff] %vm484, %v3663
        %s3708 = scalar_lea.vmem [#allocation2], 360
        %3709 = vst.msk [vmem:[%s3708 + $0x1] sm:$0xff] %vm484, %v3664
        %3710 = vst.msk [vmem:[%s3708 + $0x9] sm:$0xff] %vm484, %v3665
        %s3711 = scalar_lea.vmem [#allocation2], 384
        %3712 = vst.msk [vmem:[%s3711 + $0x1] sm:$0xff] %vm484, %v3666
        %3713 = vst.msk [vmem:[%s3711 + $0x9] sm:$0xff] %vm484, %v3667
        %v3714 = vld [vmem:[#allocation2] sm:$0xff]
        %v3715 = vld [vmem:[#allocation2 + $0x8] sm:$0xff]
        %v3716 = vld [vmem:[#allocation2 + $0x18] sm:$0xff]
        %v3717 = vld [vmem:[#allocation2 + $0x20] sm:$0xff]
        %v3718 = vld [vmem:[#allocation2 + $0x30] sm:$0xff]
        %v3719 = vld [vmem:[#allocation2 + $0x38] sm:$0xff]
        %v3720 = vld [vmem:[#allocation2 + $0x48] sm:$0xff]
        %v3721 = vld [vmem:[#allocation2 + $0x50] sm:$0xff]
        %v3722 = vld [vmem:[#allocation2 + $0x60] sm:$0xff]
        %v3723 = vld [vmem:[#allocation2 + $0x68] sm:$0xff]
        %v3724 = vld [vmem:[#allocation2 + $0x78] sm:$0xff]
        %v3725 = vld [vmem:[#allocation2 + $0x80] sm:$0xff]
        %v3726 = vld [vmem:[#allocation2 + $0x90] sm:$0xff]
        %v3727 = vld [vmem:[#allocation2 + $0x98] sm:$0xff]
        %v3728 = vld [vmem:[#allocation2 + $0xa8] sm:$0xff]
        %v3729 = vld [vmem:[#allocation2 + $0xb0] sm:$0xff]
        %v3730 = vld [vmem:[#allocation2 + $0xc0] sm:$0xff]
        %v3731 = vld [vmem:[#allocation2 + $0xc8] sm:$0xff]
        %v3732 = vld [vmem:[#allocation2 + $0xd8] sm:$0xff]
        %v3733 = vld [vmem:[#allocation2 + $0xe0] sm:$0xff]
        %v3734 = vld [vmem:[#allocation2 + $0xf0] sm:$0xff]
        %v3735 = vld [vmem:[#allocation2 + $0xf8] sm:$0xff]
        %v3736 = vld [vmem:[#allocation2 + $0x108] sm:$0xff]
        %v3737 = vld [vmem:[#allocation2 + $0x110] sm:$0xff]
        %v3738 = vld [vmem:[#allocation2 + $0x120] sm:$0xff]
        %v3739 = vld [vmem:[#allocation2 + $0x128] sm:$0xff]
        %v3740 = vld [vmem:[#allocation2 + $0x138] sm:$0xff]
        %v3741 = vld [vmem:[#allocation2 + $0x140] sm:$0xff]
        %v3742 = vld [vmem:[#allocation2 + $0x150] sm:$0xff]
        %v3743 = vld [vmem:[#allocation2 + $0x158] sm:$0xff]
        %v3744 = vld [vmem:[#allocation2 + $0x168] sm:$0xff]
        %v3745 = vld [vmem:[#allocation2 + $0x170] sm:$0xff]
        %v3746 = vld [vmem:[#allocation2 + $0x1] sm:$0xff]
        %v3747 = vld [vmem:[#allocation2 + $0x9] sm:$0xff]
        %v3748 = vld [vmem:[#allocation2 + $0x19] sm:$0xff]
        %v3749 = vld [vmem:[#allocation2 + $0x21] sm:$0xff]
        %v3750 = vld [vmem:[#allocation2 + $0x31] sm:$0xff]
        %v3751 = vld [vmem:[#allocation2 + $0x39] sm:$0xff]
        %v3752 = vld [vmem:[#allocation2 + $0x49] sm:$0xff]
        %v3753 = vld [vmem:[#allocation2 + $0x51] sm:$0xff]
        %v3754 = vld [vmem:[#allocation2 + $0x61] sm:$0xff]
        %v3755 = vld [vmem:[#allocation2 + $0x69] sm:$0xff]
        %v3756 = vld [vmem:[#allocation2 + $0x79] sm:$0xff]
        %v3757 = vld [vmem:[#allocation2 + $0x81] sm:$0xff]
        %v3758 = vld [vmem:[#allocation2 + $0x91] sm:$0xff]
        %v3759 = vld [vmem:[#allocation2 + $0x99] sm:$0xff]
        %v3760 = vld [vmem:[#allocation2 + $0xa9] sm:$0xff]
        %v3761 = vld [vmem:[#allocation2 + $0xb1] sm:$0xff]
        %v3762 = vld [vmem:[#allocation2 + $0xc1] sm:$0xff]
        %v3763 = vld [vmem:[#allocation2 + $0xc9] sm:$0xff]
        %v3764 = vld [vmem:[#allocation2 + $0xd9] sm:$0xff]
        %v3765 = vld [vmem:[#allocation2 + $0xe1] sm:$0xff]
        %v3766 = vld [vmem:[#allocation2 + $0xf1] sm:$0xff]
        %v3767 = vld [vmem:[#allocation2 + $0xf9] sm:$0xff]
        %v3768 = vld [vmem:[#allocation2 + $0x109] sm:$0xff]
        %v3769 = vld [vmem:[#allocation2 + $0x111] sm:$0xff]
        %v3770 = vld [vmem:[#allocation2 + $0x121] sm:$0xff]
        %v3771 = vld [vmem:[#allocation2 + $0x129] sm:$0xff]
        %v3772 = vld [vmem:[#allocation2 + $0x139] sm:$0xff]
        %v3773 = vld [vmem:[#allocation2 + $0x141] sm:$0xff]
        %v3774 = vld [vmem:[#allocation2 + $0x151] sm:$0xff]
        %v3775 = vld [vmem:[#allocation2 + $0x159] sm:$0xff]
        %v3776 = vld [vmem:[#allocation2 + $0x169] sm:$0xff]
        %v3777 = vld [vmem:[#allocation2 + $0x171] sm:$0xff]
        %v3779 = vsel %vm484, %v3746, 0
        %v3782 = vsel %vm484, %v3747, 0
        %v3785 = vsel %vm484, %v3748, 0
        %v3788 = vsel %vm484, %v3749, 0
        %v3791 = vsel %vm484, %v3750, 0
        %v3794 = vsel %vm484, %v3751, 0
        %v3797 = vsel %vm484, %v3752, 0
        %v3800 = vsel %vm484, %v3753, 0
        %v3803 = vsel %vm484, %v3754, 0
        %v3806 = vsel %vm484, %v3755, 0
        %v3809 = vsel %vm484, %v3756, 0
        %v3812 = vsel %vm484, %v3757, 0
        %v3815 = vsel %vm484, %v3758, 0
        %v3818 = vsel %vm484, %v3759, 0
        %v3821 = vsel %vm484, %v3760, 0
        %v3824 = vsel %vm484, %v3761, 0
        %v3827 = vsel %vm484, %v3762, 0
        %v3830 = vsel %vm484, %v3763, 0
        %v3833 = vsel %vm484, %v3764, 0
        %v3836 = vsel %vm484, %v3765, 0
        %v3839 = vsel %vm484, %v3766, 0
        %v3842 = vsel %vm484, %v3767, 0
        %v3845 = vsel %vm484, %v3768, 0
        %v3848 = vsel %vm484, %v3769, 0
        %v3851 = vsel %vm484, %v3770, 0
        %v3854 = vsel %vm484, %v3771, 0
        %v3857 = vsel %vm484, %v3772, 0
        %v3860 = vsel %vm484, %v3773, 0
        %v3863 = vsel %vm484, %v3774, 0
        %v3866 = vsel %vm484, %v3775, 0
        %v3869 = vsel %vm484, %v3776, 0
        %v3872 = vsel %vm484, %v3777, 0
        %3874 = vmatpush.msra.mxu0 0.0
        %3875 = vmatpush.msra.mxu0 0.0
        %3876 = vmatpush.msra.mxu0 0.0
        %3877 = vmatpush.msra.mxu0 0.0
        %3878 = vmatpush.msra.mxu0 0.0
        %3879 = vmatpush.msra.mxu0 0.0
        %3880 = vmatpush.msra.mxu0 0.0
        %3881 = vmatpush.msra.mxu0 0.0
        %3882 = vmatpush.msra.mxu0 0.0
        %3883 = vmatpush.msra.mxu0 0.0
        %3884 = vmatpush.msra.mxu0 0.0
        %3885 = vmatpush.msra.mxu0 0.0
        %3886 = vmatpush.msra.mxu0 %v647
        %3887 = vmatpush.msra.mxu0 %v646
        %3888 = vmatpush.msra.mxu0 %v645
        %3889 = vmatpush.msra.mxu0 %v644
        %3890 = vmatmul.f32.gmra.mxu0 %v3779
        %v3891 = vpop.f32.mrf.mxu0
        %v3892 = vadd.f32 0.0, %v3891
        %3893 = vmatmul.f32.gmra.mxu0 %v3782
        %v3894 = vpop.f32.mrf.mxu0
        %v3895 = vadd.f32 0.0, %v3894
        %3896 = vmatmul.f32.gmra.mxu0 %v3785
        %v3897 = vpop.f32.mrf.mxu0
        %v3898 = vadd.f32 0.0, %v3897
        %3899 = vmatmul.f32.gmra.mxu0 %v3788
        %v3900 = vpop.f32.mrf.mxu0
        %v3901 = vadd.f32 0.0, %v3900
        %3902 = vmatmul.f32.gmra.mxu0 %v3791
        %v3903 = vpop.f32.mrf.mxu0
        %v3904 = vadd.f32 0.0, %v3903
        %3905 = vmatmul.f32.gmra.mxu0 %v3794
        %v3906 = vpop.f32.mrf.mxu0
        %v3907 = vadd.f32 0.0, %v3906
        %3908 = vmatmul.f32.gmra.mxu0 %v3797
        %v3909 = vpop.f32.mrf.mxu0
        %v3910 = vadd.f32 0.0, %v3909
        %3911 = vmatmul.f32.gmra.mxu0 %v3800
        %v3912 = vpop.f32.mrf.mxu0
        %v3913 = vadd.f32 0.0, %v3912
        %3914 = vmatmul.f32.gmra.mxu0 %v3803
        %v3915 = vpop.f32.mrf.mxu0
        %v3916 = vadd.f32 0.0, %v3915
        %3917 = vmatmul.f32.gmra.mxu0 %v3806
        %v3918 = vpop.f32.mrf.mxu0
        %v3919 = vadd.f32 0.0, %v3918
        %3920 = vmatmul.f32.gmra.mxu0 %v3809
        %v3921 = vpop.f32.mrf.mxu0
        %v3922 = vadd.f32 0.0, %v3921
        %3923 = vmatmul.f32.gmra.mxu0 %v3812
        %v3924 = vpop.f32.mrf.mxu0
        %v3925 = vadd.f32 0.0, %v3924
        %3926 = vmatmul.f32.gmra.mxu0 %v3815
        %v3927 = vpop.f32.mrf.mxu0
        %v3928 = vadd.f32 0.0, %v3927
        %3929 = vmatmul.f32.gmra.mxu0 %v3818
        %v3930 = vpop.f32.mrf.mxu0
        %v3931 = vadd.f32 0.0, %v3930
        %3932 = vmatmul.f32.gmra.mxu0 %v3821
        %v3933 = vpop.f32.mrf.mxu0
        %v3934 = vadd.f32 0.0, %v3933
        %3935 = vmatmul.f32.gmra.mxu0 %v3824
        %v3936 = vpop.f32.mrf.mxu0
        %v3937 = vadd.f32 0.0, %v3936
        %3938 = vmatmul.f32.gmra.mxu0 %v3827
        %v3939 = vpop.f32.mrf.mxu0
        %v3940 = vadd.f32 0.0, %v3939
        %3941 = vmatmul.f32.gmra.mxu0 %v3830
        %v3942 = vpop.f32.mrf.mxu0
        %v3943 = vadd.f32 0.0, %v3942
        %3944 = vmatmul.f32.gmra.mxu0 %v3833
        %v3945 = vpop.f32.mrf.mxu0
        %v3946 = vadd.f32 0.0, %v3945
        %3947 = vmatmul.f32.gmra.mxu0 %v3836
        %v3948 = vpop.f32.mrf.mxu0
        %v3949 = vadd.f32 0.0, %v3948
        %3950 = vmatmul.f32.gmra.mxu0 %v3839
        %v3951 = vpop.f32.mrf.mxu0
        %v3952 = vadd.f32 0.0, %v3951
        %3953 = vmatmul.f32.gmra.mxu0 %v3842
        %v3954 = vpop.f32.mrf.mxu0
        %v3955 = vadd.f32 0.0, %v3954
        %3956 = vmatmul.f32.gmra.mxu0 %v3845
        %v3957 = vpop.f32.mrf.mxu0
        %v3958 = vadd.f32 0.0, %v3957
        %3959 = vmatmul.f32.gmra.mxu0 %v3848
        %v3960 = vpop.f32.mrf.mxu0
        %v3961 = vadd.f32 0.0, %v3960
        %3962 = vmatmul.f32.gmra.mxu0 %v3851
        %v3963 = vpop.f32.mrf.mxu0
        %v3964 = vadd.f32 0.0, %v3963
        %3965 = vmatmul.f32.gmra.mxu0 %v3854
        %v3966 = vpop.f32.mrf.mxu0
        %v3967 = vadd.f32 0.0, %v3966
        %3968 = vmatmul.f32.gmra.mxu0 %v3857
        %v3969 = vpop.f32.mrf.mxu0
        %v3970 = vadd.f32 0.0, %v3969
        %3971 = vmatmul.f32.gmra.mxu0 %v3860
        %v3972 = vpop.f32.mrf.mxu0
        %v3973 = vadd.f32 0.0, %v3972
        %3974 = vmatmul.f32.gmra.mxu0 %v3863
        %v3975 = vpop.f32.mrf.mxu0
        %v3976 = vadd.f32 0.0, %v3975
        %3977 = vmatmul.f32.gmra.mxu0 %v3866
        %v3978 = vpop.f32.mrf.mxu0
        %v3979 = vadd.f32 0.0, %v3978
        %3980 = vmatmul.f32.gmra.mxu0 %v3869
        %v3981 = vpop.f32.mrf.mxu0
        %v3982 = vadd.f32 0.0, %v3981
        %3983 = vmatmul.f32.gmra.mxu0 %v3872
        %v3984 = vpop.f32.mrf.mxu0
        %v3985 = vadd.f32 0.0, %v3984
        %3986 = vdwg.mxu0
        %v3988 = vsel %vm484, %v3714, 0
        %v3991 = vsel %vm484, %v3715, 0
        %v3994 = vsel %vm484, %v3716, 0
        %v3997 = vsel %vm484, %v3717, 0
        %v4000 = vsel %vm484, %v3718, 0
        %v4003 = vsel %vm484, %v3719, 0
        %v4006 = vsel %vm484, %v3720, 0
        %v4009 = vsel %vm484, %v3721, 0
        %v4012 = vsel %vm484, %v3722, 0
        %v4015 = vsel %vm484, %v3723, 0
        %v4018 = vsel %vm484, %v3724, 0
        %v4021 = vsel %vm484, %v3725, 0
        %v4024 = vsel %vm484, %v3726, 0
        %v4027 = vsel %vm484, %v3727, 0
        %v4030 = vsel %vm484, %v3728, 0
        %v4033 = vsel %vm484, %v3729, 0
        %v4036 = vsel %vm484, %v3730, 0
        %v4039 = vsel %vm484, %v3731, 0
        %v4042 = vsel %vm484, %v3732, 0
        %v4045 = vsel %vm484, %v3733, 0
        %v4048 = vsel %vm484, %v3734, 0
        %v4051 = vsel %vm484, %v3735, 0
        %v4054 = vsel %vm484, %v3736, 0
        %v4057 = vsel %vm484, %v3737, 0
        %v4060 = vsel %vm484, %v3738, 0
        %v4063 = vsel %vm484, %v3739, 0
        %v4066 = vsel %vm484, %v3740, 0
        %v4069 = vsel %vm484, %v3741, 0
        %v4072 = vsel %vm484, %v3742, 0
        %v4075 = vsel %vm484, %v3743, 0
        %v4078 = vsel %vm484, %v3744, 0
        %v4081 = vsel %vm484, %v3745, 0
        %4083 = vmatpush.msra.mxu0 0.0
        %4084 = vmatpush.msra.mxu0 0.0
        %4085 = vmatpush.msra.mxu0 0.0
        %4086 = vmatpush.msra.mxu0 0.0
        %4087 = vmatpush.msra.mxu0 0.0
        %4088 = vmatpush.msra.mxu0 0.0
        %4089 = vmatpush.msra.mxu0 0.0
        %4090 = vmatpush.msra.mxu0 0.0
        %4091 = vmatpush.msra.mxu0 0.0
        %4092 = vmatpush.msra.mxu0 0.0
        %4093 = vmatpush.msra.mxu0 0.0
        %4094 = vmatpush.msra.mxu0 0.0
        %4095 = vmatpush.msra.mxu0 %v643
        %4096 = vmatpush.msra.mxu0 %v642
        %4097 = vmatpush.msra.mxu0 %v641
        %4098 = vmatpush.msra.mxu0 %v640
        %4099 = vmatmul.f32.gmra.mxu0 %v3988
        %v4100 = vpop.f32.mrf.mxu0
        %v4101 = vadd.f32 %v3892, %v4100
        %4102 = vmatmul.f32.gmra.mxu0 %v3991
        %v4103 = vpop.f32.mrf.mxu0
        %v4104 = vadd.f32 %v3895, %v4103
        %4105 = vmatmul.f32.gmra.mxu0 %v3994
        %v4106 = vpop.f32.mrf.mxu0
        %v4107 = vadd.f32 %v3898, %v4106
        %4108 = vmatmul.f32.gmra.mxu0 %v3997
        %v4109 = vpop.f32.mrf.mxu0
        %v4110 = vadd.f32 %v3901, %v4109
        %4111 = vmatmul.f32.gmra.mxu0 %v4000
        %v4112 = vpop.f32.mrf.mxu0
        %v4113 = vadd.f32 %v3904, %v4112
        %4114 = vmatmul.f32.gmra.mxu0 %v4003
        %v4115 = vpop.f32.mrf.mxu0
        %v4116 = vadd.f32 %v3907, %v4115
        %4117 = vmatmul.f32.gmra.mxu0 %v4006
        %v4118 = vpop.f32.mrf.mxu0
        %v4119 = vadd.f32 %v3910, %v4118
        %4120 = vmatmul.f32.gmra.mxu0 %v4009
        %v4121 = vpop.f32.mrf.mxu0
        %v4122 = vadd.f32 %v3913, %v4121
        %4123 = vmatmul.f32.gmra.mxu0 %v4012
        %v4124 = vpop.f32.mrf.mxu0
        %v4125 = vadd.f32 %v3916, %v4124
        %4126 = vmatmul.f32.gmra.mxu0 %v4015
        %v4127 = vpop.f32.mrf.mxu0
        %v4128 = vadd.f32 %v3919, %v4127
        %4129 = vmatmul.f32.gmra.mxu0 %v4018
        %v4130 = vpop.f32.mrf.mxu0
        %v4131 = vadd.f32 %v3922, %v4130
        %4132 = vmatmul.f32.gmra.mxu0 %v4021
        %v4133 = vpop.f32.mrf.mxu0
        %v4134 = vadd.f32 %v3925, %v4133
        %4135 = vmatmul.f32.gmra.mxu0 %v4024
        %v4136 = vpop.f32.mrf.mxu0
        %v4137 = vadd.f32 %v3928, %v4136
        %4138 = vmatmul.f32.gmra.mxu0 %v4027
        %v4139 = vpop.f32.mrf.mxu0
        %v4140 = vadd.f32 %v3931, %v4139
        %4141 = vmatmul.f32.gmra.mxu0 %v4030
        %v4142 = vpop.f32.mrf.mxu0
        %v4143 = vadd.f32 %v3934, %v4142
        %4144 = vmatmul.f32.gmra.mxu0 %v4033
        %v4145 = vpop.f32.mrf.mxu0
        %v4146 = vadd.f32 %v3937, %v4145
        %4147 = vmatmul.f32.gmra.mxu0 %v4036
        %v4148 = vpop.f32.mrf.mxu0
        %v4149 = vadd.f32 %v3940, %v4148
        %4150 = vmatmul.f32.gmra.mxu0 %v4039
        %v4151 = vpop.f32.mrf.mxu0
        %v4152 = vadd.f32 %v3943, %v4151
        %4153 = vmatmul.f32.gmra.mxu0 %v4042
        %v4154 = vpop.f32.mrf.mxu0
        %v4155 = vadd.f32 %v3946, %v4154
        %4156 = vmatmul.f32.gmra.mxu0 %v4045
        %v4157 = vpop.f32.mrf.mxu0
        %v4158 = vadd.f32 %v3949, %v4157
        %4159 = vmatmul.f32.gmra.mxu0 %v4048
        %v4160 = vpop.f32.mrf.mxu0
        %v4161 = vadd.f32 %v3952, %v4160
        %4162 = vmatmul.f32.gmra.mxu0 %v4051
        %v4163 = vpop.f32.mrf.mxu0
        %v4164 = vadd.f32 %v3955, %v4163
        %4165 = vmatmul.f32.gmra.mxu0 %v4054
        %v4166 = vpop.f32.mrf.mxu0
        %v4167 = vadd.f32 %v3958, %v4166
        %4168 = vmatmul.f32.gmra.mxu0 %v4057
        %v4169 = vpop.f32.mrf.mxu0
        %v4170 = vadd.f32 %v3961, %v4169
        %4171 = vmatmul.f32.gmra.mxu0 %v4060
        %v4172 = vpop.f32.mrf.mxu0
        %v4173 = vadd.f32 %v3964, %v4172
        %4174 = vmatmul.f32.gmra.mxu0 %v4063
        %v4175 = vpop.f32.mrf.mxu0
        %v4176 = vadd.f32 %v3967, %v4175
        %4177 = vmatmul.f32.gmra.mxu0 %v4066
        %v4178 = vpop.f32.mrf.mxu0
        %v4179 = vadd.f32 %v3970, %v4178
        %4180 = vmatmul.f32.gmra.mxu0 %v4069
        %v4181 = vpop.f32.mrf.mxu0
        %v4182 = vadd.f32 %v3973, %v4181
        %4183 = vmatmul.f32.gmra.mxu0 %v4072
        %v4184 = vpop.f32.mrf.mxu0
        %v4185 = vadd.f32 %v3976, %v4184
        %4186 = vmatmul.f32.gmra.mxu0 %v4075
        %v4187 = vpop.f32.mrf.mxu0
        %v4188 = vadd.f32 %v3979, %v4187
        %4189 = vmatmul.f32.gmra.mxu0 %v4078
        %v4190 = vpop.f32.mrf.mxu0
        %v4191 = vadd.f32 %v3982, %v4190
        %4192 = vmatmul.f32.gmra.mxu0 %v4081
        %v4193 = vpop.f32.mrf.mxu0
        %v4194 = vadd.f32 %v3985, %v4193
        %4195 = vdwg.mxu0
        %v4196 = vld [vmem:[#allocation2 + $0x2] sm:$0xff]
        %v4197 = vld [vmem:[#allocation2 + $0xa] sm:$0xff]
        %v4198 = vld [vmem:[#allocation2 + $0x1a] sm:$0xff]
        %v4199 = vld [vmem:[#allocation2 + $0x22] sm:$0xff]
        %v4200 = vld [vmem:[#allocation2 + $0x32] sm:$0xff]
        %v4201 = vld [vmem:[#allocation2 + $0x3a] sm:$0xff]
        %v4202 = vld [vmem:[#allocation2 + $0x4a] sm:$0xff]
        %v4203 = vld [vmem:[#allocation2 + $0x52] sm:$0xff]
        %v4204 = vld [vmem:[#allocation2 + $0x62] sm:$0xff]
        %v4205 = vld [vmem:[#allocation2 + $0x6a] sm:$0xff]
        %v4206 = vld [vmem:[#allocation2 + $0x7a] sm:$0xff]
        %v4207 = vld [vmem:[#allocation2 + $0x82] sm:$0xff]
        %v4208 = vld [vmem:[#allocation2 + $0x92] sm:$0xff]
        %v4209 = vld [vmem:[#allocation2 + $0x9a] sm:$0xff]
        %v4210 = vld [vmem:[#allocation2 + $0xaa] sm:$0xff]
        %v4211 = vld [vmem:[#allocation2 + $0xb2] sm:$0xff]
        %v4212 = vld [vmem:[#allocation2 + $0xc2] sm:$0xff]
        %v4213 = vld [vmem:[#allocation2 + $0xca] sm:$0xff]
        %v4214 = vld [vmem:[#allocation2 + $0xda] sm:$0xff]
        %v4215 = vld [vmem:[#allocation2 + $0xe2] sm:$0xff]
        %v4216 = vld [vmem:[#allocation2 + $0xf2] sm:$0xff]
        %v4217 = vld [vmem:[#allocation2 + $0xfa] sm:$0xff]
        %v4218 = vld [vmem:[#allocation2 + $0x10a] sm:$0xff]
        %v4219 = vld [vmem:[#allocation2 + $0x112] sm:$0xff]
        %v4220 = vld [vmem:[#allocation2 + $0x122] sm:$0xff]
        %v4221 = vld [vmem:[#allocation2 + $0x12a] sm:$0xff]
        %v4222 = vld [vmem:[#allocation2 + $0x13a] sm:$0xff]
        %v4223 = vld [vmem:[#allocation2 + $0x142] sm:$0xff]
        %v4224 = vld [vmem:[#allocation2 + $0x152] sm:$0xff]
        %v4225 = vld [vmem:[#allocation2 + $0x15a] sm:$0xff]
        %v4226 = vld [vmem:[#allocation2 + $0x16a] sm:$0xff]
        %v4227 = vld [vmem:[#allocation2 + $0x172] sm:$0xff]
        %v4229 = vsel %vm484, %v4196, 0
        %v4232 = vsel %vm484, %v4197, 0
        %v4235 = vsel %vm484, %v4198, 0
        %v4238 = vsel %vm484, %v4199, 0
        %v4241 = vsel %vm484, %v4200, 0
        %v4244 = vsel %vm484, %v4201, 0
        %v4247 = vsel %vm484, %v4202, 0
        %v4250 = vsel %vm484, %v4203, 0
        %v4253 = vsel %vm484, %v4204, 0
        %v4256 = vsel %vm484, %v4205, 0
        %v4259 = vsel %vm484, %v4206, 0
        %v4262 = vsel %vm484, %v4207, 0
        %v4265 = vsel %vm484, %v4208, 0
        %v4268 = vsel %vm484, %v4209, 0
        %v4271 = vsel %vm484, %v4210, 0
        %v4274 = vsel %vm484, %v4211, 0
        %v4277 = vsel %vm484, %v4212, 0
        %v4280 = vsel %vm484, %v4213, 0
        %v4283 = vsel %vm484, %v4214, 0
        %v4286 = vsel %vm484, %v4215, 0
        %v4289 = vsel %vm484, %v4216, 0
        %v4292 = vsel %vm484, %v4217, 0
        %v4295 = vsel %vm484, %v4218, 0
        %v4298 = vsel %vm484, %v4219, 0
        %v4301 = vsel %vm484, %v4220, 0
        %v4304 = vsel %vm484, %v4221, 0
        %v4307 = vsel %vm484, %v4222, 0
        %v4310 = vsel %vm484, %v4223, 0
        %v4313 = vsel %vm484, %v4224, 0
        %v4316 = vsel %vm484, %v4225, 0
        %v4319 = vsel %vm484, %v4226, 0
        %v4322 = vsel %vm484, %v4227, 0
        %4324 = vmatpush.msra.mxu0 0.0
        %4325 = vmatpush.msra.mxu0 0.0
        %4326 = vmatpush.msra.mxu0 0.0
        %4327 = vmatpush.msra.mxu0 0.0
        %4328 = vmatpush.msra.mxu0 0.0
        %4329 = vmatpush.msra.mxu0 0.0
        %4330 = vmatpush.msra.mxu0 0.0
        %4331 = vmatpush.msra.mxu0 0.0
        %4332 = vmatpush.msra.mxu0 0.0
        %4333 = vmatpush.msra.mxu0 0.0
        %4334 = vmatpush.msra.mxu0 0.0
        %4335 = vmatpush.msra.mxu0 0.0
        %4336 = vmatpush.msra.mxu0 %v651
        %4337 = vmatpush.msra.mxu0 %v650
        %4338 = vmatpush.msra.mxu0 %v649
        %4339 = vmatpush.msra.mxu0 %v648
        %4340 = vmatmul.f32.gmra.mxu0 %v4229
        %v4341 = vpop.f32.mrf.mxu0
        %v4342 = vadd.f32 0.0, %v4341
        %4343 = vmatmul.f32.gmra.mxu0 %v4232
        %v4344 = vpop.f32.mrf.mxu0
        %v4345 = vadd.f32 0.0, %v4344
        %4346 = vmatmul.f32.gmra.mxu0 %v4235
        %v4347 = vpop.f32.mrf.mxu0
        %v4348 = vadd.f32 0.0, %v4347
        %4349 = vmatmul.f32.gmra.mxu0 %v4238
        %v4350 = vpop.f32.mrf.mxu0
        %v4351 = vadd.f32 0.0, %v4350
        %4352 = vmatmul.f32.gmra.mxu0 %v4241
        %v4353 = vpop.f32.mrf.mxu0
        %v4354 = vadd.f32 0.0, %v4353
        %4355 = vmatmul.f32.gmra.mxu0 %v4244
        %v4356 = vpop.f32.mrf.mxu0
        %v4357 = vadd.f32 0.0, %v4356
        %4358 = vmatmul.f32.gmra.mxu0 %v4247
        %v4359 = vpop.f32.mrf.mxu0
        %v4360 = vadd.f32 0.0, %v4359
        %4361 = vmatmul.f32.gmra.mxu0 %v4250
        %v4362 = vpop.f32.mrf.mxu0
        %v4363 = vadd.f32 0.0, %v4362
        %4364 = vmatmul.f32.gmra.mxu0 %v4253
        %v4365 = vpop.f32.mrf.mxu0
        %v4366 = vadd.f32 0.0, %v4365
        %4367 = vmatmul.f32.gmra.mxu0 %v4256
        %v4368 = vpop.f32.mrf.mxu0
        %v4369 = vadd.f32 0.0, %v4368
        %4370 = vmatmul.f32.gmra.mxu0 %v4259
        %v4371 = vpop.f32.mrf.mxu0
        %v4372 = vadd.f32 0.0, %v4371
        %4373 = vmatmul.f32.gmra.mxu0 %v4262
        %v4374 = vpop.f32.mrf.mxu0
        %v4375 = vadd.f32 0.0, %v4374
        %4376 = vmatmul.f32.gmra.mxu0 %v4265
        %v4377 = vpop.f32.mrf.mxu0
        %v4378 = vadd.f32 0.0, %v4377
        %4379 = vmatmul.f32.gmra.mxu0 %v4268
        %v4380 = vpop.f32.mrf.mxu0
        %v4381 = vadd.f32 0.0, %v4380
        %4382 = vmatmul.f32.gmra.mxu0 %v4271
        %v4383 = vpop.f32.mrf.mxu0
        %v4384 = vadd.f32 0.0, %v4383
        %4385 = vmatmul.f32.gmra.mxu0 %v4274
        %v4386 = vpop.f32.mrf.mxu0
        %v4387 = vadd.f32 0.0, %v4386
        %4388 = vmatmul.f32.gmra.mxu0 %v4277
        %v4389 = vpop.f32.mrf.mxu0
        %v4390 = vadd.f32 0.0, %v4389
        %4391 = vmatmul.f32.gmra.mxu0 %v4280
        %v4392 = vpop.f32.mrf.mxu0
        %v4393 = vadd.f32 0.0, %v4392
        %4394 = vmatmul.f32.gmra.mxu0 %v4283
        %v4395 = vpop.f32.mrf.mxu0
        %v4396 = vadd.f32 0.0, %v4395
        %4397 = vmatmul.f32.gmra.mxu0 %v4286
        %v4398 = vpop.f32.mrf.mxu0
        %v4399 = vadd.f32 0.0, %v4398
        %4400 = vmatmul.f32.gmra.mxu0 %v4289
        %v4401 = vpop.f32.mrf.mxu0
        %v4402 = vadd.f32 0.0, %v4401
        %4403 = vmatmul.f32.gmra.mxu0 %v4292
        %v4404 = vpop.f32.mrf.mxu0
        %v4405 = vadd.f32 0.0, %v4404
        %4406 = vmatmul.f32.gmra.mxu0 %v4295
        %v4407 = vpop.f32.mrf.mxu0
        %v4408 = vadd.f32 0.0, %v4407
        %4409 = vmatmul.f32.gmra.mxu0 %v4298
        %v4410 = vpop.f32.mrf.mxu0
        %v4411 = vadd.f32 0.0, %v4410
        %4412 = vmatmul.f32.gmra.mxu0 %v4301
        %v4413 = vpop.f32.mrf.mxu0
        %v4414 = vadd.f32 0.0, %v4413
        %4415 = vmatmul.f32.gmra.mxu0 %v4304
        %v4416 = vpop.f32.mrf.mxu0
        %v4417 = vadd.f32 0.0, %v4416
        %4418 = vmatmul.f32.gmra.mxu0 %v4307
        %v4419 = vpop.f32.mrf.mxu0
        %v4420 = vadd.f32 0.0, %v4419
        %4421 = vmatmul.f32.gmra.mxu0 %v4310
        %v4422 = vpop.f32.mrf.mxu0
        %v4423 = vadd.f32 0.0, %v4422
        %4424 = vmatmul.f32.gmra.mxu0 %v4313
        %v4425 = vpop.f32.mrf.mxu0
        %v4426 = vadd.f32 0.0, %v4425
        %4427 = vmatmul.f32.gmra.mxu0 %v4316
        %v4428 = vpop.f32.mrf.mxu0
        %v4429 = vadd.f32 0.0, %v4428
        %4430 = vmatmul.f32.gmra.mxu0 %v4319
        %v4431 = vpop.f32.mrf.mxu0
        %v4432 = vadd.f32 0.0, %v4431
        %4433 = vmatmul.f32.gmra.mxu0 %v4322
        %v4434 = vpop.f32.mrf.mxu0
        %v4435 = vadd.f32 0.0, %v4434
        %4436 = vdwg.mxu0
        %v4437 = vadd.f32 %v4101, %v4342
        %v4438 = vadd.f32 %v4104, %v4345
        %v4439 = vadd.f32 %v4107, %v4348
        %v4440 = vadd.f32 %v4110, %v4351
        %v4441 = vadd.f32 %v4113, %v4354
        %v4442 = vadd.f32 %v4116, %v4357
        %v4443 = vadd.f32 %v4119, %v4360
        %v4444 = vadd.f32 %v4122, %v4363
        %v4445 = vadd.f32 %v4125, %v4366
        %v4446 = vadd.f32 %v4128, %v4369
        %v4447 = vadd.f32 %v4131, %v4372
        %v4448 = vadd.f32 %v4134, %v4375
        %v4449 = vadd.f32 %v4137, %v4378
        %v4450 = vadd.f32 %v4140, %v4381
        %v4451 = vadd.f32 %v4143, %v4384
        %v4452 = vadd.f32 %v4146, %v4387
        %v4453 = vadd.f32 %v4149, %v4390
        %v4454 = vadd.f32 %v4152, %v4393
        %v4455 = vadd.f32 %v4155, %v4396
        %v4456 = vadd.f32 %v4158, %v4399
        %v4457 = vadd.f32 %v4161, %v4402
        %v4458 = vadd.f32 %v4164, %v4405
        %v4459 = vadd.f32 %v4167, %v4408
        %v4460 = vadd.f32 %v4170, %v4411
        %v4461 = vadd.f32 %v4173, %v4414
        %v4462 = vadd.f32 %v4176, %v4417
        %v4463 = vadd.f32 %v4179, %v4420
        %v4464 = vadd.f32 %v4182, %v4423
        %v4465 = vadd.f32 %v4185, %v4426
        %v4466 = vadd.f32 %v4188, %v4429
        %v4467 = vadd.f32 %v4191, %v4432
        %v4468 = vadd.f32 %v4194, %v4435
        %v4469 = vld [vmem:[%s721] sm:$0xff]
        %v4470 = vld [vmem:[%s721 + $0x8] sm:$0xff]
        %v4471 = vld [vmem:[%s721 + $0x18] sm:$0xff]
        %v4472 = vld [vmem:[%s721 + $0x20] sm:$0xff]
        %v4473 = vld [vmem:[%s721 + $0x30] sm:$0xff]
        %v4474 = vld [vmem:[%s721 + $0x38] sm:$0xff]
        %v4475 = vld [vmem:[%s721 + $0x48] sm:$0xff]
        %v4476 = vld [vmem:[%s721 + $0x50] sm:$0xff]
        %v4477 = vld [vmem:[%s721 + $0x60] sm:$0xff]
        %v4478 = vld [vmem:[%s721 + $0x68] sm:$0xff]
        %v4479 = vld [vmem:[%s721 + $0x78] sm:$0xff]
        %v4480 = vld [vmem:[%s721 + $0x80] sm:$0xff]
        %v4481 = vld [vmem:[%s721 + $0x90] sm:$0xff]
        %v4482 = vld [vmem:[%s721 + $0x98] sm:$0xff]
        %v4483 = vld [vmem:[%s721 + $0xa8] sm:$0xff]
        %v4484 = vld [vmem:[%s721 + $0xb0] sm:$0xff]
        %v4485 = vld [vmem:[%s721 + $0xc0] sm:$0xff]
        %v4486 = vld [vmem:[%s721 + $0xc8] sm:$0xff]
        %v4487 = vld [vmem:[%s721 + $0xd8] sm:$0xff]
        %v4488 = vld [vmem:[%s721 + $0xe0] sm:$0xff]
        %v4489 = vld [vmem:[%s721 + $0xf0] sm:$0xff]
        %v4490 = vld [vmem:[%s721 + $0xf8] sm:$0xff]
        %v4491 = vld [vmem:[%s721 + $0x108] sm:$0xff]
        %v4492 = vld [vmem:[%s721 + $0x110] sm:$0xff]
        %v4493 = vld [vmem:[%s721 + $0x120] sm:$0xff]
        %v4494 = vld [vmem:[%s721 + $0x128] sm:$0xff]
        %v4495 = vld [vmem:[%s721 + $0x138] sm:$0xff]
        %v4496 = vld [vmem:[%s721 + $0x140] sm:$0xff]
        %v4497 = vld [vmem:[%s721 + $0x150] sm:$0xff]
        %v4498 = vld [vmem:[%s721 + $0x158] sm:$0xff]
        %v4499 = vld [vmem:[%s721 + $0x168] sm:$0xff]
        %v4500 = vld [vmem:[%s721 + $0x170] sm:$0xff]
        %v4502 = vsel %vm484, %v4469, 0
        %v4505 = vsel %vm484, %v4470, 0
        %v4508 = vsel %vm484, %v4471, 0
        %v4511 = vsel %vm484, %v4472, 0
        %v4514 = vsel %vm484, %v4473, 0
        %v4517 = vsel %vm484, %v4474, 0
        %v4520 = vsel %vm484, %v4475, 0
        %v4523 = vsel %vm484, %v4476, 0
        %v4526 = vsel %vm484, %v4477, 0
        %v4529 = vsel %vm484, %v4478, 0
        %v4532 = vsel %vm484, %v4479, 0
        %v4535 = vsel %vm484, %v4480, 0
        %v4538 = vsel %vm484, %v4481, 0
        %v4541 = vsel %vm484, %v4482, 0
        %v4544 = vsel %vm484, %v4483, 0
        %v4547 = vsel %vm484, %v4484, 0
        %v4550 = vsel %vm484, %v4485, 0
        %v4553 = vsel %vm484, %v4486, 0
        %v4556 = vsel %vm484, %v4487, 0
        %v4559 = vsel %vm484, %v4488, 0
        %v4562 = vsel %vm484, %v4489, 0
        %v4565 = vsel %vm484, %v4490, 0
        %v4568 = vsel %vm484, %v4491, 0
        %v4571 = vsel %vm484, %v4492, 0
        %v4574 = vsel %vm484, %v4493, 0
        %v4577 = vsel %vm484, %v4494, 0
        %v4580 = vsel %vm484, %v4495, 0
        %v4583 = vsel %vm484, %v4496, 0
        %v4586 = vsel %vm484, %v4497, 0
        %v4589 = vsel %vm484, %v4498, 0
        %v4592 = vsel %vm484, %v4499, 0
        %v4595 = vsel %vm484, %v4500, 0
        %4597 = vmatpush.msra.mxu0 0.0
        %4598 = vmatpush.msra.mxu0 0.0
        %4599 = vmatpush.msra.mxu0 0.0
        %4600 = vmatpush.msra.mxu0 0.0
        %4601 = vmatpush.msra.mxu0 0.0
        %4602 = vmatpush.msra.mxu0 0.0
        %4603 = vmatpush.msra.mxu0 0.0
        %4604 = vmatpush.msra.mxu0 0.0
        %4605 = vmatpush.msra.mxu0 0.0
        %4606 = vmatpush.msra.mxu0 0.0
        %4607 = vmatpush.msra.mxu0 0.0
        %4608 = vmatpush.msra.mxu0 0.0
        %4609 = vmatpush.msra.mxu0 %v655
        %4610 = vmatpush.msra.mxu0 %v654
        %4611 = vmatpush.msra.mxu0 %v653
        %4612 = vmatpush.msra.mxu0 %v652
        %4613 = vmatmul.f32.gmra.mxu0 %v4502
        %v4614 = vpop.f32.mrf.mxu0
        %v4615 = vadd.f32 0.0, %v4614
        %4616 = vmatmul.f32.gmra.mxu0 %v4505
        %v4617 = vpop.f32.mrf.mxu0
        %v4618 = vadd.f32 0.0, %v4617
        %4619 = vmatmul.f32.gmra.mxu0 %v4508
        %v4620 = vpop.f32.mrf.mxu0
        %v4621 = vadd.f32 0.0, %v4620
        %4622 = vmatmul.f32.gmra.mxu0 %v4511
        %v4623 = vpop.f32.mrf.mxu0
        %v4624 = vadd.f32 0.0, %v4623
        %4625 = vmatmul.f32.gmra.mxu0 %v4514
        %v4626 = vpop.f32.mrf.mxu0
        %v4627 = vadd.f32 0.0, %v4626
        %4628 = vmatmul.f32.gmra.mxu0 %v4517
        %v4629 = vpop.f32.mrf.mxu0
        %v4630 = vadd.f32 0.0, %v4629
        %4631 = vmatmul.f32.gmra.mxu0 %v4520
        %v4632 = vpop.f32.mrf.mxu0
        %v4633 = vadd.f32 0.0, %v4632
        %4634 = vmatmul.f32.gmra.mxu0 %v4523
        %v4635 = vpop.f32.mrf.mxu0
        %v4636 = vadd.f32 0.0, %v4635
        %4637 = vmatmul.f32.gmra.mxu0 %v4526
        %v4638 = vpop.f32.mrf.mxu0
        %v4639 = vadd.f32 0.0, %v4638
        %4640 = vmatmul.f32.gmra.mxu0 %v4529
        %v4641 = vpop.f32.mrf.mxu0
        %v4642 = vadd.f32 0.0, %v4641
        %4643 = vmatmul.f32.gmra.mxu0 %v4532
        %v4644 = vpop.f32.mrf.mxu0
        %v4645 = vadd.f32 0.0, %v4644
        %4646 = vmatmul.f32.gmra.mxu0 %v4535
        %v4647 = vpop.f32.mrf.mxu0
        %v4648 = vadd.f32 0.0, %v4647
        %4649 = vmatmul.f32.gmra.mxu0 %v4538
        %v4650 = vpop.f32.mrf.mxu0
        %v4651 = vadd.f32 0.0, %v4650
        %4652 = vmatmul.f32.gmra.mxu0 %v4541
        %v4653 = vpop.f32.mrf.mxu0
        %v4654 = vadd.f32 0.0, %v4653
        %4655 = vmatmul.f32.gmra.mxu0 %v4544
        %v4656 = vpop.f32.mrf.mxu0
        %v4657 = vadd.f32 0.0, %v4656
        %4658 = vmatmul.f32.gmra.mxu0 %v4547
        %v4659 = vpop.f32.mrf.mxu0
        %v4660 = vadd.f32 0.0, %v4659
        %4661 = vmatmul.f32.gmra.mxu0 %v4550
        %v4662 = vpop.f32.mrf.mxu0
        %v4663 = vadd.f32 0.0, %v4662
        %4664 = vmatmul.f32.gmra.mxu0 %v4553
        %v4665 = vpop.f32.mrf.mxu0
        %v4666 = vadd.f32 0.0, %v4665
        %4667 = vmatmul.f32.gmra.mxu0 %v4556
        %v4668 = vpop.f32.mrf.mxu0
        %v4669 = vadd.f32 0.0, %v4668
        %4670 = vmatmul.f32.gmra.mxu0 %v4559
        %v4671 = vpop.f32.mrf.mxu0
        %v4672 = vadd.f32 0.0, %v4671
        %4673 = vmatmul.f32.gmra.mxu0 %v4562
        %v4674 = vpop.f32.mrf.mxu0
        %v4675 = vadd.f32 0.0, %v4674
        %4676 = vmatmul.f32.gmra.mxu0 %v4565
        %v4677 = vpop.f32.mrf.mxu0
        %v4678 = vadd.f32 0.0, %v4677
        %4679 = vmatmul.f32.gmra.mxu0 %v4568
        %v4680 = vpop.f32.mrf.mxu0
        %v4681 = vadd.f32 0.0, %v4680
        %4682 = vmatmul.f32.gmra.mxu0 %v4571
        %v4683 = vpop.f32.mrf.mxu0
        %v4684 = vadd.f32 0.0, %v4683
        %4685 = vmatmul.f32.gmra.mxu0 %v4574
        %v4686 = vpop.f32.mrf.mxu0
        %v4687 = vadd.f32 0.0, %v4686
        %4688 = vmatmul.f32.gmra.mxu0 %v4577
        %v4689 = vpop.f32.mrf.mxu0
        %v4690 = vadd.f32 0.0, %v4689
        %4691 = vmatmul.f32.gmra.mxu0 %v4580
        %v4692 = vpop.f32.mrf.mxu0
        %v4693 = vadd.f32 0.0, %v4692
        %4694 = vmatmul.f32.gmra.mxu0 %v4583
        %v4695 = vpop.f32.mrf.mxu0
        %v4696 = vadd.f32 0.0, %v4695
        %4697 = vmatmul.f32.gmra.mxu0 %v4586
        %v4698 = vpop.f32.mrf.mxu0
        %v4699 = vadd.f32 0.0, %v4698
        %4700 = vmatmul.f32.gmra.mxu0 %v4589
        %v4701 = vpop.f32.mrf.mxu0
        %v4702 = vadd.f32 0.0, %v4701
        %4703 = vmatmul.f32.gmra.mxu0 %v4592
        %v4704 = vpop.f32.mrf.mxu0
        %v4705 = vadd.f32 0.0, %v4704
        %4706 = vmatmul.f32.gmra.mxu0 %v4595
        %v4707 = vpop.f32.mrf.mxu0
        %v4708 = vadd.f32 0.0, %v4707
        %4709 = vdwg.mxu0
        %v4710 = vadd.f32 %v4437, %v4615
        %v4711 = vadd.f32 %v4438, %v4618
        %v4712 = vadd.f32 %v4439, %v4621
        %v4713 = vadd.f32 %v4440, %v4624
        %v4714 = vadd.f32 %v4441, %v4627
        %v4715 = vadd.f32 %v4442, %v4630
        %v4716 = vadd.f32 %v4443, %v4633
        %v4717 = vadd.f32 %v4444, %v4636
        %v4718 = vadd.f32 %v4445, %v4639
        %v4719 = vadd.f32 %v4446, %v4642
        %v4720 = vadd.f32 %v4447, %v4645
        %v4721 = vadd.f32 %v4448, %v4648
        %v4722 = vadd.f32 %v4449, %v4651
        %v4723 = vadd.f32 %v4450, %v4654
        %v4724 = vadd.f32 %v4451, %v4657
        %v4725 = vadd.f32 %v4452, %v4660
        %v4726 = vadd.f32 %v4453, %v4663
        %v4727 = vadd.f32 %v4454, %v4666
        %v4728 = vadd.f32 %v4455, %v4669
        %v4729 = vadd.f32 %v4456, %v4672
        %v4730 = vadd.f32 %v4457, %v4675
        %v4731 = vadd.f32 %v4458, %v4678
        %v4732 = vadd.f32 %v4459, %v4681
        %v4733 = vadd.f32 %v4460, %v4684
        %v4734 = vadd.f32 %v4461, %v4687
        %v4735 = vadd.f32 %v4462, %v4690
        %v4736 = vadd.f32 %v4463, %v4693
        %v4737 = vadd.f32 %v4464, %v4696
        %v4738 = vadd.f32 %v4465, %v4699
        %v4739 = vadd.f32 %v4466, %v4702
        %v4740 = vadd.f32 %v4467, %v4705
        %v4741 = vadd.f32 %v4468, %v4708
        %v4742 = vld [vmem:[%s721 + $0x1] sm:$0xff]
        %v4743 = vld [vmem:[%s721 + $0x9] sm:$0xff]
        %v4744 = vld [vmem:[%s721 + $0x19] sm:$0xff]
        %v4745 = vld [vmem:[%s721 + $0x21] sm:$0xff]
        %v4746 = vld [vmem:[%s721 + $0x31] sm:$0xff]
        %v4747 = vld [vmem:[%s721 + $0x39] sm:$0xff]
        %v4748 = vld [vmem:[%s721 + $0x49] sm:$0xff]
        %v4749 = vld [vmem:[%s721 + $0x51] sm:$0xff]
        %v4750 = vld [vmem:[%s721 + $0x61] sm:$0xff]
        %v4751 = vld [vmem:[%s721 + $0x69] sm:$0xff]
        %v4752 = vld [vmem:[%s721 + $0x79] sm:$0xff]
        %v4753 = vld [vmem:[%s721 + $0x81] sm:$0xff]
        %v4754 = vld [vmem:[%s721 + $0x91] sm:$0xff]
        %v4755 = vld [vmem:[%s721 + $0x99] sm:$0xff]
        %v4756 = vld [vmem:[%s721 + $0xa9] sm:$0xff]
        %v4757 = vld [vmem:[%s721 + $0xb1] sm:$0xff]
        %v4758 = vld [vmem:[%s721 + $0xc1] sm:$0xff]
        %v4759 = vld [vmem:[%s721 + $0xc9] sm:$0xff]
        %v4760 = vld [vmem:[%s721 + $0xd9] sm:$0xff]
        %v4761 = vld [vmem:[%s721 + $0xe1] sm:$0xff]
        %v4762 = vld [vmem:[%s721 + $0xf1] sm:$0xff]
        %v4763 = vld [vmem:[%s721 + $0xf9] sm:$0xff]
        %v4764 = vld [vmem:[%s721 + $0x109] sm:$0xff]
        %v4765 = vld [vmem:[%s721 + $0x111] sm:$0xff]
        %v4766 = vld [vmem:[%s721 + $0x121] sm:$0xff]
        %v4767 = vld [vmem:[%s721 + $0x129] sm:$0xff]
        %v4768 = vld [vmem:[%s721 + $0x139] sm:$0xff]
        %v4769 = vld [vmem:[%s721 + $0x141] sm:$0xff]
        %v4770 = vld [vmem:[%s721 + $0x151] sm:$0xff]
        %v4771 = vld [vmem:[%s721 + $0x159] sm:$0xff]
        %v4772 = vld [vmem:[%s721 + $0x169] sm:$0xff]
        %v4773 = vld [vmem:[%s721 + $0x171] sm:$0xff]
        %v4775 = vsel %vm484, %v4742, 0
        %v4778 = vsel %vm484, %v4743, 0
        %v4781 = vsel %vm484, %v4744, 0
        %v4784 = vsel %vm484, %v4745, 0
        %v4787 = vsel %vm484, %v4746, 0
        %v4790 = vsel %vm484, %v4747, 0
        %v4793 = vsel %vm484, %v4748, 0
        %v4796 = vsel %vm484, %v4749, 0
        %v4799 = vsel %vm484, %v4750, 0
        %v4802 = vsel %vm484, %v4751, 0
        %v4805 = vsel %vm484, %v4752, 0
        %v4808 = vsel %vm484, %v4753, 0
        %v4811 = vsel %vm484, %v4754, 0
        %v4814 = vsel %vm484, %v4755, 0
        %v4817 = vsel %vm484, %v4756, 0
        %v4820 = vsel %vm484, %v4757, 0
        %v4823 = vsel %vm484, %v4758, 0
        %v4826 = vsel %vm484, %v4759, 0
        %v4829 = vsel %vm484, %v4760, 0
        %v4832 = vsel %vm484, %v4761, 0
        %v4835 = vsel %vm484, %v4762, 0
        %v4838 = vsel %vm484, %v4763, 0
        %v4841 = vsel %vm484, %v4764, 0
        %v4844 = vsel %vm484, %v4765, 0
        %v4847 = vsel %vm484, %v4766, 0
        %v4850 = vsel %vm484, %v4767, 0
        %v4853 = vsel %vm484, %v4768, 0
        %v4856 = vsel %vm484, %v4769, 0
        %v4859 = vsel %vm484, %v4770, 0
        %v4862 = vsel %vm484, %v4771, 0
        %v4865 = vsel %vm484, %v4772, 0
        %v4868 = vsel %vm484, %v4773, 0
        %4870 = vmatpush.msra.mxu0 0.0
        %4871 = vmatpush.msra.mxu0 0.0
        %4872 = vmatpush.msra.mxu0 0.0
        %4873 = vmatpush.msra.mxu0 0.0
        %4874 = vmatpush.msra.mxu0 0.0
        %4875 = vmatpush.msra.mxu0 0.0
        %4876 = vmatpush.msra.mxu0 0.0
        %4877 = vmatpush.msra.mxu0 0.0
        %4878 = vmatpush.msra.mxu0 0.0
        %4879 = vmatpush.msra.mxu0 0.0
        %4880 = vmatpush.msra.mxu0 0.0
        %4881 = vmatpush.msra.mxu0 0.0
        %4882 = vmatpush.msra.mxu0 %v659
        %4883 = vmatpush.msra.mxu0 %v658
        %4884 = vmatpush.msra.mxu0 %v657
        %4885 = vmatpush.msra.mxu0 %v656
        %4886 = vmatmul.f32.gmra.mxu0 %v4775
        %v4887 = vpop.f32.mrf.mxu0
        %v4888 = vadd.f32 0.0, %v4887
        %4889 = vmatmul.f32.gmra.mxu0 %v4778
        %v4890 = vpop.f32.mrf.mxu0
        %v4891 = vadd.f32 0.0, %v4890
        %4892 = vmatmul.f32.gmra.mxu0 %v4781
        %v4893 = vpop.f32.mrf.mxu0
        %v4894 = vadd.f32 0.0, %v4893
        %4895 = vmatmul.f32.gmra.mxu0 %v4784
        %v4896 = vpop.f32.mrf.mxu0
        %v4897 = vadd.f32 0.0, %v4896
        %4898 = vmatmul.f32.gmra.mxu0 %v4787
        %v4899 = vpop.f32.mrf.mxu0
        %v4900 = vadd.f32 0.0, %v4899
        %4901 = vmatmul.f32.gmra.mxu0 %v4790
        %v4902 = vpop.f32.mrf.mxu0
        %v4903 = vadd.f32 0.0, %v4902
        %4904 = vmatmul.f32.gmra.mxu0 %v4793
        %v4905 = vpop.f32.mrf.mxu0
        %v4906 = vadd.f32 0.0, %v4905
        %4907 = vmatmul.f32.gmra.mxu0 %v4796
        %v4908 = vpop.f32.mrf.mxu0
        %v4909 = vadd.f32 0.0, %v4908
        %4910 = vmatmul.f32.gmra.mxu0 %v4799
        %v4911 = vpop.f32.mrf.mxu0
        %v4912 = vadd.f32 0.0, %v4911
        %4913 = vmatmul.f32.gmra.mxu0 %v4802
        %v4914 = vpop.f32.mrf.mxu0
        %v4915 = vadd.f32 0.0, %v4914
        %4916 = vmatmul.f32.gmra.mxu0 %v4805
        %v4917 = vpop.f32.mrf.mxu0
        %v4918 = vadd.f32 0.0, %v4917
        %4919 = vmatmul.f32.gmra.mxu0 %v4808
        %v4920 = vpop.f32.mrf.mxu0
        %v4921 = vadd.f32 0.0, %v4920
        %4922 = vmatmul.f32.gmra.mxu0 %v4811
        %v4923 = vpop.f32.mrf.mxu0
        %v4924 = vadd.f32 0.0, %v4923
        %4925 = vmatmul.f32.gmra.mxu0 %v4814
        %v4926 = vpop.f32.mrf.mxu0
        %v4927 = vadd.f32 0.0, %v4926
        %4928 = vmatmul.f32.gmra.mxu0 %v4817
        %v4929 = vpop.f32.mrf.mxu0
        %v4930 = vadd.f32 0.0, %v4929
        %4931 = vmatmul.f32.gmra.mxu0 %v4820
        %v4932 = vpop.f32.mrf.mxu0
        %v4933 = vadd.f32 0.0, %v4932
        %4934 = vmatmul.f32.gmra.mxu0 %v4823
        %v4935 = vpop.f32.mrf.mxu0
        %v4936 = vadd.f32 0.0, %v4935
        %4937 = vmatmul.f32.gmra.mxu0 %v4826
        %v4938 = vpop.f32.mrf.mxu0
        %v4939 = vadd.f32 0.0, %v4938
        %4940 = vmatmul.f32.gmra.mxu0 %v4829
        %v4941 = vpop.f32.mrf.mxu0
        %v4942 = vadd.f32 0.0, %v4941
        %4943 = vmatmul.f32.gmra.mxu0 %v4832
        %v4944 = vpop.f32.mrf.mxu0
        %v4945 = vadd.f32 0.0, %v4944
        %4946 = vmatmul.f32.gmra.mxu0 %v4835
        %v4947 = vpop.f32.mrf.mxu0
        %v4948 = vadd.f32 0.0, %v4947
        %4949 = vmatmul.f32.gmra.mxu0 %v4838
        %v4950 = vpop.f32.mrf.mxu0
        %v4951 = vadd.f32 0.0, %v4950
        %4952 = vmatmul.f32.gmra.mxu0 %v4841
        %v4953 = vpop.f32.mrf.mxu0
        %v4954 = vadd.f32 0.0, %v4953
        %4955 = vmatmul.f32.gmra.mxu0 %v4844
        %v4956 = vpop.f32.mrf.mxu0
        %v4957 = vadd.f32 0.0, %v4956
        %4958 = vmatmul.f32.gmra.mxu0 %v4847
        %v4959 = vpop.f32.mrf.mxu0
        %v4960 = vadd.f32 0.0, %v4959
        %4961 = vmatmul.f32.gmra.mxu0 %v4850
        %v4962 = vpop.f32.mrf.mxu0
        %v4963 = vadd.f32 0.0, %v4962
        %4964 = vmatmul.f32.gmra.mxu0 %v4853
        %v4965 = vpop.f32.mrf.mxu0
        %v4966 = vadd.f32 0.0, %v4965
        %4967 = vmatmul.f32.gmra.mxu0 %v4856
        %v4968 = vpop.f32.mrf.mxu0
        %v4969 = vadd.f32 0.0, %v4968
        %4970 = vmatmul.f32.gmra.mxu0 %v4859
        %v4971 = vpop.f32.mrf.mxu0
        %v4972 = vadd.f32 0.0, %v4971
        %4973 = vmatmul.f32.gmra.mxu0 %v4862
        %v4974 = vpop.f32.mrf.mxu0
        %v4975 = vadd.f32 0.0, %v4974
        %4976 = vmatmul.f32.gmra.mxu0 %v4865
        %v4977 = vpop.f32.mrf.mxu0
        %v4978 = vadd.f32 0.0, %v4977
        %4979 = vmatmul.f32.gmra.mxu0 %v4868
        %v4980 = vpop.f32.mrf.mxu0
        %v4981 = vadd.f32 0.0, %v4980
        %4982 = vdwg.mxu0
        %v4983 = vadd.f32 %v4710, %v4888
        %v4984 = vadd.f32 %v4711, %v4891
        %v4985 = vadd.f32 %v4712, %v4894
        %v4986 = vadd.f32 %v4713, %v4897
        %v4987 = vadd.f32 %v4714, %v4900
        %v4988 = vadd.f32 %v4715, %v4903
        %v4989 = vadd.f32 %v4716, %v4906
        %v4990 = vadd.f32 %v4717, %v4909
        %v4991 = vadd.f32 %v4718, %v4912
        %v4992 = vadd.f32 %v4719, %v4915
        %v4993 = vadd.f32 %v4720, %v4918
        %v4994 = vadd.f32 %v4721, %v4921
        %v4995 = vadd.f32 %v4722, %v4924
        %v4996 = vadd.f32 %v4723, %v4927
        %v4997 = vadd.f32 %v4724, %v4930
        %v4998 = vadd.f32 %v4725, %v4933
        %v4999 = vadd.f32 %v4726, %v4936
        %v5000 = vadd.f32 %v4727, %v4939
        %v5001 = vadd.f32 %v4728, %v4942
        %v5002 = vadd.f32 %v4729, %v4945
        %v5003 = vadd.f32 %v4730, %v4948
        %v5004 = vadd.f32 %v4731, %v4951
        %v5005 = vadd.f32 %v4732, %v4954
        %v5006 = vadd.f32 %v4733, %v4957
        %v5007 = vadd.f32 %v4734, %v4960
        %v5008 = vadd.f32 %v4735, %v4963
        %v5009 = vadd.f32 %v4736, %v4966
        %v5010 = vadd.f32 %v4737, %v4969
        %v5011 = vadd.f32 %v4738, %v4972
        %v5012 = vadd.f32 %v4739, %v4975
        %v5013 = vadd.f32 %v4740, %v4978
        %v5014 = vadd.f32 %v4741, %v4981
        %v5015 = vld [vmem:[%s721 + $0x2] sm:$0xff]
        %v5016 = vld [vmem:[%s721 + $0xa] sm:$0xff]
        %v5017 = vld [vmem:[%s721 + $0x1a] sm:$0xff]
        %v5018 = vld [vmem:[%s721 + $0x22] sm:$0xff]
        %v5019 = vld [vmem:[%s721 + $0x32] sm:$0xff]
        %v5020 = vld [vmem:[%s721 + $0x3a] sm:$0xff]
        %v5021 = vld [vmem:[%s721 + $0x4a] sm:$0xff]
        %v5022 = vld [vmem:[%s721 + $0x52] sm:$0xff]
        %v5023 = vld [vmem:[%s721 + $0x62] sm:$0xff]
        %v5024 = vld [vmem:[%s721 + $0x6a] sm:$0xff]
        %v5025 = vld [vmem:[%s721 + $0x7a] sm:$0xff]
        %v5026 = vld [vmem:[%s721 + $0x82] sm:$0xff]
        %v5027 = vld [vmem:[%s721 + $0x92] sm:$0xff]
        %v5028 = vld [vmem:[%s721 + $0x9a] sm:$0xff]
        %v5029 = vld [vmem:[%s721 + $0xaa] sm:$0xff]
        %v5030 = vld [vmem:[%s721 + $0xb2] sm:$0xff]
        %v5031 = vld [vmem:[%s721 + $0xc2] sm:$0xff]
        %v5032 = vld [vmem:[%s721 + $0xca] sm:$0xff]
        %v5033 = vld [vmem:[%s721 + $0xda] sm:$0xff]
        %v5034 = vld [vmem:[%s721 + $0xe2] sm:$0xff]
        %v5035 = vld [vmem:[%s721 + $0xf2] sm:$0xff]
        %v5036 = vld [vmem:[%s721 + $0xfa] sm:$0xff]
        %v5037 = vld [vmem:[%s721 + $0x10a] sm:$0xff]
        %v5038 = vld [vmem:[%s721 + $0x112] sm:$0xff]
        %v5039 = vld [vmem:[%s721 + $0x122] sm:$0xff]
        %v5040 = vld [vmem:[%s721 + $0x12a] sm:$0xff]
        %v5041 = vld [vmem:[%s721 + $0x13a] sm:$0xff]
        %v5042 = vld [vmem:[%s721 + $0x142] sm:$0xff]
        %v5043 = vld [vmem:[%s721 + $0x152] sm:$0xff]
        %v5044 = vld [vmem:[%s721 + $0x15a] sm:$0xff]
        %v5045 = vld [vmem:[%s721 + $0x16a] sm:$0xff]
        %v5046 = vld [vmem:[%s721 + $0x172] sm:$0xff]
        %v5048 = vsel %vm484, %v5015, 0
        %v5051 = vsel %vm484, %v5016, 0
        %v5054 = vsel %vm484, %v5017, 0
        %v5057 = vsel %vm484, %v5018, 0
        %v5060 = vsel %vm484, %v5019, 0
        %v5063 = vsel %vm484, %v5020, 0
        %v5066 = vsel %vm484, %v5021, 0
        %v5069 = vsel %vm484, %v5022, 0
        %v5072 = vsel %vm484, %v5023, 0
        %v5075 = vsel %vm484, %v5024, 0
        %v5078 = vsel %vm484, %v5025, 0
        %v5081 = vsel %vm484, %v5026, 0
        %v5084 = vsel %vm484, %v5027, 0
        %v5087 = vsel %vm484, %v5028, 0
        %v5090 = vsel %vm484, %v5029, 0
        %v5093 = vsel %vm484, %v5030, 0
        %v5096 = vsel %vm484, %v5031, 0
        %v5099 = vsel %vm484, %v5032, 0
        %v5102 = vsel %vm484, %v5033, 0
        %v5105 = vsel %vm484, %v5034, 0
        %v5108 = vsel %vm484, %v5035, 0
        %v5111 = vsel %vm484, %v5036, 0
        %v5114 = vsel %vm484, %v5037, 0
        %v5117 = vsel %vm484, %v5038, 0
        %v5120 = vsel %vm484, %v5039, 0
        %v5123 = vsel %vm484, %v5040, 0
        %v5126 = vsel %vm484, %v5041, 0
        %v5129 = vsel %vm484, %v5042, 0
        %v5132 = vsel %vm484, %v5043, 0
        %v5135 = vsel %vm484, %v5044, 0
        %v5138 = vsel %vm484, %v5045, 0
        %v5141 = vsel %vm484, %v5046, 0
        %5143 = vmatpush.msra.mxu0 0.0
        %5144 = vmatpush.msra.mxu0 0.0
        %5145 = vmatpush.msra.mxu0 0.0
        %5146 = vmatpush.msra.mxu0 0.0
        %5147 = vmatpush.msra.mxu0 0.0
        %5148 = vmatpush.msra.mxu0 0.0
        %5149 = vmatpush.msra.mxu0 0.0
        %5150 = vmatpush.msra.mxu0 0.0
        %5151 = vmatpush.msra.mxu0 0.0
        %5152 = vmatpush.msra.mxu0 0.0
        %5153 = vmatpush.msra.mxu0 0.0
        %5154 = vmatpush.msra.mxu0 0.0
        %5155 = vmatpush.msra.mxu0 %v663
        %5156 = vmatpush.msra.mxu0 %v662
        %5157 = vmatpush.msra.mxu0 %v661
        %5158 = vmatpush.msra.mxu0 %v660
        %5159 = vmatmul.f32.gmra.mxu0 %v5048
        %v5160 = vpop.f32.mrf.mxu0
        %v5161 = vadd.f32 0.0, %v5160
        %5162 = vmatmul.f32.gmra.mxu0 %v5051
        %v5163 = vpop.f32.mrf.mxu0
        %v5164 = vadd.f32 0.0, %v5163
        %5165 = vmatmul.f32.gmra.mxu0 %v5054
        %v5166 = vpop.f32.mrf.mxu0
        %v5167 = vadd.f32 0.0, %v5166
        %5168 = vmatmul.f32.gmra.mxu0 %v5057
        %v5169 = vpop.f32.mrf.mxu0
        %v5170 = vadd.f32 0.0, %v5169
        %5171 = vmatmul.f32.gmra.mxu0 %v5060
        %v5172 = vpop.f32.mrf.mxu0
        %v5173 = vadd.f32 0.0, %v5172
        %5174 = vmatmul.f32.gmra.mxu0 %v5063
        %v5175 = vpop.f32.mrf.mxu0
        %v5176 = vadd.f32 0.0, %v5175
        %5177 = vmatmul.f32.gmra.mxu0 %v5066
        %v5178 = vpop.f32.mrf.mxu0
        %v5179 = vadd.f32 0.0, %v5178
        %5180 = vmatmul.f32.gmra.mxu0 %v5069
        %v5181 = vpop.f32.mrf.mxu0
        %v5182 = vadd.f32 0.0, %v5181
        %5183 = vmatmul.f32.gmra.mxu0 %v5072
        %v5184 = vpop.f32.mrf.mxu0
        %v5185 = vadd.f32 0.0, %v5184
        %5186 = vmatmul.f32.gmra.mxu0 %v5075
        %v5187 = vpop.f32.mrf.mxu0
        %v5188 = vadd.f32 0.0, %v5187
        %5189 = vmatmul.f32.gmra.mxu0 %v5078
        %v5190 = vpop.f32.mrf.mxu0
        %v5191 = vadd.f32 0.0, %v5190
        %5192 = vmatmul.f32.gmra.mxu0 %v5081
        %v5193 = vpop.f32.mrf.mxu0
        %v5194 = vadd.f32 0.0, %v5193
        %5195 = vmatmul.f32.gmra.mxu0 %v5084
        %v5196 = vpop.f32.mrf.mxu0
        %v5197 = vadd.f32 0.0, %v5196
        %5198 = vmatmul.f32.gmra.mxu0 %v5087
        %v5199 = vpop.f32.mrf.mxu0
        %v5200 = vadd.f32 0.0, %v5199
        %5201 = vmatmul.f32.gmra.mxu0 %v5090
        %v5202 = vpop.f32.mrf.mxu0
        %v5203 = vadd.f32 0.0, %v5202
        %5204 = vmatmul.f32.gmra.mxu0 %v5093
        %v5205 = vpop.f32.mrf.mxu0
        %v5206 = vadd.f32 0.0, %v5205
        %5207 = vmatmul.f32.gmra.mxu0 %v5096
        %v5208 = vpop.f32.mrf.mxu0
        %v5209 = vadd.f32 0.0, %v5208
        %5210 = vmatmul.f32.gmra.mxu0 %v5099
        %v5211 = vpop.f32.mrf.mxu0
        %v5212 = vadd.f32 0.0, %v5211
        %5213 = vmatmul.f32.gmra.mxu0 %v5102
        %v5214 = vpop.f32.mrf.mxu0
        %v5215 = vadd.f32 0.0, %v5214
        %5216 = vmatmul.f32.gmra.mxu0 %v5105
        %v5217 = vpop.f32.mrf.mxu0
        %v5218 = vadd.f32 0.0, %v5217
        %5219 = vmatmul.f32.gmra.mxu0 %v5108
        %v5220 = vpop.f32.mrf.mxu0
        %v5221 = vadd.f32 0.0, %v5220
        %5222 = vmatmul.f32.gmra.mxu0 %v5111
        %v5223 = vpop.f32.mrf.mxu0
        %v5224 = vadd.f32 0.0, %v5223
        %5225 = vmatmul.f32.gmra.mxu0 %v5114
        %v5226 = vpop.f32.mrf.mxu0
        %v5227 = vadd.f32 0.0, %v5226
        %5228 = vmatmul.f32.gmra.mxu0 %v5117
        %v5229 = vpop.f32.mrf.mxu0
        %v5230 = vadd.f32 0.0, %v5229
        %5231 = vmatmul.f32.gmra.mxu0 %v5120
        %v5232 = vpop.f32.mrf.mxu0
        %v5233 = vadd.f32 0.0, %v5232
        %5234 = vmatmul.f32.gmra.mxu0 %v5123
        %v5235 = vpop.f32.mrf.mxu0
        %v5236 = vadd.f32 0.0, %v5235
        %5237 = vmatmul.f32.gmra.mxu0 %v5126
        %v5238 = vpop.f32.mrf.mxu0
        %v5239 = vadd.f32 0.0, %v5238
        %5240 = vmatmul.f32.gmra.mxu0 %v5129
        %v5241 = vpop.f32.mrf.mxu0
        %v5242 = vadd.f32 0.0, %v5241
        %5243 = vmatmul.f32.gmra.mxu0 %v5132
        %v5244 = vpop.f32.mrf.mxu0
        %v5245 = vadd.f32 0.0, %v5244
        %5246 = vmatmul.f32.gmra.mxu0 %v5135
        %v5247 = vpop.f32.mrf.mxu0
        %v5248 = vadd.f32 0.0, %v5247
        %5249 = vmatmul.f32.gmra.mxu0 %v5138
        %v5250 = vpop.f32.mrf.mxu0
        %v5251 = vadd.f32 0.0, %v5250
        %5252 = vmatmul.f32.gmra.mxu0 %v5141
        %v5253 = vpop.f32.mrf.mxu0
        %v5254 = vadd.f32 0.0, %v5253
        %5255 = vdwg.mxu0
        %v5256 = vadd.f32 %v4983, %v5161
        %v5257 = vadd.f32 %v4984, %v5164
        %v5258 = vadd.f32 %v4985, %v5167
        %v5259 = vadd.f32 %v4986, %v5170
        %v5260 = vadd.f32 %v4987, %v5173
        %v5261 = vadd.f32 %v4988, %v5176
        %v5262 = vadd.f32 %v4989, %v5179
        %v5263 = vadd.f32 %v4990, %v5182
        %v5264 = vadd.f32 %v4991, %v5185
        %v5265 = vadd.f32 %v4992, %v5188
        %v5266 = vadd.f32 %v4993, %v5191
        %v5267 = vadd.f32 %v4994, %v5194
        %v5268 = vadd.f32 %v4995, %v5197
        %v5269 = vadd.f32 %v4996, %v5200
        %v5270 = vadd.f32 %v4997, %v5203
        %v5271 = vadd.f32 %v4998, %v5206
        %v5272 = vadd.f32 %v4999, %v5209
        %v5273 = vadd.f32 %v5000, %v5212
        %v5274 = vadd.f32 %v5001, %v5215
        %v5275 = vadd.f32 %v5002, %v5218
        %v5276 = vadd.f32 %v5003, %v5221
        %v5277 = vadd.f32 %v5004, %v5224
        %v5278 = vadd.f32 %v5005, %v5227
        %v5279 = vadd.f32 %v5006, %v5230
        %v5280 = vadd.f32 %v5007, %v5233
        %v5281 = vadd.f32 %v5008, %v5236
        %v5282 = vadd.f32 %v5009, %v5239
        %v5283 = vadd.f32 %v5010, %v5242
        %v5284 = vadd.f32 %v5011, %v5245
        %v5285 = vadd.f32 %v5012, %v5248
        %v5286 = vadd.f32 %v5013, %v5251
        %v5287 = vadd.f32 %v5014, %v5254
        %v5288 = vld [vmem:[%s2328] sm:$0xff]
        %v5289 = vld [vmem:[%s2328 + $0x8] sm:$0xff]
        %v5290 = vld [vmem:[%s2328 + $0x18] sm:$0xff]
        %v5291 = vld [vmem:[%s2328 + $0x20] sm:$0xff]
        %v5292 = vld [vmem:[%s2328 + $0x30] sm:$0xff]
        %v5293 = vld [vmem:[%s2328 + $0x38] sm:$0xff]
        %v5294 = vld [vmem:[%s2328 + $0x48] sm:$0xff]
        %v5295 = vld [vmem:[%s2328 + $0x50] sm:$0xff]
        %v5296 = vld [vmem:[%s2328 + $0x60] sm:$0xff]
        %v5297 = vld [vmem:[%s2328 + $0x68] sm:$0xff]
        %v5298 = vld [vmem:[%s2328 + $0x78] sm:$0xff]
        %v5299 = vld [vmem:[%s2328 + $0x80] sm:$0xff]
        %v5300 = vld [vmem:[%s2328 + $0x90] sm:$0xff]
        %v5301 = vld [vmem:[%s2328 + $0x98] sm:$0xff]
        %v5302 = vld [vmem:[%s2328 + $0xa8] sm:$0xff]
        %v5303 = vld [vmem:[%s2328 + $0xb0] sm:$0xff]
        %v5304 = vld [vmem:[%s2328 + $0xc0] sm:$0xff]
        %v5305 = vld [vmem:[%s2328 + $0xc8] sm:$0xff]
        %v5306 = vld [vmem:[%s2328 + $0xd8] sm:$0xff]
        %v5307 = vld [vmem:[%s2328 + $0xe0] sm:$0xff]
        %v5308 = vld [vmem:[%s2328 + $0xf0] sm:$0xff]
        %v5309 = vld [vmem:[%s2328 + $0xf8] sm:$0xff]
        %v5310 = vld [vmem:[%s2328 + $0x108] sm:$0xff]
        %v5311 = vld [vmem:[%s2328 + $0x110] sm:$0xff]
        %v5312 = vld [vmem:[%s2328 + $0x120] sm:$0xff]
        %v5313 = vld [vmem:[%s2328 + $0x128] sm:$0xff]
        %v5314 = vld [vmem:[%s2328 + $0x138] sm:$0xff]
        %v5315 = vld [vmem:[%s2328 + $0x140] sm:$0xff]
        %v5316 = vld [vmem:[%s2328 + $0x150] sm:$0xff]
        %v5317 = vld [vmem:[%s2328 + $0x158] sm:$0xff]
        %v5318 = vld [vmem:[%s2328 + $0x168] sm:$0xff]
        %v5319 = vld [vmem:[%s2328 + $0x170] sm:$0xff]
        %v5321 = vsel %vm484, %v5288, 0
        %v5324 = vsel %vm484, %v5289, 0
        %v5327 = vsel %vm484, %v5290, 0
        %v5330 = vsel %vm484, %v5291, 0
        %v5333 = vsel %vm484, %v5292, 0
        %v5336 = vsel %vm484, %v5293, 0
        %v5339 = vsel %vm484, %v5294, 0
        %v5342 = vsel %vm484, %v5295, 0
        %v5345 = vsel %vm484, %v5296, 0
        %v5348 = vsel %vm484, %v5297, 0
        %v5351 = vsel %vm484, %v5298, 0
        %v5354 = vsel %vm484, %v5299, 0
        %v5357 = vsel %vm484, %v5300, 0
        %v5360 = vsel %vm484, %v5301, 0
        %v5363 = vsel %vm484, %v5302, 0
        %v5366 = vsel %vm484, %v5303, 0
        %v5369 = vsel %vm484, %v5304, 0
        %v5372 = vsel %vm484, %v5305, 0
        %v5375 = vsel %vm484, %v5306, 0
        %v5378 = vsel %vm484, %v5307, 0
        %v5381 = vsel %vm484, %v5308, 0
        %v5384 = vsel %vm484, %v5309, 0
        %v5387 = vsel %vm484, %v5310, 0
        %v5390 = vsel %vm484, %v5311, 0
        %v5393 = vsel %vm484, %v5312, 0
        %v5396 = vsel %vm484, %v5313, 0
        %v5399 = vsel %vm484, %v5314, 0
        %v5402 = vsel %vm484, %v5315, 0
        %v5405 = vsel %vm484, %v5316, 0
        %v5408 = vsel %vm484, %v5317, 0
        %v5411 = vsel %vm484, %v5318, 0
        %v5414 = vsel %vm484, %v5319, 0
        %5416 = vmatpush.msra.mxu0 0.0
        %5417 = vmatpush.msra.mxu0 0.0
        %5418 = vmatpush.msra.mxu0 0.0
        %5419 = vmatpush.msra.mxu0 0.0
        %5420 = vmatpush.msra.mxu0 0.0
        %5421 = vmatpush.msra.mxu0 0.0
        %5422 = vmatpush.msra.mxu0 0.0
        %5423 = vmatpush.msra.mxu0 0.0
        %5424 = vmatpush.msra.mxu0 0.0
        %5425 = vmatpush.msra.mxu0 0.0
        %5426 = vmatpush.msra.mxu0 0.0
        %5427 = vmatpush.msra.mxu0 0.0
        %5428 = vmatpush.msra.mxu0 %v667
        %5429 = vmatpush.msra.mxu0 %v666
        %5430 = vmatpush.msra.mxu0 %v665
        %5431 = vmatpush.msra.mxu0 %v664
        %5432 = vmatmul.f32.gmra.mxu0 %v5321
        %v5433 = vpop.f32.mrf.mxu0
        %v5434 = vadd.f32 0.0, %v5433
        %5435 = vmatmul.f32.gmra.mxu0 %v5324
        %v5436 = vpop.f32.mrf.mxu0
        %v5437 = vadd.f32 0.0, %v5436
        %5438 = vmatmul.f32.gmra.mxu0 %v5327
        %v5439 = vpop.f32.mrf.mxu0
        %v5440 = vadd.f32 0.0, %v5439
        %5441 = vmatmul.f32.gmra.mxu0 %v5330
        %v5442 = vpop.f32.mrf.mxu0
        %v5443 = vadd.f32 0.0, %v5442
        %5444 = vmatmul.f32.gmra.mxu0 %v5333
        %v5445 = vpop.f32.mrf.mxu0
        %v5446 = vadd.f32 0.0, %v5445
        %5447 = vmatmul.f32.gmra.mxu0 %v5336
        %v5448 = vpop.f32.mrf.mxu0
        %v5449 = vadd.f32 0.0, %v5448
        %5450 = vmatmul.f32.gmra.mxu0 %v5339
        %v5451 = vpop.f32.mrf.mxu0
        %v5452 = vadd.f32 0.0, %v5451
        %5453 = vmatmul.f32.gmra.mxu0 %v5342
        %v5454 = vpop.f32.mrf.mxu0
        %v5455 = vadd.f32 0.0, %v5454
        %5456 = vmatmul.f32.gmra.mxu0 %v5345
        %v5457 = vpop.f32.mrf.mxu0
        %v5458 = vadd.f32 0.0, %v5457
        %5459 = vmatmul.f32.gmra.mxu0 %v5348
        %v5460 = vpop.f32.mrf.mxu0
        %v5461 = vadd.f32 0.0, %v5460
        %5462 = vmatmul.f32.gmra.mxu0 %v5351
        %v5463 = vpop.f32.mrf.mxu0
        %v5464 = vadd.f32 0.0, %v5463
        %5465 = vmatmul.f32.gmra.mxu0 %v5354
        %v5466 = vpop.f32.mrf.mxu0
        %v5467 = vadd.f32 0.0, %v5466
        %5468 = vmatmul.f32.gmra.mxu0 %v5357
        %v5469 = vpop.f32.mrf.mxu0
        %v5470 = vadd.f32 0.0, %v5469
        %5471 = vmatmul.f32.gmra.mxu0 %v5360
        %v5472 = vpop.f32.mrf.mxu0
        %v5473 = vadd.f32 0.0, %v5472
        %5474 = vmatmul.f32.gmra.mxu0 %v5363
        %v5475 = vpop.f32.mrf.mxu0
        %v5476 = vadd.f32 0.0, %v5475
        %5477 = vmatmul.f32.gmra.mxu0 %v5366
        %v5478 = vpop.f32.mrf.mxu0
        %v5479 = vadd.f32 0.0, %v5478
        %5480 = vmatmul.f32.gmra.mxu0 %v5369
        %v5481 = vpop.f32.mrf.mxu0
        %v5482 = vadd.f32 0.0, %v5481
        %5483 = vmatmul.f32.gmra.mxu0 %v5372
        %v5484 = vpop.f32.mrf.mxu0
        %v5485 = vadd.f32 0.0, %v5484
        %5486 = vmatmul.f32.gmra.mxu0 %v5375
        %v5487 = vpop.f32.mrf.mxu0
        %v5488 = vadd.f32 0.0, %v5487
        %5489 = vmatmul.f32.gmra.mxu0 %v5378
        %v5490 = vpop.f32.mrf.mxu0
        %v5491 = vadd.f32 0.0, %v5490
        %5492 = vmatmul.f32.gmra.mxu0 %v5381
        %v5493 = vpop.f32.mrf.mxu0
        %v5494 = vadd.f32 0.0, %v5493
        %5495 = vmatmul.f32.gmra.mxu0 %v5384
        %v5496 = vpop.f32.mrf.mxu0
        %v5497 = vadd.f32 0.0, %v5496
        %5498 = vmatmul.f32.gmra.mxu0 %v5387
        %v5499 = vpop.f32.mrf.mxu0
        %v5500 = vadd.f32 0.0, %v5499
        %5501 = vmatmul.f32.gmra.mxu0 %v5390
        %v5502 = vpop.f32.mrf.mxu0
        %v5503 = vadd.f32 0.0, %v5502
        %5504 = vmatmul.f32.gmra.mxu0 %v5393
        %v5505 = vpop.f32.mrf.mxu0
        %v5506 = vadd.f32 0.0, %v5505
        %5507 = vmatmul.f32.gmra.mxu0 %v5396
        %v5508 = vpop.f32.mrf.mxu0
        %v5509 = vadd.f32 0.0, %v5508
        %5510 = vmatmul.f32.gmra.mxu0 %v5399
        %v5511 = vpop.f32.mrf.mxu0
        %v5512 = vadd.f32 0.0, %v5511
        %5513 = vmatmul.f32.gmra.mxu0 %v5402
        %v5514 = vpop.f32.mrf.mxu0
        %v5515 = vadd.f32 0.0, %v5514
        %5516 = vmatmul.f32.gmra.mxu0 %v5405
        %v5517 = vpop.f32.mrf.mxu0
        %v5518 = vadd.f32 0.0, %v5517
        %5519 = vmatmul.f32.gmra.mxu0 %v5408
        %v5520 = vpop.f32.mrf.mxu0
        %v5521 = vadd.f32 0.0, %v5520
        %5522 = vmatmul.f32.gmra.mxu0 %v5411
        %v5523 = vpop.f32.mrf.mxu0
        %v5524 = vadd.f32 0.0, %v5523
        %5525 = vmatmul.f32.gmra.mxu0 %v5414
        %v5526 = vpop.f32.mrf.mxu0
        %v5527 = vadd.f32 0.0, %v5526
        %5528 = vdwg.mxu0
        %v5529 = vadd.f32 %v5256, %v5434
        %v5530 = vadd.f32 %v5257, %v5437
        %v5531 = vadd.f32 %v5258, %v5440
        %v5532 = vadd.f32 %v5259, %v5443
        %v5533 = vadd.f32 %v5260, %v5446
        %v5534 = vadd.f32 %v5261, %v5449
        %v5535 = vadd.f32 %v5262, %v5452
        %v5536 = vadd.f32 %v5263, %v5455
        %v5537 = vadd.f32 %v5264, %v5458
        %v5538 = vadd.f32 %v5265, %v5461
        %v5539 = vadd.f32 %v5266, %v5464
        %v5540 = vadd.f32 %v5267, %v5467
        %v5541 = vadd.f32 %v5268, %v5470
        %v5542 = vadd.f32 %v5269, %v5473
        %v5543 = vadd.f32 %v5270, %v5476
        %v5544 = vadd.f32 %v5271, %v5479
        %v5545 = vadd.f32 %v5272, %v5482
        %v5546 = vadd.f32 %v5273, %v5485
        %v5547 = vadd.f32 %v5274, %v5488
        %v5548 = vadd.f32 %v5275, %v5491
        %v5549 = vadd.f32 %v5276, %v5494
        %v5550 = vadd.f32 %v5277, %v5497
        %v5551 = vadd.f32 %v5278, %v5500
        %v5552 = vadd.f32 %v5279, %v5503
        %v5553 = vadd.f32 %v5280, %v5506
        %v5554 = vadd.f32 %v5281, %v5509
        %v5555 = vadd.f32 %v5282, %v5512
        %v5556 = vadd.f32 %v5283, %v5515
        %v5557 = vadd.f32 %v5284, %v5518
        %v5558 = vadd.f32 %v5285, %v5521
        %v5559 = vadd.f32 %v5286, %v5524
        %v5560 = vadd.f32 %v5287, %v5527
        %v5561 = vld [vmem:[%s2328 + $0x1] sm:$0xff]
        %v5562 = vld [vmem:[%s2328 + $0x9] sm:$0xff]
        %v5563 = vld [vmem:[%s2328 + $0x19] sm:$0xff]
        %v5564 = vld [vmem:[%s2328 + $0x21] sm:$0xff]
        %v5565 = vld [vmem:[%s2328 + $0x31] sm:$0xff]
        %v5566 = vld [vmem:[%s2328 + $0x39] sm:$0xff]
        %v5567 = vld [vmem:[%s2328 + $0x49] sm:$0xff]
        %v5568 = vld [vmem:[%s2328 + $0x51] sm:$0xff]
        %v5569 = vld [vmem:[%s2328 + $0x61] sm:$0xff]
        %v5570 = vld [vmem:[%s2328 + $0x69] sm:$0xff]
        %v5571 = vld [vmem:[%s2328 + $0x79] sm:$0xff]
        %v5572 = vld [vmem:[%s2328 + $0x81] sm:$0xff]
        %v5573 = vld [vmem:[%s2328 + $0x91] sm:$0xff]
        %v5574 = vld [vmem:[%s2328 + $0x99] sm:$0xff]
        %v5575 = vld [vmem:[%s2328 + $0xa9] sm:$0xff]
        %v5576 = vld [vmem:[%s2328 + $0xb1] sm:$0xff]
        %v5577 = vld [vmem:[%s2328 + $0xc1] sm:$0xff]
        %v5578 = vld [vmem:[%s2328 + $0xc9] sm:$0xff]
        %v5579 = vld [vmem:[%s2328 + $0xd9] sm:$0xff]
        %v5580 = vld [vmem:[%s2328 + $0xe1] sm:$0xff]
        %v5581 = vld [vmem:[%s2328 + $0xf1] sm:$0xff]
        %v5582 = vld [vmem:[%s2328 + $0xf9] sm:$0xff]
        %v5583 = vld [vmem:[%s2328 + $0x109] sm:$0xff]
        %v5584 = vld [vmem:[%s2328 + $0x111] sm:$0xff]
        %v5585 = vld [vmem:[%s2328 + $0x121] sm:$0xff]
        %v5586 = vld [vmem:[%s2328 + $0x129] sm:$0xff]
        %v5587 = vld [vmem:[%s2328 + $0x139] sm:$0xff]
        %v5588 = vld [vmem:[%s2328 + $0x141] sm:$0xff]
        %v5589 = vld [vmem:[%s2328 + $0x151] sm:$0xff]
        %v5590 = vld [vmem:[%s2328 + $0x159] sm:$0xff]
        %v5591 = vld [vmem:[%s2328 + $0x169] sm:$0xff]
        %v5592 = vld [vmem:[%s2328 + $0x171] sm:$0xff]
        %v5594 = vsel %vm484, %v5561, 0
        %v5597 = vsel %vm484, %v5562, 0
        %v5600 = vsel %vm484, %v5563, 0
        %v5603 = vsel %vm484, %v5564, 0
        %v5606 = vsel %vm484, %v5565, 0
        %v5609 = vsel %vm484, %v5566, 0
        %v5612 = vsel %vm484, %v5567, 0
        %v5615 = vsel %vm484, %v5568, 0
        %v5618 = vsel %vm484, %v5569, 0
        %v5621 = vsel %vm484, %v5570, 0
        %v5624 = vsel %vm484, %v5571, 0
        %v5627 = vsel %vm484, %v5572, 0
        %v5630 = vsel %vm484, %v5573, 0
        %v5633 = vsel %vm484, %v5574, 0
        %v5636 = vsel %vm484, %v5575, 0
        %v5639 = vsel %vm484, %v5576, 0
        %v5642 = vsel %vm484, %v5577, 0
        %v5645 = vsel %vm484, %v5578, 0
        %v5648 = vsel %vm484, %v5579, 0
        %v5651 = vsel %vm484, %v5580, 0
        %v5654 = vsel %vm484, %v5581, 0
        %v5657 = vsel %vm484, %v5582, 0
        %v5660 = vsel %vm484, %v5583, 0
        %v5663 = vsel %vm484, %v5584, 0
        %v5666 = vsel %vm484, %v5585, 0
        %v5669 = vsel %vm484, %v5586, 0
        %v5672 = vsel %vm484, %v5587, 0
        %v5675 = vsel %vm484, %v5588, 0
        %v5678 = vsel %vm484, %v5589, 0
        %v5681 = vsel %vm484, %v5590, 0
        %v5684 = vsel %vm484, %v5591, 0
        %v5687 = vsel %vm484, %v5592, 0
        %5689 = vmatpush.msra.mxu0 0.0
        %5690 = vmatpush.msra.mxu0 0.0
        %5691 = vmatpush.msra.mxu0 0.0
        %5692 = vmatpush.msra.mxu0 0.0
        %5693 = vmatpush.msra.mxu0 0.0
        %5694 = vmatpush.msra.mxu0 0.0
        %5695 = vmatpush.msra.mxu0 0.0
        %5696 = vmatpush.msra.mxu0 0.0
        %5697 = vmatpush.msra.mxu0 0.0
        %5698 = vmatpush.msra.mxu0 0.0
        %5699 = vmatpush.msra.mxu0 0.0
        %5700 = vmatpush.msra.mxu0 0.0
        %5701 = vmatpush.msra.mxu0 %v671
        %5702 = vmatpush.msra.mxu0 %v670
        %5703 = vmatpush.msra.mxu0 %v669
        %5704 = vmatpush.msra.mxu0 %v668
        %5705 = vmatmul.f32.gmra.mxu0 %v5594
        %v5706 = vpop.f32.mrf.mxu0
        %v5707 = vadd.f32 0.0, %v5706
        %5708 = vmatmul.f32.gmra.mxu0 %v5597
        %v5709 = vpop.f32.mrf.mxu0
        %v5710 = vadd.f32 0.0, %v5709
        %5711 = vmatmul.f32.gmra.mxu0 %v5600
        %v5712 = vpop.f32.mrf.mxu0
        %v5713 = vadd.f32 0.0, %v5712
        %5714 = vmatmul.f32.gmra.mxu0 %v5603
        %v5715 = vpop.f32.mrf.mxu0
        %v5716 = vadd.f32 0.0, %v5715
        %5717 = vmatmul.f32.gmra.mxu0 %v5606
        %v5718 = vpop.f32.mrf.mxu0
        %v5719 = vadd.f32 0.0, %v5718
        %5720 = vmatmul.f32.gmra.mxu0 %v5609
        %v5721 = vpop.f32.mrf.mxu0
        %v5722 = vadd.f32 0.0, %v5721
        %5723 = vmatmul.f32.gmra.mxu0 %v5612
        %v5724 = vpop.f32.mrf.mxu0
        %v5725 = vadd.f32 0.0, %v5724
        %5726 = vmatmul.f32.gmra.mxu0 %v5615
        %v5727 = vpop.f32.mrf.mxu0
        %v5728 = vadd.f32 0.0, %v5727
        %5729 = vmatmul.f32.gmra.mxu0 %v5618
        %v5730 = vpop.f32.mrf.mxu0
        %v5731 = vadd.f32 0.0, %v5730
        %5732 = vmatmul.f32.gmra.mxu0 %v5621
        %v5733 = vpop.f32.mrf.mxu0
        %v5734 = vadd.f32 0.0, %v5733
        %5735 = vmatmul.f32.gmra.mxu0 %v5624
        %v5736 = vpop.f32.mrf.mxu0
        %v5737 = vadd.f32 0.0, %v5736
        %5738 = vmatmul.f32.gmra.mxu0 %v5627
        %v5739 = vpop.f32.mrf.mxu0
        %v5740 = vadd.f32 0.0, %v5739
        %5741 = vmatmul.f32.gmra.mxu0 %v5630
        %v5742 = vpop.f32.mrf.mxu0
        %v5743 = vadd.f32 0.0, %v5742
        %5744 = vmatmul.f32.gmra.mxu0 %v5633
        %v5745 = vpop.f32.mrf.mxu0
        %v5746 = vadd.f32 0.0, %v5745
        %5747 = vmatmul.f32.gmra.mxu0 %v5636
        %v5748 = vpop.f32.mrf.mxu0
        %v5749 = vadd.f32 0.0, %v5748
        %5750 = vmatmul.f32.gmra.mxu0 %v5639
        %v5751 = vpop.f32.mrf.mxu0
        %v5752 = vadd.f32 0.0, %v5751
        %5753 = vmatmul.f32.gmra.mxu0 %v5642
        %v5754 = vpop.f32.mrf.mxu0
        %v5755 = vadd.f32 0.0, %v5754
        %5756 = vmatmul.f32.gmra.mxu0 %v5645
        %v5757 = vpop.f32.mrf.mxu0
        %v5758 = vadd.f32 0.0, %v5757
        %5759 = vmatmul.f32.gmra.mxu0 %v5648
        %v5760 = vpop.f32.mrf.mxu0
        %v5761 = vadd.f32 0.0, %v5760
        %5762 = vmatmul.f32.gmra.mxu0 %v5651
        %v5763 = vpop.f32.mrf.mxu0
        %v5764 = vadd.f32 0.0, %v5763
        %5765 = vmatmul.f32.gmra.mxu0 %v5654
        %v5766 = vpop.f32.mrf.mxu0
        %v5767 = vadd.f32 0.0, %v5766
        %5768 = vmatmul.f32.gmra.mxu0 %v5657
        %v5769 = vpop.f32.mrf.mxu0
        %v5770 = vadd.f32 0.0, %v5769
        %5771 = vmatmul.f32.gmra.mxu0 %v5660
        %v5772 = vpop.f32.mrf.mxu0
        %v5773 = vadd.f32 0.0, %v5772
        %5774 = vmatmul.f32.gmra.mxu0 %v5663
        %v5775 = vpop.f32.mrf.mxu0
        %v5776 = vadd.f32 0.0, %v5775
        %5777 = vmatmul.f32.gmra.mxu0 %v5666
        %v5778 = vpop.f32.mrf.mxu0
        %v5779 = vadd.f32 0.0, %v5778
        %5780 = vmatmul.f32.gmra.mxu0 %v5669
        %v5781 = vpop.f32.mrf.mxu0
        %v5782 = vadd.f32 0.0, %v5781
        %5783 = vmatmul.f32.gmra.mxu0 %v5672
        %v5784 = vpop.f32.mrf.mxu0
        %v5785 = vadd.f32 0.0, %v5784
        %5786 = vmatmul.f32.gmra.mxu0 %v5675
        %v5787 = vpop.f32.mrf.mxu0
        %v5788 = vadd.f32 0.0, %v5787
        %5789 = vmatmul.f32.gmra.mxu0 %v5678
        %v5790 = vpop.f32.mrf.mxu0
        %v5791 = vadd.f32 0.0, %v5790
        %5792 = vmatmul.f32.gmra.mxu0 %v5681
        %v5793 = vpop.f32.mrf.mxu0
        %v5794 = vadd.f32 0.0, %v5793
        %5795 = vmatmul.f32.gmra.mxu0 %v5684
        %v5796 = vpop.f32.mrf.mxu0
        %v5797 = vadd.f32 0.0, %v5796
        %5798 = vmatmul.f32.gmra.mxu0 %v5687
        %v5799 = vpop.f32.mrf.mxu0
        %v5800 = vadd.f32 0.0, %v5799
        %5801 = vdwg.mxu0
        %v5802 = vadd.f32 %v5529, %v5707
        %v5803 = vadd.f32 %v5530, %v5710
        %v5804 = vadd.f32 %v5531, %v5713
        %v5805 = vadd.f32 %v5532, %v5716
        %v5806 = vadd.f32 %v5533, %v5719
        %v5807 = vadd.f32 %v5534, %v5722
        %v5808 = vadd.f32 %v5535, %v5725
        %v5809 = vadd.f32 %v5536, %v5728
        %v5810 = vadd.f32 %v5537, %v5731
        %v5811 = vadd.f32 %v5538, %v5734
        %v5812 = vadd.f32 %v5539, %v5737
        %v5813 = vadd.f32 %v5540, %v5740
        %v5814 = vadd.f32 %v5541, %v5743
        %v5815 = vadd.f32 %v5542, %v5746
        %v5816 = vadd.f32 %v5543, %v5749
        %v5817 = vadd.f32 %v5544, %v5752
        %v5818 = vadd.f32 %v5545, %v5755
        %v5819 = vadd.f32 %v5546, %v5758
        %v5820 = vadd.f32 %v5547, %v5761
        %v5821 = vadd.f32 %v5548, %v5764
        %v5822 = vadd.f32 %v5549, %v5767
        %v5823 = vadd.f32 %v5550, %v5770
        %v5824 = vadd.f32 %v5551, %v5773
        %v5825 = vadd.f32 %v5552, %v5776
        %v5826 = vadd.f32 %v5553, %v5779
        %v5827 = vadd.f32 %v5554, %v5782
        %v5828 = vadd.f32 %v5555, %v5785
        %v5829 = vadd.f32 %v5556, %v5788
        %v5830 = vadd.f32 %v5557, %v5791
        %v5831 = vadd.f32 %v5558, %v5794
        %v5832 = vadd.f32 %v5559, %v5797
        %v5833 = vadd.f32 %v5560, %v5800
        %v5834 = vld [vmem:[%s2328 + $0x2] sm:$0xff]
        %v5835 = vld [vmem:[%s2328 + $0xa] sm:$0xff]
        %v5836 = vld [vmem:[%s2328 + $0x1a] sm:$0xff]
        %v5837 = vld [vmem:[%s2328 + $0x22] sm:$0xff]
        %v5838 = vld [vmem:[%s2328 + $0x32] sm:$0xff]
        %v5839 = vld [vmem:[%s2328 + $0x3a] sm:$0xff]
        %v5840 = vld [vmem:[%s2328 + $0x4a] sm:$0xff]
        %v5841 = vld [vmem:[%s2328 + $0x52] sm:$0xff]
        %v5842 = vld [vmem:[%s2328 + $0x62] sm:$0xff]
        %v5843 = vld [vmem:[%s2328 + $0x6a] sm:$0xff]
        %v5844 = vld [vmem:[%s2328 + $0x7a] sm:$0xff]
        %v5845 = vld [vmem:[%s2328 + $0x82] sm:$0xff]
        %v5846 = vld [vmem:[%s2328 + $0x92] sm:$0xff]
        %v5847 = vld [vmem:[%s2328 + $0x9a] sm:$0xff]
        %v5848 = vld [vmem:[%s2328 + $0xaa] sm:$0xff]
        %v5849 = vld [vmem:[%s2328 + $0xb2] sm:$0xff]
        %v5850 = vld [vmem:[%s2328 + $0xc2] sm:$0xff]
        %v5851 = vld [vmem:[%s2328 + $0xca] sm:$0xff]
        %v5852 = vld [vmem:[%s2328 + $0xda] sm:$0xff]
        %v5853 = vld [vmem:[%s2328 + $0xe2] sm:$0xff]
        %v5854 = vld [vmem:[%s2328 + $0xf2] sm:$0xff]
        %v5855 = vld [vmem:[%s2328 + $0xfa] sm:$0xff]
        %v5856 = vld [vmem:[%s2328 + $0x10a] sm:$0xff]
        %v5857 = vld [vmem:[%s2328 + $0x112] sm:$0xff]
        %v5858 = vld [vmem:[%s2328 + $0x122] sm:$0xff]
        %v5859 = vld [vmem:[%s2328 + $0x12a] sm:$0xff]
        %v5860 = vld [vmem:[%s2328 + $0x13a] sm:$0xff]
        %v5861 = vld [vmem:[%s2328 + $0x142] sm:$0xff]
        %v5862 = vld [vmem:[%s2328 + $0x152] sm:$0xff]
        %v5863 = vld [vmem:[%s2328 + $0x15a] sm:$0xff]
        %v5864 = vld [vmem:[%s2328 + $0x16a] sm:$0xff]
        %v5865 = vld [vmem:[%s2328 + $0x172] sm:$0xff]
        %v5867 = vsel %vm484, %v5834, 0
        %v5870 = vsel %vm484, %v5835, 0
        %v5873 = vsel %vm484, %v5836, 0
        %v5876 = vsel %vm484, %v5837, 0
        %v5879 = vsel %vm484, %v5838, 0
        %v5882 = vsel %vm484, %v5839, 0
        %v5885 = vsel %vm484, %v5840, 0
        %v5888 = vsel %vm484, %v5841, 0
        %v5891 = vsel %vm484, %v5842, 0
        %v5894 = vsel %vm484, %v5843, 0
        %v5897 = vsel %vm484, %v5844, 0
        %v5900 = vsel %vm484, %v5845, 0
        %v5903 = vsel %vm484, %v5846, 0
        %v5906 = vsel %vm484, %v5847, 0
        %v5909 = vsel %vm484, %v5848, 0
        %v5912 = vsel %vm484, %v5849, 0
        %v5915 = vsel %vm484, %v5850, 0
        %v5918 = vsel %vm484, %v5851, 0
        %v5921 = vsel %vm484, %v5852, 0
        %v5924 = vsel %vm484, %v5853, 0
        %v5927 = vsel %vm484, %v5854, 0
        %v5930 = vsel %vm484, %v5855, 0
        %v5933 = vsel %vm484, %v5856, 0
        %v5936 = vsel %vm484, %v5857, 0
        %v5939 = vsel %vm484, %v5858, 0
        %v5942 = vsel %vm484, %v5859, 0
        %v5945 = vsel %vm484, %v5860, 0
        %v5948 = vsel %vm484, %v5861, 0
        %v5951 = vsel %vm484, %v5862, 0
        %v5954 = vsel %vm484, %v5863, 0
        %v5957 = vsel %vm484, %v5864, 0
        %v5960 = vsel %vm484, %v5865, 0
        %5962 = vmatpush.msra.mxu0 0.0
        %5963 = vmatpush.msra.mxu0 0.0
        %5964 = vmatpush.msra.mxu0 0.0
        %5965 = vmatpush.msra.mxu0 0.0
        %5966 = vmatpush.msra.mxu0 0.0
        %5967 = vmatpush.msra.mxu0 0.0
        %5968 = vmatpush.msra.mxu0 0.0
        %5969 = vmatpush.msra.mxu0 0.0
        %5970 = vmatpush.msra.mxu0 0.0
        %5971 = vmatpush.msra.mxu0 0.0
        %5972 = vmatpush.msra.mxu0 0.0
        %5973 = vmatpush.msra.mxu0 0.0
        %5974 = vmatpush.msra.mxu0 %v675
        %5975 = vmatpush.msra.mxu0 %v674
        %5976 = vmatpush.msra.mxu0 %v673
        %5977 = vmatpush.msra.mxu0 %v672
        %5978 = vmatmul.f32.gmra.mxu0 %v5867
        %v5979 = vpop.f32.mrf.mxu0
        %v5980 = vadd.f32 0.0, %v5979
        %5981 = vmatmul.f32.gmra.mxu0 %v5870
        %v5982 = vpop.f32.mrf.mxu0
        %v5983 = vadd.f32 0.0, %v5982
        %5984 = vmatmul.f32.gmra.mxu0 %v5873
        %v5985 = vpop.f32.mrf.mxu0
        %v5986 = vadd.f32 0.0, %v5985
        %5987 = vmatmul.f32.gmra.mxu0 %v5876
        %v5988 = vpop.f32.mrf.mxu0
        %v5989 = vadd.f32 0.0, %v5988
        %5990 = vmatmul.f32.gmra.mxu0 %v5879
        %v5991 = vpop.f32.mrf.mxu0
        %v5992 = vadd.f32 0.0, %v5991
        %5993 = vmatmul.f32.gmra.mxu0 %v5882
        %v5994 = vpop.f32.mrf.mxu0
        %v5995 = vadd.f32 0.0, %v5994
        %5996 = vmatmul.f32.gmra.mxu0 %v5885
        %v5997 = vpop.f32.mrf.mxu0
        %v5998 = vadd.f32 0.0, %v5997
        %5999 = vmatmul.f32.gmra.mxu0 %v5888
        %v6000 = vpop.f32.mrf.mxu0
        %v6001 = vadd.f32 0.0, %v6000
        %6002 = vmatmul.f32.gmra.mxu0 %v5891
        %v6003 = vpop.f32.mrf.mxu0
        %v6004 = vadd.f32 0.0, %v6003
        %6005 = vmatmul.f32.gmra.mxu0 %v5894
        %v6006 = vpop.f32.mrf.mxu0
        %v6007 = vadd.f32 0.0, %v6006
        %6008 = vmatmul.f32.gmra.mxu0 %v5897
        %v6009 = vpop.f32.mrf.mxu0
        %v6010 = vadd.f32 0.0, %v6009
        %6011 = vmatmul.f32.gmra.mxu0 %v5900
        %v6012 = vpop.f32.mrf.mxu0
        %v6013 = vadd.f32 0.0, %v6012
        %6014 = vmatmul.f32.gmra.mxu0 %v5903
        %v6015 = vpop.f32.mrf.mxu0
        %v6016 = vadd.f32 0.0, %v6015
        %6017 = vmatmul.f32.gmra.mxu0 %v5906
        %v6018 = vpop.f32.mrf.mxu0
        %v6019 = vadd.f32 0.0, %v6018
        %6020 = vmatmul.f32.gmra.mxu0 %v5909
        %v6021 = vpop.f32.mrf.mxu0
        %v6022 = vadd.f32 0.0, %v6021
        %6023 = vmatmul.f32.gmra.mxu0 %v5912
        %v6024 = vpop.f32.mrf.mxu0
        %v6025 = vadd.f32 0.0, %v6024
        %6026 = vmatmul.f32.gmra.mxu0 %v5915
        %v6027 = vpop.f32.mrf.mxu0
        %v6028 = vadd.f32 0.0, %v6027
        %6029 = vmatmul.f32.gmra.mxu0 %v5918
        %v6030 = vpop.f32.mrf.mxu0
        %v6031 = vadd.f32 0.0, %v6030
        %6032 = vmatmul.f32.gmra.mxu0 %v5921
        %v6033 = vpop.f32.mrf.mxu0
        %v6034 = vadd.f32 0.0, %v6033
        %6035 = vmatmul.f32.gmra.mxu0 %v5924
        %v6036 = vpop.f32.mrf.mxu0
        %v6037 = vadd.f32 0.0, %v6036
        %6038 = vmatmul.f32.gmra.mxu0 %v5927
        %v6039 = vpop.f32.mrf.mxu0
        %v6040 = vadd.f32 0.0, %v6039
        %6041 = vmatmul.f32.gmra.mxu0 %v5930
        %v6042 = vpop.f32.mrf.mxu0
        %v6043 = vadd.f32 0.0, %v6042
        %6044 = vmatmul.f32.gmra.mxu0 %v5933
        %v6045 = vpop.f32.mrf.mxu0
        %v6046 = vadd.f32 0.0, %v6045
        %6047 = vmatmul.f32.gmra.mxu0 %v5936
        %v6048 = vpop.f32.mrf.mxu0
        %v6049 = vadd.f32 0.0, %v6048
        %6050 = vmatmul.f32.gmra.mxu0 %v5939
        %v6051 = vpop.f32.mrf.mxu0
        %v6052 = vadd.f32 0.0, %v6051
        %6053 = vmatmul.f32.gmra.mxu0 %v5942
        %v6054 = vpop.f32.mrf.mxu0
        %v6055 = vadd.f32 0.0, %v6054
        %6056 = vmatmul.f32.gmra.mxu0 %v5945
        %v6057 = vpop.f32.mrf.mxu0
        %v6058 = vadd.f32 0.0, %v6057
        %6059 = vmatmul.f32.gmra.mxu0 %v5948
        %v6060 = vpop.f32.mrf.mxu0
        %v6061 = vadd.f32 0.0, %v6060
        %6062 = vmatmul.f32.gmra.mxu0 %v5951
        %v6063 = vpop.f32.mrf.mxu0
        %v6064 = vadd.f32 0.0, %v6063
        %6065 = vmatmul.f32.gmra.mxu0 %v5954
        %v6066 = vpop.f32.mrf.mxu0
        %v6067 = vadd.f32 0.0, %v6066
        %6068 = vmatmul.f32.gmra.mxu0 %v5957
        %v6069 = vpop.f32.mrf.mxu0
        %v6070 = vadd.f32 0.0, %v6069
        %6071 = vmatmul.f32.gmra.mxu0 %v5960
        %v6072 = vpop.f32.mrf.mxu0
        %v6073 = vadd.f32 0.0, %v6072
        %6074 = vdwg.mxu0
        %v6075 = vadd.f32 %v5802, %v5980
        %v6076 = vadd.f32 %v5803, %v5983
        %v6077 = vadd.f32 %v5804, %v5986
        %v6078 = vadd.f32 %v5805, %v5989
        %v6079 = vadd.f32 %v5806, %v5992
        %v6080 = vadd.f32 %v5807, %v5995
        %v6081 = vadd.f32 %v5808, %v5998
        %v6082 = vadd.f32 %v5809, %v6001
        %v6083 = vadd.f32 %v5810, %v6004
        %v6084 = vadd.f32 %v5811, %v6007
        %v6085 = vadd.f32 %v5812, %v6010
        %v6086 = vadd.f32 %v5813, %v6013
        %v6087 = vadd.f32 %v5814, %v6016
        %v6088 = vadd.f32 %v5815, %v6019
        %v6089 = vadd.f32 %v5816, %v6022
        %v6090 = vadd.f32 %v5817, %v6025
        %v6091 = vadd.f32 %v5818, %v6028
        %v6092 = vadd.f32 %v5819, %v6031
        %v6093 = vadd.f32 %v5820, %v6034
        %v6094 = vadd.f32 %v5821, %v6037
        %v6095 = vadd.f32 %v5822, %v6040
        %v6096 = vadd.f32 %v5823, %v6043
        %v6097 = vadd.f32 %v5824, %v6046
        %v6098 = vadd.f32 %v5825, %v6049
        %v6099 = vadd.f32 %v5826, %v6052
        %v6100 = vadd.f32 %v5827, %v6055
        %v6101 = vadd.f32 %v5828, %v6058
        %v6102 = vadd.f32 %v5829, %v6061
        %v6103 = vadd.f32 %v5830, %v6064
        %v6104 = vadd.f32 %v5831, %v6067
        %v6105 = vadd.f32 %v5832, %v6070
        %v6106 = vadd.f32 %v5833, %v6073
        %v6108 = vperm.slane %v687, 0
        %v6110 = vadd.f32 %v6075, %v6108
        %v6111 = vadd.f32 %v6076, %v6108
        %v6112 = vadd.f32 %v6077, %v6108
        %v6113 = vadd.f32 %v6078, %v6108
        %v6114 = vadd.f32 %v6079, %v6108
        %v6115 = vadd.f32 %v6080, %v6108
        %v6116 = vadd.f32 %v6081, %v6108
        %v6117 = vadd.f32 %v6082, %v6108
        %v6118 = vadd.f32 %v6083, %v6108
        %v6119 = vadd.f32 %v6084, %v6108
        %v6120 = vadd.f32 %v6085, %v6108
        %v6121 = vadd.f32 %v6086, %v6108
        %v6122 = vadd.f32 %v6087, %v6108
        %v6123 = vadd.f32 %v6088, %v6108
        %v6124 = vadd.f32 %v6089, %v6108
        %v6125 = vadd.f32 %v6090, %v6108
        %v6126 = vadd.f32 %v6091, %v6108
        %v6127 = vadd.f32 %v6092, %v6108
        %v6128 = vadd.f32 %v6093, %v6108
        %v6129 = vadd.f32 %v6094, %v6108
        %v6130 = vadd.f32 %v6095, %v6108
        %v6131 = vadd.f32 %v6096, %v6108
        %v6132 = vadd.f32 %v6097, %v6108
        %v6133 = vadd.f32 %v6098, %v6108
        %v6134 = vadd.f32 %v6099, %v6108
        %v6135 = vadd.f32 %v6100, %v6108
        %v6136 = vadd.f32 %v6101, %v6108
        %v6137 = vadd.f32 %v6102, %v6108
        %v6138 = vadd.f32 %v6103, %v6108
        %v6139 = vadd.f32 %v6104, %v6108
        %v6140 = vadd.f32 %v6105, %v6108
        %v6141 = vadd.f32 %v6106, %v6108
        %v6142 = vmax.f32 %v6110, 0.0
        %v6143 = vmax.f32 %v6111, 0.0
        %v6144 = vmax.f32 %v6112, 0.0
        %v6145 = vmax.f32 %v6113, 0.0
        %v6146 = vmax.f32 %v6114, 0.0
        %v6147 = vmax.f32 %v6115, 0.0
        %v6148 = vmax.f32 %v6116, 0.0
        %v6149 = vmax.f32 %v6117, 0.0
        %v6150 = vmax.f32 %v6118, 0.0
        %v6151 = vmax.f32 %v6119, 0.0
        %v6152 = vmax.f32 %v6120, 0.0
        %v6153 = vmax.f32 %v6121, 0.0
        %v6154 = vmax.f32 %v6122, 0.0
        %v6155 = vmax.f32 %v6123, 0.0
        %v6156 = vmax.f32 %v6124, 0.0
        %v6157 = vmax.f32 %v6125, 0.0
        %v6158 = vmax.f32 %v6126, 0.0
        %v6159 = vmax.f32 %v6127, 0.0
        %v6160 = vmax.f32 %v6128, 0.0
        %v6161 = vmax.f32 %v6129, 0.0
        %v6162 = vmax.f32 %v6130, 0.0
        %v6163 = vmax.f32 %v6131, 0.0
        %v6164 = vmax.f32 %v6132, 0.0
        %v6165 = vmax.f32 %v6133, 0.0
        %v6166 = vmax.f32 %v6134, 0.0
        %v6167 = vmax.f32 %v6135, 0.0
        %v6168 = vmax.f32 %v6136, 0.0
        %v6169 = vmax.f32 %v6137, 0.0
        %v6170 = vmax.f32 %v6138, 0.0
        %v6171 = vmax.f32 %v6139, 0.0
        %v6172 = vmax.f32 %v6140, 0.0
        %v6173 = vmax.f32 %v6141, 0.0
        %s6174 = scalar_lea.vmem [#allocation3], 24
        %6175 = vst.msk [vmem:[%s6174 + $0x1] sm:$0xff] %vm540, %v6142
        %6176 = vst.msk [vmem:[%s6174 + $0x9] sm:$0xff] %vm540, %v6143
        %s6177 = scalar_lea.vmem [#allocation3], 48
        %6178 = vst.msk [vmem:[%s6177 + $0x1] sm:$0xff] %vm540, %v6144
        %6179 = vst.msk [vmem:[%s6177 + $0x9] sm:$0xff] %vm540, %v6145
        %s6180 = scalar_lea.vmem [#allocation3], 72
        %6181 = vst.msk [vmem:[%s6180 + $0x1] sm:$0xff] %vm540, %v6146
        %6182 = vst.msk [vmem:[%s6180 + $0x9] sm:$0xff] %vm540, %v6147
        %s6183 = scalar_lea.vmem [#allocation3], 96
        %6184 = vst.msk [vmem:[%s6183 + $0x1] sm:$0xff] %vm540, %v6148
        %6185 = vst.msk [vmem:[%s6183 + $0x9] sm:$0xff] %vm540, %v6149
        %s6186 = scalar_lea.vmem [#allocation3], 120
        %6187 = vst.msk [vmem:[%s6186 + $0x1] sm:$0xff] %vm540, %v6150
        %6188 = vst.msk [vmem:[%s6186 + $0x9] sm:$0xff] %vm540, %v6151
        %s6189 = scalar_lea.vmem [#allocation3], 144
        %6190 = vst.msk [vmem:[%s6189 + $0x1] sm:$0xff] %vm540, %v6152
        %6191 = vst.msk [vmem:[%s6189 + $0x9] sm:$0xff] %vm540, %v6153
        %s6192 = scalar_lea.vmem [#allocation3], 168
        %6193 = vst.msk [vmem:[%s6192 + $0x1] sm:$0xff] %vm540, %v6154
        %6194 = vst.msk [vmem:[%s6192 + $0x9] sm:$0xff] %vm540, %v6155
        %s6195 = scalar_lea.vmem [#allocation3], 192
        %6196 = vst.msk [vmem:[%s6195 + $0x1] sm:$0xff] %vm540, %v6156
        %6197 = vst.msk [vmem:[%s6195 + $0x9] sm:$0xff] %vm540, %v6157
        %s6198 = scalar_lea.vmem [#allocation3], 216
        %6199 = vst.msk [vmem:[%s6198 + $0x1] sm:$0xff] %vm540, %v6158
        %6200 = vst.msk [vmem:[%s6198 + $0x9] sm:$0xff] %vm540, %v6159
        %s6201 = scalar_lea.vmem [#allocation3], 240
        %6202 = vst.msk [vmem:[%s6201 + $0x1] sm:$0xff] %vm540, %v6160
        %6203 = vst.msk [vmem:[%s6201 + $0x9] sm:$0xff] %vm540, %v6161
        %s6204 = scalar_lea.vmem [#allocation3], 264
        %6205 = vst.msk [vmem:[%s6204 + $0x1] sm:$0xff] %vm540, %v6162
        %6206 = vst.msk [vmem:[%s6204 + $0x9] sm:$0xff] %vm540, %v6163
        %s6207 = scalar_lea.vmem [#allocation3], 288
        %6208 = vst.msk [vmem:[%s6207 + $0x1] sm:$0xff] %vm540, %v6164
        %6209 = vst.msk [vmem:[%s6207 + $0x9] sm:$0xff] %vm540, %v6165
        %s6210 = scalar_lea.vmem [#allocation3], 312
        %6211 = vst.msk [vmem:[%s6210 + $0x1] sm:$0xff] %vm540, %v6166
        %6212 = vst.msk [vmem:[%s6210 + $0x9] sm:$0xff] %vm540, %v6167
        %s6213 = scalar_lea.vmem [#allocation3], 336
        %6214 = vst.msk [vmem:[%s6213 + $0x1] sm:$0xff] %vm540, %v6168
        %6215 = vst.msk [vmem:[%s6213 + $0x9] sm:$0xff] %vm540, %v6169
        %s6216 = scalar_lea.vmem [#allocation3], 360
        %6217 = vst.msk [vmem:[%s6216 + $0x1] sm:$0xff] %vm540, %v6170
        %6218 = vst.msk [vmem:[%s6216 + $0x9] sm:$0xff] %vm540, %v6171
        %s6219 = scalar_lea.vmem [#allocation3], 384
        %6220 = vst.msk [vmem:[%s6219 + $0x1] sm:$0xff] %vm540, %v6172
        %6221 = vst.msk [vmem:[%s6219 + $0x9] sm:$0xff] %vm540, %v6173
        %v6222 = vld [vmem:[#allocation3] sm:$0xff]
        %v6223 = vld [vmem:[#allocation3 + $0x8] sm:$0xff]
        %v6224 = vld [vmem:[#allocation3 + $0x18] sm:$0xff]
        %v6225 = vld [vmem:[#allocation3 + $0x20] sm:$0xff]
        %v6226 = vld [vmem:[#allocation3 + $0x30] sm:$0xff]
        %v6227 = vld [vmem:[#allocation3 + $0x38] sm:$0xff]
        %v6228 = vld [vmem:[#allocation3 + $0x48] sm:$0xff]
        %v6229 = vld [vmem:[#allocation3 + $0x50] sm:$0xff]
        %v6230 = vld [vmem:[#allocation3 + $0x60] sm:$0xff]
        %v6231 = vld [vmem:[#allocation3 + $0x68] sm:$0xff]
        %v6232 = vld [vmem:[#allocation3 + $0x78] sm:$0xff]
        %v6233 = vld [vmem:[#allocation3 + $0x80] sm:$0xff]
        %v6234 = vld [vmem:[#allocation3 + $0x90] sm:$0xff]
        %v6235 = vld [vmem:[#allocation3 + $0x98] sm:$0xff]
        %v6236 = vld [vmem:[#allocation3 + $0xa8] sm:$0xff]
        %v6237 = vld [vmem:[#allocation3 + $0xb0] sm:$0xff]
        %v6238 = vld [vmem:[#allocation3 + $0xc0] sm:$0xff]
        %v6239 = vld [vmem:[#allocation3 + $0xc8] sm:$0xff]
        %v6240 = vld [vmem:[#allocation3 + $0xd8] sm:$0xff]
        %v6241 = vld [vmem:[#allocation3 + $0xe0] sm:$0xff]
        %v6242 = vld [vmem:[#allocation3 + $0xf0] sm:$0xff]
        %v6243 = vld [vmem:[#allocation3 + $0xf8] sm:$0xff]
        %v6244 = vld [vmem:[#allocation3 + $0x108] sm:$0xff]
        %v6245 = vld [vmem:[#allocation3 + $0x110] sm:$0xff]
        %v6246 = vld [vmem:[#allocation3 + $0x120] sm:$0xff]
        %v6247 = vld [vmem:[#allocation3 + $0x128] sm:$0xff]
        %v6248 = vld [vmem:[#allocation3 + $0x138] sm:$0xff]
        %v6249 = vld [vmem:[#allocation3 + $0x140] sm:$0xff]
        %v6250 = vld [vmem:[#allocation3 + $0x150] sm:$0xff]
        %v6251 = vld [vmem:[#allocation3 + $0x158] sm:$0xff]
        %v6252 = vld [vmem:[#allocation3 + $0x168] sm:$0xff]
        %v6253 = vld [vmem:[#allocation3 + $0x170] sm:$0xff]
        %v6254 = vld [vmem:[#allocation3 + $0x1] sm:$0xff]
        %v6255 = vld [vmem:[#allocation3 + $0x9] sm:$0xff]
        %v6256 = vld [vmem:[#allocation3 + $0x19] sm:$0xff]
        %v6257 = vld [vmem:[#allocation3 + $0x21] sm:$0xff]
        %v6258 = vld [vmem:[#allocation3 + $0x31] sm:$0xff]
        %v6259 = vld [vmem:[#allocation3 + $0x39] sm:$0xff]
        %v6260 = vld [vmem:[#allocation3 + $0x49] sm:$0xff]
        %v6261 = vld [vmem:[#allocation3 + $0x51] sm:$0xff]
        %v6262 = vld [vmem:[#allocation3 + $0x61] sm:$0xff]
        %v6263 = vld [vmem:[#allocation3 + $0x69] sm:$0xff]
        %v6264 = vld [vmem:[#allocation3 + $0x79] sm:$0xff]
        %v6265 = vld [vmem:[#allocation3 + $0x81] sm:$0xff]
        %v6266 = vld [vmem:[#allocation3 + $0x91] sm:$0xff]
        %v6267 = vld [vmem:[#allocation3 + $0x99] sm:$0xff]
        %v6268 = vld [vmem:[#allocation3 + $0xa9] sm:$0xff]
        %v6269 = vld [vmem:[#allocation3 + $0xb1] sm:$0xff]
        %v6270 = vld [vmem:[#allocation3 + $0xc1] sm:$0xff]
        %v6271 = vld [vmem:[#allocation3 + $0xc9] sm:$0xff]
        %v6272 = vld [vmem:[#allocation3 + $0xd9] sm:$0xff]
        %v6273 = vld [vmem:[#allocation3 + $0xe1] sm:$0xff]
        %v6274 = vld [vmem:[#allocation3 + $0xf1] sm:$0xff]
        %v6275 = vld [vmem:[#allocation3 + $0xf9] sm:$0xff]
        %v6276 = vld [vmem:[#allocation3 + $0x109] sm:$0xff]
        %v6277 = vld [vmem:[#allocation3 + $0x111] sm:$0xff]
        %v6278 = vld [vmem:[#allocation3 + $0x121] sm:$0xff]
        %v6279 = vld [vmem:[#allocation3 + $0x129] sm:$0xff]
        %v6280 = vld [vmem:[#allocation3 + $0x139] sm:$0xff]
        %v6281 = vld [vmem:[#allocation3 + $0x141] sm:$0xff]
        %v6282 = vld [vmem:[#allocation3 + $0x151] sm:$0xff]
        %v6283 = vld [vmem:[#allocation3 + $0x159] sm:$0xff]
        %v6284 = vld [vmem:[#allocation3 + $0x169] sm:$0xff]
        %v6285 = vld [vmem:[#allocation3 + $0x171] sm:$0xff]
        %v6287 = vsel %vm540, %v6254, 0
        %v6290 = vsel %vm540, %v6255, 0
        %v6293 = vsel %vm540, %v6256, 0
        %v6296 = vsel %vm540, %v6257, 0
        %v6299 = vsel %vm540, %v6258, 0
        %v6302 = vsel %vm540, %v6259, 0
        %v6305 = vsel %vm540, %v6260, 0
        %v6308 = vsel %vm540, %v6261, 0
        %v6311 = vsel %vm540, %v6262, 0
        %v6314 = vsel %vm540, %v6263, 0
        %v6317 = vsel %vm540, %v6264, 0
        %v6320 = vsel %vm540, %v6265, 0
        %v6323 = vsel %vm540, %v6266, 0
        %v6326 = vsel %vm540, %v6267, 0
        %v6329 = vsel %vm540, %v6268, 0
        %v6332 = vsel %vm540, %v6269, 0
        %v6335 = vsel %vm540, %v6270, 0
        %v6338 = vsel %vm540, %v6271, 0
        %v6341 = vsel %vm540, %v6272, 0
        %v6344 = vsel %vm540, %v6273, 0
        %v6347 = vsel %vm540, %v6274, 0
        %v6350 = vsel %vm540, %v6275, 0
        %v6353 = vsel %vm540, %v6276, 0
        %v6356 = vsel %vm540, %v6277, 0
        %v6359 = vsel %vm540, %v6278, 0
        %v6362 = vsel %vm540, %v6279, 0
        %v6365 = vsel %vm540, %v6280, 0
        %v6368 = vsel %vm540, %v6281, 0
        %v6371 = vsel %vm540, %v6282, 0
        %v6374 = vsel %vm540, %v6283, 0
        %v6377 = vsel %vm540, %v6284, 0
        %v6380 = vsel %vm540, %v6285, 0
        %vm6382 = vcmask 1041408
        %v6384 = vsel %vm6382, %v677, 0
        %6386 = vmatpush.msra.mxu0 0.0
        %6387 = vmatpush.msra.mxu0 0.0
        %6388 = vmatpush.msra.mxu0 0.0
        %6389 = vmatpush.msra.mxu0 0.0
        %6390 = vmatpush.msra.mxu0 0.0
        %6391 = vmatpush.msra.mxu0 0.0
        %6392 = vmatpush.msra.mxu0 0.0
        %6393 = vmatpush.msra.mxu0 0.0
        %6394 = vmatpush.msra.mxu0 0.0
        %6395 = vmatpush.msra.mxu0 0.0
        %6396 = vmatpush.msra.mxu0 0.0
        %6397 = vmatpush.msra.mxu0 0.0
        %6398 = vmatpush.msra.mxu0 0.0
        %6399 = vmatpush.msra.mxu0 0.0
        %6400 = vmatpush.msra.mxu0 0.0
        %6401 = vmatpush.msra.mxu0 %v6384
        %6402 = vmatmul.f32.gmra.mxu0 %v6287
        %v6403 = vpop.f32.mrf.mxu0
        %v6404 = vadd.f32 0.0, %v6403
        %6405 = vmatmul.f32.gmra.mxu0 %v6290
        %v6406 = vpop.f32.mrf.mxu0
        %v6407 = vadd.f32 0.0, %v6406
        %6408 = vmatmul.f32.gmra.mxu0 %v6293
        %v6409 = vpop.f32.mrf.mxu0
        %v6410 = vadd.f32 0.0, %v6409
        %6411 = vmatmul.f32.gmra.mxu0 %v6296
        %v6412 = vpop.f32.mrf.mxu0
        %v6413 = vadd.f32 0.0, %v6412
        %6414 = vmatmul.f32.gmra.mxu0 %v6299
        %v6415 = vpop.f32.mrf.mxu0
        %v6416 = vadd.f32 0.0, %v6415
        %6417 = vmatmul.f32.gmra.mxu0 %v6302
        %v6418 = vpop.f32.mrf.mxu0
        %v6419 = vadd.f32 0.0, %v6418
        %6420 = vmatmul.f32.gmra.mxu0 %v6305
        %v6421 = vpop.f32.mrf.mxu0
        %v6422 = vadd.f32 0.0, %v6421
        %6423 = vmatmul.f32.gmra.mxu0 %v6308
        %v6424 = vpop.f32.mrf.mxu0
        %v6425 = vadd.f32 0.0, %v6424
        %6426 = vmatmul.f32.gmra.mxu0 %v6311
        %v6427 = vpop.f32.mrf.mxu0
        %v6428 = vadd.f32 0.0, %v6427
        %6429 = vmatmul.f32.gmra.mxu0 %v6314
        %v6430 = vpop.f32.mrf.mxu0
        %v6431 = vadd.f32 0.0, %v6430
        %6432 = vmatmul.f32.gmra.mxu0 %v6317
        %v6433 = vpop.f32.mrf.mxu0
        %v6434 = vadd.f32 0.0, %v6433
        %6435 = vmatmul.f32.gmra.mxu0 %v6320
        %v6436 = vpop.f32.mrf.mxu0
        %v6437 = vadd.f32 0.0, %v6436
        %6438 = vmatmul.f32.gmra.mxu0 %v6323
        %v6439 = vpop.f32.mrf.mxu0
        %v6440 = vadd.f32 0.0, %v6439
        %6441 = vmatmul.f32.gmra.mxu0 %v6326
        %v6442 = vpop.f32.mrf.mxu0
        %v6443 = vadd.f32 0.0, %v6442
        %6444 = vmatmul.f32.gmra.mxu0 %v6329
        %v6445 = vpop.f32.mrf.mxu0
        %v6446 = vadd.f32 0.0, %v6445
        %6447 = vmatmul.f32.gmra.mxu0 %v6332
        %v6448 = vpop.f32.mrf.mxu0
        %v6449 = vadd.f32 0.0, %v6448
        %6450 = vmatmul.f32.gmra.mxu0 %v6335
        %v6451 = vpop.f32.mrf.mxu0
        %v6452 = vadd.f32 0.0, %v6451
        %6453 = vmatmul.f32.gmra.mxu0 %v6338
        %v6454 = vpop.f32.mrf.mxu0
        %v6455 = vadd.f32 0.0, %v6454
        %6456 = vmatmul.f32.gmra.mxu0 %v6341
        %v6457 = vpop.f32.mrf.mxu0
        %v6458 = vadd.f32 0.0, %v6457
        %6459 = vmatmul.f32.gmra.mxu0 %v6344
        %v6460 = vpop.f32.mrf.mxu0
        %v6461 = vadd.f32 0.0, %v6460
        %6462 = vmatmul.f32.gmra.mxu0 %v6347
        %v6463 = vpop.f32.mrf.mxu0
        %v6464 = vadd.f32 0.0, %v6463
        %6465 = vmatmul.f32.gmra.mxu0 %v6350
        %v6466 = vpop.f32.mrf.mxu0
        %v6467 = vadd.f32 0.0, %v6466
        %6468 = vmatmul.f32.gmra.mxu0 %v6353
        %v6469 = vpop.f32.mrf.mxu0
        %v6470 = vadd.f32 0.0, %v6469
        %6471 = vmatmul.f32.gmra.mxu0 %v6356
        %v6472 = vpop.f32.mrf.mxu0
        %v6473 = vadd.f32 0.0, %v6472
        %6474 = vmatmul.f32.gmra.mxu0 %v6359
        %v6475 = vpop.f32.mrf.mxu0
        %v6476 = vadd.f32 0.0, %v6475
        %6477 = vmatmul.f32.gmra.mxu0 %v6362
        %v6478 = vpop.f32.mrf.mxu0
        %v6479 = vadd.f32 0.0, %v6478
        %6480 = vmatmul.f32.gmra.mxu0 %v6365
        %v6481 = vpop.f32.mrf.mxu0
        %v6482 = vadd.f32 0.0, %v6481
        %6483 = vmatmul.f32.gmra.mxu0 %v6368
        %v6484 = vpop.f32.mrf.mxu0
        %v6485 = vadd.f32 0.0, %v6484
        %6486 = vmatmul.f32.gmra.mxu0 %v6371
        %v6487 = vpop.f32.mrf.mxu0
        %v6488 = vadd.f32 0.0, %v6487
        %6489 = vmatmul.f32.gmra.mxu0 %v6374
        %v6490 = vpop.f32.mrf.mxu0
        %v6491 = vadd.f32 0.0, %v6490
        %6492 = vmatmul.f32.gmra.mxu0 %v6377
        %v6493 = vpop.f32.mrf.mxu0
        %v6494 = vadd.f32 0.0, %v6493
        %6495 = vmatmul.f32.gmra.mxu0 %v6380
        %v6496 = vpop.f32.mrf.mxu0
        %v6497 = vadd.f32 0.0, %v6496
        %6498 = vdwg.mxu0
        %v6500 = vsel %vm540, %v6222, 0
        %v6503 = vsel %vm540, %v6223, 0
        %v6506 = vsel %vm540, %v6224, 0
        %v6509 = vsel %vm540, %v6225, 0
        %v6512 = vsel %vm540, %v6226, 0
        %v6515 = vsel %vm540, %v6227, 0
        %v6518 = vsel %vm540, %v6228, 0
        %v6521 = vsel %vm540, %v6229, 0
        %v6524 = vsel %vm540, %v6230, 0
        %v6527 = vsel %vm540, %v6231, 0
        %v6530 = vsel %vm540, %v6232, 0
        %v6533 = vsel %vm540, %v6233, 0
        %v6536 = vsel %vm540, %v6234, 0
        %v6539 = vsel %vm540, %v6235, 0
        %v6542 = vsel %vm540, %v6236, 0
        %v6545 = vsel %vm540, %v6237, 0
        %v6548 = vsel %vm540, %v6238, 0
        %v6551 = vsel %vm540, %v6239, 0
        %v6554 = vsel %vm540, %v6240, 0
        %v6557 = vsel %vm540, %v6241, 0
        %v6560 = vsel %vm540, %v6242, 0
        %v6563 = vsel %vm540, %v6243, 0
        %v6566 = vsel %vm540, %v6244, 0
        %v6569 = vsel %vm540, %v6245, 0
        %v6572 = vsel %vm540, %v6246, 0
        %v6575 = vsel %vm540, %v6247, 0
        %v6578 = vsel %vm540, %v6248, 0
        %v6581 = vsel %vm540, %v6249, 0
        %v6584 = vsel %vm540, %v6250, 0
        %v6587 = vsel %vm540, %v6251, 0
        %v6590 = vsel %vm540, %v6252, 0
        %v6593 = vsel %vm540, %v6253, 0
        %v6596 = vsel %vm6382, %v676, 0
        %6598 = vmatpush.msra.mxu0 0.0
        %6599 = vmatpush.msra.mxu0 0.0
        %6600 = vmatpush.msra.mxu0 0.0
        %6601 = vmatpush.msra.mxu0 0.0
        %6602 = vmatpush.msra.mxu0 0.0
        %6603 = vmatpush.msra.mxu0 0.0
        %6604 = vmatpush.msra.mxu0 0.0
        %6605 = vmatpush.msra.mxu0 0.0
        %6606 = vmatpush.msra.mxu0 0.0
        %6607 = vmatpush.msra.mxu0 0.0
        %6608 = vmatpush.msra.mxu0 0.0
        %6609 = vmatpush.msra.mxu0 0.0
        %6610 = vmatpush.msra.mxu0 0.0
        %6611 = vmatpush.msra.mxu0 0.0
        %6612 = vmatpush.msra.mxu0 0.0
        %6613 = vmatpush.msra.mxu0 %v6596
        %6614 = vmatmul.f32.gmra.mxu0 %v6500
        %v6615 = vpop.f32.mrf.mxu0
        %v6616 = vadd.f32 %v6404, %v6615
        %6617 = vmatmul.f32.gmra.mxu0 %v6503
        %v6618 = vpop.f32.mrf.mxu0
        %v6619 = vadd.f32 %v6407, %v6618
        %6620 = vmatmul.f32.gmra.mxu0 %v6506
        %v6621 = vpop.f32.mrf.mxu0
        %v6622 = vadd.f32 %v6410, %v6621
        %6623 = vmatmul.f32.gmra.mxu0 %v6509
        %v6624 = vpop.f32.mrf.mxu0
        %v6625 = vadd.f32 %v6413, %v6624
        %6626 = vmatmul.f32.gmra.mxu0 %v6512
        %v6627 = vpop.f32.mrf.mxu0
        %v6628 = vadd.f32 %v6416, %v6627
        %6629 = vmatmul.f32.gmra.mxu0 %v6515
        %v6630 = vpop.f32.mrf.mxu0
        %v6631 = vadd.f32 %v6419, %v6630
        %6632 = vmatmul.f32.gmra.mxu0 %v6518
        %v6633 = vpop.f32.mrf.mxu0
        %v6634 = vadd.f32 %v6422, %v6633
        %6635 = vmatmul.f32.gmra.mxu0 %v6521
        %v6636 = vpop.f32.mrf.mxu0
        %v6637 = vadd.f32 %v6425, %v6636
        %6638 = vmatmul.f32.gmra.mxu0 %v6524
        %v6639 = vpop.f32.mrf.mxu0
        %v6640 = vadd.f32 %v6428, %v6639
        %6641 = vmatmul.f32.gmra.mxu0 %v6527
        %v6642 = vpop.f32.mrf.mxu0
        %v6643 = vadd.f32 %v6431, %v6642
        %6644 = vmatmul.f32.gmra.mxu0 %v6530
        %v6645 = vpop.f32.mrf.mxu0
        %v6646 = vadd.f32 %v6434, %v6645
        %6647 = vmatmul.f32.gmra.mxu0 %v6533
        %v6648 = vpop.f32.mrf.mxu0
        %v6649 = vadd.f32 %v6437, %v6648
        %6650 = vmatmul.f32.gmra.mxu0 %v6536
        %v6651 = vpop.f32.mrf.mxu0
        %v6652 = vadd.f32 %v6440, %v6651
        %6653 = vmatmul.f32.gmra.mxu0 %v6539
        %v6654 = vpop.f32.mrf.mxu0
        %v6655 = vadd.f32 %v6443, %v6654
        %6656 = vmatmul.f32.gmra.mxu0 %v6542
        %v6657 = vpop.f32.mrf.mxu0
        %v6658 = vadd.f32 %v6446, %v6657
        %6659 = vmatmul.f32.gmra.mxu0 %v6545
        %v6660 = vpop.f32.mrf.mxu0
        %v6661 = vadd.f32 %v6449, %v6660
        %6662 = vmatmul.f32.gmra.mxu0 %v6548
        %v6663 = vpop.f32.mrf.mxu0
        %v6664 = vadd.f32 %v6452, %v6663
        %6665 = vmatmul.f32.gmra.mxu0 %v6551
        %v6666 = vpop.f32.mrf.mxu0
        %v6667 = vadd.f32 %v6455, %v6666
        %6668 = vmatmul.f32.gmra.mxu0 %v6554
        %v6669 = vpop.f32.mrf.mxu0
        %v6670 = vadd.f32 %v6458, %v6669
        %6671 = vmatmul.f32.gmra.mxu0 %v6557
        %v6672 = vpop.f32.mrf.mxu0
        %v6673 = vadd.f32 %v6461, %v6672
        %6674 = vmatmul.f32.gmra.mxu0 %v6560
        %v6675 = vpop.f32.mrf.mxu0
        %v6676 = vadd.f32 %v6464, %v6675
        %6677 = vmatmul.f32.gmra.mxu0 %v6563
        %v6678 = vpop.f32.mrf.mxu0
        %v6679 = vadd.f32 %v6467, %v6678
        %6680 = vmatmul.f32.gmra.mxu0 %v6566
        %v6681 = vpop.f32.mrf.mxu0
        %v6682 = vadd.f32 %v6470, %v6681
        %6683 = vmatmul.f32.gmra.mxu0 %v6569
        %v6684 = vpop.f32.mrf.mxu0
        %v6685 = vadd.f32 %v6473, %v6684
        %6686 = vmatmul.f32.gmra.mxu0 %v6572
        %v6687 = vpop.f32.mrf.mxu0
        %v6688 = vadd.f32 %v6476, %v6687
        %6689 = vmatmul.f32.gmra.mxu0 %v6575
        %v6690 = vpop.f32.mrf.mxu0
        %v6691 = vadd.f32 %v6479, %v6690
        %6692 = vmatmul.f32.gmra.mxu0 %v6578
        %v6693 = vpop.f32.mrf.mxu0
        %v6694 = vadd.f32 %v6482, %v6693
        %6695 = vmatmul.f32.gmra.mxu0 %v6581
        %v6696 = vpop.f32.mrf.mxu0
        %v6697 = vadd.f32 %v6485, %v6696
        %6698 = vmatmul.f32.gmra.mxu0 %v6584
        %v6699 = vpop.f32.mrf.mxu0
        %v6700 = vadd.f32 %v6488, %v6699
        %6701 = vmatmul.f32.gmra.mxu0 %v6587
        %v6702 = vpop.f32.mrf.mxu0
        %v6703 = vadd.f32 %v6491, %v6702
        %6704 = vmatmul.f32.gmra.mxu0 %v6590
        %v6705 = vpop.f32.mrf.mxu0
        %v6706 = vadd.f32 %v6494, %v6705
        %6707 = vmatmul.f32.gmra.mxu0 %v6593
        %v6708 = vpop.f32.mrf.mxu0
        %v6709 = vadd.f32 %v6497, %v6708
        %6710 = vdwg.mxu0
        %v6711 = vld [vmem:[#allocation3 + $0x2] sm:$0xff]
        %v6712 = vld [vmem:[#allocation3 + $0xa] sm:$0xff]
        %v6713 = vld [vmem:[#allocation3 + $0x1a] sm:$0xff]
        %v6714 = vld [vmem:[#allocation3 + $0x22] sm:$0xff]
        %v6715 = vld [vmem:[#allocation3 + $0x32] sm:$0xff]
        %v6716 = vld [vmem:[#allocation3 + $0x3a] sm:$0xff]
        %v6717 = vld [vmem:[#allocation3 + $0x4a] sm:$0xff]
        %v6718 = vld [vmem:[#allocation3 + $0x52] sm:$0xff]
        %v6719 = vld [vmem:[#allocation3 + $0x62] sm:$0xff]
        %v6720 = vld [vmem:[#allocation3 + $0x6a] sm:$0xff]
        %v6721 = vld [vmem:[#allocation3 + $0x7a] sm:$0xff]
        %v6722 = vld [vmem:[#allocation3 + $0x82] sm:$0xff]
        %v6723 = vld [vmem:[#allocation3 + $0x92] sm:$0xff]
        %v6724 = vld [vmem:[#allocation3 + $0x9a] sm:$0xff]
        %v6725 = vld [vmem:[#allocation3 + $0xaa] sm:$0xff]
        %v6726 = vld [vmem:[#allocation3 + $0xb2] sm:$0xff]
        %v6727 = vld [vmem:[#allocation3 + $0xc2] sm:$0xff]
        %v6728 = vld [vmem:[#allocation3 + $0xca] sm:$0xff]
        %v6729 = vld [vmem:[#allocation3 + $0xda] sm:$0xff]
        %v6730 = vld [vmem:[#allocation3 + $0xe2] sm:$0xff]
        %v6731 = vld [vmem:[#allocation3 + $0xf2] sm:$0xff]
        %v6732 = vld [vmem:[#allocation3 + $0xfa] sm:$0xff]
        %v6733 = vld [vmem:[#allocation3 + $0x10a] sm:$0xff]
        %v6734 = vld [vmem:[#allocation3 + $0x112] sm:$0xff]
        %v6735 = vld [vmem:[#allocation3 + $0x122] sm:$0xff]
        %v6736 = vld [vmem:[#allocation3 + $0x12a] sm:$0xff]
        %v6737 = vld [vmem:[#allocation3 + $0x13a] sm:$0xff]
        %v6738 = vld [vmem:[#allocation3 + $0x142] sm:$0xff]
        %v6739 = vld [vmem:[#allocation3 + $0x152] sm:$0xff]
        %v6740 = vld [vmem:[#allocation3 + $0x15a] sm:$0xff]
        %v6741 = vld [vmem:[#allocation3 + $0x16a] sm:$0xff]
        %v6742 = vld [vmem:[#allocation3 + $0x172] sm:$0xff]
        %v6744 = vsel %vm540, %v6711, 0
        %v6747 = vsel %vm540, %v6712, 0
        %v6750 = vsel %vm540, %v6713, 0
        %v6753 = vsel %vm540, %v6714, 0
        %v6756 = vsel %vm540, %v6715, 0
        %v6759 = vsel %vm540, %v6716, 0
        %v6762 = vsel %vm540, %v6717, 0
        %v6765 = vsel %vm540, %v6718, 0
        %v6768 = vsel %vm540, %v6719, 0
        %v6771 = vsel %vm540, %v6720, 0
        %v6774 = vsel %vm540, %v6721, 0
        %v6777 = vsel %vm540, %v6722, 0
        %v6780 = vsel %vm540, %v6723, 0
        %v6783 = vsel %vm540, %v6724, 0
        %v6786 = vsel %vm540, %v6725, 0
        %v6789 = vsel %vm540, %v6726, 0
        %v6792 = vsel %vm540, %v6727, 0
        %v6795 = vsel %vm540, %v6728, 0
        %v6798 = vsel %vm540, %v6729, 0
        %v6801 = vsel %vm540, %v6730, 0
        %v6804 = vsel %vm540, %v6731, 0
        %v6807 = vsel %vm540, %v6732, 0
        %v6810 = vsel %vm540, %v6733, 0
        %v6813 = vsel %vm540, %v6734, 0
        %v6816 = vsel %vm540, %v6735, 0
        %v6819 = vsel %vm540, %v6736, 0
        %v6822 = vsel %vm540, %v6737, 0
        %v6825 = vsel %vm540, %v6738, 0
        %v6828 = vsel %vm540, %v6739, 0
        %v6831 = vsel %vm540, %v6740, 0
        %v6834 = vsel %vm540, %v6741, 0
        %v6837 = vsel %vm540, %v6742, 0
        %v6840 = vsel %vm6382, %v678, 0
        %6842 = vmatpush.msra.mxu0 0.0
        %6843 = vmatpush.msra.mxu0 0.0
        %6844 = vmatpush.msra.mxu0 0.0
        %6845 = vmatpush.msra.mxu0 0.0
        %6846 = vmatpush.msra.mxu0 0.0
        %6847 = vmatpush.msra.mxu0 0.0
        %6848 = vmatpush.msra.mxu0 0.0
        %6849 = vmatpush.msra.mxu0 0.0
        %6850 = vmatpush.msra.mxu0 0.0
        %6851 = vmatpush.msra.mxu0 0.0
        %6852 = vmatpush.msra.mxu0 0.0
        %6853 = vmatpush.msra.mxu0 0.0
        %6854 = vmatpush.msra.mxu0 0.0
        %6855 = vmatpush.msra.mxu0 0.0
        %6856 = vmatpush.msra.mxu0 0.0
        %6857 = vmatpush.msra.mxu0 %v6840
        %6858 = vmatmul.f32.gmra.mxu0 %v6744
        %v6859 = vpop.f32.mrf.mxu0
        %v6860 = vadd.f32 0.0, %v6859
        %6861 = vmatmul.f32.gmra.mxu0 %v6747
        %v6862 = vpop.f32.mrf.mxu0
        %v6863 = vadd.f32 0.0, %v6862
        %6864 = vmatmul.f32.gmra.mxu0 %v6750
        %v6865 = vpop.f32.mrf.mxu0
        %v6866 = vadd.f32 0.0, %v6865
        %6867 = vmatmul.f32.gmra.mxu0 %v6753
        %v6868 = vpop.f32.mrf.mxu0
        %v6869 = vadd.f32 0.0, %v6868
        %6870 = vmatmul.f32.gmra.mxu0 %v6756
        %v6871 = vpop.f32.mrf.mxu0
        %v6872 = vadd.f32 0.0, %v6871
        %6873 = vmatmul.f32.gmra.mxu0 %v6759
        %v6874 = vpop.f32.mrf.mxu0
        %v6875 = vadd.f32 0.0, %v6874
        %6876 = vmatmul.f32.gmra.mxu0 %v6762
        %v6877 = vpop.f32.mrf.mxu0
        %v6878 = vadd.f32 0.0, %v6877
        %6879 = vmatmul.f32.gmra.mxu0 %v6765
        %v6880 = vpop.f32.mrf.mxu0
        %v6881 = vadd.f32 0.0, %v6880
        %6882 = vmatmul.f32.gmra.mxu0 %v6768
        %v6883 = vpop.f32.mrf.mxu0
        %v6884 = vadd.f32 0.0, %v6883
        %6885 = vmatmul.f32.gmra.mxu0 %v6771
        %v6886 = vpop.f32.mrf.mxu0
        %v6887 = vadd.f32 0.0, %v6886
        %6888 = vmatmul.f32.gmra.mxu0 %v6774
        %v6889 = vpop.f32.mrf.mxu0
        %v6890 = vadd.f32 0.0, %v6889
        %6891 = vmatmul.f32.gmra.mxu0 %v6777
        %v6892 = vpop.f32.mrf.mxu0
        %v6893 = vadd.f32 0.0, %v6892
        %6894 = vmatmul.f32.gmra.mxu0 %v6780
        %v6895 = vpop.f32.mrf.mxu0
        %v6896 = vadd.f32 0.0, %v6895
        %6897 = vmatmul.f32.gmra.mxu0 %v6783
        %v6898 = vpop.f32.mrf.mxu0
        %v6899 = vadd.f32 0.0, %v6898
        %6900 = vmatmul.f32.gmra.mxu0 %v6786
        %v6901 = vpop.f32.mrf.mxu0
        %v6902 = vadd.f32 0.0, %v6901
        %6903 = vmatmul.f32.gmra.mxu0 %v6789
        %v6904 = vpop.f32.mrf.mxu0
        %v6905 = vadd.f32 0.0, %v6904
        %6906 = vmatmul.f32.gmra.mxu0 %v6792
        %v6907 = vpop.f32.mrf.mxu0
        %v6908 = vadd.f32 0.0, %v6907
        %6909 = vmatmul.f32.gmra.mxu0 %v6795
        %v6910 = vpop.f32.mrf.mxu0
        %v6911 = vadd.f32 0.0, %v6910
        %6912 = vmatmul.f32.gmra.mxu0 %v6798
        %v6913 = vpop.f32.mrf.mxu0
        %v6914 = vadd.f32 0.0, %v6913
        %6915 = vmatmul.f32.gmra.mxu0 %v6801
        %v6916 = vpop.f32.mrf.mxu0
        %v6917 = vadd.f32 0.0, %v6916
        %6918 = vmatmul.f32.gmra.mxu0 %v6804
        %v6919 = vpop.f32.mrf.mxu0
        %v6920 = vadd.f32 0.0, %v6919
        %6921 = vmatmul.f32.gmra.mxu0 %v6807
        %v6922 = vpop.f32.mrf.mxu0
        %v6923 = vadd.f32 0.0, %v6922
        %6924 = vmatmul.f32.gmra.mxu0 %v6810
        %v6925 = vpop.f32.mrf.mxu0
        %v6926 = vadd.f32 0.0, %v6925
        %6927 = vmatmul.f32.gmra.mxu0 %v6813
        %v6928 = vpop.f32.mrf.mxu0
        %v6929 = vadd.f32 0.0, %v6928
        %6930 = vmatmul.f32.gmra.mxu0 %v6816
        %v6931 = vpop.f32.mrf.mxu0
        %v6932 = vadd.f32 0.0, %v6931
        %6933 = vmatmul.f32.gmra.mxu0 %v6819
        %v6934 = vpop.f32.mrf.mxu0
        %v6935 = vadd.f32 0.0, %v6934
        %6936 = vmatmul.f32.gmra.mxu0 %v6822
        %v6937 = vpop.f32.mrf.mxu0
        %v6938 = vadd.f32 0.0, %v6937
        %6939 = vmatmul.f32.gmra.mxu0 %v6825
        %v6940 = vpop.f32.mrf.mxu0
        %v6941 = vadd.f32 0.0, %v6940
        %6942 = vmatmul.f32.gmra.mxu0 %v6828
        %v6943 = vpop.f32.mrf.mxu0
        %v6944 = vadd.f32 0.0, %v6943
        %6945 = vmatmul.f32.gmra.mxu0 %v6831
        %v6946 = vpop.f32.mrf.mxu0
        %v6947 = vadd.f32 0.0, %v6946
        %6948 = vmatmul.f32.gmra.mxu0 %v6834
        %v6949 = vpop.f32.mrf.mxu0
        %v6950 = vadd.f32 0.0, %v6949
        %6951 = vmatmul.f32.gmra.mxu0 %v6837
        %v6952 = vpop.f32.mrf.mxu0
        %v6953 = vadd.f32 0.0, %v6952
        %6954 = vdwg.mxu0
        %v6955 = vadd.f32 %v6616, %v6860
        %v6956 = vadd.f32 %v6619, %v6863
        %v6957 = vadd.f32 %v6622, %v6866
        %v6958 = vadd.f32 %v6625, %v6869
        %v6959 = vadd.f32 %v6628, %v6872
        %v6960 = vadd.f32 %v6631, %v6875
        %v6961 = vadd.f32 %v6634, %v6878
        %v6962 = vadd.f32 %v6637, %v6881
        %v6963 = vadd.f32 %v6640, %v6884
        %v6964 = vadd.f32 %v6643, %v6887
        %v6965 = vadd.f32 %v6646, %v6890
        %v6966 = vadd.f32 %v6649, %v6893
        %v6967 = vadd.f32 %v6652, %v6896
        %v6968 = vadd.f32 %v6655, %v6899
        %v6969 = vadd.f32 %v6658, %v6902
        %v6970 = vadd.f32 %v6661, %v6905
        %v6971 = vadd.f32 %v6664, %v6908
        %v6972 = vadd.f32 %v6667, %v6911
        %v6973 = vadd.f32 %v6670, %v6914
        %v6974 = vadd.f32 %v6673, %v6917
        %v6975 = vadd.f32 %v6676, %v6920
        %v6976 = vadd.f32 %v6679, %v6923
        %v6977 = vadd.f32 %v6682, %v6926
        %v6978 = vadd.f32 %v6685, %v6929
        %v6979 = vadd.f32 %v6688, %v6932
        %v6980 = vadd.f32 %v6691, %v6935
        %v6981 = vadd.f32 %v6694, %v6938
        %v6982 = vadd.f32 %v6697, %v6941
        %v6983 = vadd.f32 %v6700, %v6944
        %v6984 = vadd.f32 %v6703, %v6947
        %v6985 = vadd.f32 %v6706, %v6950
        %v6986 = vadd.f32 %v6709, %v6953
        %v6987 = vld [vmem:[%s6174] sm:$0xff]
        %v6988 = vld [vmem:[%s6174 + $0x8] sm:$0xff]
        %v6989 = vld [vmem:[%s6174 + $0x18] sm:$0xff]
        %v6990 = vld [vmem:[%s6174 + $0x20] sm:$0xff]
        %v6991 = vld [vmem:[%s6174 + $0x30] sm:$0xff]
        %v6992 = vld [vmem:[%s6174 + $0x38] sm:$0xff]
        %v6993 = vld [vmem:[%s6174 + $0x48] sm:$0xff]
        %v6994 = vld [vmem:[%s6174 + $0x50] sm:$0xff]
        %v6995 = vld [vmem:[%s6174 + $0x60] sm:$0xff]
        %v6996 = vld [vmem:[%s6174 + $0x68] sm:$0xff]
        %v6997 = vld [vmem:[%s6174 + $0x78] sm:$0xff]
        %v6998 = vld [vmem:[%s6174 + $0x80] sm:$0xff]
        %v6999 = vld [vmem:[%s6174 + $0x90] sm:$0xff]
        %v7000 = vld [vmem:[%s6174 + $0x98] sm:$0xff]
        %v7001 = vld [vmem:[%s6174 + $0xa8] sm:$0xff]
        %v7002 = vld [vmem:[%s6174 + $0xb0] sm:$0xff]
        %v7003 = vld [vmem:[%s6174 + $0xc0] sm:$0xff]
        %v7004 = vld [vmem:[%s6174 + $0xc8] sm:$0xff]
        %v7005 = vld [vmem:[%s6174 + $0xd8] sm:$0xff]
        %v7006 = vld [vmem:[%s6174 + $0xe0] sm:$0xff]
        %v7007 = vld [vmem:[%s6174 + $0xf0] sm:$0xff]
        %v7008 = vld [vmem:[%s6174 + $0xf8] sm:$0xff]
        %v7009 = vld [vmem:[%s6174 + $0x108] sm:$0xff]
        %v7010 = vld [vmem:[%s6174 + $0x110] sm:$0xff]
        %v7011 = vld [vmem:[%s6174 + $0x120] sm:$0xff]
        %v7012 = vld [vmem:[%s6174 + $0x128] sm:$0xff]
        %v7013 = vld [vmem:[%s6174 + $0x138] sm:$0xff]
        %v7014 = vld [vmem:[%s6174 + $0x140] sm:$0xff]
        %v7015 = vld [vmem:[%s6174 + $0x150] sm:$0xff]
        %v7016 = vld [vmem:[%s6174 + $0x158] sm:$0xff]
        %v7017 = vld [vmem:[%s6174 + $0x168] sm:$0xff]
        %v7018 = vld [vmem:[%s6174 + $0x170] sm:$0xff]
        %v7020 = vsel %vm540, %v6987, 0
        %v7023 = vsel %vm540, %v6988, 0
        %v7026 = vsel %vm540, %v6989, 0
        %v7029 = vsel %vm540, %v6990, 0
        %v7032 = vsel %vm540, %v6991, 0
        %v7035 = vsel %vm540, %v6992, 0
        %v7038 = vsel %vm540, %v6993, 0
        %v7041 = vsel %vm540, %v6994, 0
        %v7044 = vsel %vm540, %v6995, 0
        %v7047 = vsel %vm540, %v6996, 0
        %v7050 = vsel %vm540, %v6997, 0
        %v7053 = vsel %vm540, %v6998, 0
        %v7056 = vsel %vm540, %v6999, 0
        %v7059 = vsel %vm540, %v7000, 0
        %v7062 = vsel %vm540, %v7001, 0
        %v7065 = vsel %vm540, %v7002, 0
        %v7068 = vsel %vm540, %v7003, 0
        %v7071 = vsel %vm540, %v7004, 0
        %v7074 = vsel %vm540, %v7005, 0
        %v7077 = vsel %vm540, %v7006, 0
        %v7080 = vsel %vm540, %v7007, 0
        %v7083 = vsel %vm540, %v7008, 0
        %v7086 = vsel %vm540, %v7009, 0
        %v7089 = vsel %vm540, %v7010, 0
        %v7092 = vsel %vm540, %v7011, 0
        %v7095 = vsel %vm540, %v7012, 0
        %v7098 = vsel %vm540, %v7013, 0
        %v7101 = vsel %vm540, %v7014, 0
        %v7104 = vsel %vm540, %v7015, 0
        %v7107 = vsel %vm540, %v7016, 0
        %v7110 = vsel %vm540, %v7017, 0
        %v7113 = vsel %vm540, %v7018, 0
        %v7116 = vsel %vm6382, %v679, 0
        %7118 = vmatpush.msra.mxu0 0.0
        %7119 = vmatpush.msra.mxu0 0.0
        %7120 = vmatpush.msra.mxu0 0.0
        %7121 = vmatpush.msra.mxu0 0.0
        %7122 = vmatpush.msra.mxu0 0.0
        %7123 = vmatpush.msra.mxu0 0.0
        %7124 = vmatpush.msra.mxu0 0.0
        %7125 = vmatpush.msra.mxu0 0.0
        %7126 = vmatpush.msra.mxu0 0.0
        %7127 = vmatpush.msra.mxu0 0.0
        %7128 = vmatpush.msra.mxu0 0.0
        %7129 = vmatpush.msra.mxu0 0.0
        %7130 = vmatpush.msra.mxu0 0.0
        %7131 = vmatpush.msra.mxu0 0.0
        %7132 = vmatpush.msra.mxu0 0.0
        %7133 = vmatpush.msra.mxu0 %v7116
        %7134 = vmatmul.f32.gmra.mxu0 %v7020
        %v7135 = vpop.f32.mrf.mxu0
        %v7136 = vadd.f32 0.0, %v7135
        %7137 = vmatmul.f32.gmra.mxu0 %v7023
        %v7138 = vpop.f32.mrf.mxu0
        %v7139 = vadd.f32 0.0, %v7138
        %7140 = vmatmul.f32.gmra.mxu0 %v7026
        %v7141 = vpop.f32.mrf.mxu0
        %v7142 = vadd.f32 0.0, %v7141
        %7143 = vmatmul.f32.gmra.mxu0 %v7029
        %v7144 = vpop.f32.mrf.mxu0
        %v7145 = vadd.f32 0.0, %v7144
        %7146 = vmatmul.f32.gmra.mxu0 %v7032
        %v7147 = vpop.f32.mrf.mxu0
        %v7148 = vadd.f32 0.0, %v7147
        %7149 = vmatmul.f32.gmra.mxu0 %v7035
        %v7150 = vpop.f32.mrf.mxu0
        %v7151 = vadd.f32 0.0, %v7150
        %7152 = vmatmul.f32.gmra.mxu0 %v7038
        %v7153 = vpop.f32.mrf.mxu0
        %v7154 = vadd.f32 0.0, %v7153
        %7155 = vmatmul.f32.gmra.mxu0 %v7041
        %v7156 = vpop.f32.mrf.mxu0
        %v7157 = vadd.f32 0.0, %v7156
        %7158 = vmatmul.f32.gmra.mxu0 %v7044
        %v7159 = vpop.f32.mrf.mxu0
        %v7160 = vadd.f32 0.0, %v7159
        %7161 = vmatmul.f32.gmra.mxu0 %v7047
        %v7162 = vpop.f32.mrf.mxu0
        %v7163 = vadd.f32 0.0, %v7162
        %7164 = vmatmul.f32.gmra.mxu0 %v7050
        %v7165 = vpop.f32.mrf.mxu0
        %v7166 = vadd.f32 0.0, %v7165
        %7167 = vmatmul.f32.gmra.mxu0 %v7053
        %v7168 = vpop.f32.mrf.mxu0
        %v7169 = vadd.f32 0.0, %v7168
        %7170 = vmatmul.f32.gmra.mxu0 %v7056
        %v7171 = vpop.f32.mrf.mxu0
        %v7172 = vadd.f32 0.0, %v7171
        %7173 = vmatmul.f32.gmra.mxu0 %v7059
        %v7174 = vpop.f32.mrf.mxu0
        %v7175 = vadd.f32 0.0, %v7174
        %7176 = vmatmul.f32.gmra.mxu0 %v7062
        %v7177 = vpop.f32.mrf.mxu0
        %v7178 = vadd.f32 0.0, %v7177
        %7179 = vmatmul.f32.gmra.mxu0 %v7065
        %v7180 = vpop.f32.mrf.mxu0
        %v7181 = vadd.f32 0.0, %v7180
        %7182 = vmatmul.f32.gmra.mxu0 %v7068
        %v7183 = vpop.f32.mrf.mxu0
        %v7184 = vadd.f32 0.0, %v7183
        %7185 = vmatmul.f32.gmra.mxu0 %v7071
        %v7186 = vpop.f32.mrf.mxu0
        %v7187 = vadd.f32 0.0, %v7186
        %7188 = vmatmul.f32.gmra.mxu0 %v7074
        %v7189 = vpop.f32.mrf.mxu0
        %v7190 = vadd.f32 0.0, %v7189
        %7191 = vmatmul.f32.gmra.mxu0 %v7077
        %v7192 = vpop.f32.mrf.mxu0
        %v7193 = vadd.f32 0.0, %v7192
        %7194 = vmatmul.f32.gmra.mxu0 %v7080
        %v7195 = vpop.f32.mrf.mxu0
        %v7196 = vadd.f32 0.0, %v7195
        %7197 = vmatmul.f32.gmra.mxu0 %v7083
        %v7198 = vpop.f32.mrf.mxu0
        %v7199 = vadd.f32 0.0, %v7198
        %7200 = vmatmul.f32.gmra.mxu0 %v7086
        %v7201 = vpop.f32.mrf.mxu0
        %v7202 = vadd.f32 0.0, %v7201
        %7203 = vmatmul.f32.gmra.mxu0 %v7089
        %v7204 = vpop.f32.mrf.mxu0
        %v7205 = vadd.f32 0.0, %v7204
        %7206 = vmatmul.f32.gmra.mxu0 %v7092
        %v7207 = vpop.f32.mrf.mxu0
        %v7208 = vadd.f32 0.0, %v7207
        %7209 = vmatmul.f32.gmra.mxu0 %v7095
        %v7210 = vpop.f32.mrf.mxu0
        %v7211 = vadd.f32 0.0, %v7210
        %7212 = vmatmul.f32.gmra.mxu0 %v7098
        %v7213 = vpop.f32.mrf.mxu0
        %v7214 = vadd.f32 0.0, %v7213
        %7215 = vmatmul.f32.gmra.mxu0 %v7101
        %v7216 = vpop.f32.mrf.mxu0
        %v7217 = vadd.f32 0.0, %v7216
        %7218 = vmatmul.f32.gmra.mxu0 %v7104
        %v7219 = vpop.f32.mrf.mxu0
        %v7220 = vadd.f32 0.0, %v7219
        %7221 = vmatmul.f32.gmra.mxu0 %v7107
        %v7222 = vpop.f32.mrf.mxu0
        %v7223 = vadd.f32 0.0, %v7222
        %7224 = vmatmul.f32.gmra.mxu0 %v7110
        %v7225 = vpop.f32.mrf.mxu0
        %v7226 = vadd.f32 0.0, %v7225
        %7227 = vmatmul.f32.gmra.mxu0 %v7113
        %v7228 = vpop.f32.mrf.mxu0
        %v7229 = vadd.f32 0.0, %v7228
        %7230 = vdwg.mxu0
        %v7231 = vadd.f32 %v6955, %v7136
        %v7232 = vadd.f32 %v6956, %v7139
        %v7233 = vadd.f32 %v6957, %v7142
        %v7234 = vadd.f32 %v6958, %v7145
        %v7235 = vadd.f32 %v6959, %v7148
        %v7236 = vadd.f32 %v6960, %v7151
        %v7237 = vadd.f32 %v6961, %v7154
        %v7238 = vadd.f32 %v6962, %v7157
        %v7239 = vadd.f32 %v6963, %v7160
        %v7240 = vadd.f32 %v6964, %v7163
        %v7241 = vadd.f32 %v6965, %v7166
        %v7242 = vadd.f32 %v6966, %v7169
        %v7243 = vadd.f32 %v6967, %v7172
        %v7244 = vadd.f32 %v6968, %v7175
        %v7245 = vadd.f32 %v6969, %v7178
        %v7246 = vadd.f32 %v6970, %v7181
        %v7247 = vadd.f32 %v6971, %v7184
        %v7248 = vadd.f32 %v6972, %v7187
        %v7249 = vadd.f32 %v6973, %v7190
        %v7250 = vadd.f32 %v6974, %v7193
        %v7251 = vadd.f32 %v6975, %v7196
        %v7252 = vadd.f32 %v6976, %v7199
        %v7253 = vadd.f32 %v6977, %v7202
        %v7254 = vadd.f32 %v6978, %v7205
        %v7255 = vadd.f32 %v6979, %v7208
        %v7256 = vadd.f32 %v6980, %v7211
        %v7257 = vadd.f32 %v6981, %v7214
        %v7258 = vadd.f32 %v6982, %v7217
        %v7259 = vadd.f32 %v6983, %v7220
        %v7260 = vadd.f32 %v6984, %v7223
        %v7261 = vadd.f32 %v6985, %v7226
        %v7262 = vadd.f32 %v6986, %v7229
        %v7263 = vld [vmem:[%s6174 + $0x1] sm:$0xff]
        %v7264 = vld [vmem:[%s6174 + $0x9] sm:$0xff]
        %v7265 = vld [vmem:[%s6174 + $0x19] sm:$0xff]
        %v7266 = vld [vmem:[%s6174 + $0x21] sm:$0xff]
        %v7267 = vld [vmem:[%s6174 + $0x31] sm:$0xff]
        %v7268 = vld [vmem:[%s6174 + $0x39] sm:$0xff]
        %v7269 = vld [vmem:[%s6174 + $0x49] sm:$0xff]
        %v7270 = vld [vmem:[%s6174 + $0x51] sm:$0xff]
        %v7271 = vld [vmem:[%s6174 + $0x61] sm:$0xff]
        %v7272 = vld [vmem:[%s6174 + $0x69] sm:$0xff]
        %v7273 = vld [vmem:[%s6174 + $0x79] sm:$0xff]
        %v7274 = vld [vmem:[%s6174 + $0x81] sm:$0xff]
        %v7275 = vld [vmem:[%s6174 + $0x91] sm:$0xff]
        %v7276 = vld [vmem:[%s6174 + $0x99] sm:$0xff]
        %v7277 = vld [vmem:[%s6174 + $0xa9] sm:$0xff]
        %v7278 = vld [vmem:[%s6174 + $0xb1] sm:$0xff]
        %v7279 = vld [vmem:[%s6174 + $0xc1] sm:$0xff]
        %v7280 = vld [vmem:[%s6174 + $0xc9] sm:$0xff]
        %v7281 = vld [vmem:[%s6174 + $0xd9] sm:$0xff]
        %v7282 = vld [vmem:[%s6174 + $0xe1] sm:$0xff]
        %v7283 = vld [vmem:[%s6174 + $0xf1] sm:$0xff]
        %v7284 = vld [vmem:[%s6174 + $0xf9] sm:$0xff]
        %v7285 = vld [vmem:[%s6174 + $0x109] sm:$0xff]
        %v7286 = vld [vmem:[%s6174 + $0x111] sm:$0xff]
        %v7287 = vld [vmem:[%s6174 + $0x121] sm:$0xff]
        %v7288 = vld [vmem:[%s6174 + $0x129] sm:$0xff]
        %v7289 = vld [vmem:[%s6174 + $0x139] sm:$0xff]
        %v7290 = vld [vmem:[%s6174 + $0x141] sm:$0xff]
        %v7291 = vld [vmem:[%s6174 + $0x151] sm:$0xff]
        %v7292 = vld [vmem:[%s6174 + $0x159] sm:$0xff]
        %v7293 = vld [vmem:[%s6174 + $0x169] sm:$0xff]
        %v7294 = vld [vmem:[%s6174 + $0x171] sm:$0xff]
        %v7296 = vsel %vm540, %v7263, 0
        %v7299 = vsel %vm540, %v7264, 0
        %v7302 = vsel %vm540, %v7265, 0
        %v7305 = vsel %vm540, %v7266, 0
        %v7308 = vsel %vm540, %v7267, 0
        %v7311 = vsel %vm540, %v7268, 0
        %v7314 = vsel %vm540, %v7269, 0
        %v7317 = vsel %vm540, %v7270, 0
        %v7320 = vsel %vm540, %v7271, 0
        %v7323 = vsel %vm540, %v7272, 0
        %v7326 = vsel %vm540, %v7273, 0
        %v7329 = vsel %vm540, %v7274, 0
        %v7332 = vsel %vm540, %v7275, 0
        %v7335 = vsel %vm540, %v7276, 0
        %v7338 = vsel %vm540, %v7277, 0
        %v7341 = vsel %vm540, %v7278, 0
        %v7344 = vsel %vm540, %v7279, 0
        %v7347 = vsel %vm540, %v7280, 0
        %v7350 = vsel %vm540, %v7281, 0
        %v7353 = vsel %vm540, %v7282, 0
        %v7356 = vsel %vm540, %v7283, 0
        %v7359 = vsel %vm540, %v7284, 0
        %v7362 = vsel %vm540, %v7285, 0
        %v7365 = vsel %vm540, %v7286, 0
        %v7368 = vsel %vm540, %v7287, 0
        %v7371 = vsel %vm540, %v7288, 0
        %v7374 = vsel %vm540, %v7289, 0
        %v7377 = vsel %vm540, %v7290, 0
        %v7380 = vsel %vm540, %v7291, 0
        %v7383 = vsel %vm540, %v7292, 0
        %v7386 = vsel %vm540, %v7293, 0
        %v7389 = vsel %vm540, %v7294, 0
        %v7392 = vsel %vm6382, %v680, 0
        %7394 = vmatpush.msra.mxu0 0.0
        %7395 = vmatpush.msra.mxu0 0.0
        %7396 = vmatpush.msra.mxu0 0.0
        %7397 = vmatpush.msra.mxu0 0.0
        %7398 = vmatpush.msra.mxu0 0.0
        %7399 = vmatpush.msra.mxu0 0.0
        %7400 = vmatpush.msra.mxu0 0.0
        %7401 = vmatpush.msra.mxu0 0.0
        %7402 = vmatpush.msra.mxu0 0.0
        %7403 = vmatpush.msra.mxu0 0.0
        %7404 = vmatpush.msra.mxu0 0.0
        %7405 = vmatpush.msra.mxu0 0.0
        %7406 = vmatpush.msra.mxu0 0.0
        %7407 = vmatpush.msra.mxu0 0.0
        %7408 = vmatpush.msra.mxu0 0.0
        %7409 = vmatpush.msra.mxu0 %v7392
        %7410 = vmatmul.f32.gmra.mxu0 %v7296
        %v7411 = vpop.f32.mrf.mxu0
        %v7412 = vadd.f32 0.0, %v7411
        %7413 = vmatmul.f32.gmra.mxu0 %v7299
        %v7414 = vpop.f32.mrf.mxu0
        %v7415 = vadd.f32 0.0, %v7414
        %7416 = vmatmul.f32.gmra.mxu0 %v7302
        %v7417 = vpop.f32.mrf.mxu0
        %v7418 = vadd.f32 0.0, %v7417
        %7419 = vmatmul.f32.gmra.mxu0 %v7305
        %v7420 = vpop.f32.mrf.mxu0
        %v7421 = vadd.f32 0.0, %v7420
        %7422 = vmatmul.f32.gmra.mxu0 %v7308
        %v7423 = vpop.f32.mrf.mxu0
        %v7424 = vadd.f32 0.0, %v7423
        %7425 = vmatmul.f32.gmra.mxu0 %v7311
        %v7426 = vpop.f32.mrf.mxu0
        %v7427 = vadd.f32 0.0, %v7426
        %7428 = vmatmul.f32.gmra.mxu0 %v7314
        %v7429 = vpop.f32.mrf.mxu0
        %v7430 = vadd.f32 0.0, %v7429
        %7431 = vmatmul.f32.gmra.mxu0 %v7317
        %v7432 = vpop.f32.mrf.mxu0
        %v7433 = vadd.f32 0.0, %v7432
        %7434 = vmatmul.f32.gmra.mxu0 %v7320
        %v7435 = vpop.f32.mrf.mxu0
        %v7436 = vadd.f32 0.0, %v7435
        %7437 = vmatmul.f32.gmra.mxu0 %v7323
        %v7438 = vpop.f32.mrf.mxu0
        %v7439 = vadd.f32 0.0, %v7438
        %7440 = vmatmul.f32.gmra.mxu0 %v7326
        %v7441 = vpop.f32.mrf.mxu0
        %v7442 = vadd.f32 0.0, %v7441
        %7443 = vmatmul.f32.gmra.mxu0 %v7329
        %v7444 = vpop.f32.mrf.mxu0
        %v7445 = vadd.f32 0.0, %v7444
        %7446 = vmatmul.f32.gmra.mxu0 %v7332
        %v7447 = vpop.f32.mrf.mxu0
        %v7448 = vadd.f32 0.0, %v7447
        %7449 = vmatmul.f32.gmra.mxu0 %v7335
        %v7450 = vpop.f32.mrf.mxu0
        %v7451 = vadd.f32 0.0, %v7450
        %7452 = vmatmul.f32.gmra.mxu0 %v7338
        %v7453 = vpop.f32.mrf.mxu0
        %v7454 = vadd.f32 0.0, %v7453
        %7455 = vmatmul.f32.gmra.mxu0 %v7341
        %v7456 = vpop.f32.mrf.mxu0
        %v7457 = vadd.f32 0.0, %v7456
        %7458 = vmatmul.f32.gmra.mxu0 %v7344
        %v7459 = vpop.f32.mrf.mxu0
        %v7460 = vadd.f32 0.0, %v7459
        %7461 = vmatmul.f32.gmra.mxu0 %v7347
        %v7462 = vpop.f32.mrf.mxu0
        %v7463 = vadd.f32 0.0, %v7462
        %7464 = vmatmul.f32.gmra.mxu0 %v7350
        %v7465 = vpop.f32.mrf.mxu0
        %v7466 = vadd.f32 0.0, %v7465
        %7467 = vmatmul.f32.gmra.mxu0 %v7353
        %v7468 = vpop.f32.mrf.mxu0
        %v7469 = vadd.f32 0.0, %v7468
        %7470 = vmatmul.f32.gmra.mxu0 %v7356
        %v7471 = vpop.f32.mrf.mxu0
        %v7472 = vadd.f32 0.0, %v7471
        %7473 = vmatmul.f32.gmra.mxu0 %v7359
        %v7474 = vpop.f32.mrf.mxu0
        %v7475 = vadd.f32 0.0, %v7474
        %7476 = vmatmul.f32.gmra.mxu0 %v7362
        %v7477 = vpop.f32.mrf.mxu0
        %v7478 = vadd.f32 0.0, %v7477
        %7479 = vmatmul.f32.gmra.mxu0 %v7365
        %v7480 = vpop.f32.mrf.mxu0
        %v7481 = vadd.f32 0.0, %v7480
        %7482 = vmatmul.f32.gmra.mxu0 %v7368
        %v7483 = vpop.f32.mrf.mxu0
        %v7484 = vadd.f32 0.0, %v7483
        %7485 = vmatmul.f32.gmra.mxu0 %v7371
        %v7486 = vpop.f32.mrf.mxu0
        %v7487 = vadd.f32 0.0, %v7486
        %7488 = vmatmul.f32.gmra.mxu0 %v7374
        %v7489 = vpop.f32.mrf.mxu0
        %v7490 = vadd.f32 0.0, %v7489
        %7491 = vmatmul.f32.gmra.mxu0 %v7377
        %v7492 = vpop.f32.mrf.mxu0
        %v7493 = vadd.f32 0.0, %v7492
        %7494 = vmatmul.f32.gmra.mxu0 %v7380
        %v7495 = vpop.f32.mrf.mxu0
        %v7496 = vadd.f32 0.0, %v7495
        %7497 = vmatmul.f32.gmra.mxu0 %v7383
        %v7498 = vpop.f32.mrf.mxu0
        %v7499 = vadd.f32 0.0, %v7498
        %7500 = vmatmul.f32.gmra.mxu0 %v7386
        %v7501 = vpop.f32.mrf.mxu0
        %v7502 = vadd.f32 0.0, %v7501
        %7503 = vmatmul.f32.gmra.mxu0 %v7389
        %v7504 = vpop.f32.mrf.mxu0
        %v7505 = vadd.f32 0.0, %v7504
        %7506 = vdwg.mxu0
        %v7507 = vadd.f32 %v7231, %v7412
        %v7508 = vadd.f32 %v7232, %v7415
        %v7509 = vadd.f32 %v7233, %v7418
        %v7510 = vadd.f32 %v7234, %v7421
        %v7511 = vadd.f32 %v7235, %v7424
        %v7512 = vadd.f32 %v7236, %v7427
        %v7513 = vadd.f32 %v7237, %v7430
        %v7514 = vadd.f32 %v7238, %v7433
        %v7515 = vadd.f32 %v7239, %v7436
        %v7516 = vadd.f32 %v7240, %v7439
        %v7517 = vadd.f32 %v7241, %v7442
        %v7518 = vadd.f32 %v7242, %v7445
        %v7519 = vadd.f32 %v7243, %v7448
        %v7520 = vadd.f32 %v7244, %v7451
        %v7521 = vadd.f32 %v7245, %v7454
        %v7522 = vadd.f32 %v7246, %v7457
        %v7523 = vadd.f32 %v7247, %v7460
        %v7524 = vadd.f32 %v7248, %v7463
        %v7525 = vadd.f32 %v7249, %v7466
        %v7526 = vadd.f32 %v7250, %v7469
        %v7527 = vadd.f32 %v7251, %v7472
        %v7528 = vadd.f32 %v7252, %v7475
        %v7529 = vadd.f32 %v7253, %v7478
        %v7530 = vadd.f32 %v7254, %v7481
        %v7531 = vadd.f32 %v7255, %v7484
        %v7532 = vadd.f32 %v7256, %v7487
        %v7533 = vadd.f32 %v7257, %v7490
        %v7534 = vadd.f32 %v7258, %v7493
        %v7535 = vadd.f32 %v7259, %v7496
        %v7536 = vadd.f32 %v7260, %v7499
        %v7537 = vadd.f32 %v7261, %v7502
        %v7538 = vadd.f32 %v7262, %v7505
        %v7539 = vld [vmem:[%s6174 + $0x2] sm:$0xff]
        %v7540 = vld [vmem:[%s6174 + $0xa] sm:$0xff]
        %v7541 = vld [vmem:[%s6174 + $0x1a] sm:$0xff]
        %v7542 = vld [vmem:[%s6174 + $0x22] sm:$0xff]
        %v7543 = vld [vmem:[%s6174 + $0x32] sm:$0xff]
        %v7544 = vld [vmem:[%s6174 + $0x3a] sm:$0xff]
        %v7545 = vld [vmem:[%s6174 + $0x4a] sm:$0xff]
        %v7546 = vld [vmem:[%s6174 + $0x52] sm:$0xff]
        %v7547 = vld [vmem:[%s6174 + $0x62] sm:$0xff]
        %v7548 = vld [vmem:[%s6174 + $0x6a] sm:$0xff]
        %v7549 = vld [vmem:[%s6174 + $0x7a] sm:$0xff]
        %v7550 = vld [vmem:[%s6174 + $0x82] sm:$0xff]
        %v7551 = vld [vmem:[%s6174 + $0x92] sm:$0xff]
        %v7552 = vld [vmem:[%s6174 + $0x9a] sm:$0xff]
        %v7553 = vld [vmem:[%s6174 + $0xaa] sm:$0xff]
        %v7554 = vld [vmem:[%s6174 + $0xb2] sm:$0xff]
        %v7555 = vld [vmem:[%s6174 + $0xc2] sm:$0xff]
        %v7556 = vld [vmem:[%s6174 + $0xca] sm:$0xff]
        %v7557 = vld [vmem:[%s6174 + $0xda] sm:$0xff]
        %v7558 = vld [vmem:[%s6174 + $0xe2] sm:$0xff]
        %v7559 = vld [vmem:[%s6174 + $0xf2] sm:$0xff]
        %v7560 = vld [vmem:[%s6174 + $0xfa] sm:$0xff]
        %v7561 = vld [vmem:[%s6174 + $0x10a] sm:$0xff]
        %v7562 = vld [vmem:[%s6174 + $0x112] sm:$0xff]
        %v7563 = vld [vmem:[%s6174 + $0x122] sm:$0xff]
        %v7564 = vld [vmem:[%s6174 + $0x12a] sm:$0xff]
        %v7565 = vld [vmem:[%s6174 + $0x13a] sm:$0xff]
        %v7566 = vld [vmem:[%s6174 + $0x142] sm:$0xff]
        %v7567 = vld [vmem:[%s6174 + $0x152] sm:$0xff]
        %v7568 = vld [vmem:[%s6174 + $0x15a] sm:$0xff]
        %v7569 = vld [vmem:[%s6174 + $0x16a] sm:$0xff]
        %v7570 = vld [vmem:[%s6174 + $0x172] sm:$0xff]
        %v7572 = vsel %vm540, %v7539, 0
        %v7575 = vsel %vm540, %v7540, 0
        %v7578 = vsel %vm540, %v7541, 0
        %v7581 = vsel %vm540, %v7542, 0
        %v7584 = vsel %vm540, %v7543, 0
        %v7587 = vsel %vm540, %v7544, 0
        %v7590 = vsel %vm540, %v7545, 0
        %v7593 = vsel %vm540, %v7546, 0
        %v7596 = vsel %vm540, %v7547, 0
        %v7599 = vsel %vm540, %v7548, 0
        %v7602 = vsel %vm540, %v7549, 0
        %v7605 = vsel %vm540, %v7550, 0
        %v7608 = vsel %vm540, %v7551, 0
        %v7611 = vsel %vm540, %v7552, 0
        %v7614 = vsel %vm540, %v7553, 0
        %v7617 = vsel %vm540, %v7554, 0
        %v7620 = vsel %vm540, %v7555, 0
        %v7623 = vsel %vm540, %v7556, 0
        %v7626 = vsel %vm540, %v7557, 0
        %v7629 = vsel %vm540, %v7558, 0
        %v7632 = vsel %vm540, %v7559, 0
        %v7635 = vsel %vm540, %v7560, 0
        %v7638 = vsel %vm540, %v7561, 0
        %v7641 = vsel %vm540, %v7562, 0
        %v7644 = vsel %vm540, %v7563, 0
        %v7647 = vsel %vm540, %v7564, 0
        %v7650 = vsel %vm540, %v7565, 0
        %v7653 = vsel %vm540, %v7566, 0
        %v7656 = vsel %vm540, %v7567, 0
        %v7659 = vsel %vm540, %v7568, 0
        %v7662 = vsel %vm540, %v7569, 0
        %v7665 = vsel %vm540, %v7570, 0
        %v7668 = vsel %vm6382, %v681, 0
        %7670 = vmatpush.msra.mxu0 0.0
        %7671 = vmatpush.msra.mxu0 0.0
        %7672 = vmatpush.msra.mxu0 0.0
        %7673 = vmatpush.msra.mxu0 0.0
        %7674 = vmatpush.msra.mxu0 0.0
        %7675 = vmatpush.msra.mxu0 0.0
        %7676 = vmatpush.msra.mxu0 0.0
        %7677 = vmatpush.msra.mxu0 0.0
        %7678 = vmatpush.msra.mxu0 0.0
        %7679 = vmatpush.msra.mxu0 0.0
        %7680 = vmatpush.msra.mxu0 0.0
        %7681 = vmatpush.msra.mxu0 0.0
        %7682 = vmatpush.msra.mxu0 0.0
        %7683 = vmatpush.msra.mxu0 0.0
        %7684 = vmatpush.msra.mxu0 0.0
        %7685 = vmatpush.msra.mxu0 %v7668
        %7686 = vmatmul.f32.gmra.mxu0 %v7572
        %v7687 = vpop.f32.mrf.mxu0
        %v7688 = vadd.f32 0.0, %v7687
        %7689 = vmatmul.f32.gmra.mxu0 %v7575
        %v7690 = vpop.f32.mrf.mxu0
        %v7691 = vadd.f32 0.0, %v7690
        %7692 = vmatmul.f32.gmra.mxu0 %v7578
        %v7693 = vpop.f32.mrf.mxu0
        %v7694 = vadd.f32 0.0, %v7693
        %7695 = vmatmul.f32.gmra.mxu0 %v7581
        %v7696 = vpop.f32.mrf.mxu0
        %v7697 = vadd.f32 0.0, %v7696
        %7698 = vmatmul.f32.gmra.mxu0 %v7584
        %v7699 = vpop.f32.mrf.mxu0
        %v7700 = vadd.f32 0.0, %v7699
        %7701 = vmatmul.f32.gmra.mxu0 %v7587
        %v7702 = vpop.f32.mrf.mxu0
        %v7703 = vadd.f32 0.0, %v7702
        %7704 = vmatmul.f32.gmra.mxu0 %v7590
        %v7705 = vpop.f32.mrf.mxu0
        %v7706 = vadd.f32 0.0, %v7705
        %7707 = vmatmul.f32.gmra.mxu0 %v7593
        %v7708 = vpop.f32.mrf.mxu0
        %v7709 = vadd.f32 0.0, %v7708
        %7710 = vmatmul.f32.gmra.mxu0 %v7596
        %v7711 = vpop.f32.mrf.mxu0
        %v7712 = vadd.f32 0.0, %v7711
        %7713 = vmatmul.f32.gmra.mxu0 %v7599
        %v7714 = vpop.f32.mrf.mxu0
        %v7715 = vadd.f32 0.0, %v7714
        %7716 = vmatmul.f32.gmra.mxu0 %v7602
        %v7717 = vpop.f32.mrf.mxu0
        %v7718 = vadd.f32 0.0, %v7717
        %7719 = vmatmul.f32.gmra.mxu0 %v7605
        %v7720 = vpop.f32.mrf.mxu0
        %v7721 = vadd.f32 0.0, %v7720
        %7722 = vmatmul.f32.gmra.mxu0 %v7608
        %v7723 = vpop.f32.mrf.mxu0
        %v7724 = vadd.f32 0.0, %v7723
        %7725 = vmatmul.f32.gmra.mxu0 %v7611
        %v7726 = vpop.f32.mrf.mxu0
        %v7727 = vadd.f32 0.0, %v7726
        %7728 = vmatmul.f32.gmra.mxu0 %v7614
        %v7729 = vpop.f32.mrf.mxu0
        %v7730 = vadd.f32 0.0, %v7729
        %7731 = vmatmul.f32.gmra.mxu0 %v7617
        %v7732 = vpop.f32.mrf.mxu0
        %v7733 = vadd.f32 0.0, %v7732
        %7734 = vmatmul.f32.gmra.mxu0 %v7620
        %v7735 = vpop.f32.mrf.mxu0
        %v7736 = vadd.f32 0.0, %v7735
        %7737 = vmatmul.f32.gmra.mxu0 %v7623
        %v7738 = vpop.f32.mrf.mxu0
        %v7739 = vadd.f32 0.0, %v7738
        %7740 = vmatmul.f32.gmra.mxu0 %v7626
        %v7741 = vpop.f32.mrf.mxu0
        %v7742 = vadd.f32 0.0, %v7741
        %7743 = vmatmul.f32.gmra.mxu0 %v7629
        %v7744 = vpop.f32.mrf.mxu0
        %v7745 = vadd.f32 0.0, %v7744
        %7746 = vmatmul.f32.gmra.mxu0 %v7632
        %v7747 = vpop.f32.mrf.mxu0
        %v7748 = vadd.f32 0.0, %v7747
        %7749 = vmatmul.f32.gmra.mxu0 %v7635
        %v7750 = vpop.f32.mrf.mxu0
        %v7751 = vadd.f32 0.0, %v7750
        %7752 = vmatmul.f32.gmra.mxu0 %v7638
        %v7753 = vpop.f32.mrf.mxu0
        %v7754 = vadd.f32 0.0, %v7753
        %7755 = vmatmul.f32.gmra.mxu0 %v7641
        %v7756 = vpop.f32.mrf.mxu0
        %v7757 = vadd.f32 0.0, %v7756
        %7758 = vmatmul.f32.gmra.mxu0 %v7644
        %v7759 = vpop.f32.mrf.mxu0
        %v7760 = vadd.f32 0.0, %v7759
        %7761 = vmatmul.f32.gmra.mxu0 %v7647
        %v7762 = vpop.f32.mrf.mxu0
        %v7763 = vadd.f32 0.0, %v7762
        %7764 = vmatmul.f32.gmra.mxu0 %v7650
        %v7765 = vpop.f32.mrf.mxu0
        %v7766 = vadd.f32 0.0, %v7765
        %7767 = vmatmul.f32.gmra.mxu0 %v7653
        %v7768 = vpop.f32.mrf.mxu0
        %v7769 = vadd.f32 0.0, %v7768
        %7770 = vmatmul.f32.gmra.mxu0 %v7656
        %v7771 = vpop.f32.mrf.mxu0
        %v7772 = vadd.f32 0.0, %v7771
        %7773 = vmatmul.f32.gmra.mxu0 %v7659
        %v7774 = vpop.f32.mrf.mxu0
        %v7775 = vadd.f32 0.0, %v7774
        %7776 = vmatmul.f32.gmra.mxu0 %v7662
        %v7777 = vpop.f32.mrf.mxu0
        %v7778 = vadd.f32 0.0, %v7777
        %7779 = vmatmul.f32.gmra.mxu0 %v7665
        %v7780 = vpop.f32.mrf.mxu0
        %v7781 = vadd.f32 0.0, %v7780
        %7782 = vdwg.mxu0
        %v7783 = vadd.f32 %v7507, %v7688
        %v7784 = vadd.f32 %v7508, %v7691
        %v7785 = vadd.f32 %v7509, %v7694
        %v7786 = vadd.f32 %v7510, %v7697
        %v7787 = vadd.f32 %v7511, %v7700
        %v7788 = vadd.f32 %v7512, %v7703
        %v7789 = vadd.f32 %v7513, %v7706
        %v7790 = vadd.f32 %v7514, %v7709
        %v7791 = vadd.f32 %v7515, %v7712
        %v7792 = vadd.f32 %v7516, %v7715
        %v7793 = vadd.f32 %v7517, %v7718
        %v7794 = vadd.f32 %v7518, %v7721
        %v7795 = vadd.f32 %v7519, %v7724
        %v7796 = vadd.f32 %v7520, %v7727
        %v7797 = vadd.f32 %v7521, %v7730
        %v7798 = vadd.f32 %v7522, %v7733
        %v7799 = vadd.f32 %v7523, %v7736
        %v7800 = vadd.f32 %v7524, %v7739
        %v7801 = vadd.f32 %v7525, %v7742
        %v7802 = vadd.f32 %v7526, %v7745
        %v7803 = vadd.f32 %v7527, %v7748
        %v7804 = vadd.f32 %v7528, %v7751
        %v7805 = vadd.f32 %v7529, %v7754
        %v7806 = vadd.f32 %v7530, %v7757
        %v7807 = vadd.f32 %v7531, %v7760
        %v7808 = vadd.f32 %v7532, %v7763
        %v7809 = vadd.f32 %v7533, %v7766
        %v7810 = vadd.f32 %v7534, %v7769
        %v7811 = vadd.f32 %v7535, %v7772
        %v7812 = vadd.f32 %v7536, %v7775
        %v7813 = vadd.f32 %v7537, %v7778
        %v7814 = vadd.f32 %v7538, %v7781
        %v7815 = vld [vmem:[%s6177] sm:$0xff]
        %v7816 = vld [vmem:[%s6177 + $0x8] sm:$0xff]
        %v7817 = vld [vmem:[%s6177 + $0x18] sm:$0xff]
        %v7818 = vld [vmem:[%s6177 + $0x20] sm:$0xff]
        %v7819 = vld [vmem:[%s6177 + $0x30] sm:$0xff]
        %v7820 = vld [vmem:[%s6177 + $0x38] sm:$0xff]
        %v7821 = vld [vmem:[%s6177 + $0x48] sm:$0xff]
        %v7822 = vld [vmem:[%s6177 + $0x50] sm:$0xff]
        %v7823 = vld [vmem:[%s6177 + $0x60] sm:$0xff]
        %v7824 = vld [vmem:[%s6177 + $0x68] sm:$0xff]
        %v7825 = vld [vmem:[%s6177 + $0x78] sm:$0xff]
        %v7826 = vld [vmem:[%s6177 + $0x80] sm:$0xff]
        %v7827 = vld [vmem:[%s6177 + $0x90] sm:$0xff]
        %v7828 = vld [vmem:[%s6177 + $0x98] sm:$0xff]
        %v7829 = vld [vmem:[%s6177 + $0xa8] sm:$0xff]
        %v7830 = vld [vmem:[%s6177 + $0xb0] sm:$0xff]
        %v7831 = vld [vmem:[%s6177 + $0xc0] sm:$0xff]
        %v7832 = vld [vmem:[%s6177 + $0xc8] sm:$0xff]
        %v7833 = vld [vmem:[%s6177 + $0xd8] sm:$0xff]
        %v7834 = vld [vmem:[%s6177 + $0xe0] sm:$0xff]
        %v7835 = vld [vmem:[%s6177 + $0xf0] sm:$0xff]
        %v7836 = vld [vmem:[%s6177 + $0xf8] sm:$0xff]
        %v7837 = vld [vmem:[%s6177 + $0x108] sm:$0xff]
        %v7838 = vld [vmem:[%s6177 + $0x110] sm:$0xff]
        %v7839 = vld [vmem:[%s6177 + $0x120] sm:$0xff]
        %v7840 = vld [vmem:[%s6177 + $0x128] sm:$0xff]
        %v7841 = vld [vmem:[%s6177 + $0x138] sm:$0xff]
        %v7842 = vld [vmem:[%s6177 + $0x140] sm:$0xff]
        %v7843 = vld [vmem:[%s6177 + $0x150] sm:$0xff]
        %v7844 = vld [vmem:[%s6177 + $0x158] sm:$0xff]
        %v7845 = vld [vmem:[%s6177 + $0x168] sm:$0xff]
        %v7846 = vld [vmem:[%s6177 + $0x170] sm:$0xff]
        %v7848 = vsel %vm540, %v7815, 0
        %v7851 = vsel %vm540, %v7816, 0
        %v7854 = vsel %vm540, %v7817, 0
        %v7857 = vsel %vm540, %v7818, 0
        %v7860 = vsel %vm540, %v7819, 0
        %v7863 = vsel %vm540, %v7820, 0
        %v7866 = vsel %vm540, %v7821, 0
        %v7869 = vsel %vm540, %v7822, 0
        %v7872 = vsel %vm540, %v7823, 0
        %v7875 = vsel %vm540, %v7824, 0
        %v7878 = vsel %vm540, %v7825, 0
        %v7881 = vsel %vm540, %v7826, 0
        %v7884 = vsel %vm540, %v7827, 0
        %v7887 = vsel %vm540, %v7828, 0
        %v7890 = vsel %vm540, %v7829, 0
        %v7893 = vsel %vm540, %v7830, 0
        %v7896 = vsel %vm540, %v7831, 0
        %v7899 = vsel %vm540, %v7832, 0
        %v7902 = vsel %vm540, %v7833, 0
        %v7905 = vsel %vm540, %v7834, 0
        %v7908 = vsel %vm540, %v7835, 0
        %v7911 = vsel %vm540, %v7836, 0
        %v7914 = vsel %vm540, %v7837, 0
        %v7917 = vsel %vm540, %v7838, 0
        %v7920 = vsel %vm540, %v7839, 0
        %v7923 = vsel %vm540, %v7840, 0
        %v7926 = vsel %vm540, %v7841, 0
        %v7929 = vsel %vm540, %v7842, 0
        %v7932 = vsel %vm540, %v7843, 0
        %v7935 = vsel %vm540, %v7844, 0
        %v7938 = vsel %vm540, %v7845, 0
        %v7941 = vsel %vm540, %v7846, 0
        %v7944 = vsel %vm6382, %v682, 0
        %7946 = vmatpush.msra.mxu0 0.0
        %7947 = vmatpush.msra.mxu0 0.0
        %7948 = vmatpush.msra.mxu0 0.0
        %7949 = vmatpush.msra.mxu0 0.0
        %7950 = vmatpush.msra.mxu0 0.0
        %7951 = vmatpush.msra.mxu0 0.0
        %7952 = vmatpush.msra.mxu0 0.0
        %7953 = vmatpush.msra.mxu0 0.0
        %7954 = vmatpush.msra.mxu0 0.0
        %7955 = vmatpush.msra.mxu0 0.0
        %7956 = vmatpush.msra.mxu0 0.0
        %7957 = vmatpush.msra.mxu0 0.0
        %7958 = vmatpush.msra.mxu0 0.0
        %7959 = vmatpush.msra.mxu0 0.0
        %7960 = vmatpush.msra.mxu0 0.0
        %7961 = vmatpush.msra.mxu0 %v7944
        %7962 = vmatmul.f32.gmra.mxu0 %v7848
        %v7963 = vpop.f32.mrf.mxu0
        %v7964 = vadd.f32 0.0, %v7963
        %7965 = vmatmul.f32.gmra.mxu0 %v7851
        %v7966 = vpop.f32.mrf.mxu0
        %v7967 = vadd.f32 0.0, %v7966
        %7968 = vmatmul.f32.gmra.mxu0 %v7854
        %v7969 = vpop.f32.mrf.mxu0
        %v7970 = vadd.f32 0.0, %v7969
        %7971 = vmatmul.f32.gmra.mxu0 %v7857
        %v7972 = vpop.f32.mrf.mxu0
        %v7973 = vadd.f32 0.0, %v7972
        %7974 = vmatmul.f32.gmra.mxu0 %v7860
        %v7975 = vpop.f32.mrf.mxu0
        %v7976 = vadd.f32 0.0, %v7975
        %7977 = vmatmul.f32.gmra.mxu0 %v7863
        %v7978 = vpop.f32.mrf.mxu0
        %v7979 = vadd.f32 0.0, %v7978
        %7980 = vmatmul.f32.gmra.mxu0 %v7866
        %v7981 = vpop.f32.mrf.mxu0
        %v7982 = vadd.f32 0.0, %v7981
        %7983 = vmatmul.f32.gmra.mxu0 %v7869
        %v7984 = vpop.f32.mrf.mxu0
        %v7985 = vadd.f32 0.0, %v7984
        %7986 = vmatmul.f32.gmra.mxu0 %v7872
        %v7987 = vpop.f32.mrf.mxu0
        %v7988 = vadd.f32 0.0, %v7987
        %7989 = vmatmul.f32.gmra.mxu0 %v7875
        %v7990 = vpop.f32.mrf.mxu0
        %v7991 = vadd.f32 0.0, %v7990
        %7992 = vmatmul.f32.gmra.mxu0 %v7878
        %v7993 = vpop.f32.mrf.mxu0
        %v7994 = vadd.f32 0.0, %v7993
        %7995 = vmatmul.f32.gmra.mxu0 %v7881
        %v7996 = vpop.f32.mrf.mxu0
        %v7997 = vadd.f32 0.0, %v7996
        %7998 = vmatmul.f32.gmra.mxu0 %v7884
        %v7999 = vpop.f32.mrf.mxu0
        %v8000 = vadd.f32 0.0, %v7999
        %8001 = vmatmul.f32.gmra.mxu0 %v7887
        %v8002 = vpop.f32.mrf.mxu0
        %v8003 = vadd.f32 0.0, %v8002
        %8004 = vmatmul.f32.gmra.mxu0 %v7890
        %v8005 = vpop.f32.mrf.mxu0
        %v8006 = vadd.f32 0.0, %v8005
        %8007 = vmatmul.f32.gmra.mxu0 %v7893
        %v8008 = vpop.f32.mrf.mxu0
        %v8009 = vadd.f32 0.0, %v8008
        %8010 = vmatmul.f32.gmra.mxu0 %v7896
        %v8011 = vpop.f32.mrf.mxu0
        %v8012 = vadd.f32 0.0, %v8011
        %8013 = vmatmul.f32.gmra.mxu0 %v7899
        %v8014 = vpop.f32.mrf.mxu0
        %v8015 = vadd.f32 0.0, %v8014
        %8016 = vmatmul.f32.gmra.mxu0 %v7902
        %v8017 = vpop.f32.mrf.mxu0
        %v8018 = vadd.f32 0.0, %v8017
        %8019 = vmatmul.f32.gmra.mxu0 %v7905
        %v8020 = vpop.f32.mrf.mxu0
        %v8021 = vadd.f32 0.0, %v8020
        %8022 = vmatmul.f32.gmra.mxu0 %v7908
        %v8023 = vpop.f32.mrf.mxu0
        %v8024 = vadd.f32 0.0, %v8023
        %8025 = vmatmul.f32.gmra.mxu0 %v7911
        %v8026 = vpop.f32.mrf.mxu0
        %v8027 = vadd.f32 0.0, %v8026
        %8028 = vmatmul.f32.gmra.mxu0 %v7914
        %v8029 = vpop.f32.mrf.mxu0
        %v8030 = vadd.f32 0.0, %v8029
        %8031 = vmatmul.f32.gmra.mxu0 %v7917
        %v8032 = vpop.f32.mrf.mxu0
        %v8033 = vadd.f32 0.0, %v8032
        %8034 = vmatmul.f32.gmra.mxu0 %v7920
        %v8035 = vpop.f32.mrf.mxu0
        %v8036 = vadd.f32 0.0, %v8035
        %8037 = vmatmul.f32.gmra.mxu0 %v7923
        %v8038 = vpop.f32.mrf.mxu0
        %v8039 = vadd.f32 0.0, %v8038
        %8040 = vmatmul.f32.gmra.mxu0 %v7926
        %v8041 = vpop.f32.mrf.mxu0
        %v8042 = vadd.f32 0.0, %v8041
        %8043 = vmatmul.f32.gmra.mxu0 %v7929
        %v8044 = vpop.f32.mrf.mxu0
        %v8045 = vadd.f32 0.0, %v8044
        %8046 = vmatmul.f32.gmra.mxu0 %v7932
        %v8047 = vpop.f32.mrf.mxu0
        %v8048 = vadd.f32 0.0, %v8047
        %8049 = vmatmul.f32.gmra.mxu0 %v7935
        %v8050 = vpop.f32.mrf.mxu0
        %v8051 = vadd.f32 0.0, %v8050
        %8052 = vmatmul.f32.gmra.mxu0 %v7938
        %v8053 = vpop.f32.mrf.mxu0
        %v8054 = vadd.f32 0.0, %v8053
        %8055 = vmatmul.f32.gmra.mxu0 %v7941
        %v8056 = vpop.f32.mrf.mxu0
        %v8057 = vadd.f32 0.0, %v8056
        %8058 = vdwg.mxu0
        %v8059 = vadd.f32 %v7783, %v7964
        %v8060 = vadd.f32 %v7784, %v7967
        %v8061 = vadd.f32 %v7785, %v7970
        %v8062 = vadd.f32 %v7786, %v7973
        %v8063 = vadd.f32 %v7787, %v7976
        %v8064 = vadd.f32 %v7788, %v7979
        %v8065 = vadd.f32 %v7789, %v7982
        %v8066 = vadd.f32 %v7790, %v7985
        %v8067 = vadd.f32 %v7791, %v7988
        %v8068 = vadd.f32 %v7792, %v7991
        %v8069 = vadd.f32 %v7793, %v7994
        %v8070 = vadd.f32 %v7794, %v7997
        %v8071 = vadd.f32 %v7795, %v8000
        %v8072 = vadd.f32 %v7796, %v8003
        %v8073 = vadd.f32 %v7797, %v8006
        %v8074 = vadd.f32 %v7798, %v8009
        %v8075 = vadd.f32 %v7799, %v8012
        %v8076 = vadd.f32 %v7800, %v8015
        %v8077 = vadd.f32 %v7801, %v8018
        %v8078 = vadd.f32 %v7802, %v8021
        %v8079 = vadd.f32 %v7803, %v8024
        %v8080 = vadd.f32 %v7804, %v8027
        %v8081 = vadd.f32 %v7805, %v8030
        %v8082 = vadd.f32 %v7806, %v8033
        %v8083 = vadd.f32 %v7807, %v8036
        %v8084 = vadd.f32 %v7808, %v8039
        %v8085 = vadd.f32 %v7809, %v8042
        %v8086 = vadd.f32 %v7810, %v8045
        %v8087 = vadd.f32 %v7811, %v8048
        %v8088 = vadd.f32 %v7812, %v8051
        %v8089 = vadd.f32 %v7813, %v8054
        %v8090 = vadd.f32 %v7814, %v8057
        %v8091 = vld [vmem:[%s6177 + $0x1] sm:$0xff]
        %v8092 = vld [vmem:[%s6177 + $0x9] sm:$0xff]
        %v8093 = vld [vmem:[%s6177 + $0x19] sm:$0xff]
        %v8094 = vld [vmem:[%s6177 + $0x21] sm:$0xff]
        %v8095 = vld [vmem:[%s6177 + $0x31] sm:$0xff]
        %v8096 = vld [vmem:[%s6177 + $0x39] sm:$0xff]
        %v8097 = vld [vmem:[%s6177 + $0x49] sm:$0xff]
        %v8098 = vld [vmem:[%s6177 + $0x51] sm:$0xff]
        %v8099 = vld [vmem:[%s6177 + $0x61] sm:$0xff]
        %v8100 = vld [vmem:[%s6177 + $0x69] sm:$0xff]
        %v8101 = vld [vmem:[%s6177 + $0x79] sm:$0xff]
        %v8102 = vld [vmem:[%s6177 + $0x81] sm:$0xff]
        %v8103 = vld [vmem:[%s6177 + $0x91] sm:$0xff]
        %v8104 = vld [vmem:[%s6177 + $0x99] sm:$0xff]
        %v8105 = vld [vmem:[%s6177 + $0xa9] sm:$0xff]
        %v8106 = vld [vmem:[%s6177 + $0xb1] sm:$0xff]
        %v8107 = vld [vmem:[%s6177 + $0xc1] sm:$0xff]
        %v8108 = vld [vmem:[%s6177 + $0xc9] sm:$0xff]
        %v8109 = vld [vmem:[%s6177 + $0xd9] sm:$0xff]
        %v8110 = vld [vmem:[%s6177 + $0xe1] sm:$0xff]
        %v8111 = vld [vmem:[%s6177 + $0xf1] sm:$0xff]
        %v8112 = vld [vmem:[%s6177 + $0xf9] sm:$0xff]
        %v8113 = vld [vmem:[%s6177 + $0x109] sm:$0xff]
        %v8114 = vld [vmem:[%s6177 + $0x111] sm:$0xff]
        %v8115 = vld [vmem:[%s6177 + $0x121] sm:$0xff]
        %v8116 = vld [vmem:[%s6177 + $0x129] sm:$0xff]
        %v8117 = vld [vmem:[%s6177 + $0x139] sm:$0xff]
        %v8118 = vld [vmem:[%s6177 + $0x141] sm:$0xff]
        %v8119 = vld [vmem:[%s6177 + $0x151] sm:$0xff]
        %v8120 = vld [vmem:[%s6177 + $0x159] sm:$0xff]
        %v8121 = vld [vmem:[%s6177 + $0x169] sm:$0xff]
        %v8122 = vld [vmem:[%s6177 + $0x171] sm:$0xff]
        %v8124 = vsel %vm540, %v8091, 0
        %v8127 = vsel %vm540, %v8092, 0
        %v8130 = vsel %vm540, %v8093, 0
        %v8133 = vsel %vm540, %v8094, 0
        %v8136 = vsel %vm540, %v8095, 0
        %v8139 = vsel %vm540, %v8096, 0
        %v8142 = vsel %vm540, %v8097, 0
        %v8145 = vsel %vm540, %v8098, 0
        %v8148 = vsel %vm540, %v8099, 0
        %v8151 = vsel %vm540, %v8100, 0
        %v8154 = vsel %vm540, %v8101, 0
        %v8157 = vsel %vm540, %v8102, 0
        %v8160 = vsel %vm540, %v8103, 0
        %v8163 = vsel %vm540, %v8104, 0
        %v8166 = vsel %vm540, %v8105, 0
        %v8169 = vsel %vm540, %v8106, 0
        %v8172 = vsel %vm540, %v8107, 0
        %v8175 = vsel %vm540, %v8108, 0
        %v8178 = vsel %vm540, %v8109, 0
        %v8181 = vsel %vm540, %v8110, 0
        %v8184 = vsel %vm540, %v8111, 0
        %v8187 = vsel %vm540, %v8112, 0
        %v8190 = vsel %vm540, %v8113, 0
        %v8193 = vsel %vm540, %v8114, 0
        %v8196 = vsel %vm540, %v8115, 0
        %v8199 = vsel %vm540, %v8116, 0
        %v8202 = vsel %vm540, %v8117, 0
        %v8205 = vsel %vm540, %v8118, 0
        %v8208 = vsel %vm540, %v8119, 0
        %v8211 = vsel %vm540, %v8120, 0
        %v8214 = vsel %vm540, %v8121, 0
        %v8217 = vsel %vm540, %v8122, 0
        %v8220 = vsel %vm6382, %v683, 0
        %8222 = vmatpush.msra.mxu0 0.0
        %8223 = vmatpush.msra.mxu0 0.0
        %8224 = vmatpush.msra.mxu0 0.0
        %8225 = vmatpush.msra.mxu0 0.0
        %8226 = vmatpush.msra.mxu0 0.0
        %8227 = vmatpush.msra.mxu0 0.0
        %8228 = vmatpush.msra.mxu0 0.0
        %8229 = vmatpush.msra.mxu0 0.0
        %8230 = vmatpush.msra.mxu0 0.0
        %8231 = vmatpush.msra.mxu0 0.0
        %8232 = vmatpush.msra.mxu0 0.0
        %8233 = vmatpush.msra.mxu0 0.0
        %8234 = vmatpush.msra.mxu0 0.0
        %8235 = vmatpush.msra.mxu0 0.0
        %8236 = vmatpush.msra.mxu0 0.0
        %8237 = vmatpush.msra.mxu0 %v8220
        %8238 = vmatmul.f32.gmra.mxu0 %v8124
        %v8239 = vpop.f32.mrf.mxu0
        %v8240 = vadd.f32 0.0, %v8239
        %8241 = vmatmul.f32.gmra.mxu0 %v8127
        %v8242 = vpop.f32.mrf.mxu0
        %v8243 = vadd.f32 0.0, %v8242
        %8244 = vmatmul.f32.gmra.mxu0 %v8130
        %v8245 = vpop.f32.mrf.mxu0
        %v8246 = vadd.f32 0.0, %v8245
        %8247 = vmatmul.f32.gmra.mxu0 %v8133
        %v8248 = vpop.f32.mrf.mxu0
        %v8249 = vadd.f32 0.0, %v8248
        %8250 = vmatmul.f32.gmra.mxu0 %v8136
        %v8251 = vpop.f32.mrf.mxu0
        %v8252 = vadd.f32 0.0, %v8251
        %8253 = vmatmul.f32.gmra.mxu0 %v8139
        %v8254 = vpop.f32.mrf.mxu0
        %v8255 = vadd.f32 0.0, %v8254
        %8256 = vmatmul.f32.gmra.mxu0 %v8142
        %v8257 = vpop.f32.mrf.mxu0
        %v8258 = vadd.f32 0.0, %v8257
        %8259 = vmatmul.f32.gmra.mxu0 %v8145
        %v8260 = vpop.f32.mrf.mxu0
        %v8261 = vadd.f32 0.0, %v8260
        %8262 = vmatmul.f32.gmra.mxu0 %v8148
        %v8263 = vpop.f32.mrf.mxu0
        %v8264 = vadd.f32 0.0, %v8263
        %8265 = vmatmul.f32.gmra.mxu0 %v8151
        %v8266 = vpop.f32.mrf.mxu0
        %v8267 = vadd.f32 0.0, %v8266
        %8268 = vmatmul.f32.gmra.mxu0 %v8154
        %v8269 = vpop.f32.mrf.mxu0
        %v8270 = vadd.f32 0.0, %v8269
        %8271 = vmatmul.f32.gmra.mxu0 %v8157
        %v8272 = vpop.f32.mrf.mxu0
        %v8273 = vadd.f32 0.0, %v8272
        %8274 = vmatmul.f32.gmra.mxu0 %v8160
        %v8275 = vpop.f32.mrf.mxu0
        %v8276 = vadd.f32 0.0, %v8275
        %8277 = vmatmul.f32.gmra.mxu0 %v8163
        %v8278 = vpop.f32.mrf.mxu0
        %v8279 = vadd.f32 0.0, %v8278
        %8280 = vmatmul.f32.gmra.mxu0 %v8166
        %v8281 = vpop.f32.mrf.mxu0
        %v8282 = vadd.f32 0.0, %v8281
        %8283 = vmatmul.f32.gmra.mxu0 %v8169
        %v8284 = vpop.f32.mrf.mxu0
        %v8285 = vadd.f32 0.0, %v8284
        %8286 = vmatmul.f32.gmra.mxu0 %v8172
        %v8287 = vpop.f32.mrf.mxu0
        %v8288 = vadd.f32 0.0, %v8287
        %8289 = vmatmul.f32.gmra.mxu0 %v8175
        %v8290 = vpop.f32.mrf.mxu0
        %v8291 = vadd.f32 0.0, %v8290
        %8292 = vmatmul.f32.gmra.mxu0 %v8178
        %v8293 = vpop.f32.mrf.mxu0
        %v8294 = vadd.f32 0.0, %v8293
        %8295 = vmatmul.f32.gmra.mxu0 %v8181
        %v8296 = vpop.f32.mrf.mxu0
        %v8297 = vadd.f32 0.0, %v8296
        %8298 = vmatmul.f32.gmra.mxu0 %v8184
        %v8299 = vpop.f32.mrf.mxu0
        %v8300 = vadd.f32 0.0, %v8299
        %8301 = vmatmul.f32.gmra.mxu0 %v8187
        %v8302 = vpop.f32.mrf.mxu0
        %v8303 = vadd.f32 0.0, %v8302
        %8304 = vmatmul.f32.gmra.mxu0 %v8190
        %v8305 = vpop.f32.mrf.mxu0
        %v8306 = vadd.f32 0.0, %v8305
        %8307 = vmatmul.f32.gmra.mxu0 %v8193
        %v8308 = vpop.f32.mrf.mxu0
        %v8309 = vadd.f32 0.0, %v8308
        %8310 = vmatmul.f32.gmra.mxu0 %v8196
        %v8311 = vpop.f32.mrf.mxu0
        %v8312 = vadd.f32 0.0, %v8311
        %8313 = vmatmul.f32.gmra.mxu0 %v8199
        %v8314 = vpop.f32.mrf.mxu0
        %v8315 = vadd.f32 0.0, %v8314
        %8316 = vmatmul.f32.gmra.mxu0 %v8202
        %v8317 = vpop.f32.mrf.mxu0
        %v8318 = vadd.f32 0.0, %v8317
        %8319 = vmatmul.f32.gmra.mxu0 %v8205
        %v8320 = vpop.f32.mrf.mxu0
        %v8321 = vadd.f32 0.0, %v8320
        %8322 = vmatmul.f32.gmra.mxu0 %v8208
        %v8323 = vpop.f32.mrf.mxu0
        %v8324 = vadd.f32 0.0, %v8323
        %8325 = vmatmul.f32.gmra.mxu0 %v8211
        %v8326 = vpop.f32.mrf.mxu0
        %v8327 = vadd.f32 0.0, %v8326
        %8328 = vmatmul.f32.gmra.mxu0 %v8214
        %v8329 = vpop.f32.mrf.mxu0
        %v8330 = vadd.f32 0.0, %v8329
        %8331 = vmatmul.f32.gmra.mxu0 %v8217
        %v8332 = vpop.f32.mrf.mxu0
        %v8333 = vadd.f32 0.0, %v8332
        %8334 = vdwg.mxu0
        %v8335 = vadd.f32 %v8059, %v8240
        %v8336 = vadd.f32 %v8060, %v8243
        %v8337 = vadd.f32 %v8061, %v8246
        %v8338 = vadd.f32 %v8062, %v8249
        %v8339 = vadd.f32 %v8063, %v8252
        %v8340 = vadd.f32 %v8064, %v8255
        %v8341 = vadd.f32 %v8065, %v8258
        %v8342 = vadd.f32 %v8066, %v8261
        %v8343 = vadd.f32 %v8067, %v8264
        %v8344 = vadd.f32 %v8068, %v8267
        %v8345 = vadd.f32 %v8069, %v8270
        %v8346 = vadd.f32 %v8070, %v8273
        %v8347 = vadd.f32 %v8071, %v8276
        %v8348 = vadd.f32 %v8072, %v8279
        %v8349 = vadd.f32 %v8073, %v8282
        %v8350 = vadd.f32 %v8074, %v8285
        %v8351 = vadd.f32 %v8075, %v8288
        %v8352 = vadd.f32 %v8076, %v8291
        %v8353 = vadd.f32 %v8077, %v8294
        %v8354 = vadd.f32 %v8078, %v8297
        %v8355 = vadd.f32 %v8079, %v8300
        %v8356 = vadd.f32 %v8080, %v8303
        %v8357 = vadd.f32 %v8081, %v8306
        %v8358 = vadd.f32 %v8082, %v8309
        %v8359 = vadd.f32 %v8083, %v8312
        %v8360 = vadd.f32 %v8084, %v8315
        %v8361 = vadd.f32 %v8085, %v8318
        %v8362 = vadd.f32 %v8086, %v8321
        %v8363 = vadd.f32 %v8087, %v8324
        %v8364 = vadd.f32 %v8088, %v8327
        %v8365 = vadd.f32 %v8089, %v8330
        %v8366 = vadd.f32 %v8090, %v8333
        %v8367 = vld [vmem:[%s6177 + $0x2] sm:$0xff]
        %v8368 = vld [vmem:[%s6177 + $0xa] sm:$0xff]
        %v8369 = vld [vmem:[%s6177 + $0x1a] sm:$0xff]
        %v8370 = vld [vmem:[%s6177 + $0x22] sm:$0xff]
        %v8371 = vld [vmem:[%s6177 + $0x32] sm:$0xff]
        %v8372 = vld [vmem:[%s6177 + $0x3a] sm:$0xff]
        %v8373 = vld [vmem:[%s6177 + $0x4a] sm:$0xff]
        %v8374 = vld [vmem:[%s6177 + $0x52] sm:$0xff]
        %v8375 = vld [vmem:[%s6177 + $0x62] sm:$0xff]
        %v8376 = vld [vmem:[%s6177 + $0x6a] sm:$0xff]
        %v8377 = vld [vmem:[%s6177 + $0x7a] sm:$0xff]
        %v8378 = vld [vmem:[%s6177 + $0x82] sm:$0xff]
        %v8379 = vld [vmem:[%s6177 + $0x92] sm:$0xff]
        %v8380 = vld [vmem:[%s6177 + $0x9a] sm:$0xff]
        %v8381 = vld [vmem:[%s6177 + $0xaa] sm:$0xff]
        %v8382 = vld [vmem:[%s6177 + $0xb2] sm:$0xff]
        %v8383 = vld [vmem:[%s6177 + $0xc2] sm:$0xff]
        %v8384 = vld [vmem:[%s6177 + $0xca] sm:$0xff]
        %v8385 = vld [vmem:[%s6177 + $0xda] sm:$0xff]
        %v8386 = vld [vmem:[%s6177 + $0xe2] sm:$0xff]
        %v8387 = vld [vmem:[%s6177 + $0xf2] sm:$0xff]
        %v8388 = vld [vmem:[%s6177 + $0xfa] sm:$0xff]
        %v8389 = vld [vmem:[%s6177 + $0x10a] sm:$0xff]
        %v8390 = vld [vmem:[%s6177 + $0x112] sm:$0xff]
        %v8391 = vld [vmem:[%s6177 + $0x122] sm:$0xff]
        %v8392 = vld [vmem:[%s6177 + $0x12a] sm:$0xff]
        %v8393 = vld [vmem:[%s6177 + $0x13a] sm:$0xff]
        %v8394 = vld [vmem:[%s6177 + $0x142] sm:$0xff]
        %v8395 = vld [vmem:[%s6177 + $0x152] sm:$0xff]
        %v8396 = vld [vmem:[%s6177 + $0x15a] sm:$0xff]
        %v8397 = vld [vmem:[%s6177 + $0x16a] sm:$0xff]
        %v8398 = vld [vmem:[%s6177 + $0x172] sm:$0xff]
        %v8400 = vsel %vm540, %v8367, 0
        %v8403 = vsel %vm540, %v8368, 0
        %v8406 = vsel %vm540, %v8369, 0
        %v8409 = vsel %vm540, %v8370, 0
        %v8412 = vsel %vm540, %v8371, 0
        %v8415 = vsel %vm540, %v8372, 0
        %v8418 = vsel %vm540, %v8373, 0
        %v8421 = vsel %vm540, %v8374, 0
        %v8424 = vsel %vm540, %v8375, 0
        %v8427 = vsel %vm540, %v8376, 0
        %v8430 = vsel %vm540, %v8377, 0
        %v8433 = vsel %vm540, %v8378, 0
        %v8436 = vsel %vm540, %v8379, 0
        %v8439 = vsel %vm540, %v8380, 0
        %v8442 = vsel %vm540, %v8381, 0
        %v8445 = vsel %vm540, %v8382, 0
        %v8448 = vsel %vm540, %v8383, 0
        %v8451 = vsel %vm540, %v8384, 0
        %v8454 = vsel %vm540, %v8385, 0
        %v8457 = vsel %vm540, %v8386, 0
        %v8460 = vsel %vm540, %v8387, 0
        %v8463 = vsel %vm540, %v8388, 0
        %v8466 = vsel %vm540, %v8389, 0
        %v8469 = vsel %vm540, %v8390, 0
        %v8472 = vsel %vm540, %v8391, 0
        %v8475 = vsel %vm540, %v8392, 0
        %v8478 = vsel %vm540, %v8393, 0
        %v8481 = vsel %vm540, %v8394, 0
        %v8484 = vsel %vm540, %v8395, 0
        %v8487 = vsel %vm540, %v8396, 0
        %v8490 = vsel %vm540, %v8397, 0
        %v8493 = vsel %vm540, %v8398, 0
        %v8496 = vsel %vm6382, %v684, 0
        %8498 = vmatpush.msra.mxu0 0.0
        %8499 = vmatpush.msra.mxu0 0.0
        %8500 = vmatpush.msra.mxu0 0.0
        %8501 = vmatpush.msra.mxu0 0.0
        %8502 = vmatpush.msra.mxu0 0.0
        %8503 = vmatpush.msra.mxu0 0.0
        %8504 = vmatpush.msra.mxu0 0.0
        %8505 = vmatpush.msra.mxu0 0.0
        %8506 = vmatpush.msra.mxu0 0.0
        %8507 = vmatpush.msra.mxu0 0.0
        %8508 = vmatpush.msra.mxu0 0.0
        %8509 = vmatpush.msra.mxu0 0.0
        %8510 = vmatpush.msra.mxu0 0.0
        %8511 = vmatpush.msra.mxu0 0.0
        %8512 = vmatpush.msra.mxu0 0.0
        %8513 = vmatpush.msra.mxu0 %v8496
        %8514 = vmatmul.f32.gmra.mxu0 %v8400
        %v8515 = vpop.f32.mrf.mxu0
        %v8516 = vadd.f32 0.0, %v8515
        %8517 = vmatmul.f32.gmra.mxu0 %v8403
        %v8518 = vpop.f32.mrf.mxu0
        %v8519 = vadd.f32 0.0, %v8518
        %8520 = vmatmul.f32.gmra.mxu0 %v8406
        %v8521 = vpop.f32.mrf.mxu0
        %v8522 = vadd.f32 0.0, %v8521
        %8523 = vmatmul.f32.gmra.mxu0 %v8409
        %v8524 = vpop.f32.mrf.mxu0
        %v8525 = vadd.f32 0.0, %v8524
        %8526 = vmatmul.f32.gmra.mxu0 %v8412
        %v8527 = vpop.f32.mrf.mxu0
        %v8528 = vadd.f32 0.0, %v8527
        %8529 = vmatmul.f32.gmra.mxu0 %v8415
        %v8530 = vpop.f32.mrf.mxu0
        %v8531 = vadd.f32 0.0, %v8530
        %8532 = vmatmul.f32.gmra.mxu0 %v8418
        %v8533 = vpop.f32.mrf.mxu0
        %v8534 = vadd.f32 0.0, %v8533
        %8535 = vmatmul.f32.gmra.mxu0 %v8421
        %v8536 = vpop.f32.mrf.mxu0
        %v8537 = vadd.f32 0.0, %v8536
        %8538 = vmatmul.f32.gmra.mxu0 %v8424
        %v8539 = vpop.f32.mrf.mxu0
        %v8540 = vadd.f32 0.0, %v8539
        %8541 = vmatmul.f32.gmra.mxu0 %v8427
        %v8542 = vpop.f32.mrf.mxu0
        %v8543 = vadd.f32 0.0, %v8542
        %8544 = vmatmul.f32.gmra.mxu0 %v8430
        %v8545 = vpop.f32.mrf.mxu0
        %v8546 = vadd.f32 0.0, %v8545
        %8547 = vmatmul.f32.gmra.mxu0 %v8433
        %v8548 = vpop.f32.mrf.mxu0
        %v8549 = vadd.f32 0.0, %v8548
        %8550 = vmatmul.f32.gmra.mxu0 %v8436
        %v8551 = vpop.f32.mrf.mxu0
        %v8552 = vadd.f32 0.0, %v8551
        %8553 = vmatmul.f32.gmra.mxu0 %v8439
        %v8554 = vpop.f32.mrf.mxu0
        %v8555 = vadd.f32 0.0, %v8554
        %8556 = vmatmul.f32.gmra.mxu0 %v8442
        %v8557 = vpop.f32.mrf.mxu0
        %v8558 = vadd.f32 0.0, %v8557
        %8559 = vmatmul.f32.gmra.mxu0 %v8445
        %v8560 = vpop.f32.mrf.mxu0
        %v8561 = vadd.f32 0.0, %v8560
        %8562 = vmatmul.f32.gmra.mxu0 %v8448
        %v8563 = vpop.f32.mrf.mxu0
        %v8564 = vadd.f32 0.0, %v8563
        %8565 = vmatmul.f32.gmra.mxu0 %v8451
        %v8566 = vpop.f32.mrf.mxu0
        %v8567 = vadd.f32 0.0, %v8566
        %8568 = vmatmul.f32.gmra.mxu0 %v8454
        %v8569 = vpop.f32.mrf.mxu0
        %v8570 = vadd.f32 0.0, %v8569
        %8571 = vmatmul.f32.gmra.mxu0 %v8457
        %v8572 = vpop.f32.mrf.mxu0
        %v8573 = vadd.f32 0.0, %v8572
        %8574 = vmatmul.f32.gmra.mxu0 %v8460
        %v8575 = vpop.f32.mrf.mxu0
        %v8576 = vadd.f32 0.0, %v8575
        %8577 = vmatmul.f32.gmra.mxu0 %v8463
        %v8578 = vpop.f32.mrf.mxu0
        %v8579 = vadd.f32 0.0, %v8578
        %8580 = vmatmul.f32.gmra.mxu0 %v8466
        %v8581 = vpop.f32.mrf.mxu0
        %v8582 = vadd.f32 0.0, %v8581
        %8583 = vmatmul.f32.gmra.mxu0 %v8469
        %v8584 = vpop.f32.mrf.mxu0
        %v8585 = vadd.f32 0.0, %v8584
        %8586 = vmatmul.f32.gmra.mxu0 %v8472
        %v8587 = vpop.f32.mrf.mxu0
        %v8588 = vadd.f32 0.0, %v8587
        %8589 = vmatmul.f32.gmra.mxu0 %v8475
        %v8590 = vpop.f32.mrf.mxu0
        %v8591 = vadd.f32 0.0, %v8590
        %8592 = vmatmul.f32.gmra.mxu0 %v8478
        %v8593 = vpop.f32.mrf.mxu0
        %v8594 = vadd.f32 0.0, %v8593
        %8595 = vmatmul.f32.gmra.mxu0 %v8481
        %v8596 = vpop.f32.mrf.mxu0
        %v8597 = vadd.f32 0.0, %v8596
        %8598 = vmatmul.f32.gmra.mxu0 %v8484
        %v8599 = vpop.f32.mrf.mxu0
        %v8600 = vadd.f32 0.0, %v8599
        %8601 = vmatmul.f32.gmra.mxu0 %v8487
        %v8602 = vpop.f32.mrf.mxu0
        %v8603 = vadd.f32 0.0, %v8602
        %8604 = vmatmul.f32.gmra.mxu0 %v8490
        %v8605 = vpop.f32.mrf.mxu0
        %v8606 = vadd.f32 0.0, %v8605
        %8607 = vmatmul.f32.gmra.mxu0 %v8493
        %v8608 = vpop.f32.mrf.mxu0
        %v8609 = vadd.f32 0.0, %v8608
        %8610 = vdwg.mxu0
        %v8611 = vadd.f32 %v8335, %v8516
        %v8612 = vadd.f32 %v8336, %v8519
        %v8613 = vadd.f32 %v8337, %v8522
        %v8614 = vadd.f32 %v8338, %v8525
        %v8615 = vadd.f32 %v8339, %v8528
        %v8616 = vadd.f32 %v8340, %v8531
        %v8617 = vadd.f32 %v8341, %v8534
        %v8618 = vadd.f32 %v8342, %v8537
        %v8619 = vadd.f32 %v8343, %v8540
        %v8620 = vadd.f32 %v8344, %v8543
        %v8621 = vadd.f32 %v8345, %v8546
        %v8622 = vadd.f32 %v8346, %v8549
        %v8623 = vadd.f32 %v8347, %v8552
        %v8624 = vadd.f32 %v8348, %v8555
        %v8625 = vadd.f32 %v8349, %v8558
        %v8626 = vadd.f32 %v8350, %v8561
        %v8627 = vadd.f32 %v8351, %v8564
        %v8628 = vadd.f32 %v8352, %v8567
        %v8629 = vadd.f32 %v8353, %v8570
        %v8630 = vadd.f32 %v8354, %v8573
        %v8631 = vadd.f32 %v8355, %v8576
        %v8632 = vadd.f32 %v8356, %v8579
        %v8633 = vadd.f32 %v8357, %v8582
        %v8634 = vadd.f32 %v8358, %v8585
        %v8635 = vadd.f32 %v8359, %v8588
        %v8636 = vadd.f32 %v8360, %v8591
        %v8637 = vadd.f32 %v8361, %v8594
        %v8638 = vadd.f32 %v8362, %v8597
        %v8639 = vadd.f32 %v8363, %v8600
        %v8640 = vadd.f32 %v8364, %v8603
        %v8641 = vadd.f32 %v8365, %v8606
        %v8642 = vadd.f32 %v8366, %v8609
        %v8644 = vperm.slane %v688, 0
        %v8646 = vadd.f32 %v8611, %v8644
        %v8647 = vadd.f32 %v8612, %v8644
        %v8648 = vadd.f32 %v8613, %v8644
        %v8649 = vadd.f32 %v8614, %v8644
        %v8650 = vadd.f32 %v8615, %v8644
        %v8651 = vadd.f32 %v8616, %v8644
        %v8652 = vadd.f32 %v8617, %v8644
        %v8653 = vadd.f32 %v8618, %v8644
        %v8654 = vadd.f32 %v8619, %v8644
        %v8655 = vadd.f32 %v8620, %v8644
        %v8656 = vadd.f32 %v8621, %v8644
        %v8657 = vadd.f32 %v8622, %v8644
        %v8658 = vadd.f32 %v8623, %v8644
        %v8659 = vadd.f32 %v8624, %v8644
        %v8660 = vadd.f32 %v8625, %v8644
        %v8661 = vadd.f32 %v8626, %v8644
        %v8662 = vadd.f32 %v8627, %v8644
        %v8663 = vadd.f32 %v8628, %v8644
        %v8664 = vadd.f32 %v8629, %v8644
        %v8665 = vadd.f32 %v8630, %v8644
        %v8666 = vadd.f32 %v8631, %v8644
        %v8667 = vadd.f32 %v8632, %v8644
        %v8668 = vadd.f32 %v8633, %v8644
        %v8669 = vadd.f32 %v8634, %v8644
        %v8670 = vadd.f32 %v8635, %v8644
        %v8671 = vadd.f32 %v8636, %v8644
        %v8672 = vadd.f32 %v8637, %v8644
        %v8673 = vadd.f32 %v8638, %v8644
        %v8674 = vadd.f32 %v8639, %v8644
        %v8675 = vadd.f32 %v8640, %v8644
        %v8676 = vadd.f32 %v8641, %v8644
        %v8677 = vadd.f32 %v8642, %v8644
        %v8678 = vsub.f32 0.0, %v8646
        %v8679 = vsub.f32 0.0, %v8647
        %v8680 = vsub.f32 0.0, %v8648
        %v8681 = vsub.f32 0.0, %v8649
        %v8682 = vsub.f32 0.0, %v8650
        %v8683 = vsub.f32 0.0, %v8651
        %v8684 = vsub.f32 0.0, %v8652
        %v8685 = vsub.f32 0.0, %v8653
        %v8686 = vsub.f32 0.0, %v8654
        %v8687 = vsub.f32 0.0, %v8655
        %v8688 = vsub.f32 0.0, %v8656
        %v8689 = vsub.f32 0.0, %v8657
        %v8690 = vsub.f32 0.0, %v8658
        %v8691 = vsub.f32 0.0, %v8659
        %v8692 = vsub.f32 0.0, %v8660
        %v8693 = vsub.f32 0.0, %v8661
        %v8694 = vsub.f32 0.0, %v8662
        %v8695 = vsub.f32 0.0, %v8663
        %v8696 = vsub.f32 0.0, %v8664
        %v8697 = vsub.f32 0.0, %v8665
        %v8698 = vsub.f32 0.0, %v8666
        %v8699 = vsub.f32 0.0, %v8667
        %v8700 = vsub.f32 0.0, %v8668
        %v8701 = vsub.f32 0.0, %v8669
        %v8702 = vsub.f32 0.0, %v8670
        %v8703 = vsub.f32 0.0, %v8671
        %v8704 = vsub.f32 0.0, %v8672
        %v8705 = vsub.f32 0.0, %v8673
        %v8706 = vsub.f32 0.0, %v8674
        %v8707 = vsub.f32 0.0, %v8675
        %v8708 = vsub.f32 0.0, %v8676
        %v8709 = vsub.f32 0.0, %v8677
        %v8710 = vmul.f32 %v8678, 1.442695
        %v8711 = vpow.pop %v8710
        %v8712 = vmul.f32 %v8679, 1.442695
        %v8713 = vpow.pop %v8712
        %v8714 = vmul.f32 %v8680, 1.442695
        %v8715 = vpow.pop %v8714
        %v8716 = vmul.f32 %v8681, 1.442695
        %v8717 = vpow.pop %v8716
        %v8718 = vmul.f32 %v8682, 1.442695
        %v8719 = vpow.pop %v8718
        %v8720 = vmul.f32 %v8683, 1.442695
        %v8721 = vpow.pop %v8720
        %v8722 = vmul.f32 %v8684, 1.442695
        %v8723 = vpow.pop %v8722
        %v8724 = vmul.f32 %v8685, 1.442695
        %v8725 = vpow.pop %v8724
        %v8726 = vmul.f32 %v8686, 1.442695
        %v8727 = vpow.pop %v8726
        %v8728 = vmul.f32 %v8687, 1.442695
        %v8729 = vpow.pop %v8728
        %v8730 = vmul.f32 %v8688, 1.442695
        %v8731 = vpow.pop %v8730
        %v8732 = vmul.f32 %v8689, 1.442695
        %v8733 = vpow.pop %v8732
        %v8734 = vmul.f32 %v8690, 1.442695
        %v8735 = vpow.pop %v8734
        %v8736 = vmul.f32 %v8691, 1.442695
        %v8737 = vpow.pop %v8736
        %v8738 = vmul.f32 %v8692, 1.442695
        %v8739 = vpow.pop %v8738
        %v8740 = vmul.f32 %v8693, 1.442695
        %v8741 = vpow.pop %v8740
        %v8742 = vmul.f32 %v8694, 1.442695
        %v8743 = vpow.pop %v8742
        %v8744 = vmul.f32 %v8695, 1.442695
        %v8745 = vpow.pop %v8744
        %v8746 = vmul.f32 %v8696, 1.442695
        %v8747 = vpow.pop %v8746
        %v8748 = vmul.f32 %v8697, 1.442695
        %v8749 = vpow.pop %v8748
        %v8750 = vmul.f32 %v8698, 1.442695
        %v8751 = vpow.pop %v8750
        %v8752 = vmul.f32 %v8699, 1.442695
        %v8753 = vpow.pop %v8752
        %v8754 = vmul.f32 %v8700, 1.442695
        %v8755 = vpow.pop %v8754
        %v8756 = vmul.f32 %v8701, 1.442695
        %v8757 = vpow.pop %v8756
        %v8758 = vmul.f32 %v8702, 1.442695
        %v8759 = vpow.pop %v8758
        %v8760 = vmul.f32 %v8703, 1.442695
        %v8761 = vpow.pop %v8760
        %v8762 = vmul.f32 %v8704, 1.442695
        %v8763 = vpow.pop %v8762
        %v8764 = vmul.f32 %v8705, 1.442695
        %v8765 = vpow.pop %v8764
        %v8766 = vmul.f32 %v8706, 1.442695
        %v8767 = vpow.pop %v8766
        %v8768 = vmul.f32 %v8707, 1.442695
        %v8769 = vpow.pop %v8768
        %v8770 = vmul.f32 %v8708, 1.442695
        %v8771 = vpow.pop %v8770
        %v8772 = vmul.f32 %v8709, 1.442695
        %v8773 = vpow.pop %v8772
        %v8774 = vadd.f32 %v8711, 1.0
        %v8775 = vadd.f32 %v8713, 1.0
        %v8776 = vadd.f32 %v8715, 1.0
        %v8777 = vadd.f32 %v8717, 1.0
        %v8778 = vadd.f32 %v8719, 1.0
        %v8779 = vadd.f32 %v8721, 1.0
        %v8780 = vadd.f32 %v8723, 1.0
        %v8781 = vadd.f32 %v8725, 1.0
        %v8782 = vadd.f32 %v8727, 1.0
        %v8783 = vadd.f32 %v8729, 1.0
        %v8784 = vadd.f32 %v8731, 1.0
        %v8785 = vadd.f32 %v8733, 1.0
        %v8786 = vadd.f32 %v8735, 1.0
        %v8787 = vadd.f32 %v8737, 1.0
        %v8788 = vadd.f32 %v8739, 1.0
        %v8789 = vadd.f32 %v8741, 1.0
        %v8790 = vadd.f32 %v8743, 1.0
        %v8791 = vadd.f32 %v8745, 1.0
        %v8792 = vadd.f32 %v8747, 1.0
        %v8793 = vadd.f32 %v8749, 1.0
        %v8794 = vadd.f32 %v8751, 1.0
        %v8795 = vadd.f32 %v8753, 1.0
        %v8796 = vadd.f32 %v8755, 1.0
        %v8797 = vadd.f32 %v8757, 1.0
        %v8798 = vadd.f32 %v8759, 1.0
        %v8799 = vadd.f32 %v8761, 1.0
        %v8800 = vadd.f32 %v8763, 1.0
        %v8801 = vadd.f32 %v8765, 1.0
        %v8802 = vadd.f32 %v8767, 1.0
        %v8803 = vadd.f32 %v8769, 1.0
        %v8804 = vadd.f32 %v8771, 1.0
        %v8805 = vadd.f32 %v8773, 1.0
        %v8806 = vrcp.pop %v8774
        %v8807 = vmul.f32 %v8774, %v8806
        %v8808 = vsub.f32 1.0, %v8807
        %v8809 = vmul.f32 %v8806, %v8808
        %v8810 = vadd.f32 %v8806, %v8809
        %vm8811 = vweird.f32 %v8774
        %vm8812 = vweird.f32 %v8806
        %vm8813 = vmor %vm8811, %vm8812
        %v8814 = vsel %vm8813, %v8806, %v8810
        %v8815 = vand.u32 2147483647, %v8774
        %vm8816 = vcmp.eq.f32.partialorder %v8815, 8.507059e+37
        %v8817 = vand.u32 %v8774, 2147483648
        %v8818 = vor.u32 1.1754944e-38, %v8817
        %v8819 = vsel %vm8816, %v8818, %v8814
        %v8820 = vmul.f32 1.0, %v8819
        %v8821 = vrcp.pop %v8775
        %v8822 = vmul.f32 %v8775, %v8821
        %v8823 = vsub.f32 1.0, %v8822
        %v8824 = vmul.f32 %v8821, %v8823
        %v8825 = vadd.f32 %v8821, %v8824
        %vm8826 = vweird.f32 %v8775
        %vm8827 = vweird.f32 %v8821
        %vm8828 = vmor %vm8826, %vm8827
        %v8829 = vsel %vm8828, %v8821, %v8825
        %v8830 = vand.u32 2147483647, %v8775
        %vm8831 = vcmp.eq.f32.partialorder %v8830, 8.507059e+37
        %v8832 = vand.u32 %v8775, 2147483648
        %v8833 = vor.u32 1.1754944e-38, %v8832
        %v8834 = vsel %vm8831, %v8833, %v8829
        %v8835 = vmul.f32 1.0, %v8834
        %v8836 = vrcp.pop %v8776
        %v8837 = vmul.f32 %v8776, %v8836
        %v8838 = vsub.f32 1.0, %v8837
        %v8839 = vmul.f32 %v8836, %v8838
        %v8840 = vadd.f32 %v8836, %v8839
        %vm8841 = vweird.f32 %v8776
        %vm8842 = vweird.f32 %v8836
        %vm8843 = vmor %vm8841, %vm8842
        %v8844 = vsel %vm8843, %v8836, %v8840
        %v8845 = vand.u32 2147483647, %v8776
        %vm8846 = vcmp.eq.f32.partialorder %v8845, 8.507059e+37
        %v8847 = vand.u32 %v8776, 2147483648
        %v8848 = vor.u32 1.1754944e-38, %v8847
        %v8849 = vsel %vm8846, %v8848, %v8844
        %v8850 = vmul.f32 1.0, %v8849
        %v8851 = vrcp.pop %v8777
        %v8852 = vmul.f32 %v8777, %v8851
        %v8853 = vsub.f32 1.0, %v8852
        %v8854 = vmul.f32 %v8851, %v8853
        %v8855 = vadd.f32 %v8851, %v8854
        %vm8856 = vweird.f32 %v8777
        %vm8857 = vweird.f32 %v8851
        %vm8858 = vmor %vm8856, %vm8857
        %v8859 = vsel %vm8858, %v8851, %v8855
        %v8860 = vand.u32 2147483647, %v8777
        %vm8861 = vcmp.eq.f32.partialorder %v8860, 8.507059e+37
        %v8862 = vand.u32 %v8777, 2147483648
        %v8863 = vor.u32 1.1754944e-38, %v8862
        %v8864 = vsel %vm8861, %v8863, %v8859
        %v8865 = vmul.f32 1.0, %v8864
        %v8866 = vrcp.pop %v8778
        %v8867 = vmul.f32 %v8778, %v8866
        %v8868 = vsub.f32 1.0, %v8867
        %v8869 = vmul.f32 %v8866, %v8868
        %v8870 = vadd.f32 %v8866, %v8869
        %vm8871 = vweird.f32 %v8778
        %vm8872 = vweird.f32 %v8866
        %vm8873 = vmor %vm8871, %vm8872
        %v8874 = vsel %vm8873, %v8866, %v8870
        %v8875 = vand.u32 2147483647, %v8778
        %vm8876 = vcmp.eq.f32.partialorder %v8875, 8.507059e+37
        %v8877 = vand.u32 %v8778, 2147483648
        %v8878 = vor.u32 1.1754944e-38, %v8877
        %v8879 = vsel %vm8876, %v8878, %v8874
        %v8880 = vmul.f32 1.0, %v8879
        %v8881 = vrcp.pop %v8779
        %v8882 = vmul.f32 %v8779, %v8881
        %v8883 = vsub.f32 1.0, %v8882
        %v8884 = vmul.f32 %v8881, %v8883
        %v8885 = vadd.f32 %v8881, %v8884
        %vm8886 = vweird.f32 %v8779
        %vm8887 = vweird.f32 %v8881
        %vm8888 = vmor %vm8886, %vm8887
        %v8889 = vsel %vm8888, %v8881, %v8885
        %v8890 = vand.u32 2147483647, %v8779
        %vm8891 = vcmp.eq.f32.partialorder %v8890, 8.507059e+37
        %v8892 = vand.u32 %v8779, 2147483648
        %v8893 = vor.u32 1.1754944e-38, %v8892
        %v8894 = vsel %vm8891, %v8893, %v8889
        %v8895 = vmul.f32 1.0, %v8894
        %v8896 = vrcp.pop %v8780
        %v8897 = vmul.f32 %v8780, %v8896
        %v8898 = vsub.f32 1.0, %v8897
        %v8899 = vmul.f32 %v8896, %v8898
        %v8900 = vadd.f32 %v8896, %v8899
        %vm8901 = vweird.f32 %v8780
        %vm8902 = vweird.f32 %v8896
        %vm8903 = vmor %vm8901, %vm8902
        %v8904 = vsel %vm8903, %v8896, %v8900
        %v8905 = vand.u32 2147483647, %v8780
        %vm8906 = vcmp.eq.f32.partialorder %v8905, 8.507059e+37
        %v8907 = vand.u32 %v8780, 2147483648
        %v8908 = vor.u32 1.1754944e-38, %v8907
        %v8909 = vsel %vm8906, %v8908, %v8904
        %v8910 = vmul.f32 1.0, %v8909
        %v8911 = vrcp.pop %v8781
        %v8912 = vmul.f32 %v8781, %v8911
        %v8913 = vsub.f32 1.0, %v8912
        %v8914 = vmul.f32 %v8911, %v8913
        %v8915 = vadd.f32 %v8911, %v8914
        %vm8916 = vweird.f32 %v8781
        %vm8917 = vweird.f32 %v8911
        %vm8918 = vmor %vm8916, %vm8917
        %v8919 = vsel %vm8918, %v8911, %v8915
        %v8920 = vand.u32 2147483647, %v8781
        %vm8921 = vcmp.eq.f32.partialorder %v8920, 8.507059e+37
        %v8922 = vand.u32 %v8781, 2147483648
        %v8923 = vor.u32 1.1754944e-38, %v8922
        %v8924 = vsel %vm8921, %v8923, %v8919
        %v8925 = vmul.f32 1.0, %v8924
        %v8926 = vrcp.pop %v8782
        %v8927 = vmul.f32 %v8782, %v8926
        %v8928 = vsub.f32 1.0, %v8927
        %v8929 = vmul.f32 %v8926, %v8928
        %v8930 = vadd.f32 %v8926, %v8929
        %vm8931 = vweird.f32 %v8782
        %vm8932 = vweird.f32 %v8926
        %vm8933 = vmor %vm8931, %vm8932
        %v8934 = vsel %vm8933, %v8926, %v8930
        %v8935 = vand.u32 2147483647, %v8782
        %vm8936 = vcmp.eq.f32.partialorder %v8935, 8.507059e+37
        %v8937 = vand.u32 %v8782, 2147483648
        %v8938 = vor.u32 1.1754944e-38, %v8937
        %v8939 = vsel %vm8936, %v8938, %v8934
        %v8940 = vmul.f32 1.0, %v8939
        %v8941 = vrcp.pop %v8783
        %v8942 = vmul.f32 %v8783, %v8941
        %v8943 = vsub.f32 1.0, %v8942
        %v8944 = vmul.f32 %v8941, %v8943
        %v8945 = vadd.f32 %v8941, %v8944
        %vm8946 = vweird.f32 %v8783
        %vm8947 = vweird.f32 %v8941
        %vm8948 = vmor %vm8946, %vm8947
        %v8949 = vsel %vm8948, %v8941, %v8945
        %v8950 = vand.u32 2147483647, %v8783
        %vm8951 = vcmp.eq.f32.partialorder %v8950, 8.507059e+37
        %v8952 = vand.u32 %v8783, 2147483648
        %v8953 = vor.u32 1.1754944e-38, %v8952
        %v8954 = vsel %vm8951, %v8953, %v8949
        %v8955 = vmul.f32 1.0, %v8954
        %v8956 = vrcp.pop %v8784
        %v8957 = vmul.f32 %v8784, %v8956
        %v8958 = vsub.f32 1.0, %v8957
        %v8959 = vmul.f32 %v8956, %v8958
        %v8960 = vadd.f32 %v8956, %v8959
        %vm8961 = vweird.f32 %v8784
        %vm8962 = vweird.f32 %v8956
        %vm8963 = vmor %vm8961, %vm8962
        %v8964 = vsel %vm8963, %v8956, %v8960
        %v8965 = vand.u32 2147483647, %v8784
        %vm8966 = vcmp.eq.f32.partialorder %v8965, 8.507059e+37
        %v8967 = vand.u32 %v8784, 2147483648
        %v8968 = vor.u32 1.1754944e-38, %v8967
        %v8969 = vsel %vm8966, %v8968, %v8964
        %v8970 = vmul.f32 1.0, %v8969
        %v8971 = vrcp.pop %v8785
        %v8972 = vmul.f32 %v8785, %v8971
        %v8973 = vsub.f32 1.0, %v8972
        %v8974 = vmul.f32 %v8971, %v8973
        %v8975 = vadd.f32 %v8971, %v8974
        %vm8976 = vweird.f32 %v8785
        %vm8977 = vweird.f32 %v8971
        %vm8978 = vmor %vm8976, %vm8977
        %v8979 = vsel %vm8978, %v8971, %v8975
        %v8980 = vand.u32 2147483647, %v8785
        %vm8981 = vcmp.eq.f32.partialorder %v8980, 8.507059e+37
        %v8982 = vand.u32 %v8785, 2147483648
        %v8983 = vor.u32 1.1754944e-38, %v8982
        %v8984 = vsel %vm8981, %v8983, %v8979
        %v8985 = vmul.f32 1.0, %v8984
        %v8986 = vrcp.pop %v8786
        %v8987 = vmul.f32 %v8786, %v8986
        %v8988 = vsub.f32 1.0, %v8987
        %v8989 = vmul.f32 %v8986, %v8988
        %v8990 = vadd.f32 %v8986, %v8989
        %vm8991 = vweird.f32 %v8786
        %vm8992 = vweird.f32 %v8986
        %vm8993 = vmor %vm8991, %vm8992
        %v8994 = vsel %vm8993, %v8986, %v8990
        %v8995 = vand.u32 2147483647, %v8786
        %vm8996 = vcmp.eq.f32.partialorder %v8995, 8.507059e+37
        %v8997 = vand.u32 %v8786, 2147483648
        %v8998 = vor.u32 1.1754944e-38, %v8997
        %v8999 = vsel %vm8996, %v8998, %v8994
        %v9000 = vmul.f32 1.0, %v8999
        %v9001 = vrcp.pop %v8787
        %v9002 = vmul.f32 %v8787, %v9001
        %v9003 = vsub.f32 1.0, %v9002
        %v9004 = vmul.f32 %v9001, %v9003
        %v9005 = vadd.f32 %v9001, %v9004
        %vm9006 = vweird.f32 %v8787
        %vm9007 = vweird.f32 %v9001
        %vm9008 = vmor %vm9006, %vm9007
        %v9009 = vsel %vm9008, %v9001, %v9005
        %v9010 = vand.u32 2147483647, %v8787
        %vm9011 = vcmp.eq.f32.partialorder %v9010, 8.507059e+37
        %v9012 = vand.u32 %v8787, 2147483648
        %v9013 = vor.u32 1.1754944e-38, %v9012
        %v9014 = vsel %vm9011, %v9013, %v9009
        %v9015 = vmul.f32 1.0, %v9014
        %v9016 = vrcp.pop %v8788
        %v9017 = vmul.f32 %v8788, %v9016
        %v9018 = vsub.f32 1.0, %v9017
        %v9019 = vmul.f32 %v9016, %v9018
        %v9020 = vadd.f32 %v9016, %v9019
        %vm9021 = vweird.f32 %v8788
        %vm9022 = vweird.f32 %v9016
        %vm9023 = vmor %vm9021, %vm9022
        %v9024 = vsel %vm9023, %v9016, %v9020
        %v9025 = vand.u32 2147483647, %v8788
        %vm9026 = vcmp.eq.f32.partialorder %v9025, 8.507059e+37
        %v9027 = vand.u32 %v8788, 2147483648
        %v9028 = vor.u32 1.1754944e-38, %v9027
        %v9029 = vsel %vm9026, %v9028, %v9024
        %v9030 = vmul.f32 1.0, %v9029
        %v9031 = vrcp.pop %v8789
        %v9032 = vmul.f32 %v8789, %v9031
        %v9033 = vsub.f32 1.0, %v9032
        %v9034 = vmul.f32 %v9031, %v9033
        %v9035 = vadd.f32 %v9031, %v9034
        %vm9036 = vweird.f32 %v8789
        %vm9037 = vweird.f32 %v9031
        %vm9038 = vmor %vm9036, %vm9037
        %v9039 = vsel %vm9038, %v9031, %v9035
        %v9040 = vand.u32 2147483647, %v8789
        %vm9041 = vcmp.eq.f32.partialorder %v9040, 8.507059e+37
        %v9042 = vand.u32 %v8789, 2147483648
        %v9043 = vor.u32 1.1754944e-38, %v9042
        %v9044 = vsel %vm9041, %v9043, %v9039
        %v9045 = vmul.f32 1.0, %v9044
        %v9046 = vrcp.pop %v8790
        %v9047 = vmul.f32 %v8790, %v9046
        %v9048 = vsub.f32 1.0, %v9047
        %v9049 = vmul.f32 %v9046, %v9048
        %v9050 = vadd.f32 %v9046, %v9049
        %vm9051 = vweird.f32 %v8790
        %vm9052 = vweird.f32 %v9046
        %vm9053 = vmor %vm9051, %vm9052
        %v9054 = vsel %vm9053, %v9046, %v9050
        %v9055 = vand.u32 2147483647, %v8790
        %vm9056 = vcmp.eq.f32.partialorder %v9055, 8.507059e+37
        %v9057 = vand.u32 %v8790, 2147483648
        %v9058 = vor.u32 1.1754944e-38, %v9057
        %v9059 = vsel %vm9056, %v9058, %v9054
        %v9060 = vmul.f32 1.0, %v9059
        %v9061 = vrcp.pop %v8791
        %v9062 = vmul.f32 %v8791, %v9061
        %v9063 = vsub.f32 1.0, %v9062
        %v9064 = vmul.f32 %v9061, %v9063
        %v9065 = vadd.f32 %v9061, %v9064
        %vm9066 = vweird.f32 %v8791
        %vm9067 = vweird.f32 %v9061
        %vm9068 = vmor %vm9066, %vm9067
        %v9069 = vsel %vm9068, %v9061, %v9065
        %v9070 = vand.u32 2147483647, %v8791
        %vm9071 = vcmp.eq.f32.partialorder %v9070, 8.507059e+37
        %v9072 = vand.u32 %v8791, 2147483648
        %v9073 = vor.u32 1.1754944e-38, %v9072
        %v9074 = vsel %vm9071, %v9073, %v9069
        %v9075 = vmul.f32 1.0, %v9074
        %v9076 = vrcp.pop %v8792
        %v9077 = vmul.f32 %v8792, %v9076
        %v9078 = vsub.f32 1.0, %v9077
        %v9079 = vmul.f32 %v9076, %v9078
        %v9080 = vadd.f32 %v9076, %v9079
        %vm9081 = vweird.f32 %v8792
        %vm9082 = vweird.f32 %v9076
        %vm9083 = vmor %vm9081, %vm9082
        %v9084 = vsel %vm9083, %v9076, %v9080
        %v9085 = vand.u32 2147483647, %v8792
        %vm9086 = vcmp.eq.f32.partialorder %v9085, 8.507059e+37
        %v9087 = vand.u32 %v8792, 2147483648
        %v9088 = vor.u32 1.1754944e-38, %v9087
        %v9089 = vsel %vm9086, %v9088, %v9084
        %v9090 = vmul.f32 1.0, %v9089
        %v9091 = vrcp.pop %v8793
        %v9092 = vmul.f32 %v8793, %v9091
        %v9093 = vsub.f32 1.0, %v9092
        %v9094 = vmul.f32 %v9091, %v9093
        %v9095 = vadd.f32 %v9091, %v9094
        %vm9096 = vweird.f32 %v8793
        %vm9097 = vweird.f32 %v9091
        %vm9098 = vmor %vm9096, %vm9097
        %v9099 = vsel %vm9098, %v9091, %v9095
        %v9100 = vand.u32 2147483647, %v8793
        %vm9101 = vcmp.eq.f32.partialorder %v9100, 8.507059e+37
        %v9102 = vand.u32 %v8793, 2147483648
        %v9103 = vor.u32 1.1754944e-38, %v9102
        %v9104 = vsel %vm9101, %v9103, %v9099
        %v9105 = vmul.f32 1.0, %v9104
        %v9106 = vrcp.pop %v8794
        %v9107 = vmul.f32 %v8794, %v9106
        %v9108 = vsub.f32 1.0, %v9107
        %v9109 = vmul.f32 %v9106, %v9108
        %v9110 = vadd.f32 %v9106, %v9109
        %vm9111 = vweird.f32 %v8794
        %vm9112 = vweird.f32 %v9106
        %vm9113 = vmor %vm9111, %vm9112
        %v9114 = vsel %vm9113, %v9106, %v9110
        %v9115 = vand.u32 2147483647, %v8794
        %vm9116 = vcmp.eq.f32.partialorder %v9115, 8.507059e+37
        %v9117 = vand.u32 %v8794, 2147483648
        %v9118 = vor.u32 1.1754944e-38, %v9117
        %v9119 = vsel %vm9116, %v9118, %v9114
        %v9120 = vmul.f32 1.0, %v9119
        %v9121 = vrcp.pop %v8795
        %v9122 = vmul.f32 %v8795, %v9121
        %v9123 = vsub.f32 1.0, %v9122
        %v9124 = vmul.f32 %v9121, %v9123
        %v9125 = vadd.f32 %v9121, %v9124
        %vm9126 = vweird.f32 %v8795
        %vm9127 = vweird.f32 %v9121
        %vm9128 = vmor %vm9126, %vm9127
        %v9129 = vsel %vm9128, %v9121, %v9125
        %v9130 = vand.u32 2147483647, %v8795
        %vm9131 = vcmp.eq.f32.partialorder %v9130, 8.507059e+37
        %v9132 = vand.u32 %v8795, 2147483648
        %v9133 = vor.u32 1.1754944e-38, %v9132
        %v9134 = vsel %vm9131, %v9133, %v9129
        %v9135 = vmul.f32 1.0, %v9134
        %v9136 = vrcp.pop %v8796
        %v9137 = vmul.f32 %v8796, %v9136
        %v9138 = vsub.f32 1.0, %v9137
        %v9139 = vmul.f32 %v9136, %v9138
        %v9140 = vadd.f32 %v9136, %v9139
        %vm9141 = vweird.f32 %v8796
        %vm9142 = vweird.f32 %v9136
        %vm9143 = vmor %vm9141, %vm9142
        %v9144 = vsel %vm9143, %v9136, %v9140
        %v9145 = vand.u32 2147483647, %v8796
        %vm9146 = vcmp.eq.f32.partialorder %v9145, 8.507059e+37
        %v9147 = vand.u32 %v8796, 2147483648
        %v9148 = vor.u32 1.1754944e-38, %v9147
        %v9149 = vsel %vm9146, %v9148, %v9144
        %v9150 = vmul.f32 1.0, %v9149
        %v9151 = vrcp.pop %v8797
        %v9152 = vmul.f32 %v8797, %v9151
        %v9153 = vsub.f32 1.0, %v9152
        %v9154 = vmul.f32 %v9151, %v9153
        %v9155 = vadd.f32 %v9151, %v9154
        %vm9156 = vweird.f32 %v8797
        %vm9157 = vweird.f32 %v9151
        %vm9158 = vmor %vm9156, %vm9157
        %v9159 = vsel %vm9158, %v9151, %v9155
        %v9160 = vand.u32 2147483647, %v8797
        %vm9161 = vcmp.eq.f32.partialorder %v9160, 8.507059e+37
        %v9162 = vand.u32 %v8797, 2147483648
        %v9163 = vor.u32 1.1754944e-38, %v9162
        %v9164 = vsel %vm9161, %v9163, %v9159
        %v9165 = vmul.f32 1.0, %v9164
        %v9166 = vrcp.pop %v8798
        %v9167 = vmul.f32 %v8798, %v9166
        %v9168 = vsub.f32 1.0, %v9167
        %v9169 = vmul.f32 %v9166, %v9168
        %v9170 = vadd.f32 %v9166, %v9169
        %vm9171 = vweird.f32 %v8798
        %vm9172 = vweird.f32 %v9166
        %vm9173 = vmor %vm9171, %vm9172
        %v9174 = vsel %vm9173, %v9166, %v9170
        %v9175 = vand.u32 2147483647, %v8798
        %vm9176 = vcmp.eq.f32.partialorder %v9175, 8.507059e+37
        %v9177 = vand.u32 %v8798, 2147483648
        %v9178 = vor.u32 1.1754944e-38, %v9177
        %v9179 = vsel %vm9176, %v9178, %v9174
        %v9180 = vmul.f32 1.0, %v9179
        %v9181 = vrcp.pop %v8799
        %v9182 = vmul.f32 %v8799, %v9181
        %v9183 = vsub.f32 1.0, %v9182
        %v9184 = vmul.f32 %v9181, %v9183
        %v9185 = vadd.f32 %v9181, %v9184
        %vm9186 = vweird.f32 %v8799
        %vm9187 = vweird.f32 %v9181
        %vm9188 = vmor %vm9186, %vm9187
        %v9189 = vsel %vm9188, %v9181, %v9185
        %v9190 = vand.u32 2147483647, %v8799
        %vm9191 = vcmp.eq.f32.partialorder %v9190, 8.507059e+37
        %v9192 = vand.u32 %v8799, 2147483648
        %v9193 = vor.u32 1.1754944e-38, %v9192
        %v9194 = vsel %vm9191, %v9193, %v9189
        %v9195 = vmul.f32 1.0, %v9194
        %v9196 = vrcp.pop %v8800
        %v9197 = vmul.f32 %v8800, %v9196
        %v9198 = vsub.f32 1.0, %v9197
        %v9199 = vmul.f32 %v9196, %v9198
        %v9200 = vadd.f32 %v9196, %v9199
        %vm9201 = vweird.f32 %v8800
        %vm9202 = vweird.f32 %v9196
        %vm9203 = vmor %vm9201, %vm9202
        %v9204 = vsel %vm9203, %v9196, %v9200
        %v9205 = vand.u32 2147483647, %v8800
        %vm9206 = vcmp.eq.f32.partialorder %v9205, 8.507059e+37
        %v9207 = vand.u32 %v8800, 2147483648
        %v9208 = vor.u32 1.1754944e-38, %v9207
        %v9209 = vsel %vm9206, %v9208, %v9204
        %v9210 = vmul.f32 1.0, %v9209
        %v9211 = vrcp.pop %v8801
        %v9212 = vmul.f32 %v8801, %v9211
        %v9213 = vsub.f32 1.0, %v9212
        %v9214 = vmul.f32 %v9211, %v9213
        %v9215 = vadd.f32 %v9211, %v9214
        %vm9216 = vweird.f32 %v8801
        %vm9217 = vweird.f32 %v9211
        %vm9218 = vmor %vm9216, %vm9217
        %v9219 = vsel %vm9218, %v9211, %v9215
        %v9220 = vand.u32 2147483647, %v8801
        %vm9221 = vcmp.eq.f32.partialorder %v9220, 8.507059e+37
        %v9222 = vand.u32 %v8801, 2147483648
        %v9223 = vor.u32 1.1754944e-38, %v9222
        %v9224 = vsel %vm9221, %v9223, %v9219
        %v9225 = vmul.f32 1.0, %v9224
        %v9226 = vrcp.pop %v8802
        %v9227 = vmul.f32 %v8802, %v9226
        %v9228 = vsub.f32 1.0, %v9227
        %v9229 = vmul.f32 %v9226, %v9228
        %v9230 = vadd.f32 %v9226, %v9229
        %vm9231 = vweird.f32 %v8802
        %vm9232 = vweird.f32 %v9226
        %vm9233 = vmor %vm9231, %vm9232
        %v9234 = vsel %vm9233, %v9226, %v9230
        %v9235 = vand.u32 2147483647, %v8802
        %vm9236 = vcmp.eq.f32.partialorder %v9235, 8.507059e+37
        %v9237 = vand.u32 %v8802, 2147483648
        %v9238 = vor.u32 1.1754944e-38, %v9237
        %v9239 = vsel %vm9236, %v9238, %v9234
        %v9240 = vmul.f32 1.0, %v9239
        %v9241 = vrcp.pop %v8803
        %v9242 = vmul.f32 %v8803, %v9241
        %v9243 = vsub.f32 1.0, %v9242
        %v9244 = vmul.f32 %v9241, %v9243
        %v9245 = vadd.f32 %v9241, %v9244
        %vm9246 = vweird.f32 %v8803
        %vm9247 = vweird.f32 %v9241
        %vm9248 = vmor %vm9246, %vm9247
        %v9249 = vsel %vm9248, %v9241, %v9245
        %v9250 = vand.u32 2147483647, %v8803
        %vm9251 = vcmp.eq.f32.partialorder %v9250, 8.507059e+37
        %v9252 = vand.u32 %v8803, 2147483648
        %v9253 = vor.u32 1.1754944e-38, %v9252
        %v9254 = vsel %vm9251, %v9253, %v9249
        %v9255 = vmul.f32 1.0, %v9254
        %v9256 = vrcp.pop %v8804
        %v9257 = vmul.f32 %v8804, %v9256
        %v9258 = vsub.f32 1.0, %v9257
        %v9259 = vmul.f32 %v9256, %v9258
        %v9260 = vadd.f32 %v9256, %v9259
        %vm9261 = vweird.f32 %v8804
        %vm9262 = vweird.f32 %v9256
        %vm9263 = vmor %vm9261, %vm9262
        %v9264 = vsel %vm9263, %v9256, %v9260
        %v9265 = vand.u32 2147483647, %v8804
        %vm9266 = vcmp.eq.f32.partialorder %v9265, 8.507059e+37
        %v9267 = vand.u32 %v8804, 2147483648
        %v9268 = vor.u32 1.1754944e-38, %v9267
        %v9269 = vsel %vm9266, %v9268, %v9264
        %v9270 = vmul.f32 1.0, %v9269
        %v9271 = vrcp.pop %v8805
        %v9272 = vmul.f32 %v8805, %v9271
        %v9273 = vsub.f32 1.0, %v9272
        %v9274 = vmul.f32 %v9271, %v9273
        %v9275 = vadd.f32 %v9271, %v9274
        %vm9276 = vweird.f32 %v8805
        %vm9277 = vweird.f32 %v9271
        %vm9278 = vmor %vm9276, %vm9277
        %v9279 = vsel %vm9278, %v9271, %v9275
        %v9280 = vand.u32 2147483647, %v8805
        %vm9281 = vcmp.eq.f32.partialorder %v9280, 8.507059e+37
        %v9282 = vand.u32 %v8805, 2147483648
        %v9283 = vor.u32 1.1754944e-38, %v9282
        %v9284 = vsel %vm9281, %v9283, %v9279
        %v9285 = vmul.f32 1.0, %v9284
        %v9286 = vmul.f32 %v8820, %v3636
        %v9287 = vmul.f32 %v8835, %v3637
        %v9288 = vmul.f32 %v8850, %v3638
        %v9289 = vmul.f32 %v8865, %v3639
        %v9290 = vmul.f32 %v8880, %v3640
        %v9291 = vmul.f32 %v8895, %v3641
        %v9292 = vmul.f32 %v8910, %v3642
        %v9293 = vmul.f32 %v8925, %v3643
        %v9294 = vmul.f32 %v8940, %v3644
        %v9295 = vmul.f32 %v8955, %v3645
        %v9296 = vmul.f32 %v8970, %v3646
        %v9297 = vmul.f32 %v8985, %v3647
        %v9298 = vmul.f32 %v9000, %v3648
        %v9299 = vmul.f32 %v9015, %v3649
        %v9300 = vmul.f32 %v9030, %v3650
        %v9301 = vmul.f32 %v9045, %v3651
        %v9302 = vmul.f32 %v9060, %v3652
        %v9303 = vmul.f32 %v9075, %v3653
        %v9304 = vmul.f32 %v9090, %v3654
        %v9305 = vmul.f32 %v9105, %v3655
        %v9306 = vmul.f32 %v9120, %v3656
        %v9307 = vmul.f32 %v9135, %v3657
        %v9308 = vmul.f32 %v9150, %v3658
        %v9309 = vmul.f32 %v9165, %v3659
        %v9310 = vmul.f32 %v9180, %v3660
        %v9311 = vmul.f32 %v9195, %v3661
        %v9312 = vmul.f32 %v9210, %v3662
        %v9313 = vmul.f32 %v9225, %v3663
        %v9314 = vmul.f32 %v9240, %v3664
        %v9315 = vmul.f32 %v9255, %v3665
        %v9316 = vmul.f32 %v9270, %v3666
        %v9317 = vmul.f32 %v9285, %v3667
        %9318 = vst.msk [vmem:[%s483] sm:$0xff] %vm484, %v9286
        %9319 = vst.msk [vmem:[%s483 + $0x8] sm:$0xff] %vm484, %v9287
        %9320 = vst.msk [vmem:[%s483 + $0x10] sm:$0xff] %vm484, %v9288
        %9321 = vst.msk [vmem:[%s483 + $0x18] sm:$0xff] %vm484, %v9289
        %9322 = vst.msk [vmem:[%s483 + $0x20] sm:$0xff] %vm484, %v9290
        %9323 = vst.msk [vmem:[%s483 + $0x28] sm:$0xff] %vm484, %v9291
        %9324 = vst.msk [vmem:[%s483 + $0x30] sm:$0xff] %vm484, %v9292
        %9325 = vst.msk [vmem:[%s483 + $0x38] sm:$0xff] %vm484, %v9293
        %9326 = vst.msk [vmem:[%s483 + $0x40] sm:$0xff] %vm484, %v9294
        %9327 = vst.msk [vmem:[%s483 + $0x48] sm:$0xff] %vm484, %v9295
        %9328 = vst.msk [vmem:[%s483 + $0x50] sm:$0xff] %vm484, %v9296
        %9329 = vst.msk [vmem:[%s483 + $0x58] sm:$0xff] %vm484, %v9297
        %9330 = vst.msk [vmem:[%s483 + $0x60] sm:$0xff] %vm484, %v9298
        %9331 = vst.msk [vmem:[%s483 + $0x68] sm:$0xff] %vm484, %v9299
        %9332 = vst.msk [vmem:[%s483 + $0x70] sm:$0xff] %vm484, %v9300
        %9333 = vst.msk [vmem:[%s483 + $0x78] sm:$0xff] %vm484, %v9301
        %9334 = vst.msk [vmem:[%s483 + $0x80] sm:$0xff] %vm484, %v9302
        %9335 = vst.msk [vmem:[%s483 + $0x88] sm:$0xff] %vm484, %v9303
        %9336 = vst.msk [vmem:[%s483 + $0x90] sm:$0xff] %vm484, %v9304
        %9337 = vst.msk [vmem:[%s483 + $0x98] sm:$0xff] %vm484, %v9305
        %9338 = vst.msk [vmem:[%s483 + $0xa0] sm:$0xff] %vm484, %v9306
        %9339 = vst.msk [vmem:[%s483 + $0xa8] sm:$0xff] %vm484, %v9307
        %9340 = vst.msk [vmem:[%s483 + $0xb0] sm:$0xff] %vm484, %v9308
        %9341 = vst.msk [vmem:[%s483 + $0xb8] sm:$0xff] %vm484, %v9309
        %9342 = vst.msk [vmem:[%s483 + $0xc0] sm:$0xff] %vm484, %v9310
        %9343 = vst.msk [vmem:[%s483 + $0xc8] sm:$0xff] %vm484, %v9311
        %9344 = vst.msk [vmem:[%s483 + $0xd0] sm:$0xff] %vm484, %v9312
        %9345 = vst.msk [vmem:[%s483 + $0xd8] sm:$0xff] %vm484, %v9313
        %9346 = vst.msk [vmem:[%s483 + $0xe0] sm:$0xff] %vm484, %v9314
        %9347 = vst.msk [vmem:[%s483 + $0xe8] sm:$0xff] %vm484, %v9315
        %9348 = vst.msk [vmem:[%s483 + $0xf0] sm:$0xff] %vm484, %v9316
        %9349 = vst.msk [vmem:[%s483 + $0xf8] sm:$0xff] %vm484, %v9317
        %p9350 = scmp.lt.s32.totalorder %s29, 1
        %s9351 = scalar_select %p9350, %s29, 1
        %s9352 = smul.addr %s9351, 32
        %s9353 = smul.addr %s9352, 8
        %s9354 = scalar_lea.vmem %s11, %s9353
        // Predicated region
        $region81: #{tpu_custom_call.1} parent=63 // pred_check
          %p9355 = pneg %p288
        $region82: #{tpu_custom_call.1} parent=63 // pred_check_branch
          %9357 = sbr.rel (%p9355) target = $region84
        $region83: #{tpu_custom_call.1} parent=63 // pred_region
          _
        $region84: #{tpu_custom_call.1} parent=63 // pred_fallthru
          _
      $region64: #{tpu_custom_call.1} parent=5 // pred_fallthru
        _
      %p9358 = scmp.le.s32.totalorder 2, %s24
      // Predicated region
      $region85: #{tpu_custom_call.1} parent=5 // pred_check
        %p9359 = pneg %p9358
      $region86: #{tpu_custom_call.1} parent=5 // pred_check_branch
        %9361 = sbr.rel (%p9359) target = $region88
      $region87: #{tpu_custom_call.1} parent=5 // pred_region
        %s9362 = ssub.s32 %s24, 2
        // Predicated region
        $region89: #{tpu_custom_call.1} parent=87 // pred_check
          %p9363 = pneg %p294
        $region90: #{tpu_custom_call.1} parent=87 // pred_check_branch
          %9365 = sbr.rel (%p9363) target = $region92
        $region91: #{tpu_custom_call.1} parent=87 // pred_region
          %p9366 = scmp.lt.s32.totalorder %s30, 1
          %s9367 = scalar_select %p9366, %s30, 1
          %s9368 = smul.addr %s9367, 32
          %s9369 = smul.addr %s9368, 8
          %s9370 = scalar_lea.vmem %s11, %s9369
        $region92: #{tpu_custom_call.1} parent=87 // pred_fallthru
          _
      $region88: #{tpu_custom_call.1} parent=5 // pred_fallthru
        _
    $region6: #{tpu_custom_call.1} parent=1 // loop_footer
      %s28 = sadd.s32 1, %s24
    $region7: #{tpu_custom_call.1} parent=1 // loop_footer_branch
      %23 = sbr.rel target = $region3
    $region8: #{tpu_custom_call.1} parent=1 // loop_exit
      _
    %9371 = vsyncpa [#allocation5], 1
    %s9372 = scalar_lea.sflag [#allocation5], 1
    %9373 = vsyncpa %s9372, 1
    %9374 = vsyncpa [#allocation7], 1
    %s9375 = scalar_lea.sflag [#allocation7], 1
    %9376 = vsyncpa %s9375, 1
    %9377 = vsyncpa [#allocation10], 1

</llo_original>
